<compile_context>
chip_gen: v6e
topology: v6e:2x2x1
jax: 0.10.0
libtpu: 0.0.40
codegen_flags: <defaults>
</compile_context>

<pallas_src>
import math

import numpy as np

import jax
import jax.numpy as jnp
from jax.experimental import pallas as pl
from jax.experimental.pallas import tpu as pltpu

# ----------------------------- model sizes ---------------------------------
EDIM = 32
CATEGORICAL_DIM = 8
LATENT_DIM = EDIM // CATEGORICAL_DIM      # 4
USER_NUM = 20
ITEM_NUM = 30
RATE_NUM = 6
NEG_SLOPE = 0.1                           # AttnLayer uses LeakyReLU(0.1)

F32 = jnp.float32
_VMEM = pl.BlockSpec(memory_space=pltpu.MemorySpace.VMEM)


# --------------------------- in-kernel helpers ------------------------------

def _dot(a, b):
    return jnp.dot(a, b, preferred_element_type=jnp.float32)


def _relu(x):
    return jnp.maximum(x, 0.0)


def _leaky(x):
    return jnp.where(x >= 0.0, x, NEG_SLOPE * x)


# ------------------------- packed parameter layout ---------------------------
# Every (D,D) weight matrix lives in one slab (stacked along rows, 32-row blocks,
# tile-aligned); every bias / (D,1) row-vector lives in a second (n_vec, D) slab.

def _build_layout():
    mat_names, vec_names = [], []
    for p in ("su", "gu"):                                   # strategy / generation encoders
        mat_names += [p + "_rate_wi", p + "_rate_wr"]
        vec_names += [p + "_rate_b"]
        for a in (p + "_ia", p + "_ua"):                     # item / social attention
            mat_names += [a + "_w1i", a + "_w1u", a + "_w2"]
            vec_names += [a + "_b1", a + "_b2", a + "_w3"]
        mat_names += [p + "_fuse_wa", p + "_fuse_wb", p + "_self_wa", p + "_self_wb",
                      p + "_unexp_w", p + "_exp_w"]
        vec_names += [p + "_fuse_b", p + "_self_b", p + "_unexp_b", p + "_exp_b"]
    mat_names += ["st_ie1_w", "st_ie2_w", "st_um_wu", "st_um_wi", "st_em_wu", "st_em_wi"]
    vec_names += ["st_ie1_b", "st_ie2_b", "st_um_b", "st_em_b"]
    mat_names += ["ex_w1u", "ex_w1i", "ex_w1s"]
    vec_names += ["ex_b1", "ex_w2"]
    mat_names += ["rt_im1_w", "rt_im2_w"]
    vec_names += ["rt_im1_b", "rt_im2_b"]
    for p in ("rt_un", "rt_ex"):
        mat_names += [p + "_w1u", p + "_w1i", p + "_w1s", p + "_w2"]
        vec_names += [p + "_b1", p + "_b2", p + "_w3"]
    vec_names += ["scalars"]                                 # [expo_b2, rate_un_b3, rate_ex_b3, 0...]
    return tuple(mat_names), tuple(vec_names)


_MAT_NAMES, _VEC_NAMES = _build_layout()
_MI = {n: i for i, n in enumerate(_MAT_NAMES)}
_VI = {n: i for i, n in enumerate(_VEC_NAMES)}


def pack_params(params):
    """Pack all weights into two VMEM slabs.  Called once, OUTSIDE the jitted forward."""
    D = EDIM
    mats, vecs = {}, {}

    def put_lin2(wa, wb, bname, lin):
        mats[wa] = lin["w"][:D]
        mats[wb] = lin["w"][D:]
        vecs[bname] = lin["b"]

    def put_enc(p, enc):
        put_lin2(p + "_rate_wi", p + "_rate_wr", p + "_rate_b", enc["rate_lin"])
        for a, key in ((p + "_ia", "item_attn"), (p + "_ua", "user_attn")):
            blk = enc[key]
            put_lin2(a + "_w1i", a + "_w1u", a + "_b1", blk["attn1"])
            mats[a + "_w2"] = blk["attn2"]["w"]
            vecs[a + "_b2"] = blk["attn2"]["b"]
            vecs[a + "_w3"] = blk["attn3"]["w"][:, 0]
            # attn3 bias intentionally dropped: softmax over positions is shift-invariant.
        put_lin2(p + "_fuse_wa", p + "_fuse_wb", p + "_fuse_b", enc["fuse_lin"])
        put_lin2(p + "_self_wa", p + "_self_wb", p + "_self_b", enc["self_lin"])
        mats[p + "_unexp_w"] = enc["unexp_lin"]["w"]
        vecs[p + "_unexp_b"] = enc["unexp_lin"]["b"]
        mats[p + "_exp_w"] = enc["exp_lin"]["w"]
        vecs[p + "_exp_b"] = enc["exp_lin"]["b"]

    put_enc("su", params["strategy_encoder"]["s_user_encoder"])
    put_enc("gu", params["user_encoder"])

    sp = params["strategy_encoder"]
    mats["st_ie1_w"] = sp["s_item_enc1"]["w"]
    vecs["st_ie1_b"] = sp["s_item_enc1"]["b"]
    mats["st_ie2_w"] = sp["s_item_enc2"]["w"]
    vecs["st_ie2_b"] = sp["s_item_enc2"]["b"]
    put_lin2("st_um_wu", "st_um_wi", "st_um_b", sp["unexp_merge"])
    put_lin2("st_em_wu", "st_em_wi", "st_em_b", sp["exp_merge"])

    ep = params["exposure_predictor"]
    w = ep["l1"]["w"]
    mats["ex_w1u"], mats["ex_w1i"], mats["ex_w1s"] = w[:D], w[D:2 * D], w[2 * D:]
    vecs["ex_b1"] = ep["l1"]["b"]
    vecs["ex_w2"] = ep["l2"]["w"][:, 0]

    rp = params["rate_predictor"]
    mats["rt_im1_w"] = rp["item_mlp1"]["w"]
    vecs["rt_im1_b"] = rp["item_mlp1"]["b"]
    mats["rt_im2_w"] = rp["item_mlp2"]["w"]
    vecs["rt_im2_b"] = rp["item_mlp2"]["b"]
    for p, key in (("rt_un", "unexp"), ("rt_ex", "exp")):
        layers = rp[key]
        w = layers[0]["w"]
        mats[p + "_w1u"], mats[p + "_w1i"], mats[p + "_w1s"] = w[:D], w[D:2 * D], w[2 * D:]
        vecs[p + "_b1"] = layers[0]["b"]
        mats[p + "_w2"] = layers[1]["w"]
        vecs[p + "_b2"] = layers[1]["b"]
        vecs[p + "_w3"] = layers[2]["w"][:, 0]

    scal = jnp.zeros((D,), F32)
    scal = scal.at[0].set(ep["l2"]["b"][0])
    scal = scal.at[1].set(rp["unexp"][2]["b"][0])
    scal = scal.at[2].set(rp["exp"][2]["b"][0])
    vecs["scalars"] = scal

    mat_slab = jnp.concatenate([mats[n] for n in _MAT_NAMES], axis=0)   # (47*D, D)
    vec_slab = jnp.stack([vecs[n] for n in _VEC_NAMES], axis=0)         # (n_vec, D)
    return mat_slab, vec_slab


# ============================= the fused kernel ==============================

def _rest_kernel(idx_hist_ref, idx_nbr_ref, idx_uie_ref,
                 hist_mask_ref, nbrs_mask_ref, gumbel_ref,
                 user_tab_ref, item_tab_ref, rate_tab_ref,
                 mats_ref, vecs_ref, out_ref):
    B, L = hist_mask_ref.shape
    Nn = nbrs_mask_ref.shape[1]
    n_user, D = user_tab_ref.shape
    n_item = item_tab_ref.shape[0]
    n_rate = rate_tab_ref.shape[0]
    C = CATEGORICAL_DIM

    def M(name):                                   # (D, D) weight, tile-aligned slice
        r = _MI[name] * D
        return mats_ref[r:r + D, :]

    def V(name):                                   # (1, D) bias / row vector
        r = _VI[name]
        return vecs_ref[r:r + 1, :]

    user_tab = user_tab_ref[...]
    item_tab = item_tab_ref[...]
    rate_tab = rate_tab_ref[...]

    def onehot(idx_col, n_rows):                   # (N,1) int32 -> (N, n_rows) f32
        iota = jax.lax.broadcasted_iota(jnp.int32, (idx_col.shape[0], n_rows), 1)
        return (idx_col == iota).astype(jnp.float32)

    idx_hist = idx_hist_ref[...]                   # (B*L, 2)  [item, rate]
    idx_nbr = idx_nbr_ref[...]                     # (B*Nn, 2) [pos, neg]
    idx_uie = idx_uie_ref[...]                     # (B, 3)    [user, exp_item, unexp_item]

    # ---- embedding lookups (one_hot @ table on the MXU, exact row selection) ----
    hist_item_e = _dot(onehot(idx_hist[:, 0:1], n_item), item_tab)     # (B*L, D)
    hist_rate_e = _dot(onehot(idx_hist[:, 1:2], n_rate), rate_tab)     # (B*L, D)
    pos_nbr_e = _dot(onehot(idx_nbr[:, 0:1], n_user), user_tab)        # (B*Nn, D)
    neg_nbr_e = _dot(onehot(idx_nbr[:, 1:2], n_user), user_tab)        # (B*Nn, D)
    user_e = _dot(onehot(idx_uie[:, 0:1], n_user), user_tab)           # (B, D)
    item_e = _dot(onehot(idx_uie[:, 1:2], n_item), item_tab)           # (B, D)
    unexp_e = _dot(onehot(idx_uie[:, 2:3], n_item), item_tab)          # (B, D)

    hist_mask = hist_mask_ref[...]
    nbrs_mask = nbrs_mask_ref[...]

    # ---- UserEncoder_rate (shared structure, two independent parameter sets) ----
    def attn(items2d, n, mask, a):
        hu = _dot(user_e, M(a + "_w1u"))                               # (B, D), once
        h = _dot(items2d, M(a + "_w1i")) + V(a + "_b1")                # (B*n, D)
        h = h.reshape(B, n, D) + jnp.broadcast_to(hu[:, None, :], (B, n, D))
        h = _leaky(h)                                                  # Dropout = identity
        h = _dot(h.reshape(B * n, D), M(a + "_w2")) + V(a + "_b2")
        h = _leaky(h)
        s = jnp.sum(h.reshape(B, n, D) * V(a + "_w3"), axis=-1) + mask  # (B, n)
        s = s - jnp.max(s, axis=-1, keepdims=True)
        e = jnp.exp(s)
        w = e / jnp.sum(e, axis=-1, keepdims=True)
        return jnp.sum(w[:, :, None] * items2d.reshape(B, n, D), axis=1)  # (B, D)

    def user_encoder(p):
        hist_e = (_dot(hist_item_e, M(p + "_rate_wi")) +
                  _dot(hist_rate_e, M(p + "_rate_wr")) + V(p + "_rate_b"))
        h_item = attn(hist_e, L, hist_mask, p + "_ia")
        h_soc = attn(pos_nbr_e, Nn, nbrs_mask, p + "_ua")
        h = _relu(_dot(h_item, M(p + "_fuse_wa")) + _dot(h_soc, M(p + "_fuse_wb"))
                  + V(p + "_fuse_b"))                                  # Dropout = identity
        h = (_dot(h, M(p + "_self_wa")) + _dot(user_e, M(p + "_self_wb"))
             + V(p + "_self_b"))
        un = _dot(h, M(p + "_unexp_w")) + V(p + "_unexp_b")
        ex = _dot(h, M(p + "_exp_w")) + V(p + "_exp_b")
        return un, ex

    # ---- strategy encoder ----
    s_un_user, s_ex_user = user_encoder("su")

    def s_item_enc(e):
        h = _relu(_dot(e, M("st_ie1_w")) + V("st_ie1_b"))              # Dropout = identity
        return _dot(h, M("st_ie2_w")) + V("st_ie2_b")

    q_un = _relu(_dot(s_un_user, M("st_um_wu")) + _dot(s_item_enc(unexp_e), M("st_um_wi"))
                 + V("st_um_b"))
    q_ex = _relu(_dot(s_ex_user, M("st_em_wu")) + _dot(s_item_enc(item_e), M("st_em_wi"))
                 + V("st_em_b"))

    def softmax_last(x):
        x = x - jnp.max(x, axis=-1, keepdims=True)
        e = jnp.exp(x)
        return e / jnp.sum(e, axis=-1, keepdims=True)

    qs_un = softmax_last(q_un)
    qs_ex = softmax_last(q_ex)

    # ---- straight-through gumbel sample ----
    # forward value of (y_hard - y).detach() + y == y_hard == one-hot of the per-group
    # argmax of (logits + gumbel); a positive temperature never changes the argmax.
    g = gumbel_ref[...]                                                # (2B, D)

    def st_hard(y):
        parts = []
        for k in range(D // C):
            seg = y[:, k * C:(k + 1) * C]
            col = jax.lax.broadcasted_iota(jnp.int32, seg.shape, 1)
            m = jnp.max(seg, axis=-1, keepdims=True)
            first = jnp.min(jnp.where(seg == m, col, C), axis=-1, keepdims=True)
            parts.append((col == first).astype(jnp.float32))
        return jnp.concatenate(parts, axis=-1)

    ss_un = st_hard(q_un + g[0:B, :])
    ss_ex = st_hard(q_ex + g[B:2 * B, :])

    # ---- generation heads ----
    g_un_user, g_ex_user = user_encoder("gu")
    scalars = V("scalars")                                             # (1, D)

    def exposure(hu, hi, ss):
        eh = _relu(_dot(hu, M("ex_w1u")) + _dot(hi, M("ex_w1i"))
                   + _dot(ss, M("ex_w1s")) + V("ex_b1"))               # Dropout = identity
        return jnp.sum(eh * V("ex_w2"), axis=-1, keepdims=True) + scalars[:, 0:1]

    def rate(hu, hi_raw, hs, p, b3):
        hi2 = (_dot(_relu(_dot(hi_raw, M("rt_im1_w")) + V("rt_im1_b")), M("rt_im2_w"))
               + V("rt_im2_b"))
        r = _relu(_dot(hu, M(p + "_w1u")) + _dot(hi2, M(p + "_w1i"))
                  + _dot(hs, M(p + "_w1s")) + V(p + "_b1"))
        r = _relu(_dot(r, M(p + "_w2")) + V(p + "_b2"))
        return jnp.sum(r * V(p + "_w3"), axis=-1, keepdims=True) + b3

    expo_un = exposure(g_un_user, unexp_e, ss_un)                      # (B, 1)
    expo_ex = exposure(g_ex_user, item_e, ss_ex)
    rate_un = rate(g_un_user, unexp_e, q_un, "rt_un", scalars[:, 1:2])
    rate_ex = rate(g_ex_user, item_e, q_ex, "rt_ex", scalars[:, 2:3])

    # ---- social neighbour logits ----
    pos_logits = jnp.sum(user_e[:, None, :] * pos_nbr_e.reshape(B, Nn, D), axis=-1)
    neg_logits = jnp.sum(user_e[:, None, :] * neg_nbr_e.reshape(B, Nn, D), axis=-1)

    # ---- single lane-dense output slab ----
    used = 5 * D + 2 * Nn + 4
    pieces = [user_e, item_e, unexp_e, qs_un, qs_ex, pos_logits, neg_logits,
              expo_un, expo_ex, rate_un, rate_ex]
    pad_w = out_ref.shape[1] - used
    if pad_w:
        pieces.append(jnp.zeros((B, pad_w), jnp.float32))
    out_ref[...] = jnp.concatenate(pieces, axis=-1)


# ============================ parameter setup ===============================

def init_linear(key, din, dout):
    kw, kb = jax.random.split(key)
    lim = 1.0 / math.sqrt(din)
    return {"w": jax.random.uniform(kw, (din, dout), F32, -lim, lim),
            "b": jax.random.uniform(kb, (dout,), F32, -lim, lim)}


def init_attn(key, d):
    k1, k2, k3 = jax.random.split(key, 3)
    return {"attn1": init_linear(k1, 2 * d, d),
            "attn2": init_linear(k2, d, d),
            "attn3": init_linear(k3, d, 1)}


def init_user_encoder(key, d):
    ks = jax.random.split(key, 7)
    return {"item_attn": init_attn(ks[0], d),
            "user_attn": init_attn(ks[1], d),
            "rate_lin": init_linear(ks[2], 2 * d, d),
            "fuse_lin": init_linear(ks[3], 2 * d, d),
            "self_lin": init_linear(ks[4], 2 * d, d),
            "exp_lin": init_linear(ks[5], d, d),
            "unexp_lin": init_linear(ks[6], d, d)}


def init_params(key):
    d = EDIM
    ks = jax.random.split(key, 15)
    user_embs = jax.random.uniform(ks[0], (USER_NUM, d), F32,
                                   -0.5 / USER_NUM, 0.5 / USER_NUM).at[0].set(0.0)
    item_embs = jax.random.uniform(ks[1], (ITEM_NUM, d), F32,
                                   -0.5 / ITEM_NUM, 0.5 / ITEM_NUM).at[0].set(0.0)
    rate_embs = jax.random.uniform(ks[2], (RATE_NUM, d), F32,
                                   -0.5 / 6, 0.5 / 6).at[0].set(0.0)
    return {
        "user_embs_mu": user_embs,
        "item_embs_mu": item_embs,
        "rate_embs": rate_embs,
        "user_encoder": init_user_encoder(ks[3], d),
        "strategy_encoder": {
            "s_user_encoder": init_user_encoder(ks[4], d),
            "s_item_enc1": init_linear(ks[5], d, d),
            "s_item_enc2": init_linear(ks[6], d, d),
            "unexp_merge": init_linear(ks[7], 2 * d, d),
            "exp_merge": init_linear(ks[8], 2 * d, d),
        },
        "exposure_predictor": {
            "l1": init_linear(ks[9], 3 * d, d),
            "l2": init_linear(ks[10], d, 1),
        },
        "rate_predictor": {
            "item_mlp1": init_linear(ks[11], d, d),
            "item_mlp2": init_linear(ks[12], d, d),
            "unexp": [init_linear(jax.random.fold_in(ks[13], i), din, dout)
                      for i, (din, dout) in enumerate([(3 * d, d), (d, d), (d, 1)])],
            "exp": [init_linear(jax.random.fold_in(ks[14], i), din, dout)
                    for i, (din, dout) in enumerate([(3 * d, d), (d, d), (d, 1)])],
        },
    }


# ============================ forward functions =============================

@jax.jit
def rest_forward_core(mat_slab, vec_slab, user_tab, item_tab, rate_tab,
                      user, user_hist, pos_nbr, neg_nbr, item, unexp_item, gumbel_key):
    B = user.shape[0]
    L = user_hist.shape[1]
    Nn = pos_nbr.shape[1]
    D = user_tab.shape[1]

    # small int32 index arrays and masks (everything else happens inside the kernel)
    idx_hist = user_hist.reshape(B * L, 2).astype(jnp.int32)
    idx_nbr = jnp.stack([pos_nbr, neg_nbr], axis=-1).reshape(B * Nn, 2).astype(jnp.int32)
    idx_uie = jnp.stack([user, item, unexp_item], axis=-1).astype(jnp.int32)
    hist_mask = -1000000000.0 * (user_hist[:, :, 0] == 0).astype(F32)
    nbrs_mask = -1000000000.0 * (pos_nbr == 0).astype(F32)

    eps = 1e-20
    U = jax.random.uniform(gumbel_key, (2 * B, D), F32)                 # torch.rand_like
    gumbel = -jnp.log(-jnp.log(U + eps) + eps)

    used = 5 * D + 2 * Nn + 4
    out_w = ((used + 127) // 128) * 128

    out = pl.pallas_call(
        _rest_kernel,
        out_shape=jax.ShapeDtypeStruct((B, out_w), F32),
        in_specs=[_VMEM] * 11,
        out_specs=_VMEM,
        cost_estimate=pl.CostEstimate(flops=4_000_000, transcendentals=512,
                                      bytes_accessed=300_000),
    )(idx_hist, idx_nbr, idx_uie, hist_mask, nbrs_mask, gumbel,
      user_tab, item_tab, rate_tab, mat_slab, vec_slab)

    # unpack the lane-dense slab
    user_emb = out[:, 0:D]
    item_emb = out[:, D:2 * D]
    unexp_item_emb = out[:, 2 * D:3 * D]
    q_hidden = jnp.concatenate([out[:, 3 * D:4 * D], out[:, 4 * D:5 * D]], axis=0)
    base = 5 * D
    pos_logits = out[:, base:base + Nn]
    neg_logits = out[:, base + Nn:base + 2 * Nn]
    s = base + 2 * Nn
    exposure_logits = jnp.concatenate([out[:, s], out[:, s + 1]], axis=0)
    exposure_label = jnp.concatenate([jnp.zeros((B,), F32), jnp.ones((B,), F32)], axis=0)
    unexp_pred_rate = out[:, s + 2]
    exp_pred_rate = out[:, s + 3]
    return (q_hidden, exposure_logits, exposure_label, unexp_pred_rate, exp_pred_rate,
            pos_logits, neg_logits, user_emb, item_emb, unexp_item_emb)


def rest_forward(params, mat_slab, vec_slab, user, user_hist, pos_nbr, neg_nbr,
                 item, unexp_item, temp, gumbel_key):
    # `temp` only rescales the gumbel logits; a positive temperature never changes the
    # argmax, so the straight-through sample's forward value (and every returned
    # tensor) is independent of it.
    _ = temp
    (q_hidden, exposure_logits, exposure_label, unexp_pred_rate, exp_pred_rate,
     pos_logits, neg_logits, user_emb, item_emb, unexp_item_emb) = rest_forward_core(
        mat_slab, vec_slab, params["user_embs_mu"], params["item_embs_mu"],
        params["rate_embs"], user, user_hist, pos_nbr, neg_nbr, item, unexp_item,
        gumbel_key)

    # torch.where(...)[0]-style dynamic-shape selections.  The indices depend only on
    # the integer INPUTS, so they are computed host-side with numpy (no sync on the
    # TPU forward) and applied as tiny gathers, matching PyTorch output shapes exactly
    # (including the row-index-with-multiplicity behaviour on the 2-D pos_nbr).
    all_items = np.concatenate([np.asarray(unexp_item), np.asarray(item)], axis=-1)
    exp_idx = np.nonzero(all_items != 0)[0]
    nbr_idx = np.nonzero(np.asarray(pos_nbr) != 0)[0]
    exposure_logits = exposure_logits[exp_idx]
    exposure_label = exposure_label[exp_idx]
    pos_nbr_logits = pos_logits[nbr_idx]
    neg_nbr_logits = neg_logits[nbr_idx]

    return (q_hidden, exposure_logits, exposure_label, unexp_pred_rate, exp_pred_rate,
            pos_nbr_logits, neg_nbr_logits, user_emb, item_emb, unexp_item_emb)


# ================================== main ====================================

if __name__ == "__main__":
    key = jax.random.PRNGKey(0)
    pkey, dkey, gkey = jax.random.split(key, 3)
    params = init_params(pkey)
    # one-time weight packing into two VMEM slabs (outside the jitted forward)
    mat_slab, vec_slab = pack_params(params)

    B, L, Nn = 2, 8, 6
    ks = jax.random.split(dkey, 7)
    user = jax.random.randint(ks[0], (B,), 1, USER_NUM)
    hist_items = jax.random.randint(ks[1], (B, L), 0, ITEM_NUM)   # 0 = padding
    hist_rates = jax.random.randint(ks[2], (B, L), 1, 6)
    user_hist = jnp.stack([hist_items, hist_rates], axis=-1)      # (B, L, 2)
    pos_nbr = jax.random.randint(ks[3], (B, Nn), 0, USER_NUM)     # 0 = padding
    neg_nbr = jax.random.randint(ks[4], (B, Nn), 0, USER_NUM)
    item = jax.random.randint(ks[5], (B,), 1, ITEM_NUM)
    unexp_item = jax.random.randint(ks[6], (B,), 1, ITEM_NUM)
    temp = 0.5

    # TODO(synk): train-mode dropout (random masking) is not modelled; the kernel
    # implements the deterministic eval-mode forward.
    outs = rest_forward(params, mat_slab, vec_slab, user, user_hist, pos_nbr, neg_nbr,
                        item, unexp_item, temp, gkey)
    jax.block_until_ready(outs)
    print("KERNEL_OK")
</pallas_src>

<mosaic_0001>
module attributes {stable_mosaic.version = 11 : i64} {
  func.func @_rest_kernel(%arg0: memref<16x2xi32, #tpu.memory_space<vmem>>, %arg1: memref<12x2xi32, #tpu.memory_space<vmem>>, %arg2: memref<2x3xi32, #tpu.memory_space<vmem>>, %arg3: memref<2x8xf32, #tpu.memory_space<vmem>>, %arg4: memref<2x6xf32, #tpu.memory_space<vmem>>, %arg5: memref<4x32xf32, #tpu.memory_space<vmem>>, %arg6: memref<20x32xf32, #tpu.memory_space<vmem>>, %arg7: memref<30x32xf32, #tpu.memory_space<vmem>>, %arg8: memref<6x32xf32, #tpu.memory_space<vmem>>, %arg9: memref<1504x32xf32, #tpu.memory_space<vmem>>, %arg10: memref<37x32xf32, #tpu.memory_space<vmem>>, %arg11: memref<2x256xf32, #tpu.memory_space<vmem>>) attributes {dimension_semantics = [], scalar_prefetch = 0 : i64, scratch_operands = 0 : i64, tpu.core_type = #tpu.core_type<tc>} {
    %c0 = arith.constant 0 : index
    %c0_0 = arith.constant 0 : index
    %0 = vector.load %arg6[%c0, %c0_0] : memref<20x32xf32, #tpu.memory_space<vmem>>, vector<20x32xf32>
    %c0_1 = arith.constant 0 : index
    %c0_2 = arith.constant 0 : index
    %1 = vector.load %arg7[%c0_1, %c0_2] : memref<30x32xf32, #tpu.memory_space<vmem>>, vector<30x32xf32>
    %c0_3 = arith.constant 0 : index
    %c0_4 = arith.constant 0 : index
    %2 = vector.load %arg8[%c0_3, %c0_4] : memref<6x32xf32, #tpu.memory_space<vmem>>, vector<6x32xf32>
    %c0_5 = arith.constant 0 : index
    %c0_6 = arith.constant 0 : index
    %3 = vector.load %arg0[%c0_5, %c0_6] : memref<16x2xi32, #tpu.memory_space<vmem>>, vector<16x2xi32>
    %c0_7 = arith.constant 0 : index
    %c0_8 = arith.constant 0 : index
    %4 = vector.load %arg1[%c0_7, %c0_8] : memref<12x2xi32, #tpu.memory_space<vmem>>, vector<12x2xi32>
    %c0_9 = arith.constant 0 : index
    %c0_10 = arith.constant 0 : index
    %5 = vector.load %arg2[%c0_9, %c0_10] : memref<2x3xi32, #tpu.memory_space<vmem>>, vector<2x3xi32>
    %6 = vector.extract_strided_slice %3 {offsets = [0, 0], sizes = [16, 1], strides = [1, 1]} : vector<16x2xi32> to vector<16x1xi32>
    %7 = tpu.iota {dimensions = array<i32: 1>} : vector<16x30xi32>
    %8 = vector.broadcast %6 : vector<16x1xi32> to vector<16x30xi32>
    %9 = arith.cmpi eq, %8, %7 : vector<16x30xi32>
    %10 = arith.extui %9 : vector<16x30xi1> to vector<16x30xi32>
    %11 = arith.sitofp %10 : vector<16x30xi32> to vector<16x30xf32>
    %cst = arith.constant dense<0.000000e+00> : vector<16x32xf32>
    %12 = tpu.matmul %11, %1, %cst {dimension_numbers = #tpu.dot_dimension_numbers<[1], [0], [0], [1], [0, 0, 1, 1], [], []>} : vector<16x30xf32>, vector<30x32xf32>, vector<16x32xf32> -> vector<16x32xf32>
    %13 = vector.extract_strided_slice %3 {offsets = [0, 1], sizes = [16, 1], strides = [1, 1]} : vector<16x2xi32> to vector<16x1xi32>
    %14 = tpu.iota {dimensions = array<i32: 1>} : vector<16x6xi32>
    %15 = vector.broadcast %13 : vector<16x1xi32> to vector<16x6xi32>
    %16 = arith.cmpi eq, %15, %14 : vector<16x6xi32>
    %17 = arith.extui %16 : vector<16x6xi1> to vector<16x6xi32>
    %18 = arith.sitofp %17 : vector<16x6xi32> to vector<16x6xf32>
    %cst_11 = arith.constant dense<0.000000e+00> : vector<16x32xf32>
    %19 = tpu.matmul %18, %2, %cst_11 {dimension_numbers = #tpu.dot_dimension_numbers<[1], [0], [0], [1], [0, 0, 1, 1], [], []>} : vector<16x6xf32>, vector<6x32xf32>, vector<16x32xf32> -> vector<16x32xf32>
    %20 = vector.extract_strided_slice %4 {offsets = [0, 0], sizes = [12, 1], strides = [1, 1]} : vector<12x2xi32> to vector<12x1xi32>
    %21 = tpu.iota {dimensions = array<i32: 1>} : vector<12x20xi32>
    %22 = vector.broadcast %20 : vector<12x1xi32> to vector<12x20xi32>
    %23 = arith.cmpi eq, %22, %21 : vector<12x20xi32>
    %24 = arith.extui %23 : vector<12x20xi1> to vector<12x20xi32>
    %25 = arith.sitofp %24 : vector<12x20xi32> to vector<12x20xf32>
    %cst_12 = arith.constant dense<0.000000e+00> : vector<12x32xf32>
    %26 = tpu.matmul %25, %0, %cst_12 {dimension_numbers = #tpu.dot_dimension_numbers<[1], [0], [0], [1], [0, 0, 1, 1], [], []>} : vector<12x20xf32>, vector<20x32xf32>, vector<12x32xf32> -> vector<12x32xf32>
    %27 = vector.extract_strided_slice %4 {offsets = [0, 1], sizes = [12, 1], strides = [1, 1]} : vector<12x2xi32> to vector<12x1xi32>
    %28 = tpu.iota {dimensions = array<i32: 1>} : vector<12x20xi32>
    %29 = vector.broadcast %27 : vector<12x1xi32> to vector<12x20xi32>
    %30 = arith.cmpi eq, %29, %28 : vector<12x20xi32>
    %31 = arith.extui %30 : vector<12x20xi1> to vector<12x20xi32>
    %32 = arith.sitofp %31 : vector<12x20xi32> to vector<12x20xf32>
    %cst_13 = arith.constant dense<0.000000e+00> : vector<12x32xf32>
    %33 = tpu.matmul %32, %0, %cst_13 {dimension_numbers = #tpu.dot_dimension_numbers<[1], [0], [0], [1], [0, 0, 1, 1], [], []>} : vector<12x20xf32>, vector<20x32xf32>, vector<12x32xf32> -> vector<12x32xf32>
    %34 = vector.extract_strided_slice %5 {offsets = [0, 0], sizes = [2, 1], strides = [1, 1]} : vector<2x3xi32> to vector<2x1xi32>
    %35 = tpu.iota {dimensions = array<i32: 1>} : vector<2x20xi32>
    %36 = vector.broadcast %34 : vector<2x1xi32> to vector<2x20xi32>
    %37 = arith.cmpi eq, %36, %35 : vector<2x20xi32>
    %38 = arith.extui %37 : vector<2x20xi1> to vector<2x20xi32>
    %39 = arith.sitofp %38 : vector<2x20xi32> to vector<2x20xf32>
    %cst_14 = arith.constant dense<0.000000e+00> : vector<2x32xf32>
    %40 = tpu.matmul %39, %0, %cst_14 {dimension_numbers = #tpu.dot_dimension_numbers<[1], [0], [0], [1], [0, 0, 1, 1], [], []>} : vector<2x20xf32>, vector<20x32xf32>, vector<2x32xf32> -> vector<2x32xf32>
    %41 = vector.extract_strided_slice %5 {offsets = [0, 1], sizes = [2, 1], strides = [1, 1]} : vector<2x3xi32> to vector<2x1xi32>
    %42 = tpu.iota {dimensions = array<i32: 1>} : vector<2x30xi32>
    %43 = vector.broadcast %41 : vector<2x1xi32> to vector<2x30xi32>
    %44 = arith.cmpi eq, %43, %42 : vector<2x30xi32>
    %45 = arith.extui %44 : vector<2x30xi1> to vector<2x30xi32>
    %46 = arith.sitofp %45 : vector<2x30xi32> to vector<2x30xf32>
    %cst_15 = arith.constant dense<0.000000e+00> : vector<2x32xf32>
    %47 = tpu.matmul %46, %1, %cst_15 {dimension_numbers = #tpu.dot_dimension_numbers<[1], [0], [0], [1], [0, 0, 1, 1], [], []>} : vector<2x30xf32>, vector<30x32xf32>, vector<2x32xf32> -> vector<2x32xf32>
    %48 = vector.extract_strided_slice %5 {offsets = [0, 2], sizes = [2, 1], strides = [1, 1]} : vector<2x3xi32> to vector<2x1xi32>
    %49 = tpu.iota {dimensions = array<i32: 1>} : vector<2x30xi32>
    %50 = vector.broadcast %48 : vector<2x1xi32> to vector<2x30xi32>
    %51 = arith.cmpi eq, %50, %49 : vector<2x30xi32>
    %52 = arith.extui %51 : vector<2x30xi1> to vector<2x30xi32>
    %53 = arith.sitofp %52 : vector<2x30xi32> to vector<2x30xf32>
    %cst_16 = arith.constant dense<0.000000e+00> : vector<2x32xf32>
    %54 = tpu.matmul %53, %1, %cst_16 {dimension_numbers = #tpu.dot_dimension_numbers<[1], [0], [0], [1], [0, 0, 1, 1], [], []>} : vector<2x30xf32>, vector<30x32xf32>, vector<2x32xf32> -> vector<2x32xf32>
    %c0_17 = arith.constant 0 : index
    %c0_18 = arith.constant 0 : index
    %55 = vector.load %arg3[%c0_17, %c0_18] : memref<2x8xf32, #tpu.memory_space<vmem>>, vector<2x8xf32>
    %c0_19 = arith.constant 0 : index
    %c0_20 = arith.constant 0 : index
    %56 = vector.load %arg4[%c0_19, %c0_20] : memref<2x6xf32, #tpu.memory_space<vmem>>, vector<2x6xf32>
    %c0_21 = arith.constant 0 : index
    %c0_22 = arith.constant 0 : index
    %57 = vector.load %arg9[%c0_21, %c0_22] : memref<1504x32xf32, #tpu.memory_space<vmem>>, vector<32x32xf32>
    %cst_23 = arith.constant dense<0.000000e+00> : vector<16x32xf32>
    %58 = tpu.matmul %12, %57, %cst_23 {dimension_numbers = #tpu.dot_dimension_numbers<[1], [0], [0], [1], [0, 0, 1, 1], [], []>} : vector<16x32xf32>, vector<32x32xf32>, vector<16x32xf32> -> vector<16x32xf32>
    %c32 = arith.constant 32 : index
    %c0_24 = arith.constant 0 : index
    %59 = vector.load %arg9[%c32, %c0_24] : memref<1504x32xf32, #tpu.memory_space<vmem>>, vector<32x32xf32>
    %cst_25 = arith.constant dense<0.000000e+00> : vector<16x32xf32>
    %60 = tpu.matmul %19, %59, %cst_25 {dimension_numbers = #tpu.dot_dimension_numbers<[1], [0], [0], [1], [0, 0, 1, 1], [], []>} : vector<16x32xf32>, vector<32x32xf32>, vector<16x32xf32> -> vector<16x32xf32>
    %61 = arith.addf %58, %60 : vector<16x32xf32>
    %c0_26 = arith.constant 0 : index
    %c0_27 = arith.constant 0 : index
    %62 = vector.load %arg10[%c0_26, %c0_27] : memref<37x32xf32, #tpu.memory_space<vmem>>, vector<1x32xf32>
    %63 = vector.broadcast %62 : vector<1x32xf32> to vector<16x32xf32>
    %64 = arith.addf %61, %63 : vector<16x32xf32>
    %c96 = arith.constant 96 : index
    %c0_28 = arith.constant 0 : index
    %65 = vector.load %arg9[%c96, %c0_28] : memref<1504x32xf32, #tpu.memory_space<vmem>>, vector<32x32xf32>
    %cst_29 = arith.constant dense<0.000000e+00> : vector<2x32xf32>
    %66 = tpu.matmul %40, %65, %cst_29 {dimension_numbers = #tpu.dot_dimension_numbers<[1], [0], [0], [1], [0, 0, 1, 1], [], []>} : vector<2x32xf32>, vector<32x32xf32>, vector<2x32xf32> -> vector<2x32xf32>
    %c64 = arith.constant 64 : index
    %c0_30 = arith.constant 0 : index
    %67 = vector.load %arg9[%c64, %c0_30] : memref<1504x32xf32, #tpu.memory_space<vmem>>, vector<32x32xf32>
    %cst_31 = arith.constant dense<0.000000e+00> : vector<16x32xf32>
    %68 = tpu.matmul %64, %67, %cst_31 {dimension_numbers = #tpu.dot_dimension_numbers<[1], [0], [0], [1], [0, 0, 1, 1], [], []>} : vector<16x32xf32>, vector<32x32xf32>, vector<16x32xf32> -> vector<16x32xf32>
    %c1 = arith.constant 1 : index
    %c0_32 = arith.constant 0 : index
    %69 = vector.load %arg10[%c1, %c0_32] : memref<37x32xf32, #tpu.memory_space<vmem>>, vector<1x32xf32>
    %70 = vector.broadcast %69 : vector<1x32xf32> to vector<16x32xf32>
    %71 = arith.addf %68, %70 : vector<16x32xf32>
    %72 = vector.shape_cast %71 : vector<16x32xf32> to vector<2x8x32xf32>
    %73 = vector.shape_cast %66 : vector<2x32xf32> to vector<2x1x32xf32>
    %74 = vector.shape_cast %73 : vector<2x1x32xf32> to vector<2x1x32xf32>
    %75 = vector.broadcast %74 : vector<2x1x32xf32> to vector<2x8x32xf32>
    %76 = arith.addf %72, %75 : vector<2x8x32xf32>
    %cst_33 = arith.constant 0.000000e+00 : f32
    %77 = vector.broadcast %cst_33 : f32 to vector<2x8x32xf32>
    %78 = arith.cmpf oge, %76, %77 : vector<2x8x32xf32>
    %cst_34 = arith.constant 1.000000e-01 : f32
    %79 = vector.broadcast %cst_34 : f32 to vector<2x8x32xf32>
    %80 = arith.mulf %79, %76 : vector<2x8x32xf32>
    %81 = arith.select %78, %76, %80 : vector<2x8x32xi1>, vector<2x8x32xf32>
    %82 = vector.shape_cast %81 : vector<2x8x32xf32> to vector<16x32xf32>
    %c128 = arith.constant 128 : index
    %c0_35 = arith.constant 0 : index
    %83 = vector.load %arg9[%c128, %c0_35] : memref<1504x32xf32, #tpu.memory_space<vmem>>, vector<32x32xf32>
    %cst_36 = arith.constant dense<0.000000e+00> : vector<16x32xf32>
    %84 = tpu.matmul %82, %83, %cst_36 {dimension_numbers = #tpu.dot_dimension_numbers<[1], [0], [0], [1], [0, 0, 1, 1], [], []>} : vector<16x32xf32>, vector<32x32xf32>, vector<16x32xf32> -> vector<16x32xf32>
    %c2 = arith.constant 2 : index
    %c0_37 = arith.constant 0 : index
    %85 = vector.load %arg10[%c2, %c0_37] : memref<37x32xf32, #tpu.memory_space<vmem>>, vector<1x32xf32>
    %86 = vector.broadcast %85 : vector<1x32xf32> to vector<16x32xf32>
    %87 = arith.addf %84, %86 : vector<16x32xf32>
    %cst_38 = arith.constant 0.000000e+00 : f32
    %88 = vector.broadcast %cst_38 : f32 to vector<16x32xf32>
    %89 = arith.cmpf oge, %87, %88 : vector<16x32xf32>
    %cst_39 = arith.constant 1.000000e-01 : f32
    %90 = vector.broadcast %cst_39 : f32 to vector<16x32xf32>
    %91 = arith.mulf %90, %87 : vector<16x32xf32>
    %92 = arith.select %89, %87, %91 : vector<16x32xi1>, vector<16x32xf32>
    %93 = vector.shape_cast %92 : vector<16x32xf32> to vector<2x8x32xf32>
    %c3 = arith.constant 3 : index
    %c0_40 = arith.constant 0 : index
    %94 = vector.load %arg10[%c3, %c0_40] : memref<37x32xf32, #tpu.memory_space<vmem>>, vector<1x32xf32>
    %95 = vector.shape_cast %94 : vector<1x32xf32> to vector<1x1x32xf32>
    %96 = vector.broadcast %95 : vector<1x1x32xf32> to vector<2x8x32xf32>
    %97 = arith.mulf %93, %96 : vector<2x8x32xf32>
    %cst_41 = arith.constant dense<0.000000e+00> : vector<2x8xf32>
    %98 = vector.multi_reduction <add>, %97, %cst_41 [2] : vector<2x8x32xf32> to vector<2x8xf32>
    %99 = arith.addf %98, %55 : vector<2x8xf32>
    %cst_42 = arith.constant dense<0xFF800000> : vector<2xf32>
    %100 = vector.multi_reduction <maximumf>, %99, %cst_42 [1] : vector<2x8xf32> to vector<2xf32>
    %101 = vector.shape_cast %100 : vector<2xf32> to vector<2x1xf32>
    %102 = vector.broadcast %101 : vector<2x1xf32> to vector<2x8xf32>
    %103 = arith.subf %99, %102 : vector<2x8xf32>
    %104 = math.exp %103 : vector<2x8xf32>
    %cst_43 = arith.constant dense<0.000000e+00> : vector<2xf32>
    %105 = vector.multi_reduction <add>, %104, %cst_43 [1] : vector<2x8xf32> to vector<2xf32>
    %106 = vector.shape_cast %105 : vector<2xf32> to vector<2x1xf32>
    %107 = vector.broadcast %106 : vector<2x1xf32> to vector<2x8xf32>
    %108 = arith.divf %104, %107 : vector<2x8xf32>
    %109 = vector.shape_cast %108 : vector<2x8xf32> to vector<2x8x1xf32>
    %110 = vector.shape_cast %64 : vector<16x32xf32> to vector<2x8x32xf32>
    %111 = vector.broadcast %109 : vector<2x8x1xf32> to vector<2x8x32xf32>
    %112 = arith.mulf %111, %110 : vector<2x8x32xf32>
    %cst_44 = arith.constant dense<0.000000e+00> : vector<2x32xf32>
    %113 = vector.multi_reduction <add>, %112, %cst_44 [1] : vector<2x8x32xf32> to vector<2x32xf32>
    %c192 = arith.constant 192 : index
    %c0_45 = arith.constant 0 : index
    %114 = vector.load %arg9[%c192, %c0_45] : memref<1504x32xf32, #tpu.memory_space<vmem>>, vector<32x32xf32>
    %cst_46 = arith.constant dense<0.000000e+00> : vector<2x32xf32>
    %115 = tpu.matmul %40, %114, %cst_46 {dimension_numbers = #tpu.dot_dimension_numbers<[1], [0], [0], [1], [0, 0, 1, 1], [], []>} : vector<2x32xf32>, vector<32x32xf32>, vector<2x32xf32> -> vector<2x32xf32>
    %c160 = arith.constant 160 : index
    %c0_47 = arith.constant 0 : index
    %116 = vector.load %arg9[%c160, %c0_47] : memref<1504x32xf32, #tpu.memory_space<vmem>>, vector<32x32xf32>
    %cst_48 = arith.constant dense<0.000000e+00> : vector<12x32xf32>
    %117 = tpu.matmul %26, %116, %cst_48 {dimension_numbers = #tpu.dot_dimension_numbers<[1], [0], [0], [1], [0, 0, 1, 1], [], []>} : vector<12x32xf32>, vector<32x32xf32>, vector<12x32xf32> -> vector<12x32xf32>
    %c4 = arith.constant 4 : index
    %c0_49 = arith.constant 0 : index
    %118 = vector.load %arg10[%c4, %c0_49] : memref<37x32xf32, #tpu.memory_space<vmem>>, vector<1x32xf32>
    %119 = vector.broadcast %118 : vector<1x32xf32> to vector<12x32xf32>
    %120 = arith.addf %117, %119 : vector<12x32xf32>
    %121 = vector.shape_cast %120 : vector<12x32xf32> to vector<2x6x32xf32>
    %122 = vector.shape_cast %115 : vector<2x32xf32> to vector<2x1x32xf32>
    %123 = vector.shape_cast %122 : vector<2x1x32xf32> to vector<2x1x32xf32>
    %124 = vector.broadcast %123 : vector<2x1x32xf32> to vector<2x6x32xf32>
    %125 = arith.addf %121, %124 : vector<2x6x32xf32>
    %cst_50 = arith.constant 0.000000e+00 : f32
    %126 = vector.broadcast %cst_50 : f32 to vector<2x6x32xf32>
    %127 = arith.cmpf oge, %125, %126 : vector<2x6x32xf32>
    %cst_51 = arith.constant 1.000000e-01 : f32
    %128 = vector.broadcast %cst_51 : f32 to vector<2x6x32xf32>
    %129 = arith.mulf %128, %125 : vector<2x6x32xf32>
    %130 = arith.select %127, %125, %129 : vector<2x6x32xi1>, vector<2x6x32xf32>
    %131 = vector.shape_cast %130 : vector<2x6x32xf32> to vector<12x32xf32>
    %c224 = arith.constant 224 : index
    %c0_52 = arith.constant 0 : index
    %132 = vector.load %arg9[%c224, %c0_52] : memref<1504x32xf32, #tpu.memory_space<vmem>>, vector<32x32xf32>
    %cst_53 = arith.constant dense<0.000000e+00> : vector<12x32xf32>
    %133 = tpu.matmul %131, %132, %cst_53 {dimension_numbers = #tpu.dot_dimension_numbers<[1], [0], [0], [1], [0, 0, 1, 1], [], []>} : vector<12x32xf32>, vector<32x32xf32>, vector<12x32xf32> -> vector<12x32xf32>
    %c5 = arith.constant 5 : index
    %c0_54 = arith.constant 0 : index
    %134 = vector.load %arg10[%c5, %c0_54] : memref<37x32xf32, #tpu.memory_space<vmem>>, vector<1x32xf32>
    %135 = vector.broadcast %134 : vector<1x32xf32> to vector<12x32xf32>
    %136 = arith.addf %133, %135 : vector<12x32xf32>
    %cst_55 = arith.constant 0.000000e+00 : f32
    %137 = vector.broadcast %cst_55 : f32 to vector<12x32xf32>
    %138 = arith.cmpf oge, %136, %137 : vector<12x32xf32>
    %cst_56 = arith.constant 1.000000e-01 : f32
    %139 = vector.broadcast %cst_56 : f32 to vector<12x32xf32>
    %140 = arith.mulf %139, %136 : vector<12x32xf32>
    %141 = arith.select %138, %136, %140 : vector<12x32xi1>, vector<12x32xf32>
    %142 = vector.shape_cast %141 : vector<12x32xf32> to vector<2x6x32xf32>
    %c6 = arith.constant 6 : index
    %c0_57 = arith.constant 0 : index
    %143 = vector.load %arg10[%c6, %c0_57] : memref<37x32xf32, #tpu.memory_space<vmem>>, vector<1x32xf32>
    %144 = vector.shape_cast %143 : vector<1x32xf32> to vector<1x1x32xf32>
    %145 = vector.broadcast %144 : vector<1x1x32xf32> to vector<2x6x32xf32>
    %146 = arith.mulf %142, %145 : vector<2x6x32xf32>
    %cst_58 = arith.constant dense<0.000000e+00> : vector<2x6xf32>
    %147 = vector.multi_reduction <add>, %146, %cst_58 [2] : vector<2x6x32xf32> to vector<2x6xf32>
    %148 = arith.addf %147, %56 : vector<2x6xf32>
    %cst_59 = arith.constant dense<0xFF800000> : vector<2xf32>
    %149 = vector.multi_reduction <maximumf>, %148, %cst_59 [1] : vector<2x6xf32> to vector<2xf32>
    %150 = vector.shape_cast %149 : vector<2xf32> to vector<2x1xf32>
    %151 = vector.broadcast %150 : vector<2x1xf32> to vector<2x6xf32>
    %152 = arith.subf %148, %151 : vector<2x6xf32>
    %153 = math.exp %152 : vector<2x6xf32>
    %cst_60 = arith.constant dense<0.000000e+00> : vector<2xf32>
    %154 = vector.multi_reduction <add>, %153, %cst_60 [1] : vector<2x6xf32> to vector<2xf32>
    %155 = vector.shape_cast %154 : vector<2xf32> to vector<2x1xf32>
    %156 = vector.broadcast %155 : vector<2x1xf32> to vector<2x6xf32>
    %157 = arith.divf %153, %156 : vector<2x6xf32>
    %158 = vector.shape_cast %157 : vector<2x6xf32> to vector<2x6x1xf32>
    %159 = vector.shape_cast %26 : vector<12x32xf32> to vector<2x6x32xf32>
    %160 = vector.broadcast %158 : vector<2x6x1xf32> to vector<2x6x32xf32>
    %161 = arith.mulf %160, %159 : vector<2x6x32xf32>
    %cst_61 = arith.constant dense<0.000000e+00> : vector<2x32xf32>
    %162 = vector.multi_reduction <add>, %161, %cst_61 [1] : vector<2x6x32xf32> to vector<2x32xf32>
    %c256 = arith.constant 256 : index
    %c0_62 = arith.constant 0 : index
    %163 = vector.load %arg9[%c256, %c0_62] : memref<1504x32xf32, #tpu.memory_space<vmem>>, vector<32x32xf32>
    %cst_63 = arith.constant dense<0.000000e+00> : vector<2x32xf32>
    %164 = tpu.matmul %113, %163, %cst_63 {dimension_numbers = #tpu.dot_dimension_numbers<[1], [0], [0], [1], [0, 0, 1, 1], [], []>} : vector<2x32xf32>, vector<32x32xf32>, vector<2x32xf32> -> vector<2x32xf32>
    %c288 = arith.constant 288 : index
    %c0_64 = arith.constant 0 : index
    %165 = vector.load %arg9[%c288, %c0_64] : memref<1504x32xf32, #tpu.memory_space<vmem>>, vector<32x32xf32>
    %cst_65 = arith.constant dense<0.000000e+00> : vector<2x32xf32>
    %166 = tpu.matmul %162, %165, %cst_65 {dimension_numbers = #tpu.dot_dimension_numbers<[1], [0], [0], [1], [0, 0, 1, 1], [], []>} : vector<2x32xf32>, vector<32x32xf32>, vector<2x32xf32> -> vector<2x32xf32>
    %167 = arith.addf %164, %166 : vector<2x32xf32>
    %c7 = arith.constant 7 : index
    %c0_66 = arith.constant 0 : index
    %168 = vector.load %arg10[%c7, %c0_66] : memref<37x32xf32, #tpu.memory_space<vmem>>, vector<1x32xf32>
    %169 = vector.broadcast %168 : vector<1x32xf32> to vector<2x32xf32>
    %170 = arith.addf %167, %169 : vector<2x32xf32>
    %cst_67 = arith.constant 0.000000e+00 : f32
    %171 = vector.broadcast %cst_67 : f32 to vector<2x32xf32>
    %172 = arith.maximumf %170, %171 : vector<2x32xf32>
    %c320 = arith.constant 320 : index
    %c0_68 = arith.constant 0 : index
    %173 = vector.load %arg9[%c320, %c0_68] : memref<1504x32xf32, #tpu.memory_space<vmem>>, vector<32x32xf32>
    %cst_69 = arith.constant dense<0.000000e+00> : vector<2x32xf32>
    %174 = tpu.matmul %172, %173, %cst_69 {dimension_numbers = #tpu.dot_dimension_numbers<[1], [0], [0], [1], [0, 0, 1, 1], [], []>} : vector<2x32xf32>, vector<32x32xf32>, vector<2x32xf32> -> vector<2x32xf32>
    %c352 = arith.constant 352 : index
    %c0_70 = arith.constant 0 : index
    %175 = vector.load %arg9[%c352, %c0_70] : memref<1504x32xf32, #tpu.memory_space<vmem>>, vector<32x32xf32>
    %cst_71 = arith.constant dense<0.000000e+00> : vector<2x32xf32>
    %176 = tpu.matmul %40, %175, %cst_71 {dimension_numbers = #tpu.dot_dimension_numbers<[1], [0], [0], [1], [0, 0, 1, 1], [], []>} : vector<2x32xf32>, vector<32x32xf32>, vector<2x32xf32> -> vector<2x32xf32>
    %177 = arith.addf %174, %176 : vector<2x32xf32>
    %c8 = arith.constant 8 : index
    %c0_72 = arith.constant 0 : index
    %178 = vector.load %arg10[%c8, %c0_72] : memref<37x32xf32, #tpu.memory_space<vmem>>, vector<1x32xf32>
    %179 = vector.broadcast %178 : vector<1x32xf32> to vector<2x32xf32>
    %180 = arith.addf %177, %179 : vector<2x32xf32>
    %c384 = arith.constant 384 : index
    %c0_73 = arith.constant 0 : index
    %181 = vector.load %arg9[%c384, %c0_73] : memref<1504x32xf32, #tpu.memory_space<vmem>>, vector<32x32xf32>
    %cst_74 = arith.constant dense<0.000000e+00> : vector<2x32xf32>
    %182 = tpu.matmul %180, %181, %cst_74 {dimension_numbers = #tpu.dot_dimension_numbers<[1], [0], [0], [1], [0, 0, 1, 1], [], []>} : vector<2x32xf32>, vector<32x32xf32>, vector<2x32xf32> -> vector<2x32xf32>
    %c9 = arith.constant 9 : index
    %c0_75 = arith.constant 0 : index
    %183 = vector.load %arg10[%c9, %c0_75] : memref<37x32xf32, #tpu.memory_space<vmem>>, vector<1x32xf32>
    %184 = vector.broadcast %183 : vector<1x32xf32> to vector<2x32xf32>
    %185 = arith.addf %182, %184 : vector<2x32xf32>
    %c416 = arith.constant 416 : index
    %c0_76 = arith.constant 0 : index
    %186 = vector.load %arg9[%c416, %c0_76] : memref<1504x32xf32, #tpu.memory_space<vmem>>, vector<32x32xf32>
    %cst_77 = arith.constant dense<0.000000e+00> : vector<2x32xf32>
    %187 = tpu.matmul %180, %186, %cst_77 {dimension_numbers = #tpu.dot_dimension_numbers<[1], [0], [0], [1], [0, 0, 1, 1], [], []>} : vector<2x32xf32>, vector<32x32xf32>, vector<2x32xf32> -> vector<2x32xf32>
    %c10 = arith.constant 10 : index
    %c0_78 = arith.constant 0 : index
    %188 = vector.load %arg10[%c10, %c0_78] : memref<37x32xf32, #tpu.memory_space<vmem>>, vector<1x32xf32>
    %189 = vector.broadcast %188 : vector<1x32xf32> to vector<2x32xf32>
    %190 = arith.addf %187, %189 : vector<2x32xf32>
    %c960 = arith.constant 960 : index
    %c0_79 = arith.constant 0 : index
    %191 = vector.load %arg9[%c960, %c0_79] : memref<1504x32xf32, #tpu.memory_space<vmem>>, vector<32x32xf32>
    %cst_80 = arith.constant dense<0.000000e+00> : vector<2x32xf32>
    %192 = tpu.matmul %185, %191, %cst_80 {dimension_numbers = #tpu.dot_dimension_numbers<[1], [0], [0], [1], [0, 0, 1, 1], [], []>} : vector<2x32xf32>, vector<32x32xf32>, vector<2x32xf32> -> vector<2x32xf32>
    %c896 = arith.constant 896 : index
    %c0_81 = arith.constant 0 : index
    %193 = vector.load %arg9[%c896, %c0_81] : memref<1504x32xf32, #tpu.memory_space<vmem>>, vector<32x32xf32>
    %cst_82 = arith.constant dense<0.000000e+00> : vector<2x32xf32>
    %194 = tpu.matmul %54, %193, %cst_82 {dimension_numbers = #tpu.dot_dimension_numbers<[1], [0], [0], [1], [0, 0, 1, 1], [], []>} : vector<2x32xf32>, vector<32x32xf32>, vector<2x32xf32> -> vector<2x32xf32>
    %c22 = arith.constant 22 : index
    %c0_83 = arith.constant 0 : index
    %195 = vector.load %arg10[%c22, %c0_83] : memref<37x32xf32, #tpu.memory_space<vmem>>, vector<1x32xf32>
    %196 = vector.broadcast %195 : vector<1x32xf32> to vector<2x32xf32>
    %197 = arith.addf %194, %196 : vector<2x32xf32>
    %cst_84 = arith.constant 0.000000e+00 : f32
    %198 = vector.broadcast %cst_84 : f32 to vector<2x32xf32>
    %199 = arith.maximumf %197, %198 : vector<2x32xf32>
    %c928 = arith.constant 928 : index
    %c0_85 = arith.constant 0 : index
    %200 = vector.load %arg9[%c928, %c0_85] : memref<1504x32xf32, #tpu.memory_space<vmem>>, vector<32x32xf32>
    %cst_86 = arith.constant dense<0.000000e+00> : vector<2x32xf32>
    %201 = tpu.matmul %199, %200, %cst_86 {dimension_numbers = #tpu.dot_dimension_numbers<[1], [0], [0], [1], [0, 0, 1, 1], [], []>} : vector<2x32xf32>, vector<32x32xf32>, vector<2x32xf32> -> vector<2x32xf32>
    %c23 = arith.constant 23 : index
    %c0_87 = arith.constant 0 : index
    %202 = vector.load %arg10[%c23, %c0_87] : memref<37x32xf32, #tpu.memory_space<vmem>>, vector<1x32xf32>
    %203 = vector.broadcast %202 : vector<1x32xf32> to vector<2x32xf32>
    %204 = arith.addf %201, %203 : vector<2x32xf32>
    %c992 = arith.constant 992 : index
    %c0_88 = arith.constant 0 : index
    %205 = vector.load %arg9[%c992, %c0_88] : memref<1504x32xf32, #tpu.memory_space<vmem>>, vector<32x32xf32>
    %cst_89 = arith.constant dense<0.000000e+00> : vector<2x32xf32>
    %206 = tpu.matmul %204, %205, %cst_89 {dimension_numbers = #tpu.dot_dimension_numbers<[1], [0], [0], [1], [0, 0, 1, 1], [], []>} : vector<2x32xf32>, vector<32x32xf32>, vector<2x32xf32> -> vector<2x32xf32>
    %207 = arith.addf %192, %206 : vector<2x32xf32>
    %c24 = arith.constant 24 : index
    %c0_90 = arith.constant 0 : index
    %208 = vector.load %arg10[%c24, %c0_90] : memref<37x32xf32, #tpu.memory_space<vmem>>, vector<1x32xf32>
    %209 = vector.broadcast %208 : vector<1x32xf32> to vector<2x32xf32>
    %210 = arith.addf %207, %209 : vector<2x32xf32>
    %cst_91 = arith.constant 0.000000e+00 : f32
    %211 = vector.broadcast %cst_91 : f32 to vector<2x32xf32>
    %212 = arith.maximumf %210, %211 : vector<2x32xf32>
    %c1024 = arith.constant 1024 : index
    %c0_92 = arith.constant 0 : index
    %213 = vector.load %arg9[%c1024, %c0_92] : memref<1504x32xf32, #tpu.memory_space<vmem>>, vector<32x32xf32>
    %cst_93 = arith.constant dense<0.000000e+00> : vector<2x32xf32>
    %214 = tpu.matmul %190, %213, %cst_93 {dimension_numbers = #tpu.dot_dimension_numbers<[1], [0], [0], [1], [0, 0, 1, 1], [], []>} : vector<2x32xf32>, vector<32x32xf32>, vector<2x32xf32> -> vector<2x32xf32>
    %c896_94 = arith.constant 896 : index
    %c0_95 = arith.constant 0 : index
    %215 = vector.load %arg9[%c896_94, %c0_95] : memref<1504x32xf32, #tpu.memory_space<vmem>>, vector<32x32xf32>
    %cst_96 = arith.constant dense<0.000000e+00> : vector<2x32xf32>
    %216 = tpu.matmul %47, %215, %cst_96 {dimension_numbers = #tpu.dot_dimension_numbers<[1], [0], [0], [1], [0, 0, 1, 1], [], []>} : vector<2x32xf32>, vector<32x32xf32>, vector<2x32xf32> -> vector<2x32xf32>
    %c22_97 = arith.constant 22 : index
    %c0_98 = arith.constant 0 : index
    %217 = vector.load %arg10[%c22_97, %c0_98] : memref<37x32xf32, #tpu.memory_space<vmem>>, vector<1x32xf32>
    %218 = vector.broadcast %217 : vector<1x32xf32> to vector<2x32xf32>
    %219 = arith.addf %216, %218 : vector<2x32xf32>
    %cst_99 = arith.constant 0.000000e+00 : f32
    %220 = vector.broadcast %cst_99 : f32 to vector<2x32xf32>
    %221 = arith.maximumf %219, %220 : vector<2x32xf32>
    %c928_100 = arith.constant 928 : index
    %c0_101 = arith.constant 0 : index
    %222 = vector.load %arg9[%c928_100, %c0_101] : memref<1504x32xf32, #tpu.memory_space<vmem>>, vector<32x32xf32>
    %cst_102 = arith.constant dense<0.000000e+00> : vector<2x32xf32>
    %223 = tpu.matmul %221, %222, %cst_102 {dimension_numbers = #tpu.dot_dimension_numbers<[1], [0], [0], [1], [0, 0, 1, 1], [], []>} : vector<2x32xf32>, vector<32x32xf32>, vector<2x32xf32> -> vector<2x32xf32>
    %c23_103 = arith.constant 23 : index
    %c0_104 = arith.constant 0 : index
    %224 = vector.load %arg10[%c23_103, %c0_104] : memref<37x32xf32, #tpu.memory_space<vmem>>, vector<1x32xf32>
    %225 = vector.broadcast %224 : vector<1x32xf32> to vector<2x32xf32>
    %226 = arith.addf %223, %225 : vector<2x32xf32>
    %c1056 = arith.constant 1056 : index
    %c0_105 = arith.constant 0 : index
    %227 = vector.load %arg9[%c1056, %c0_105] : memref<1504x32xf32, #tpu.memory_space<vmem>>, vector<32x32xf32>
    %cst_106 = arith.constant dense<0.000000e+00> : vector<2x32xf32>
    %228 = tpu.matmul %226, %227, %cst_106 {dimension_numbers = #tpu.dot_dimension_numbers<[1], [0], [0], [1], [0, 0, 1, 1], [], []>} : vector<2x32xf32>, vector<32x32xf32>, vector<2x32xf32> -> vector<2x32xf32>
    %229 = arith.addf %214, %228 : vector<2x32xf32>
    %c25 = arith.constant 25 : index
    %c0_107 = arith.constant 0 : index
    %230 = vector.load %arg10[%c25, %c0_107] : memref<37x32xf32, #tpu.memory_space<vmem>>, vector<1x32xf32>
    %231 = vector.broadcast %230 : vector<1x32xf32> to vector<2x32xf32>
    %232 = arith.addf %229, %231 : vector<2x32xf32>
    %cst_108 = arith.constant 0.000000e+00 : f32
    %233 = vector.broadcast %cst_108 : f32 to vector<2x32xf32>
    %234 = arith.maximumf %232, %233 : vector<2x32xf32>
    %cst_109 = arith.constant dense<0xFF800000> : vector<2xf32>
    %235 = vector.multi_reduction <maximumf>, %212, %cst_109 [1] : vector<2x32xf32> to vector<2xf32>
    %236 = vector.shape_cast %235 : vector<2xf32> to vector<2x1xf32>
    %237 = vector.broadcast %236 : vector<2x1xf32> to vector<2x32xf32>
    %238 = arith.subf %212, %237 : vector<2x32xf32>
    %239 = math.exp %238 : vector<2x32xf32>
    %cst_110 = arith.constant dense<0.000000e+00> : vector<2xf32>
    %240 = vector.multi_reduction <add>, %239, %cst_110 [1] : vector<2x32xf32> to vector<2xf32>
    %241 = vector.shape_cast %240 : vector<2xf32> to vector<2x1xf32>
    %242 = vector.broadcast %241 : vector<2x1xf32> to vector<2x32xf32>
    %243 = arith.divf %239, %242 : vector<2x32xf32>
    %cst_111 = arith.constant dense<0xFF800000> : vector<2xf32>
    %244 = vector.multi_reduction <maximumf>, %234, %cst_111 [1] : vector<2x32xf32> to vector<2xf32>
    %245 = vector.shape_cast %244 : vector<2xf32> to vector<2x1xf32>
    %246 = vector.broadcast %245 : vector<2x1xf32> to vector<2x32xf32>
    %247 = arith.subf %234, %246 : vector<2x32xf32>
    %248 = math.exp %247 : vector<2x32xf32>
    %cst_112 = arith.constant dense<0.000000e+00> : vector<2xf32>
    %249 = vector.multi_reduction <add>, %248, %cst_112 [1] : vector<2x32xf32> to vector<2xf32>
    %250 = vector.shape_cast %249 : vector<2xf32> to vector<2x1xf32>
    %251 = vector.broadcast %250 : vector<2x1xf32> to vector<2x32xf32>
    %252 = arith.divf %248, %251 : vector<2x32xf32>
    %c0_113 = arith.constant 0 : index
    %c0_114 = arith.constant 0 : index
    %253 = vector.load %arg5[%c0_113, %c0_114] : memref<4x32xf32, #tpu.memory_space<vmem>>, vector<4x32xf32>
    %254 = vector.extract_strided_slice %253 {offsets = [0, 0], sizes = [2, 32], strides = [1, 1]} : vector<4x32xf32> to vector<2x32xf32>
    %255 = arith.addf %212, %254 : vector<2x32xf32>
    %256 = vector.extract_strided_slice %255 {offsets = [0, 0], sizes = [2, 8], strides = [1, 1]} : vector<2x32xf32> to vector<2x8xf32>
    %257 = tpu.iota {dimensions = array<i32: 1>} : vector<2x8xi32>
    %cst_115 = arith.constant dense<0xFF800000> : vector<2xf32>
    %258 = vector.multi_reduction <maximumf>, %256, %cst_115 [1] : vector<2x8xf32> to vector<2xf32>
    %259 = vector.shape_cast %258 : vector<2xf32> to vector<2x1xf32>
    %260 = vector.broadcast %259 : vector<2x1xf32> to vector<2x8xf32>
    %261 = arith.cmpf oeq, %256, %260 : vector<2x8xf32>
    %c8_i32 = arith.constant 8 : i32
    %262 = vector.broadcast %c8_i32 : i32 to vector<2x8xi32>
    %263 = arith.select %261, %257, %262 : vector<2x8xi1>, vector<2x8xi32>
    %cst_116 = arith.constant dense<2147483647> : vector<2xi32>
    %264 = vector.multi_reduction <minsi>, %263, %cst_116 [1] : vector<2x8xi32> to vector<2xi32>
    %265 = vector.shape_cast %264 : vector<2xi32> to vector<2x1xi32>
    %266 = vector.broadcast %265 : vector<2x1xi32> to vector<2x8xi32>
    %267 = arith.cmpi eq, %257, %266 : vector<2x8xi32>
    %268 = arith.extui %267 : vector<2x8xi1> to vector<2x8xi32>
    %269 = arith.sitofp %268 : vector<2x8xi32> to vector<2x8xf32>
    %270 = vector.extract_strided_slice %255 {offsets = [0, 8], sizes = [2, 8], strides = [1, 1]} : vector<2x32xf32> to vector<2x8xf32>
    %271 = tpu.iota {dimensions = array<i32: 1>} : vector<2x8xi32>
    %cst_117 = arith.constant dense<0xFF800000> : vector<2xf32>
    %272 = vector.multi_reduction <maximumf>, %270, %cst_117 [1] : vector<2x8xf32> to vector<2xf32>
    %273 = vector.shape_cast %272 : vector<2xf32> to vector<2x1xf32>
    %274 = vector.broadcast %273 : vector<2x1xf32> to vector<2x8xf32>
    %275 = arith.cmpf oeq, %270, %274 : vector<2x8xf32>
    %c8_i32_118 = arith.constant 8 : i32
    %276 = vector.broadcast %c8_i32_118 : i32 to vector<2x8xi32>
    %277 = arith.select %275, %271, %276 : vector<2x8xi1>, vector<2x8xi32>
    %cst_119 = arith.constant dense<2147483647> : vector<2xi32>
    %278 = vector.multi_reduction <minsi>, %277, %cst_119 [1] : vector<2x8xi32> to vector<2xi32>
    %279 = vector.shape_cast %278 : vector<2xi32> to vector<2x1xi32>
    %280 = vector.broadcast %279 : vector<2x1xi32> to vector<2x8xi32>
    %281 = arith.cmpi eq, %271, %280 : vector<2x8xi32>
    %282 = arith.extui %281 : vector<2x8xi1> to vector<2x8xi32>
    %283 = arith.sitofp %282 : vector<2x8xi32> to vector<2x8xf32>
    %284 = vector.extract_strided_slice %255 {offsets = [0, 16], sizes = [2, 8], strides = [1, 1]} : vector<2x32xf32> to vector<2x8xf32>
    %285 = tpu.iota {dimensions = array<i32: 1>} : vector<2x8xi32>
    %cst_120 = arith.constant dense<0xFF800000> : vector<2xf32>
    %286 = vector.multi_reduction <maximumf>, %284, %cst_120 [1] : vector<2x8xf32> to vector<2xf32>
    %287 = vector.shape_cast %286 : vector<2xf32> to vector<2x1xf32>
    %288 = vector.broadcast %287 : vector<2x1xf32> to vector<2x8xf32>
    %289 = arith.cmpf oeq, %284, %288 : vector<2x8xf32>
    %c8_i32_121 = arith.constant 8 : i32
    %290 = vector.broadcast %c8_i32_121 : i32 to vector<2x8xi32>
    %291 = arith.select %289, %285, %290 : vector<2x8xi1>, vector<2x8xi32>
    %cst_122 = arith.constant dense<2147483647> : vector<2xi32>
    %292 = vector.multi_reduction <minsi>, %291, %cst_122 [1] : vector<2x8xi32> to vector<2xi32>
    %293 = vector.shape_cast %292 : vector<2xi32> to vector<2x1xi32>
    %294 = vector.broadcast %293 : vector<2x1xi32> to vector<2x8xi32>
    %295 = arith.cmpi eq, %285, %294 : vector<2x8xi32>
    %296 = arith.extui %295 : vector<2x8xi1> to vector<2x8xi32>
    %297 = arith.sitofp %296 : vector<2x8xi32> to vector<2x8xf32>
    %298 = vector.extract_strided_slice %255 {offsets = [0, 24], sizes = [2, 8], strides = [1, 1]} : vector<2x32xf32> to vector<2x8xf32>
    %299 = tpu.iota {dimensions = array<i32: 1>} : vector<2x8xi32>
    %cst_123 = arith.constant dense<0xFF800000> : vector<2xf32>
    %300 = vector.multi_reduction <maximumf>, %298, %cst_123 [1] : vector<2x8xf32> to vector<2xf32>
    %301 = vector.shape_cast %300 : vector<2xf32> to vector<2x1xf32>
    %302 = vector.broadcast %301 : vector<2x1xf32> to vector<2x8xf32>
    %303 = arith.cmpf oeq, %298, %302 : vector<2x8xf32>
    %c8_i32_124 = arith.constant 8 : i32
    %304 = vector.broadcast %c8_i32_124 : i32 to vector<2x8xi32>
    %305 = arith.select %303, %299, %304 : vector<2x8xi1>, vector<2x8xi32>
    %cst_125 = arith.constant dense<2147483647> : vector<2xi32>
    %306 = vector.multi_reduction <minsi>, %305, %cst_125 [1] : vector<2x8xi32> to vector<2xi32>
    %307 = vector.shape_cast %306 : vector<2xi32> to vector<2x1xi32>
    %308 = vector.broadcast %307 : vector<2x1xi32> to vector<2x8xi32>
    %309 = arith.cmpi eq, %299, %308 : vector<2x8xi32>
    %310 = arith.extui %309 : vector<2x8xi1> to vector<2x8xi32>
    %311 = arith.sitofp %310 : vector<2x8xi32> to vector<2x8xf32>
    %312 = tpu.concatenate %269, %283, %297, %311 in 1 : vector<2x8xf32>, vector<2x8xf32>, vector<2x8xf32>, vector<2x8xf32> -> vector<2x32xf32>
    %313 = vector.extract_strided_slice %253 {offsets = [2, 0], sizes = [2, 32], strides = [1, 1]} : vector<4x32xf32> to vector<2x32xf32>
    %314 = arith.addf %234, %313 : vector<2x32xf32>
    %315 = vector.extract_strided_slice %314 {offsets = [0, 0], sizes = [2, 8], strides = [1, 1]} : vector<2x32xf32> to vector<2x8xf32>
    %316 = tpu.iota {dimensions = array<i32: 1>} : vector<2x8xi32>
    %cst_126 = arith.constant dense<0xFF800000> : vector<2xf32>
    %317 = vector.multi_reduction <maximumf>, %315, %cst_126 [1] : vector<2x8xf32> to vector<2xf32>
    %318 = vector.shape_cast %317 : vector<2xf32> to vector<2x1xf32>
    %319 = vector.broadcast %318 : vector<2x1xf32> to vector<2x8xf32>
    %320 = arith.cmpf oeq, %315, %319 : vector<2x8xf32>
    %c8_i32_127 = arith.constant 8 : i32
    %321 = vector.broadcast %c8_i32_127 : i32 to vector<2x8xi32>
    %322 = arith.select %320, %316, %321 : vector<2x8xi1>, vector<2x8xi32>
    %cst_128 = arith.constant dense<2147483647> : vector<2xi32>
    %323 = vector.multi_reduction <minsi>, %322, %cst_128 [1] : vector<2x8xi32> to vector<2xi32>
    %324 = vector.shape_cast %323 : vector<2xi32> to vector<2x1xi32>
    %325 = vector.broadcast %324 : vector<2x1xi32> to vector<2x8xi32>
    %326 = arith.cmpi eq, %316, %325 : vector<2x8xi32>
    %327 = arith.extui %326 : vector<2x8xi1> to vector<2x8xi32>
    %328 = arith.sitofp %327 : vector<2x8xi32> to vector<2x8xf32>
    %329 = vector.extract_strided_slice %314 {offsets = [0, 8], sizes = [2, 8], strides = [1, 1]} : vector<2x32xf32> to vector<2x8xf32>
    %330 = tpu.iota {dimensions = array<i32: 1>} : vector<2x8xi32>
    %cst_129 = arith.constant dense<0xFF800000> : vector<2xf32>
    %331 = vector.multi_reduction <maximumf>, %329, %cst_129 [1] : vector<2x8xf32> to vector<2xf32>
    %332 = vector.shape_cast %331 : vector<2xf32> to vector<2x1xf32>
    %333 = vector.broadcast %332 : vector<2x1xf32> to vector<2x8xf32>
    %334 = arith.cmpf oeq, %329, %333 : vector<2x8xf32>
    %c8_i32_130 = arith.constant 8 : i32
    %335 = vector.broadcast %c8_i32_130 : i32 to vector<2x8xi32>
    %336 = arith.select %334, %330, %335 : vector<2x8xi1>, vector<2x8xi32>
    %cst_131 = arith.constant dense<2147483647> : vector<2xi32>
    %337 = vector.multi_reduction <minsi>, %336, %cst_131 [1] : vector<2x8xi32> to vector<2xi32>
    %338 = vector.shape_cast %337 : vector<2xi32> to vector<2x1xi32>
    %339 = vector.broadcast %338 : vector<2x1xi32> to vector<2x8xi32>
    %340 = arith.cmpi eq, %330, %339 : vector<2x8xi32>
    %341 = arith.extui %340 : vector<2x8xi1> to vector<2x8xi32>
    %342 = arith.sitofp %341 : vector<2x8xi32> to vector<2x8xf32>
    %343 = vector.extract_strided_slice %314 {offsets = [0, 16], sizes = [2, 8], strides = [1, 1]} : vector<2x32xf32> to vector<2x8xf32>
    %344 = tpu.iota {dimensions = array<i32: 1>} : vector<2x8xi32>
    %cst_132 = arith.constant dense<0xFF800000> : vector<2xf32>
    %345 = vector.multi_reduction <maximumf>, %343, %cst_132 [1] : vector<2x8xf32> to vector<2xf32>
    %346 = vector.shape_cast %345 : vector<2xf32> to vector<2x1xf32>
    %347 = vector.broadcast %346 : vector<2x1xf32> to vector<2x8xf32>
    %348 = arith.cmpf oeq, %343, %347 : vector<2x8xf32>
    %c8_i32_133 = arith.constant 8 : i32
    %349 = vector.broadcast %c8_i32_133 : i32 to vector<2x8xi32>
    %350 = arith.select %348, %344, %349 : vector<2x8xi1>, vector<2x8xi32>
    %cst_134 = arith.constant dense<2147483647> : vector<2xi32>
    %351 = vector.multi_reduction <minsi>, %350, %cst_134 [1] : vector<2x8xi32> to vector<2xi32>
    %352 = vector.shape_cast %351 : vector<2xi32> to vector<2x1xi32>
    %353 = vector.broadcast %352 : vector<2x1xi32> to vector<2x8xi32>
    %354 = arith.cmpi eq, %344, %353 : vector<2x8xi32>
    %355 = arith.extui %354 : vector<2x8xi1> to vector<2x8xi32>
    %356 = arith.sitofp %355 : vector<2x8xi32> to vector<2x8xf32>
    %357 = vector.extract_strided_slice %314 {offsets = [0, 24], sizes = [2, 8], strides = [1, 1]} : vector<2x32xf32> to vector<2x8xf32>
    %358 = tpu.iota {dimensions = array<i32: 1>} : vector<2x8xi32>
    %cst_135 = arith.constant dense<0xFF800000> : vector<2xf32>
    %359 = vector.multi_reduction <maximumf>, %357, %cst_135 [1] : vector<2x8xf32> to vector<2xf32>
    %360 = vector.shape_cast %359 : vector<2xf32> to vector<2x1xf32>
    %361 = vector.broadcast %360 : vector<2x1xf32> to vector<2x8xf32>
    %362 = arith.cmpf oeq, %357, %361 : vector<2x8xf32>
    %c8_i32_136 = arith.constant 8 : i32
    %363 = vector.broadcast %c8_i32_136 : i32 to vector<2x8xi32>
    %364 = arith.select %362, %358, %363 : vector<2x8xi1>, vector<2x8xi32>
    %cst_137 = arith.constant dense<2147483647> : vector<2xi32>
    %365 = vector.multi_reduction <minsi>, %364, %cst_137 [1] : vector<2x8xi32> to vector<2xi32>
    %366 = vector.shape_cast %365 : vector<2xi32> to vector<2x1xi32>
    %367 = vector.broadcast %366 : vector<2x1xi32> to vector<2x8xi32>
    %368 = arith.cmpi eq, %358, %367 : vector<2x8xi32>
    %369 = arith.extui %368 : vector<2x8xi1> to vector<2x8xi32>
    %370 = arith.sitofp %369 : vector<2x8xi32> to vector<2x8xf32>
    %371 = tpu.concatenate %328, %342, %356, %370 in 1 : vector<2x8xf32>, vector<2x8xf32>, vector<2x8xf32>, vector<2x8xf32> -> vector<2x32xf32>
    %c448 = arith.constant 448 : index
    %c0_138 = arith.constant 0 : index
    %372 = vector.load %arg9[%c448, %c0_138] : memref<1504x32xf32, #tpu.memory_space<vmem>>, vector<32x32xf32>
    %cst_139 = arith.constant dense<0.000000e+00> : vector<16x32xf32>
    %373 = tpu.matmul %12, %372, %cst_139 {dimension_numbers = #tpu.dot_dimension_numbers<[1], [0], [0], [1], [0, 0, 1, 1], [], []>} : vector<16x32xf32>, vector<32x32xf32>, vector<16x32xf32> -> vector<16x32xf32>
    %c480 = arith.constant 480 : index
    %c0_140 = arith.constant 0 : index
    %374 = vector.load %arg9[%c480, %c0_140] : memref<1504x32xf32, #tpu.memory_space<vmem>>, vector<32x32xf32>
    %cst_141 = arith.constant dense<0.000000e+00> : vector<16x32xf32>
    %375 = tpu.matmul %19, %374, %cst_141 {dimension_numbers = #tpu.dot_dimension_numbers<[1], [0], [0], [1], [0, 0, 1, 1], [], []>} : vector<16x32xf32>, vector<32x32xf32>, vector<16x32xf32> -> vector<16x32xf32>
    %376 = arith.addf %373, %375 : vector<16x32xf32>
    %c11 = arith.constant 11 : index
    %c0_142 = arith.constant 0 : index
    %377 = vector.load %arg10[%c11, %c0_142] : memref<37x32xf32, #tpu.memory_space<vmem>>, vector<1x32xf32>
    %378 = vector.broadcast %377 : vector<1x32xf32> to vector<16x32xf32>
    %379 = arith.addf %376, %378 : vector<16x32xf32>
    %c544 = arith.constant 544 : index
    %c0_143 = arith.constant 0 : index
    %380 = vector.load %arg9[%c544, %c0_143] : memref<1504x32xf32, #tpu.memory_space<vmem>>, vector<32x32xf32>
    %cst_144 = arith.constant dense<0.000000e+00> : vector<2x32xf32>
    %381 = tpu.matmul %40, %380, %cst_144 {dimension_numbers = #tpu.dot_dimension_numbers<[1], [0], [0], [1], [0, 0, 1, 1], [], []>} : vector<2x32xf32>, vector<32x32xf32>, vector<2x32xf32> -> vector<2x32xf32>
    %c512 = arith.constant 512 : index
    %c0_145 = arith.constant 0 : index
    %382 = vector.load %arg9[%c512, %c0_145] : memref<1504x32xf32, #tpu.memory_space<vmem>>, vector<32x32xf32>
    %cst_146 = arith.constant dense<0.000000e+00> : vector<16x32xf32>
    %383 = tpu.matmul %379, %382, %cst_146 {dimension_numbers = #tpu.dot_dimension_numbers<[1], [0], [0], [1], [0, 0, 1, 1], [], []>} : vector<16x32xf32>, vector<32x32xf32>, vector<16x32xf32> -> vector<16x32xf32>
    %c12 = arith.constant 12 : index
    %c0_147 = arith.constant 0 : index
    %384 = vector.load %arg10[%c12, %c0_147] : memref<37x32xf32, #tpu.memory_space<vmem>>, vector<1x32xf32>
    %385 = vector.broadcast %384 : vector<1x32xf32> to vector<16x32xf32>
    %386 = arith.addf %383, %385 : vector<16x32xf32>
    %387 = vector.shape_cast %386 : vector<16x32xf32> to vector<2x8x32xf32>
    %388 = vector.shape_cast %381 : vector<2x32xf32> to vector<2x1x32xf32>
    %389 = vector.shape_cast %388 : vector<2x1x32xf32> to vector<2x1x32xf32>
    %390 = vector.broadcast %389 : vector<2x1x32xf32> to vector<2x8x32xf32>
    %391 = arith.addf %387, %390 : vector<2x8x32xf32>
    %cst_148 = arith.constant 0.000000e+00 : f32
    %392 = vector.broadcast %cst_148 : f32 to vector<2x8x32xf32>
    %393 = arith.cmpf oge, %391, %392 : vector<2x8x32xf32>
    %cst_149 = arith.constant 1.000000e-01 : f32
    %394 = vector.broadcast %cst_149 : f32 to vector<2x8x32xf32>
    %395 = arith.mulf %394, %391 : vector<2x8x32xf32>
    %396 = arith.select %393, %391, %395 : vector<2x8x32xi1>, vector<2x8x32xf32>
    %397 = vector.shape_cast %396 : vector<2x8x32xf32> to vector<16x32xf32>
    %c576 = arith.constant 576 : index
    %c0_150 = arith.constant 0 : index
    %398 = vector.load %arg9[%c576, %c0_150] : memref<1504x32xf32, #tpu.memory_space<vmem>>, vector<32x32xf32>
    %cst_151 = arith.constant dense<0.000000e+00> : vector<16x32xf32>
    %399 = tpu.matmul %397, %398, %cst_151 {dimension_numbers = #tpu.dot_dimension_numbers<[1], [0], [0], [1], [0, 0, 1, 1], [], []>} : vector<16x32xf32>, vector<32x32xf32>, vector<16x32xf32> -> vector<16x32xf32>
    %c13 = arith.constant 13 : index
    %c0_152 = arith.constant 0 : index
    %400 = vector.load %arg10[%c13, %c0_152] : memref<37x32xf32, #tpu.memory_space<vmem>>, vector<1x32xf32>
    %401 = vector.broadcast %400 : vector<1x32xf32> to vector<16x32xf32>
    %402 = arith.addf %399, %401 : vector<16x32xf32>
    %cst_153 = arith.constant 0.000000e+00 : f32
    %403 = vector.broadcast %cst_153 : f32 to vector<16x32xf32>
    %404 = arith.cmpf oge, %402, %403 : vector<16x32xf32>
    %cst_154 = arith.constant 1.000000e-01 : f32
    %405 = vector.broadcast %cst_154 : f32 to vector<16x32xf32>
    %406 = arith.mulf %405, %402 : vector<16x32xf32>
    %407 = arith.select %404, %402, %406 : vector<16x32xi1>, vector<16x32xf32>
    %408 = vector.shape_cast %407 : vector<16x32xf32> to vector<2x8x32xf32>
    %c14 = arith.constant 14 : index
    %c0_155 = arith.constant 0 : index
    %409 = vector.load %arg10[%c14, %c0_155] : memref<37x32xf32, #tpu.memory_space<vmem>>, vector<1x32xf32>
    %410 = vector.shape_cast %409 : vector<1x32xf32> to vector<1x1x32xf32>
    %411 = vector.broadcast %410 : vector<1x1x32xf32> to vector<2x8x32xf32>
    %412 = arith.mulf %408, %411 : vector<2x8x32xf32>
    %cst_156 = arith.constant dense<0.000000e+00> : vector<2x8xf32>
    %413 = vector.multi_reduction <add>, %412, %cst_156 [2] : vector<2x8x32xf32> to vector<2x8xf32>
    %414 = arith.addf %413, %55 : vector<2x8xf32>
    %cst_157 = arith.constant dense<0xFF800000> : vector<2xf32>
    %415 = vector.multi_reduction <maximumf>, %414, %cst_157 [1] : vector<2x8xf32> to vector<2xf32>
    %416 = vector.shape_cast %415 : vector<2xf32> to vector<2x1xf32>
    %417 = vector.broadcast %416 : vector<2x1xf32> to vector<2x8xf32>
    %418 = arith.subf %414, %417 : vector<2x8xf32>
    %419 = math.exp %418 : vector<2x8xf32>
    %cst_158 = arith.constant dense<0.000000e+00> : vector<2xf32>
    %420 = vector.multi_reduction <add>, %419, %cst_158 [1] : vector<2x8xf32> to vector<2xf32>
    %421 = vector.shape_cast %420 : vector<2xf32> to vector<2x1xf32>
    %422 = vector.broadcast %421 : vector<2x1xf32> to vector<2x8xf32>
    %423 = arith.divf %419, %422 : vector<2x8xf32>
    %424 = vector.shape_cast %423 : vector<2x8xf32> to vector<2x8x1xf32>
    %425 = vector.shape_cast %379 : vector<16x32xf32> to vector<2x8x32xf32>
    %426 = vector.broadcast %424 : vector<2x8x1xf32> to vector<2x8x32xf32>
    %427 = arith.mulf %426, %425 : vector<2x8x32xf32>
    %cst_159 = arith.constant dense<0.000000e+00> : vector<2x32xf32>
    %428 = vector.multi_reduction <add>, %427, %cst_159 [1] : vector<2x8x32xf32> to vector<2x32xf32>
    %c640 = arith.constant 640 : index
    %c0_160 = arith.constant 0 : index
    %429 = vector.load %arg9[%c640, %c0_160] : memref<1504x32xf32, #tpu.memory_space<vmem>>, vector<32x32xf32>
    %cst_161 = arith.constant dense<0.000000e+00> : vector<2x32xf32>
    %430 = tpu.matmul %40, %429, %cst_161 {dimension_numbers = #tpu.dot_dimension_numbers<[1], [0], [0], [1], [0, 0, 1, 1], [], []>} : vector<2x32xf32>, vector<32x32xf32>, vector<2x32xf32> -> vector<2x32xf32>
    %c608 = arith.constant 608 : index
    %c0_162 = arith.constant 0 : index
    %431 = vector.load %arg9[%c608, %c0_162] : memref<1504x32xf32, #tpu.memory_space<vmem>>, vector<32x32xf32>
    %cst_163 = arith.constant dense<0.000000e+00> : vector<12x32xf32>
    %432 = tpu.matmul %26, %431, %cst_163 {dimension_numbers = #tpu.dot_dimension_numbers<[1], [0], [0], [1], [0, 0, 1, 1], [], []>} : vector<12x32xf32>, vector<32x32xf32>, vector<12x32xf32> -> vector<12x32xf32>
    %c15 = arith.constant 15 : index
    %c0_164 = arith.constant 0 : index
    %433 = vector.load %arg10[%c15, %c0_164] : memref<37x32xf32, #tpu.memory_space<vmem>>, vector<1x32xf32>
    %434 = vector.broadcast %433 : vector<1x32xf32> to vector<12x32xf32>
    %435 = arith.addf %432, %434 : vector<12x32xf32>
    %436 = vector.shape_cast %435 : vector<12x32xf32> to vector<2x6x32xf32>
    %437 = vector.shape_cast %430 : vector<2x32xf32> to vector<2x1x32xf32>
    %438 = vector.shape_cast %437 : vector<2x1x32xf32> to vector<2x1x32xf32>
    %439 = vector.broadcast %438 : vector<2x1x32xf32> to vector<2x6x32xf32>
    %440 = arith.addf %436, %439 : vector<2x6x32xf32>
    %cst_165 = arith.constant 0.000000e+00 : f32
    %441 = vector.broadcast %cst_165 : f32 to vector<2x6x32xf32>
    %442 = arith.cmpf oge, %440, %441 : vector<2x6x32xf32>
    %cst_166 = arith.constant 1.000000e-01 : f32
    %443 = vector.broadcast %cst_166 : f32 to vector<2x6x32xf32>
    %444 = arith.mulf %443, %440 : vector<2x6x32xf32>
    %445 = arith.select %442, %440, %444 : vector<2x6x32xi1>, vector<2x6x32xf32>
    %446 = vector.shape_cast %445 : vector<2x6x32xf32> to vector<12x32xf32>
    %c672 = arith.constant 672 : index
    %c0_167 = arith.constant 0 : index
    %447 = vector.load %arg9[%c672, %c0_167] : memref<1504x32xf32, #tpu.memory_space<vmem>>, vector<32x32xf32>
    %cst_168 = arith.constant dense<0.000000e+00> : vector<12x32xf32>
    %448 = tpu.matmul %446, %447, %cst_168 {dimension_numbers = #tpu.dot_dimension_numbers<[1], [0], [0], [1], [0, 0, 1, 1], [], []>} : vector<12x32xf32>, vector<32x32xf32>, vector<12x32xf32> -> vector<12x32xf32>
    %c16 = arith.constant 16 : index
    %c0_169 = arith.constant 0 : index
    %449 = vector.load %arg10[%c16, %c0_169] : memref<37x32xf32, #tpu.memory_space<vmem>>, vector<1x32xf32>
    %450 = vector.broadcast %449 : vector<1x32xf32> to vector<12x32xf32>
    %451 = arith.addf %448, %450 : vector<12x32xf32>
    %cst_170 = arith.constant 0.000000e+00 : f32
    %452 = vector.broadcast %cst_170 : f32 to vector<12x32xf32>
    %453 = arith.cmpf oge, %451, %452 : vector<12x32xf32>
    %cst_171 = arith.constant 1.000000e-01 : f32
    %454 = vector.broadcast %cst_171 : f32 to vector<12x32xf32>
    %455 = arith.mulf %454, %451 : vector<12x32xf32>
    %456 = arith.select %453, %451, %455 : vector<12x32xi1>, vector<12x32xf32>
    %457 = vector.shape_cast %456 : vector<12x32xf32> to vector<2x6x32xf32>
    %c17 = arith.constant 17 : index
    %c0_172 = arith.constant 0 : index
    %458 = vector.load %arg10[%c17, %c0_172] : memref<37x32xf32, #tpu.memory_space<vmem>>, vector<1x32xf32>
    %459 = vector.shape_cast %458 : vector<1x32xf32> to vector<1x1x32xf32>
    %460 = vector.broadcast %459 : vector<1x1x32xf32> to vector<2x6x32xf32>
    %461 = arith.mulf %457, %460 : vector<2x6x32xf32>
    %cst_173 = arith.constant dense<0.000000e+00> : vector<2x6xf32>
    %462 = vector.multi_reduction <add>, %461, %cst_173 [2] : vector<2x6x32xf32> to vector<2x6xf32>
    %463 = arith.addf %462, %56 : vector<2x6xf32>
    %cst_174 = arith.constant dense<0xFF800000> : vector<2xf32>
    %464 = vector.multi_reduction <maximumf>, %463, %cst_174 [1] : vector<2x6xf32> to vector<2xf32>
    %465 = vector.shape_cast %464 : vector<2xf32> to vector<2x1xf32>
    %466 = vector.broadcast %465 : vector<2x1xf32> to vector<2x6xf32>
    %467 = arith.subf %463, %466 : vector<2x6xf32>
    %468 = math.exp %467 : vector<2x6xf32>
    %cst_175 = arith.constant dense<0.000000e+00> : vector<2xf32>
    %469 = vector.multi_reduction <add>, %468, %cst_175 [1] : vector<2x6xf32> to vector<2xf32>
    %470 = vector.shape_cast %469 : vector<2xf32> to vector<2x1xf32>
    %471 = vector.broadcast %470 : vector<2x1xf32> to vector<2x6xf32>
    %472 = arith.divf %468, %471 : vector<2x6xf32>
    %473 = vector.shape_cast %472 : vector<2x6xf32> to vector<2x6x1xf32>
    %474 = vector.shape_cast %26 : vector<12x32xf32> to vector<2x6x32xf32>
    %475 = vector.broadcast %473 : vector<2x6x1xf32> to vector<2x6x32xf32>
    %476 = arith.mulf %475, %474 : vector<2x6x32xf32>
    %cst_176 = arith.constant dense<0.000000e+00> : vector<2x32xf32>
    %477 = vector.multi_reduction <add>, %476, %cst_176 [1] : vector<2x6x32xf32> to vector<2x32xf32>
    %c704 = arith.constant 704 : index
    %c0_177 = arith.constant 0 : index
    %478 = vector.load %arg9[%c704, %c0_177] : memref<1504x32xf32, #tpu.memory_space<vmem>>, vector<32x32xf32>
    %cst_178 = arith.constant dense<0.000000e+00> : vector<2x32xf32>
    %479 = tpu.matmul %428, %478, %cst_178 {dimension_numbers = #tpu.dot_dimension_numbers<[1], [0], [0], [1], [0, 0, 1, 1], [], []>} : vector<2x32xf32>, vector<32x32xf32>, vector<2x32xf32> -> vector<2x32xf32>
    %c736 = arith.constant 736 : index
    %c0_179 = arith.constant 0 : index
    %480 = vector.load %arg9[%c736, %c0_179] : memref<1504x32xf32, #tpu.memory_space<vmem>>, vector<32x32xf32>
    %cst_180 = arith.constant dense<0.000000e+00> : vector<2x32xf32>
    %481 = tpu.matmul %477, %480, %cst_180 {dimension_numbers = #tpu.dot_dimension_numbers<[1], [0], [0], [1], [0, 0, 1, 1], [], []>} : vector<2x32xf32>, vector<32x32xf32>, vector<2x32xf32> -> vector<2x32xf32>
    %482 = arith.addf %479, %481 : vector<2x32xf32>
    %c18 = arith.constant 18 : index
    %c0_181 = arith.constant 0 : index
    %483 = vector.load %arg10[%c18, %c0_181] : memref<37x32xf32, #tpu.memory_space<vmem>>, vector<1x32xf32>
    %484 = vector.broadcast %483 : vector<1x32xf32> to vector<2x32xf32>
    %485 = arith.addf %482, %484 : vector<2x32xf32>
    %cst_182 = arith.constant 0.000000e+00 : f32
    %486 = vector.broadcast %cst_182 : f32 to vector<2x32xf32>
    %487 = arith.maximumf %485, %486 : vector<2x32xf32>
    %c768 = arith.constant 768 : index
    %c0_183 = arith.constant 0 : index
    %488 = vector.load %arg9[%c768, %c0_183] : memref<1504x32xf32, #tpu.memory_space<vmem>>, vector<32x32xf32>
    %cst_184 = arith.constant dense<0.000000e+00> : vector<2x32xf32>
    %489 = tpu.matmul %487, %488, %cst_184 {dimension_numbers = #tpu.dot_dimension_numbers<[1], [0], [0], [1], [0, 0, 1, 1], [], []>} : vector<2x32xf32>, vector<32x32xf32>, vector<2x32xf32> -> vector<2x32xf32>
    %c800 = arith.constant 800 : index
    %c0_185 = arith.constant 0 : index
    %490 = vector.load %arg9[%c800, %c0_185] : memref<1504x32xf32, #tpu.memory_space<vmem>>, vector<32x32xf32>
    %cst_186 = arith.constant dense<0.000000e+00> : vector<2x32xf32>
    %491 = tpu.matmul %40, %490, %cst_186 {dimension_numbers = #tpu.dot_dimension_numbers<[1], [0], [0], [1], [0, 0, 1, 1], [], []>} : vector<2x32xf32>, vector<32x32xf32>, vector<2x32xf32> -> vector<2x32xf32>
    %492 = arith.addf %489, %491 : vector<2x32xf32>
    %c19 = arith.constant 19 : index
    %c0_187 = arith.constant 0 : index
    %493 = vector.load %arg10[%c19, %c0_187] : memref<37x32xf32, #tpu.memory_space<vmem>>, vector<1x32xf32>
    %494 = vector.broadcast %493 : vector<1x32xf32> to vector<2x32xf32>
    %495 = arith.addf %492, %494 : vector<2x32xf32>
    %c832 = arith.constant 832 : index
    %c0_188 = arith.constant 0 : index
    %496 = vector.load %arg9[%c832, %c0_188] : memref<1504x32xf32, #tpu.memory_space<vmem>>, vector<32x32xf32>
    %cst_189 = arith.constant dense<0.000000e+00> : vector<2x32xf32>
    %497 = tpu.matmul %495, %496, %cst_189 {dimension_numbers = #tpu.dot_dimension_numbers<[1], [0], [0], [1], [0, 0, 1, 1], [], []>} : vector<2x32xf32>, vector<32x32xf32>, vector<2x32xf32> -> vector<2x32xf32>
    %c20 = arith.constant 20 : index
    %c0_190 = arith.constant 0 : index
    %498 = vector.load %arg10[%c20, %c0_190] : memref<37x32xf32, #tpu.memory_space<vmem>>, vector<1x32xf32>
    %499 = vector.broadcast %498 : vector<1x32xf32> to vector<2x32xf32>
    %500 = arith.addf %497, %499 : vector<2x32xf32>
    %c864 = arith.constant 864 : index
    %c0_191 = arith.constant 0 : index
    %501 = vector.load %arg9[%c864, %c0_191] : memref<1504x32xf32, #tpu.memory_space<vmem>>, vector<32x32xf32>
    %cst_192 = arith.constant dense<0.000000e+00> : vector<2x32xf32>
    %502 = tpu.matmul %495, %501, %cst_192 {dimension_numbers = #tpu.dot_dimension_numbers<[1], [0], [0], [1], [0, 0, 1, 1], [], []>} : vector<2x32xf32>, vector<32x32xf32>, vector<2x32xf32> -> vector<2x32xf32>
    %c21 = arith.constant 21 : index
    %c0_193 = arith.constant 0 : index
    %503 = vector.load %arg10[%c21, %c0_193] : memref<37x32xf32, #tpu.memory_space<vmem>>, vector<1x32xf32>
    %504 = vector.broadcast %503 : vector<1x32xf32> to vector<2x32xf32>
    %505 = arith.addf %502, %504 : vector<2x32xf32>
    %c36 = arith.constant 36 : index
    %c0_194 = arith.constant 0 : index
    %506 = vector.load %arg10[%c36, %c0_194] : memref<37x32xf32, #tpu.memory_space<vmem>>, vector<1x32xf32>
    %c1088 = arith.constant 1088 : index
    %c0_195 = arith.constant 0 : index
    %507 = vector.load %arg9[%c1088, %c0_195] : memref<1504x32xf32, #tpu.memory_space<vmem>>, vector<32x32xf32>
    %cst_196 = arith.constant dense<0.000000e+00> : vector<2x32xf32>
    %508 = tpu.matmul %500, %507, %cst_196 {dimension_numbers = #tpu.dot_dimension_numbers<[1], [0], [0], [1], [0, 0, 1, 1], [], []>} : vector<2x32xf32>, vector<32x32xf32>, vector<2x32xf32> -> vector<2x32xf32>
    %c1120 = arith.constant 1120 : index
    %c0_197 = arith.constant 0 : index
    %509 = vector.load %arg9[%c1120, %c0_197] : memref<1504x32xf32, #tpu.memory_space<vmem>>, vector<32x32xf32>
    %cst_198 = arith.constant dense<0.000000e+00> : vector<2x32xf32>
    %510 = tpu.matmul %54, %509, %cst_198 {dimension_numbers = #tpu.dot_dimension_numbers<[1], [0], [0], [1], [0, 0, 1, 1], [], []>} : vector<2x32xf32>, vector<32x32xf32>, vector<2x32xf32> -> vector<2x32xf32>
    %511 = arith.addf %508, %510 : vector<2x32xf32>
    %c1152 = arith.constant 1152 : index
    %c0_199 = arith.constant 0 : index
    %512 = vector.load %arg9[%c1152, %c0_199] : memref<1504x32xf32, #tpu.memory_space<vmem>>, vector<32x32xf32>
    %cst_200 = arith.constant dense<0.000000e+00> : vector<2x32xf32>
    %513 = tpu.matmul %312, %512, %cst_200 {dimension_numbers = #tpu.dot_dimension_numbers<[1], [0], [0], [1], [0, 0, 1, 1], [], []>} : vector<2x32xf32>, vector<32x32xf32>, vector<2x32xf32> -> vector<2x32xf32>
    %514 = arith.addf %511, %513 : vector<2x32xf32>
    %c26 = arith.constant 26 : index
    %c0_201 = arith.constant 0 : index
    %515 = vector.load %arg10[%c26, %c0_201] : memref<37x32xf32, #tpu.memory_space<vmem>>, vector<1x32xf32>
    %516 = vector.broadcast %515 : vector<1x32xf32> to vector<2x32xf32>
    %517 = arith.addf %514, %516 : vector<2x32xf32>
    %cst_202 = arith.constant 0.000000e+00 : f32
    %518 = vector.broadcast %cst_202 : f32 to vector<2x32xf32>
    %519 = arith.maximumf %517, %518 : vector<2x32xf32>
    %c27 = arith.constant 27 : index
    %c0_203 = arith.constant 0 : index
    %520 = vector.load %arg10[%c27, %c0_203] : memref<37x32xf32, #tpu.memory_space<vmem>>, vector<1x32xf32>
    %521 = vector.broadcast %520 : vector<1x32xf32> to vector<2x32xf32>
    %522 = arith.mulf %519, %521 : vector<2x32xf32>
    %cst_204 = arith.constant dense<0.000000e+00> : vector<2xf32>
    %523 = vector.multi_reduction <add>, %522, %cst_204 [1] : vector<2x32xf32> to vector<2xf32>
    %524 = vector.shape_cast %523 : vector<2xf32> to vector<2x1xf32>
    %525 = vector.extract_strided_slice %506 {offsets = [0, 0], sizes = [1, 1], strides = [1, 1]} : vector<1x32xf32> to vector<1x1xf32>
    %526 = vector.broadcast %525 : vector<1x1xf32> to vector<2x1xf32>
    %527 = arith.addf %524, %526 : vector<2x1xf32>
    %c1088_205 = arith.constant 1088 : index
    %c0_206 = arith.constant 0 : index
    %528 = vector.load %arg9[%c1088_205, %c0_206] : memref<1504x32xf32, #tpu.memory_space<vmem>>, vector<32x32xf32>
    %cst_207 = arith.constant dense<0.000000e+00> : vector<2x32xf32>
    %529 = tpu.matmul %505, %528, %cst_207 {dimension_numbers = #tpu.dot_dimension_numbers<[1], [0], [0], [1], [0, 0, 1, 1], [], []>} : vector<2x32xf32>, vector<32x32xf32>, vector<2x32xf32> -> vector<2x32xf32>
    %c1120_208 = arith.constant 1120 : index
    %c0_209 = arith.constant 0 : index
    %530 = vector.load %arg9[%c1120_208, %c0_209] : memref<1504x32xf32, #tpu.memory_space<vmem>>, vector<32x32xf32>
    %cst_210 = arith.constant dense<0.000000e+00> : vector<2x32xf32>
    %531 = tpu.matmul %47, %530, %cst_210 {dimension_numbers = #tpu.dot_dimension_numbers<[1], [0], [0], [1], [0, 0, 1, 1], [], []>} : vector<2x32xf32>, vector<32x32xf32>, vector<2x32xf32> -> vector<2x32xf32>
    %532 = arith.addf %529, %531 : vector<2x32xf32>
    %c1152_211 = arith.constant 1152 : index
    %c0_212 = arith.constant 0 : index
    %533 = vector.load %arg9[%c1152_211, %c0_212] : memref<1504x32xf32, #tpu.memory_space<vmem>>, vector<32x32xf32>
    %cst_213 = arith.constant dense<0.000000e+00> : vector<2x32xf32>
    %534 = tpu.matmul %371, %533, %cst_213 {dimension_numbers = #tpu.dot_dimension_numbers<[1], [0], [0], [1], [0, 0, 1, 1], [], []>} : vector<2x32xf32>, vector<32x32xf32>, vector<2x32xf32> -> vector<2x32xf32>
    %535 = arith.addf %532, %534 : vector<2x32xf32>
    %c26_214 = arith.constant 26 : index
    %c0_215 = arith.constant 0 : index
    %536 = vector.load %arg10[%c26_214, %c0_215] : memref<37x32xf32, #tpu.memory_space<vmem>>, vector<1x32xf32>
    %537 = vector.broadcast %536 : vector<1x32xf32> to vector<2x32xf32>
    %538 = arith.addf %535, %537 : vector<2x32xf32>
    %cst_216 = arith.constant 0.000000e+00 : f32
    %539 = vector.broadcast %cst_216 : f32 to vector<2x32xf32>
    %540 = arith.maximumf %538, %539 : vector<2x32xf32>
    %c27_217 = arith.constant 27 : index
    %c0_218 = arith.constant 0 : index
    %541 = vector.load %arg10[%c27_217, %c0_218] : memref<37x32xf32, #tpu.memory_space<vmem>>, vector<1x32xf32>
    %542 = vector.broadcast %541 : vector<1x32xf32> to vector<2x32xf32>
    %543 = arith.mulf %540, %542 : vector<2x32xf32>
    %cst_219 = arith.constant dense<0.000000e+00> : vector<2xf32>
    %544 = vector.multi_reduction <add>, %543, %cst_219 [1] : vector<2x32xf32> to vector<2xf32>
    %545 = vector.shape_cast %544 : vector<2xf32> to vector<2x1xf32>
    %546 = vector.extract_strided_slice %506 {offsets = [0, 0], sizes = [1, 1], strides = [1, 1]} : vector<1x32xf32> to vector<1x1xf32>
    %547 = vector.broadcast %546 : vector<1x1xf32> to vector<2x1xf32>
    %548 = arith.addf %545, %547 : vector<2x1xf32>
    %549 = vector.extract_strided_slice %506 {offsets = [0, 1], sizes = [1, 1], strides = [1, 1]} : vector<1x32xf32> to vector<1x1xf32>
    %c1184 = arith.constant 1184 : index
    %c0_220 = arith.constant 0 : index
    %550 = vector.load %arg9[%c1184, %c0_220] : memref<1504x32xf32, #tpu.memory_space<vmem>>, vector<32x32xf32>
    %cst_221 = arith.constant dense<0.000000e+00> : vector<2x32xf32>
    %551 = tpu.matmul %54, %550, %cst_221 {dimension_numbers = #tpu.dot_dimension_numbers<[1], [0], [0], [1], [0, 0, 1, 1], [], []>} : vector<2x32xf32>, vector<32x32xf32>, vector<2x32xf32> -> vector<2x32xf32>
    %c28 = arith.constant 28 : index
    %c0_222 = arith.constant 0 : index
    %552 = vector.load %arg10[%c28, %c0_222] : memref<37x32xf32, #tpu.memory_space<vmem>>, vector<1x32xf32>
    %553 = vector.broadcast %552 : vector<1x32xf32> to vector<2x32xf32>
    %554 = arith.addf %551, %553 : vector<2x32xf32>
    %cst_223 = arith.constant 0.000000e+00 : f32
    %555 = vector.broadcast %cst_223 : f32 to vector<2x32xf32>
    %556 = arith.maximumf %554, %555 : vector<2x32xf32>
    %c1216 = arith.constant 1216 : index
    %c0_224 = arith.constant 0 : index
    %557 = vector.load %arg9[%c1216, %c0_224] : memref<1504x32xf32, #tpu.memory_space<vmem>>, vector<32x32xf32>
    %cst_225 = arith.constant dense<0.000000e+00> : vector<2x32xf32>
    %558 = tpu.matmul %556, %557, %cst_225 {dimension_numbers = #tpu.dot_dimension_numbers<[1], [0], [0], [1], [0, 0, 1, 1], [], []>} : vector<2x32xf32>, vector<32x32xf32>, vector<2x32xf32> -> vector<2x32xf32>
    %c29 = arith.constant 29 : index
    %c0_226 = arith.constant 0 : index
    %559 = vector.load %arg10[%c29, %c0_226] : memref<37x32xf32, #tpu.memory_space<vmem>>, vector<1x32xf32>
    %560 = vector.broadcast %559 : vector<1x32xf32> to vector<2x32xf32>
    %561 = arith.addf %558, %560 : vector<2x32xf32>
    %c1248 = arith.constant 1248 : index
    %c0_227 = arith.constant 0 : index
    %562 = vector.load %arg9[%c1248, %c0_227] : memref<1504x32xf32, #tpu.memory_space<vmem>>, vector<32x32xf32>
    %cst_228 = arith.constant dense<0.000000e+00> : vector<2x32xf32>
    %563 = tpu.matmul %500, %562, %cst_228 {dimension_numbers = #tpu.dot_dimension_numbers<[1], [0], [0], [1], [0, 0, 1, 1], [], []>} : vector<2x32xf32>, vector<32x32xf32>, vector<2x32xf32> -> vector<2x32xf32>
    %c1280 = arith.constant 1280 : index
    %c0_229 = arith.constant 0 : index
    %564 = vector.load %arg9[%c1280, %c0_229] : memref<1504x32xf32, #tpu.memory_space<vmem>>, vector<32x32xf32>
    %cst_230 = arith.constant dense<0.000000e+00> : vector<2x32xf32>
    %565 = tpu.matmul %561, %564, %cst_230 {dimension_numbers = #tpu.dot_dimension_numbers<[1], [0], [0], [1], [0, 0, 1, 1], [], []>} : vector<2x32xf32>, vector<32x32xf32>, vector<2x32xf32> -> vector<2x32xf32>
    %566 = arith.addf %563, %565 : vector<2x32xf32>
    %c1312 = arith.constant 1312 : index
    %c0_231 = arith.constant 0 : index
    %567 = vector.load %arg9[%c1312, %c0_231] : memref<1504x32xf32, #tpu.memory_space<vmem>>, vector<32x32xf32>
    %cst_232 = arith.constant dense<0.000000e+00> : vector<2x32xf32>
    %568 = tpu.matmul %212, %567, %cst_232 {dimension_numbers = #tpu.dot_dimension_numbers<[1], [0], [0], [1], [0, 0, 1, 1], [], []>} : vector<2x32xf32>, vector<32x32xf32>, vector<2x32xf32> -> vector<2x32xf32>
    %569 = arith.addf %566, %568 : vector<2x32xf32>
    %c30 = arith.constant 30 : index
    %c0_233 = arith.constant 0 : index
    %570 = vector.load %arg10[%c30, %c0_233] : memref<37x32xf32, #tpu.memory_space<vmem>>, vector<1x32xf32>
    %571 = vector.broadcast %570 : vector<1x32xf32> to vector<2x32xf32>
    %572 = arith.addf %569, %571 : vector<2x32xf32>
    %cst_234 = arith.constant 0.000000e+00 : f32
    %573 = vector.broadcast %cst_234 : f32 to vector<2x32xf32>
    %574 = arith.maximumf %572, %573 : vector<2x32xf32>
    %c1344 = arith.constant 1344 : index
    %c0_235 = arith.constant 0 : index
    %575 = vector.load %arg9[%c1344, %c0_235] : memref<1504x32xf32, #tpu.memory_space<vmem>>, vector<32x32xf32>
    %cst_236 = arith.constant dense<0.000000e+00> : vector<2x32xf32>
    %576 = tpu.matmul %574, %575, %cst_236 {dimension_numbers = #tpu.dot_dimension_numbers<[1], [0], [0], [1], [0, 0, 1, 1], [], []>} : vector<2x32xf32>, vector<32x32xf32>, vector<2x32xf32> -> vector<2x32xf32>
    %c31 = arith.constant 31 : index
    %c0_237 = arith.constant 0 : index
    %577 = vector.load %arg10[%c31, %c0_237] : memref<37x32xf32, #tpu.memory_space<vmem>>, vector<1x32xf32>
    %578 = vector.broadcast %577 : vector<1x32xf32> to vector<2x32xf32>
    %579 = arith.addf %576, %578 : vector<2x32xf32>
    %cst_238 = arith.constant 0.000000e+00 : f32
    %580 = vector.broadcast %cst_238 : f32 to vector<2x32xf32>
    %581 = arith.maximumf %579, %580 : vector<2x32xf32>
    %c32_239 = arith.constant 32 : index
    %c0_240 = arith.constant 0 : index
    %582 = vector.load %arg10[%c32_239, %c0_240] : memref<37x32xf32, #tpu.memory_space<vmem>>, vector<1x32xf32>
    %583 = vector.broadcast %582 : vector<1x32xf32> to vector<2x32xf32>
    %584 = arith.mulf %581, %583 : vector<2x32xf32>
    %cst_241 = arith.constant dense<0.000000e+00> : vector<2xf32>
    %585 = vector.multi_reduction <add>, %584, %cst_241 [1] : vector<2x32xf32> to vector<2xf32>
    %586 = vector.shape_cast %585 : vector<2xf32> to vector<2x1xf32>
    %587 = vector.broadcast %549 : vector<1x1xf32> to vector<2x1xf32>
    %588 = arith.addf %586, %587 : vector<2x1xf32>
    %589 = vector.extract_strided_slice %506 {offsets = [0, 2], sizes = [1, 1], strides = [1, 1]} : vector<1x32xf32> to vector<1x1xf32>
    %c1184_242 = arith.constant 1184 : index
    %c0_243 = arith.constant 0 : index
    %590 = vector.load %arg9[%c1184_242, %c0_243] : memref<1504x32xf32, #tpu.memory_space<vmem>>, vector<32x32xf32>
    %cst_244 = arith.constant dense<0.000000e+00> : vector<2x32xf32>
    %591 = tpu.matmul %47, %590, %cst_244 {dimension_numbers = #tpu.dot_dimension_numbers<[1], [0], [0], [1], [0, 0, 1, 1], [], []>} : vector<2x32xf32>, vector<32x32xf32>, vector<2x32xf32> -> vector<2x32xf32>
    %c28_245 = arith.constant 28 : index
    %c0_246 = arith.constant 0 : index
    %592 = vector.load %arg10[%c28_245, %c0_246] : memref<37x32xf32, #tpu.memory_space<vmem>>, vector<1x32xf32>
    %593 = vector.broadcast %592 : vector<1x32xf32> to vector<2x32xf32>
    %594 = arith.addf %591, %593 : vector<2x32xf32>
    %cst_247 = arith.constant 0.000000e+00 : f32
    %595 = vector.broadcast %cst_247 : f32 to vector<2x32xf32>
    %596 = arith.maximumf %594, %595 : vector<2x32xf32>
    %c1216_248 = arith.constant 1216 : index
    %c0_249 = arith.constant 0 : index
    %597 = vector.load %arg9[%c1216_248, %c0_249] : memref<1504x32xf32, #tpu.memory_space<vmem>>, vector<32x32xf32>
    %cst_250 = arith.constant dense<0.000000e+00> : vector<2x32xf32>
    %598 = tpu.matmul %596, %597, %cst_250 {dimension_numbers = #tpu.dot_dimension_numbers<[1], [0], [0], [1], [0, 0, 1, 1], [], []>} : vector<2x32xf32>, vector<32x32xf32>, vector<2x32xf32> -> vector<2x32xf32>
    %c29_251 = arith.constant 29 : index
    %c0_252 = arith.constant 0 : index
    %599 = vector.load %arg10[%c29_251, %c0_252] : memref<37x32xf32, #tpu.memory_space<vmem>>, vector<1x32xf32>
    %600 = vector.broadcast %599 : vector<1x32xf32> to vector<2x32xf32>
    %601 = arith.addf %598, %600 : vector<2x32xf32>
    %c1376 = arith.constant 1376 : index
    %c0_253 = arith.constant 0 : index
    %602 = vector.load %arg9[%c1376, %c0_253] : memref<1504x32xf32, #tpu.memory_space<vmem>>, vector<32x32xf32>
    %cst_254 = arith.constant dense<0.000000e+00> : vector<2x32xf32>
    %603 = tpu.matmul %505, %602, %cst_254 {dimension_numbers = #tpu.dot_dimension_numbers<[1], [0], [0], [1], [0, 0, 1, 1], [], []>} : vector<2x32xf32>, vector<32x32xf32>, vector<2x32xf32> -> vector<2x32xf32>
    %c1408 = arith.constant 1408 : index
    %c0_255 = arith.constant 0 : index
    %604 = vector.load %arg9[%c1408, %c0_255] : memref<1504x32xf32, #tpu.memory_space<vmem>>, vector<32x32xf32>
    %cst_256 = arith.constant dense<0.000000e+00> : vector<2x32xf32>
    %605 = tpu.matmul %601, %604, %cst_256 {dimension_numbers = #tpu.dot_dimension_numbers<[1], [0], [0], [1], [0, 0, 1, 1], [], []>} : vector<2x32xf32>, vector<32x32xf32>, vector<2x32xf32> -> vector<2x32xf32>
    %606 = arith.addf %603, %605 : vector<2x32xf32>
    %c1440 = arith.constant 1440 : index
    %c0_257 = arith.constant 0 : index
    %607 = vector.load %arg9[%c1440, %c0_257] : memref<1504x32xf32, #tpu.memory_space<vmem>>, vector<32x32xf32>
    %cst_258 = arith.constant dense<0.000000e+00> : vector<2x32xf32>
    %608 = tpu.matmul %234, %607, %cst_258 {dimension_numbers = #tpu.dot_dimension_numbers<[1], [0], [0], [1], [0, 0, 1, 1], [], []>} : vector<2x32xf32>, vector<32x32xf32>, vector<2x32xf32> -> vector<2x32xf32>
    %609 = arith.addf %606, %608 : vector<2x32xf32>
    %c33 = arith.constant 33 : index
    %c0_259 = arith.constant 0 : index
    %610 = vector.load %arg10[%c33, %c0_259] : memref<37x32xf32, #tpu.memory_space<vmem>>, vector<1x32xf32>
    %611 = vector.broadcast %610 : vector<1x32xf32> to vector<2x32xf32>
    %612 = arith.addf %609, %611 : vector<2x32xf32>
    %cst_260 = arith.constant 0.000000e+00 : f32
    %613 = vector.broadcast %cst_260 : f32 to vector<2x32xf32>
    %614 = arith.maximumf %612, %613 : vector<2x32xf32>
    %c1472 = arith.constant 1472 : index
    %c0_261 = arith.constant 0 : index
    %615 = vector.load %arg9[%c1472, %c0_261] : memref<1504x32xf32, #tpu.memory_space<vmem>>, vector<32x32xf32>
    %cst_262 = arith.constant dense<0.000000e+00> : vector<2x32xf32>
    %616 = tpu.matmul %614, %615, %cst_262 {dimension_numbers = #tpu.dot_dimension_numbers<[1], [0], [0], [1], [0, 0, 1, 1], [], []>} : vector<2x32xf32>, vector<32x32xf32>, vector<2x32xf32> -> vector<2x32xf32>
    %c34 = arith.constant 34 : index
    %c0_263 = arith.constant 0 : index
    %617 = vector.load %arg10[%c34, %c0_263] : memref<37x32xf32, #tpu.memory_space<vmem>>, vector<1x32xf32>
    %618 = vector.broadcast %617 : vector<1x32xf32> to vector<2x32xf32>
    %619 = arith.addf %616, %618 : vector<2x32xf32>
    %cst_264 = arith.constant 0.000000e+00 : f32
    %620 = vector.broadcast %cst_264 : f32 to vector<2x32xf32>
    %621 = arith.maximumf %619, %620 : vector<2x32xf32>
    %c35 = arith.constant 35 : index
    %c0_265 = arith.constant 0 : index
    %622 = vector.load %arg10[%c35, %c0_265] : memref<37x32xf32, #tpu.memory_space<vmem>>, vector<1x32xf32>
    %623 = vector.broadcast %622 : vector<1x32xf32> to vector<2x32xf32>
    %624 = arith.mulf %621, %623 : vector<2x32xf32>
    %cst_266 = arith.constant dense<0.000000e+00> : vector<2xf32>
    %625 = vector.multi_reduction <add>, %624, %cst_266 [1] : vector<2x32xf32> to vector<2xf32>
    %626 = vector.shape_cast %625 : vector<2xf32> to vector<2x1xf32>
    %627 = vector.broadcast %589 : vector<1x1xf32> to vector<2x1xf32>
    %628 = arith.addf %626, %627 : vector<2x1xf32>
    %629 = vector.shape_cast %40 : vector<2x32xf32> to vector<2x1x32xf32>
    %630 = vector.shape_cast %26 : vector<12x32xf32> to vector<2x6x32xf32>
    %631 = vector.broadcast %629 : vector<2x1x32xf32> to vector<2x6x32xf32>
    %632 = arith.mulf %631, %630 : vector<2x6x32xf32>
    %cst_267 = arith.constant dense<0.000000e+00> : vector<2x6xf32>
    %633 = vector.multi_reduction <add>, %632, %cst_267 [2] : vector<2x6x32xf32> to vector<2x6xf32>
    %634 = vector.shape_cast %40 : vector<2x32xf32> to vector<2x1x32xf32>
    %635 = vector.shape_cast %33 : vector<12x32xf32> to vector<2x6x32xf32>
    %636 = vector.broadcast %634 : vector<2x1x32xf32> to vector<2x6x32xf32>
    %637 = arith.mulf %636, %635 : vector<2x6x32xf32>
    %cst_268 = arith.constant dense<0.000000e+00> : vector<2x6xf32>
    %638 = vector.multi_reduction <add>, %637, %cst_268 [2] : vector<2x6x32xf32> to vector<2x6xf32>
    %cst_269 = arith.constant 0.000000e+00 : f32
    %639 = vector.broadcast %cst_269 : f32 to vector<2x80xf32>
    %640 = tpu.concatenate %40, %47, %54, %243, %252, %633, %638, %527, %548, %588, %628, %639 in 1 : vector<2x32xf32>, vector<2x32xf32>, vector<2x32xf32>, vector<2x32xf32>, vector<2x32xf32>, vector<2x6xf32>, vector<2x6xf32>, vector<2x1xf32>, vector<2x1xf32>, vector<2x1xf32>, vector<2x1xf32>, vector<2x80xf32> -> vector<2x256xf32>
    %c0_270 = arith.constant 0 : index
    %c0_271 = arith.constant 0 : index
    %641 = vector.load %arg11[%c0_270, %c0_271] : memref<2x256xf32, #tpu.memory_space<vmem>>, vector<2x256xf32>
    tpu.vector_store %arg11[%c0_270, %c0_271], %640 {strides = array<i32>} : memref<2x256xf32, #tpu.memory_space<vmem>>, vector<2x256xf32>,
    return
  }
}

</mosaic_0001>

<llo_original>
// kernel: rest_forward_core.1
$region0: #{rest_forward_core.1}
  #allocation0 [shape = 'u32[]', space=smem, size = 0x4, offset = 0x4, fixed_abs, tag = 'smem constant byte address 0x4 - core index']
  #allocation1 [shape = 'u32[144,128]{1,0:T(1,128)}', space=vmem, size = 0x12000, scoped, tag = 'internal scratch']
  %s0 = inlined_call_operand.vmem [shape: s32[16,2], index: 0, kind: input, shape index: {}]
  %s1 = inlined_call_operand.vmem [shape: s32[12,2], index: 1, kind: input, shape index: {}]
  %s2 = inlined_call_operand.vmem [shape: s32[2,3], index: 2, kind: input, shape index: {}]
  %s3 = inlined_call_operand.vmem [shape: f32[2,8], index: 3, kind: input, shape index: {}]
  %s4 = inlined_call_operand.vmem [shape: f32[2,6], index: 4, kind: input, shape index: {}]
  %s5 = inlined_call_operand.vmem [shape: f32[4,32], index: 5, kind: input, shape index: {}]
  %s6 = inlined_call_operand.vmem [shape: f32[20,32], index: 6, kind: input, shape index: {}]
  %s7 = inlined_call_operand.vmem [shape: f32[30,32], index: 7, kind: input, shape index: {}]
  %s8 = inlined_call_operand.vmem [shape: f32[6,32], index: 8, kind: input, shape index: {}]
  %s9 = inlined_call_operand.vmem [shape: f32[1504,32], index: 9, kind: input, shape index: {}]
  %s10 = inlined_call_operand.vmem [shape: f32[37,32], index: 10, kind: input, shape index: {}]
  %s11 = inlined_call_operand.vmem [shape: f32[2,256], index: 11, kind: output, shape index: {}]
  %s12 = sld [smem:[#allocation0]]
  $region54: #{rest_forward_core.1} parent=0
    _
  %s14 = ssub.s32 1, %s12
  %s15 = scalar_select 0, %s14, %s12
  // Predicated region
  $region2: #{rest_forward_core.1} parent=0 // pred_check
    _
  $region3: #{rest_forward_core.1} parent=0 // pred_check_branch
    %17 = sbr.rel (0) target = $region5
  $region4: #{rest_forward_core.1} parent=0 // pred_region
    _
  $region5: #{rest_forward_core.1} parent=0 // pred_fallthru
    _
  // Predicated region
  $region6: #{rest_forward_core.1} parent=0 // pred_check
    _
  $region7: #{rest_forward_core.1} parent=0 // pred_check_branch
    %19 = sbr.rel (0) target = $region9
  $region8: #{rest_forward_core.1} parent=0 // pred_region
    _
  $region9: #{rest_forward_core.1} parent=0 // pred_fallthru
    _
  // Predicated region
  $region10: #{rest_forward_core.1} parent=0 // pred_check
    _
  $region11: #{rest_forward_core.1} parent=0 // pred_check_branch
    %21 = sbr.rel (0) target = $region13
  $region12: #{rest_forward_core.1} parent=0 // pred_region
    _
  $region13: #{rest_forward_core.1} parent=0 // pred_fallthru
    _
  // Predicated region
  $region14: #{rest_forward_core.1} parent=0 // pred_check
    _
  $region15: #{rest_forward_core.1} parent=0 // pred_check_branch
    %23 = sbr.rel (0) target = $region17
  $region16: #{rest_forward_core.1} parent=0 // pred_region
    _
  $region17: #{rest_forward_core.1} parent=0 // pred_fallthru
    _
  // Predicated region
  $region18: #{rest_forward_core.1} parent=0 // pred_check
    _
  $region19: #{rest_forward_core.1} parent=0 // pred_check_branch
    %25 = sbr.rel (0) target = $region21
  $region20: #{rest_forward_core.1} parent=0 // pred_region
    _
  $region21: #{rest_forward_core.1} parent=0 // pred_fallthru
    _
  // Predicated region
  $region22: #{rest_forward_core.1} parent=0 // pred_check
    _
  $region23: #{rest_forward_core.1} parent=0 // pred_check_branch
    %27 = sbr.rel (0) target = $region25
  $region24: #{rest_forward_core.1} parent=0 // pred_region
    _
  $region25: #{rest_forward_core.1} parent=0 // pred_fallthru
    _
  // Predicated region
  $region26: #{rest_forward_core.1} parent=0 // pred_check
    _
  $region27: #{rest_forward_core.1} parent=0 // pred_check_branch
    %29 = sbr.rel (0) target = $region29
  $region28: #{rest_forward_core.1} parent=0 // pred_region
    _
  $region29: #{rest_forward_core.1} parent=0 // pred_fallthru
    _
  // Predicated region
  $region30: #{rest_forward_core.1} parent=0 // pred_check
    _
  $region31: #{rest_forward_core.1} parent=0 // pred_check_branch
    %31 = sbr.rel (0) target = $region33
  $region32: #{rest_forward_core.1} parent=0 // pred_region
    _
  $region33: #{rest_forward_core.1} parent=0 // pred_fallthru
    _
  // Predicated region
  $region34: #{rest_forward_core.1} parent=0 // pred_check
    _
  $region35: #{rest_forward_core.1} parent=0 // pred_check_branch
    %33 = sbr.rel (0) target = $region37
  $region36: #{rest_forward_core.1} parent=0 // pred_region
    _
  $region37: #{rest_forward_core.1} parent=0 // pred_fallthru
    _
  // Predicated region
  $region38: #{rest_forward_core.1} parent=0 // pred_check
    _
  $region39: #{rest_forward_core.1} parent=0 // pred_check_branch
    %35 = sbr.rel (0) target = $region41
  $region40: #{rest_forward_core.1} parent=0 // pred_region
    _
  $region41: #{rest_forward_core.1} parent=0 // pred_fallthru
    _
  // Predicated region
  $region42: #{rest_forward_core.1} parent=0 // pred_check
    _
  $region43: #{rest_forward_core.1} parent=0 // pred_check_branch
    %37 = sbr.rel (0) target = $region45
  $region44: #{rest_forward_core.1} parent=0 // pred_region
    _
  $region45: #{rest_forward_core.1} parent=0 // pred_fallthru
    _
  %v38 = vld [vmem:[%s6] sm:$0xff]
  %v39 = vld [vmem:[%s6 + $0x8] sm:$0xff]
  %v40 = vld [vmem:[%s6 + $0x10] sm:$0xf]
  %v41 = vld [vmem:[%s7] sm:$0xff]
  %v42 = vld [vmem:[%s7 + $0x8] sm:$0xff]
  %v43 = vld [vmem:[%s7 + $0x10] sm:$0xff]
  %v44 = vld [vmem:[%s7 + $0x18] sm:$0x3f]
  %v45 = vld [vmem:[%s8] sm:$0x3f]
  %v46 = vld [vmem:[%s0] sm:$0xff]
  %v47 = vld [vmem:[%s0 + $0x8] sm:$0xff]
  %v48 = vld [vmem:[%s1] sm:$0xff]
  %v49 = vld [vmem:[%s1 + $0x8] sm:$0xf]
  %v50 = vld [vmem:[%s2] sm:$0x3]
  %v51 = vlaneseq
  %v52 = vand.u32 %v51, 127
  %53 = vset.pattern.permute.xlu0 0
  %54 = vperm.xlu0 %53, %v46
  %v55 = vpop.permute.xlu0 %54
  %56 = vset.pattern.permute.xlu0 0
  %57 = vperm.xlu0 %56, %v47
  %v58 = vpop.permute.xlu0 %57
  %vm59 = vcmp.eq.s32.totalorder %v55, %v52
  %vm60 = vcmp.eq.s32.totalorder %v58, %v52
  %v61 = vsel %vm59, 1, 0
  %v62 = vsel %vm60, 1, 0
  %v63 = vcvt.s32.f32 %v61
  %v64 = vcvt.s32.f32 %v62
  %vm65 = vcmask 244736
  %v67 = vsel %vm65, %v63, 0
  %v70 = vsel %vm65, %v64, 0
  %vm72 = vcmask 1045504
  %v74 = vsel %vm72, %v44, 0
  %76 = vmatprep.subr.mxu0 0.0
  %77 = vmatpush1.msra.mxu0 0.0
  %78 = vmatprep.subr.mxu0 0.0
  %79 = vmatpush1.msra.mxu0 0.0
  %80 = vmatprep.subr.mxu0 0.0
  %81 = vmatpush1.msra.mxu0 0.0
  %82 = vmatprep.subr.mxu0 0.0
  %83 = vmatpush1.msra.mxu0 0.0
  %84 = vmatprep.subr.mxu0 0.0
  %85 = vmatpush1.msra.mxu0 0.0
  %86 = vmatprep.subr.mxu0 0.0
  %87 = vmatpush1.msra.mxu0 0.0
  %88 = vmatprep.subr.mxu0 0.0
  %89 = vmatpush1.msra.mxu0 0.0
  %90 = vmatprep.subr.mxu0 0.0
  %91 = vmatpush1.msra.mxu0 0.0
  %92 = vmatprep.subr.mxu0 0.0
  %93 = vmatpush1.msra.mxu0 0.0
  %94 = vmatprep.subr.mxu0 0.0
  %95 = vmatpush1.msra.mxu0 0.0
  %96 = vmatprep.subr.mxu0 0.0
  %97 = vmatpush1.msra.mxu0 0.0
  %98 = vmatprep.subr.mxu0 0.0
  %99 = vmatpush1.msra.mxu0 0.0
  %100 = vmatprep.subr.mxu0 0.0
  %101 = vmatpush1.msra.mxu0 %v74
  %102 = vmatprep.subr.mxu0 0.0
  %103 = vmatpush1.msra.mxu0 %v43
  %104 = vmatprep.subr.mxu0 0.0
  %105 = vmatpush1.msra.mxu0 %v42
  %106 = vmatprep.subr.mxu0 0.0
  %107 = vmatpush1.msra.mxu0 %v41
  %108 = vmatprep.subr.mxu0 0.0
  %109 = vmatpush2.msra.mxu0 0.0
  %110 = vmatprep.subr.mxu0 0.0
  %111 = vmatpush2.msra.mxu0 0.0
  %112 = vmatprep.subr.mxu0 0.0
  %113 = vmatpush2.msra.mxu0 0.0
  %114 = vmatprep.subr.mxu0 0.0
  %115 = vmatpush2.msra.mxu0 0.0
  %116 = vmatprep.subr.mxu0 0.0
  %117 = vmatpush2.msra.mxu0 0.0
  %118 = vmatprep.subr.mxu0 0.0
  %119 = vmatpush2.msra.mxu0 0.0
  %120 = vmatprep.subr.mxu0 0.0
  %121 = vmatpush2.msra.mxu0 0.0
  %122 = vmatprep.subr.mxu0 0.0
  %123 = vmatpush2.msra.mxu0 0.0
  %124 = vmatprep.subr.mxu0 0.0
  %125 = vmatpush2.msra.mxu0 0.0
  %126 = vmatprep.subr.mxu0 0.0
  %127 = vmatpush2.msra.mxu0 0.0
  %128 = vmatprep.subr.mxu0 0.0
  %129 = vmatpush2.msra.mxu0 0.0
  %130 = vmatprep.subr.mxu0 0.0
  %131 = vmatpush2.msra.mxu0 0.0
  %132 = vmatprep.subr.mxu0 0.0
  %133 = vmatpush2.msra.mxu0 0.0
  %134 = vmatprep.subr.mxu0 0.0
  %135 = vmatpush2.msra.mxu0 0.0
  %136 = vmatprep.subr.mxu0 0.0
  %137 = vmatpush2.msra.mxu0 0.0
  %138 = vmatprep.subr.mxu0 0.0
  %139 = vmatpush2.msra.mxu0 0.0
  %140 = vmatprep.mubr.f32.mxu0 0.0
  %141 = vmatmul.mubr.f32.gmra.mxu0 %v67
  %v142 = vpop.f32.mrf.mxu0
  %v143 = vadd.f32 0.0, %v142
  %v144 = vpop.f32.mrf.mxu0
  %145 = vmatprep.mubr.f32.mxu0 0.0
  %146 = vmatmul.mubr.f32.gmra.mxu0 %v70
  %v147 = vpop.f32.mrf.mxu0
  %v148 = vadd.f32 0.0, %v147
  %v149 = vpop.f32.mrf.mxu0
  %150 = vdwg.mxu0
  %151 = vset.pattern.permute.xlu0 1
  %152 = vperm.xlu0 %151, %v46
  %v153 = vpop.permute.xlu0 %152
  %154 = vset.pattern.permute.xlu0 1
  %155 = vperm.xlu0 %154, %v47
  %v156 = vpop.permute.xlu0 %155
  %vm157 = vcmp.eq.s32.totalorder %v153, %v52
  %vm158 = vcmp.eq.s32.totalorder %v156, %v52
  %v159 = vsel %vm157, 1, 0
  %v160 = vsel %vm158, 1, 0
  %v161 = vcvt.s32.f32 %v159
  %v162 = vcvt.s32.f32 %v160
  %vm163 = vcmask 48128
  %v165 = vsel %vm163, %v161, 0
  %v168 = vsel %vm163, %v162, 0
  %v171 = vsel %vm72, %v45, 0
  %173 = vmatprep.subr.mxu0 0.0
  %174 = vmatpush1.msra.mxu0 0.0
  %175 = vmatprep.subr.mxu0 0.0
  %176 = vmatpush1.msra.mxu0 0.0
  %177 = vmatprep.subr.mxu0 0.0
  %178 = vmatpush1.msra.mxu0 0.0
  %179 = vmatprep.subr.mxu0 0.0
  %180 = vmatpush1.msra.mxu0 0.0
  %181 = vmatprep.subr.mxu0 0.0
  %182 = vmatpush1.msra.mxu0 0.0
  %183 = vmatprep.subr.mxu0 0.0
  %184 = vmatpush1.msra.mxu0 0.0
  %185 = vmatprep.subr.mxu0 0.0
  %186 = vmatpush1.msra.mxu0 0.0
  %187 = vmatprep.subr.mxu0 0.0
  %188 = vmatpush1.msra.mxu0 0.0
  %189 = vmatprep.subr.mxu0 0.0
  %190 = vmatpush1.msra.mxu0 0.0
  %191 = vmatprep.subr.mxu0 0.0
  %192 = vmatpush1.msra.mxu0 0.0
  %193 = vmatprep.subr.mxu0 0.0
  %194 = vmatpush1.msra.mxu0 0.0
  %195 = vmatprep.subr.mxu0 0.0
  %196 = vmatpush1.msra.mxu0 0.0
  %197 = vmatprep.subr.mxu0 0.0
  %198 = vmatpush1.msra.mxu0 0.0
  %199 = vmatprep.subr.mxu0 0.0
  %200 = vmatpush1.msra.mxu0 0.0
  %201 = vmatprep.subr.mxu0 0.0
  %202 = vmatpush1.msra.mxu0 0.0
  %203 = vmatprep.subr.mxu0 0.0
  %204 = vmatpush1.msra.mxu0 %v171
  %205 = vmatprep.subr.mxu0 0.0
  %206 = vmatpush2.msra.mxu0 0.0
  %207 = vmatprep.subr.mxu0 0.0
  %208 = vmatpush2.msra.mxu0 0.0
  %209 = vmatprep.subr.mxu0 0.0
  %210 = vmatpush2.msra.mxu0 0.0
  %211 = vmatprep.subr.mxu0 0.0
  %212 = vmatpush2.msra.mxu0 0.0
  %213 = vmatprep.subr.mxu0 0.0
  %214 = vmatpush2.msra.mxu0 0.0
  %215 = vmatprep.subr.mxu0 0.0
  %216 = vmatpush2.msra.mxu0 0.0
  %217 = vmatprep.subr.mxu0 0.0
  %218 = vmatpush2.msra.mxu0 0.0
  %219 = vmatprep.subr.mxu0 0.0
  %220 = vmatpush2.msra.mxu0 0.0
  %221 = vmatprep.subr.mxu0 0.0
  %222 = vmatpush2.msra.mxu0 0.0
  %223 = vmatprep.subr.mxu0 0.0
  %224 = vmatpush2.msra.mxu0 0.0
  %225 = vmatprep.subr.mxu0 0.0
  %226 = vmatpush2.msra.mxu0 0.0
  %227 = vmatprep.subr.mxu0 0.0
  %228 = vmatpush2.msra.mxu0 0.0
  %229 = vmatprep.subr.mxu0 0.0
  %230 = vmatpush2.msra.mxu0 0.0
  %231 = vmatprep.subr.mxu0 0.0
  %232 = vmatpush2.msra.mxu0 0.0
  %233 = vmatprep.subr.mxu0 0.0
  %234 = vmatpush2.msra.mxu0 0.0
  %235 = vmatprep.subr.mxu0 0.0
  %236 = vmatpush2.msra.mxu0 0.0
  %237 = vmatprep.mubr.f32.mxu0 0.0
  %238 = vmatmul.mubr.f32.gmra.mxu0 %v165
  %v239 = vpop.f32.mrf.mxu0
  %v240 = vadd.f32 0.0, %v239
  %v241 = vpop.f32.mrf.mxu0
  %242 = vmatprep.mubr.f32.mxu0 0.0
  %243 = vmatmul.mubr.f32.gmra.mxu0 %v168
  %v244 = vpop.f32.mrf.mxu0
  %v245 = vadd.f32 0.0, %v244
  %v246 = vpop.f32.mrf.mxu0
  %247 = vdwg.mxu0
  %248 = vset.pattern.permute.xlu0 0
  %249 = vperm.xlu0 %248, %v48
  %v250 = vpop.permute.xlu0 %249
  %251 = vset.pattern.permute.xlu0 0
  %252 = vperm.xlu0 %251, %v49
  %v253 = vpop.permute.xlu0 %252
  %vm254 = vcmp.eq.s32.totalorder %v250, %v52
  %vm255 = vcmp.eq.s32.totalorder %v253, %v52
  %v256 = vsel %vm254, 1, 0
  %v257 = vsel %vm255, 1, 0
  %v258 = vcvt.s32.f32 %v256
  %v259 = vcvt.s32.f32 %v257
  %vm260 = vcmask 162816
  %v262 = vsel %vm260, %v258, 0
  %v265 = vsel %vm260, %v259, 0
  %vm267 = vcmask 1043456
  %v269 = vsel %vm267, %v40, 0
  %271 = vmatprep.subr.mxu0 0.0
  %272 = vmatpush1.msra.mxu0 0.0
  %273 = vmatprep.subr.mxu0 0.0
  %274 = vmatpush1.msra.mxu0 0.0
  %275 = vmatprep.subr.mxu0 0.0
  %276 = vmatpush1.msra.mxu0 0.0
  %277 = vmatprep.subr.mxu0 0.0
  %278 = vmatpush1.msra.mxu0 0.0
  %279 = vmatprep.subr.mxu0 0.0
  %280 = vmatpush1.msra.mxu0 0.0
  %281 = vmatprep.subr.mxu0 0.0
  %282 = vmatpush1.msra.mxu0 0.0
  %283 = vmatprep.subr.mxu0 0.0
  %284 = vmatpush1.msra.mxu0 0.0
  %285 = vmatprep.subr.mxu0 0.0
  %286 = vmatpush1.msra.mxu0 0.0
  %287 = vmatprep.subr.mxu0 0.0
  %288 = vmatpush1.msra.mxu0 0.0
  %289 = vmatprep.subr.mxu0 0.0
  %290 = vmatpush1.msra.mxu0 0.0
  %291 = vmatprep.subr.mxu0 0.0
  %292 = vmatpush1.msra.mxu0 0.0
  %293 = vmatprep.subr.mxu0 0.0
  %294 = vmatpush1.msra.mxu0 0.0
  %295 = vmatprep.subr.mxu0 0.0
  %296 = vmatpush1.msra.mxu0 0.0
  %297 = vmatprep.subr.mxu0 0.0
  %298 = vmatpush1.msra.mxu0 %v269
  %299 = vmatprep.subr.mxu0 0.0
  %300 = vmatpush1.msra.mxu0 %v39
  %301 = vmatprep.subr.mxu0 0.0
  %302 = vmatpush1.msra.mxu0 %v38
  %303 = vmatprep.subr.mxu0 0.0
  %304 = vmatpush2.msra.mxu0 0.0
  %305 = vmatprep.subr.mxu0 0.0
  %306 = vmatpush2.msra.mxu0 0.0
  %307 = vmatprep.subr.mxu0 0.0
  %308 = vmatpush2.msra.mxu0 0.0
  %309 = vmatprep.subr.mxu0 0.0
  %310 = vmatpush2.msra.mxu0 0.0
  %311 = vmatprep.subr.mxu0 0.0
  %312 = vmatpush2.msra.mxu0 0.0
  %313 = vmatprep.subr.mxu0 0.0
  %314 = vmatpush2.msra.mxu0 0.0
  %315 = vmatprep.subr.mxu0 0.0
  %316 = vmatpush2.msra.mxu0 0.0
  %317 = vmatprep.subr.mxu0 0.0
  %318 = vmatpush2.msra.mxu0 0.0
  %319 = vmatprep.subr.mxu0 0.0
  %320 = vmatpush2.msra.mxu0 0.0
  %321 = vmatprep.subr.mxu0 0.0
  %322 = vmatpush2.msra.mxu0 0.0
  %323 = vmatprep.subr.mxu0 0.0
  %324 = vmatpush2.msra.mxu0 0.0
  %325 = vmatprep.subr.mxu0 0.0
  %326 = vmatpush2.msra.mxu0 0.0
  %327 = vmatprep.subr.mxu0 0.0
  %328 = vmatpush2.msra.mxu0 0.0
  %329 = vmatprep.subr.mxu0 0.0
  %330 = vmatpush2.msra.mxu0 0.0
  %331 = vmatprep.subr.mxu0 0.0
  %332 = vmatpush2.msra.mxu0 0.0
  %333 = vmatprep.subr.mxu0 0.0
  %334 = vmatpush2.msra.mxu0 0.0
  %335 = vmatprep.mubr.f32.mxu0 0.0
  %336 = vmatmul.mubr.f32.gmra.mxu0 %v262
  %v337 = vpop.f32.mrf.mxu0
  %v338 = vadd.f32 0.0, %v337
  %v339 = vpop.f32.mrf.mxu0
  %340 = vmatprep.mubr.f32.mxu0 0.0
  %341 = vmatmul.mubr.f32.gmra.mxu0 %v265
  %v342 = vpop.f32.mrf.mxu0
  %v343 = vadd.f32 0.0, %v342
  %v344 = vpop.f32.mrf.mxu0
  %345 = vdwg.mxu0
  %346 = vset.pattern.permute.xlu0 1
  %347 = vperm.xlu0 %346, %v48
  %v348 = vpop.permute.xlu0 %347
  %349 = vset.pattern.permute.xlu0 1
  %350 = vperm.xlu0 %349, %v49
  %v351 = vpop.permute.xlu0 %350
  %vm352 = vcmp.eq.s32.totalorder %v348, %v52
  %vm353 = vcmp.eq.s32.totalorder %v351, %v52
  %v354 = vsel %vm352, 1, 0
  %v355 = vsel %vm353, 1, 0
  %v356 = vcvt.s32.f32 %v354
  %v357 = vcvt.s32.f32 %v355
  %v359 = vsel %vm260, %v356, 0
  %v362 = vsel %vm260, %v357, 0
  %364 = vmatprep.subr.mxu0 0.0
  %365 = vmatpush1.msra.mxu0 0.0
  %366 = vmatprep.subr.mxu0 0.0
  %367 = vmatpush1.msra.mxu0 0.0
  %368 = vmatprep.subr.mxu0 0.0
  %369 = vmatpush1.msra.mxu0 0.0
  %370 = vmatprep.subr.mxu0 0.0
  %371 = vmatpush1.msra.mxu0 0.0
  %372 = vmatprep.subr.mxu0 0.0
  %373 = vmatpush1.msra.mxu0 0.0
  %374 = vmatprep.subr.mxu0 0.0
  %375 = vmatpush1.msra.mxu0 0.0
  %376 = vmatprep.subr.mxu0 0.0
  %377 = vmatpush1.msra.mxu0 0.0
  %378 = vmatprep.subr.mxu0 0.0
  %379 = vmatpush1.msra.mxu0 0.0
  %380 = vmatprep.subr.mxu0 0.0
  %381 = vmatpush1.msra.mxu0 0.0
  %382 = vmatprep.subr.mxu0 0.0
  %383 = vmatpush1.msra.mxu0 0.0
  %384 = vmatprep.subr.mxu0 0.0
  %385 = vmatpush1.msra.mxu0 0.0
  %386 = vmatprep.subr.mxu0 0.0
  %387 = vmatpush1.msra.mxu0 0.0
  %388 = vmatprep.subr.mxu0 0.0
  %389 = vmatpush1.msra.mxu0 0.0
  %390 = vmatprep.subr.mxu0 0.0
  %391 = vmatpush1.msra.mxu0 %v269
  %392 = vmatprep.subr.mxu0 0.0
  %393 = vmatpush1.msra.mxu0 %v39
  %394 = vmatprep.subr.mxu0 0.0
  %395 = vmatpush1.msra.mxu0 %v38
  %396 = vmatprep.subr.mxu0 0.0
  %397 = vmatpush2.msra.mxu0 0.0
  %398 = vmatprep.subr.mxu0 0.0
  %399 = vmatpush2.msra.mxu0 0.0
  %400 = vmatprep.subr.mxu0 0.0
  %401 = vmatpush2.msra.mxu0 0.0
  %402 = vmatprep.subr.mxu0 0.0
  %403 = vmatpush2.msra.mxu0 0.0
  %404 = vmatprep.subr.mxu0 0.0
  %405 = vmatpush2.msra.mxu0 0.0
  %406 = vmatprep.subr.mxu0 0.0
  %407 = vmatpush2.msra.mxu0 0.0
  %408 = vmatprep.subr.mxu0 0.0
  %409 = vmatpush2.msra.mxu0 0.0
  %410 = vmatprep.subr.mxu0 0.0
  %411 = vmatpush2.msra.mxu0 0.0
  %412 = vmatprep.subr.mxu0 0.0
  %413 = vmatpush2.msra.mxu0 0.0
  %414 = vmatprep.subr.mxu0 0.0
  %415 = vmatpush2.msra.mxu0 0.0
  %416 = vmatprep.subr.mxu0 0.0
  %417 = vmatpush2.msra.mxu0 0.0
  %418 = vmatprep.subr.mxu0 0.0
  %419 = vmatpush2.msra.mxu0 0.0
  %420 = vmatprep.subr.mxu0 0.0
  %421 = vmatpush2.msra.mxu0 0.0
  %422 = vmatprep.subr.mxu0 0.0
  %423 = vmatpush2.msra.mxu0 0.0
  %424 = vmatprep.subr.mxu0 0.0
  %425 = vmatpush2.msra.mxu0 0.0
  %426 = vmatprep.subr.mxu0 0.0
  %427 = vmatpush2.msra.mxu0 0.0
  %428 = vmatprep.mubr.f32.mxu0 0.0
  %429 = vmatmul.mubr.f32.gmra.mxu0 %v359
  %v430 = vpop.f32.mrf.mxu0
  %v431 = vadd.f32 0.0, %v430
  %v432 = vpop.f32.mrf.mxu0
  %433 = vmatprep.mubr.f32.mxu0 0.0
  %434 = vmatmul.mubr.f32.gmra.mxu0 %v362
  %v435 = vpop.f32.mrf.mxu0
  %v436 = vadd.f32 0.0, %v435
  %v437 = vpop.f32.mrf.mxu0
  %438 = vdwg.mxu0
  %439 = vset.pattern.permute.xlu0 0
  %440 = vperm.xlu0 %439, %v50
  %v441 = vpop.permute.xlu0 %440
  %vm442 = vcmp.eq.s32.totalorder %v441, %v52
  %v443 = vsel %vm442, 1, 0
  %v444 = vcvt.s32.f32 %v443
  %v446 = vsel %vm260, %v444, 0
  %448 = vmatprep.subr.mxu0 0.0
  %449 = vmatpush1.msra.mxu0 0.0
  %450 = vmatprep.subr.mxu0 0.0
  %451 = vmatpush1.msra.mxu0 0.0
  %452 = vmatprep.subr.mxu0 0.0
  %453 = vmatpush1.msra.mxu0 0.0
  %454 = vmatprep.subr.mxu0 0.0
  %455 = vmatpush1.msra.mxu0 0.0
  %456 = vmatprep.subr.mxu0 0.0
  %457 = vmatpush1.msra.mxu0 0.0
  %458 = vmatprep.subr.mxu0 0.0
  %459 = vmatpush1.msra.mxu0 0.0
  %460 = vmatprep.subr.mxu0 0.0
  %461 = vmatpush1.msra.mxu0 0.0
  %462 = vmatprep.subr.mxu0 0.0
  %463 = vmatpush1.msra.mxu0 0.0
  %464 = vmatprep.subr.mxu0 0.0
  %465 = vmatpush1.msra.mxu0 0.0
  %466 = vmatprep.subr.mxu0 0.0
  %467 = vmatpush1.msra.mxu0 0.0
  %468 = vmatprep.subr.mxu0 0.0
  %469 = vmatpush1.msra.mxu0 0.0
  %470 = vmatprep.subr.mxu0 0.0
  %471 = vmatpush1.msra.mxu0 0.0
  %472 = vmatprep.subr.mxu0 0.0
  %473 = vmatpush1.msra.mxu0 0.0
  %474 = vmatprep.subr.mxu0 0.0
  %475 = vmatpush1.msra.mxu0 %v269
  %476 = vmatprep.subr.mxu0 0.0
  %477 = vmatpush1.msra.mxu0 %v39
  %478 = vmatprep.subr.mxu0 0.0
  %479 = vmatpush1.msra.mxu0 %v38
  %480 = vmatprep.subr.mxu0 0.0
  %481 = vmatpush2.msra.mxu0 0.0
  %482 = vmatprep.subr.mxu0 0.0
  %483 = vmatpush2.msra.mxu0 0.0
  %484 = vmatprep.subr.mxu0 0.0
  %485 = vmatpush2.msra.mxu0 0.0
  %486 = vmatprep.subr.mxu0 0.0
  %487 = vmatpush2.msra.mxu0 0.0
  %488 = vmatprep.subr.mxu0 0.0
  %489 = vmatpush2.msra.mxu0 0.0
  %490 = vmatprep.subr.mxu0 0.0
  %491 = vmatpush2.msra.mxu0 0.0
  %492 = vmatprep.subr.mxu0 0.0
  %493 = vmatpush2.msra.mxu0 0.0
  %494 = vmatprep.subr.mxu0 0.0
  %495 = vmatpush2.msra.mxu0 0.0
  %496 = vmatprep.subr.mxu0 0.0
  %497 = vmatpush2.msra.mxu0 0.0
  %498 = vmatprep.subr.mxu0 0.0
  %499 = vmatpush2.msra.mxu0 0.0
  %500 = vmatprep.subr.mxu0 0.0
  %501 = vmatpush2.msra.mxu0 0.0
  %502 = vmatprep.subr.mxu0 0.0
  %503 = vmatpush2.msra.mxu0 0.0
  %504 = vmatprep.subr.mxu0 0.0
  %505 = vmatpush2.msra.mxu0 0.0
  %506 = vmatprep.subr.mxu0 0.0
  %507 = vmatpush2.msra.mxu0 0.0
  %508 = vmatprep.subr.mxu0 0.0
  %509 = vmatpush2.msra.mxu0 0.0
  %510 = vmatprep.subr.mxu0 0.0
  %511 = vmatpush2.msra.mxu0 0.0
  %512 = vmatprep.mubr.f32.mxu0 0.0
  %513 = vmatmul.mubr.f32.gmra.mxu0 %v446
  %v514 = vpop.f32.mrf.mxu0
  %v515 = vadd.f32 0.0, %v514
  %v516 = vpop.f32.mrf.mxu0
  %517 = vdwg.mxu0
  %518 = vset.pattern.permute.xlu0 1
  %519 = vperm.xlu0 %518, %v50
  %v520 = vpop.permute.xlu0 %519
  %vm521 = vcmp.eq.s32.totalorder %v520, %v52
  %v522 = vsel %vm521, 1, 0
  %v523 = vcvt.s32.f32 %v522
  %v525 = vsel %vm65, %v523, 0
  %527 = vmatprep.subr.mxu0 0.0
  %528 = vmatpush1.msra.mxu0 0.0
  %529 = vmatprep.subr.mxu0 0.0
  %530 = vmatpush1.msra.mxu0 0.0
  %531 = vmatprep.subr.mxu0 0.0
  %532 = vmatpush1.msra.mxu0 0.0
  %533 = vmatprep.subr.mxu0 0.0
  %534 = vmatpush1.msra.mxu0 0.0
  %535 = vmatprep.subr.mxu0 0.0
  %536 = vmatpush1.msra.mxu0 0.0
  %537 = vmatprep.subr.mxu0 0.0
  %538 = vmatpush1.msra.mxu0 0.0
  %539 = vmatprep.subr.mxu0 0.0
  %540 = vmatpush1.msra.mxu0 0.0
  %541 = vmatprep.subr.mxu0 0.0
  %542 = vmatpush1.msra.mxu0 0.0
  %543 = vmatprep.subr.mxu0 0.0
  %544 = vmatpush1.msra.mxu0 0.0
  %545 = vmatprep.subr.mxu0 0.0
  %546 = vmatpush1.msra.mxu0 0.0
  %547 = vmatprep.subr.mxu0 0.0
  %548 = vmatpush1.msra.mxu0 0.0
  %549 = vmatprep.subr.mxu0 0.0
  %550 = vmatpush1.msra.mxu0 0.0
  %551 = vmatprep.subr.mxu0 0.0
  %552 = vmatpush1.msra.mxu0 %v74
  %553 = vmatprep.subr.mxu0 0.0
  %554 = vmatpush1.msra.mxu0 %v43
  %555 = vmatprep.subr.mxu0 0.0
  %556 = vmatpush1.msra.mxu0 %v42
  %557 = vmatprep.subr.mxu0 0.0
  %558 = vmatpush1.msra.mxu0 %v41
  %559 = vmatprep.subr.mxu0 0.0
  %560 = vmatpush2.msra.mxu0 0.0
  %561 = vmatprep.subr.mxu0 0.0
  %562 = vmatpush2.msra.mxu0 0.0
  %563 = vmatprep.subr.mxu0 0.0
  %564 = vmatpush2.msra.mxu0 0.0
  %565 = vmatprep.subr.mxu0 0.0
  %566 = vmatpush2.msra.mxu0 0.0
  %567 = vmatprep.subr.mxu0 0.0
  %568 = vmatpush2.msra.mxu0 0.0
  %569 = vmatprep.subr.mxu0 0.0
  %570 = vmatpush2.msra.mxu0 0.0
  %571 = vmatprep.subr.mxu0 0.0
  %572 = vmatpush2.msra.mxu0 0.0
  %573 = vmatprep.subr.mxu0 0.0
  %574 = vmatpush2.msra.mxu0 0.0
  %575 = vmatprep.subr.mxu0 0.0
  %576 = vmatpush2.msra.mxu0 0.0
  %577 = vmatprep.subr.mxu0 0.0
  %578 = vmatpush2.msra.mxu0 0.0
  %579 = vmatprep.subr.mxu0 0.0
  %580 = vmatpush2.msra.mxu0 0.0
  %581 = vmatprep.subr.mxu0 0.0
  %582 = vmatpush2.msra.mxu0 0.0
  %583 = vmatprep.subr.mxu0 0.0
  %584 = vmatpush2.msra.mxu0 0.0
  %585 = vmatprep.subr.mxu0 0.0
  %586 = vmatpush2.msra.mxu0 0.0
  %587 = vmatprep.subr.mxu0 0.0
  %588 = vmatpush2.msra.mxu0 0.0
  %589 = vmatprep.subr.mxu0 0.0
  %590 = vmatpush2.msra.mxu0 0.0
  %591 = vmatprep.mubr.f32.mxu0 0.0
  %592 = vmatmul.mubr.f32.gmra.mxu0 %v525
  %v593 = vpop.f32.mrf.mxu0
  %v594 = vadd.f32 0.0, %v593
  %v595 = vpop.f32.mrf.mxu0
  %596 = vdwg.mxu0
  %597 = vset.pattern.permute.xlu0 2
  %598 = vperm.xlu0 %597, %v50
  %v599 = vpop.permute.xlu0 %598
  %vm600 = vcmp.eq.s32.totalorder %v599, %v52
  %v601 = vsel %vm600, 1, 0
  %v602 = vcvt.s32.f32 %v601
  %v604 = vsel %vm65, %v602, 0
  %606 = vmatprep.subr.mxu0 0.0
  %607 = vmatpush1.msra.mxu0 0.0
  %608 = vmatprep.subr.mxu0 0.0
  %609 = vmatpush1.msra.mxu0 0.0
  %610 = vmatprep.subr.mxu0 0.0
  %611 = vmatpush1.msra.mxu0 0.0
  %612 = vmatprep.subr.mxu0 0.0
  %613 = vmatpush1.msra.mxu0 0.0
  %614 = vmatprep.subr.mxu0 0.0
  %615 = vmatpush1.msra.mxu0 0.0
  %616 = vmatprep.subr.mxu0 0.0
  %617 = vmatpush1.msra.mxu0 0.0
  %618 = vmatprep.subr.mxu0 0.0
  %619 = vmatpush1.msra.mxu0 0.0
  %620 = vmatprep.subr.mxu0 0.0
  %621 = vmatpush1.msra.mxu0 0.0
  %622 = vmatprep.subr.mxu0 0.0
  %623 = vmatpush1.msra.mxu0 0.0
  %624 = vmatprep.subr.mxu0 0.0
  %625 = vmatpush1.msra.mxu0 0.0
  %626 = vmatprep.subr.mxu0 0.0
  %627 = vmatpush1.msra.mxu0 0.0
  %628 = vmatprep.subr.mxu0 0.0
  %629 = vmatpush1.msra.mxu0 0.0
  %630 = vmatprep.subr.mxu0 0.0
  %631 = vmatpush1.msra.mxu0 %v74
  %632 = vmatprep.subr.mxu0 0.0
  %633 = vmatpush1.msra.mxu0 %v43
  %634 = vmatprep.subr.mxu0 0.0
  %635 = vmatpush1.msra.mxu0 %v42
  %636 = vmatprep.subr.mxu0 0.0
  %637 = vmatpush1.msra.mxu0 %v41
  %638 = vmatprep.subr.mxu0 0.0
  %639 = vmatpush2.msra.mxu0 0.0
  %640 = vmatprep.subr.mxu0 0.0
  %641 = vmatpush2.msra.mxu0 0.0
  %642 = vmatprep.subr.mxu0 0.0
  %643 = vmatpush2.msra.mxu0 0.0
  %644 = vmatprep.subr.mxu0 0.0
  %645 = vmatpush2.msra.mxu0 0.0
  %646 = vmatprep.subr.mxu0 0.0
  %647 = vmatpush2.msra.mxu0 0.0
  %648 = vmatprep.subr.mxu0 0.0
  %649 = vmatpush2.msra.mxu0 0.0
  %650 = vmatprep.subr.mxu0 0.0
  %651 = vmatpush2.msra.mxu0 0.0
  %652 = vmatprep.subr.mxu0 0.0
  %653 = vmatpush2.msra.mxu0 0.0
  %654 = vmatprep.subr.mxu0 0.0
  %655 = vmatpush2.msra.mxu0 0.0
  %656 = vmatprep.subr.mxu0 0.0
  %657 = vmatpush2.msra.mxu0 0.0
  %658 = vmatprep.subr.mxu0 0.0
  %659 = vmatpush2.msra.mxu0 0.0
  %660 = vmatprep.subr.mxu0 0.0
  %661 = vmatpush2.msra.mxu0 0.0
  %662 = vmatprep.subr.mxu0 0.0
  %663 = vmatpush2.msra.mxu0 0.0
  %664 = vmatprep.subr.mxu0 0.0
  %665 = vmatpush2.msra.mxu0 0.0
  %666 = vmatprep.subr.mxu0 0.0
  %667 = vmatpush2.msra.mxu0 0.0
  %668 = vmatprep.subr.mxu0 0.0
  %669 = vmatpush2.msra.mxu0 0.0
  %670 = vmatprep.mubr.f32.mxu0 0.0
  %671 = vmatmul.mubr.f32.gmra.mxu0 %v604
  %v672 = vpop.f32.mrf.mxu0
  %v673 = vadd.f32 0.0, %v672
  %v674 = vpop.f32.mrf.mxu0
  %675 = vdwg.mxu0
  %v676 = vld [vmem:[%s3] sm:$0x3]
  %v677 = vld [vmem:[%s4] sm:$0x3]
  %v678 = vld [vmem:[%s9] sm:$0xff]
  %v679 = vld [vmem:[%s9 + $0x8] sm:$0xff]
  %v680 = vld [vmem:[%s9 + $0x10] sm:$0xff]
  %v681 = vld [vmem:[%s9 + $0x18] sm:$0xff]
  %v682 = vld [vmem:[%s9 + $0x20] sm:$0xff]
  %v683 = vld [vmem:[%s9 + $0x28] sm:$0xff]
  %v684 = vld [vmem:[%s9 + $0x30] sm:$0xff]
  %v685 = vld [vmem:[%s9 + $0x38] sm:$0xff]
  %vm686 = vcmask 261120
  %v688 = vsel %vm686, %v240, 0
  %v691 = vsel %vm686, %v245, 0
  %693 = vmatprep.subr.mxu0 0.0
  %694 = vmatpush1.msra.mxu0 0.0
  %695 = vmatprep.subr.mxu0 0.0
  %696 = vmatpush1.msra.mxu0 0.0
  %697 = vmatprep.subr.mxu0 0.0
  %698 = vmatpush1.msra.mxu0 0.0
  %699 = vmatprep.subr.mxu0 0.0
  %700 = vmatpush1.msra.mxu0 0.0
  %701 = vmatprep.subr.mxu0 0.0
  %702 = vmatpush1.msra.mxu0 0.0
  %703 = vmatprep.subr.mxu0 0.0
  %704 = vmatpush1.msra.mxu0 0.0
  %705 = vmatprep.subr.mxu0 0.0
  %706 = vmatpush1.msra.mxu0 0.0
  %707 = vmatprep.subr.mxu0 0.0
  %708 = vmatpush1.msra.mxu0 0.0
  %709 = vmatprep.subr.mxu0 0.0
  %710 = vmatpush1.msra.mxu0 0.0
  %711 = vmatprep.subr.mxu0 0.0
  %712 = vmatpush1.msra.mxu0 0.0
  %713 = vmatprep.subr.mxu0 0.0
  %714 = vmatpush1.msra.mxu0 0.0
  %715 = vmatprep.subr.mxu0 0.0
  %716 = vmatpush1.msra.mxu0 0.0
  %717 = vmatprep.subr.mxu0 0.0
  %718 = vmatpush1.msra.mxu0 %v685
  %719 = vmatprep.subr.mxu0 0.0
  %720 = vmatpush1.msra.mxu0 %v684
  %721 = vmatprep.subr.mxu0 0.0
  %722 = vmatpush1.msra.mxu0 %v683
  %723 = vmatprep.subr.mxu0 0.0
  %724 = vmatpush1.msra.mxu0 %v682
  %725 = vmatprep.subr.mxu0 0.0
  %726 = vmatpush2.msra.mxu0 0.0
  %727 = vmatprep.subr.mxu0 0.0
  %728 = vmatpush2.msra.mxu0 0.0
  %729 = vmatprep.subr.mxu0 0.0
  %730 = vmatpush2.msra.mxu0 0.0
  %731 = vmatprep.subr.mxu0 0.0
  %732 = vmatpush2.msra.mxu0 0.0
  %733 = vmatprep.subr.mxu0 0.0
  %734 = vmatpush2.msra.mxu0 0.0
  %735 = vmatprep.subr.mxu0 0.0
  %736 = vmatpush2.msra.mxu0 0.0
  %737 = vmatprep.subr.mxu0 0.0
  %738 = vmatpush2.msra.mxu0 0.0
  %739 = vmatprep.subr.mxu0 0.0
  %740 = vmatpush2.msra.mxu0 0.0
  %741 = vmatprep.subr.mxu0 0.0
  %742 = vmatpush2.msra.mxu0 0.0
  %743 = vmatprep.subr.mxu0 0.0
  %744 = vmatpush2.msra.mxu0 0.0
  %745 = vmatprep.subr.mxu0 0.0
  %746 = vmatpush2.msra.mxu0 0.0
  %747 = vmatprep.subr.mxu0 0.0
  %748 = vmatpush2.msra.mxu0 0.0
  %749 = vmatprep.subr.mxu0 0.0
  %750 = vmatpush2.msra.mxu0 0.0
  %751 = vmatprep.subr.mxu0 0.0
  %752 = vmatpush2.msra.mxu0 0.0
  %753 = vmatprep.subr.mxu0 0.0
  %754 = vmatpush2.msra.mxu0 0.0
  %755 = vmatprep.subr.mxu0 0.0
  %756 = vmatpush2.msra.mxu0 0.0
  %757 = vmatprep.mubr.f32.mxu0 0.0
  %758 = vmatmul.mubr.f32.gmra.mxu0 %v688
  %v759 = vpop.f32.mrf.mxu0
  %v760 = vadd.f32 0.0, %v759
  %v761 = vpop.f32.mrf.mxu0
  %762 = vmatprep.mubr.f32.mxu0 0.0
  %763 = vmatmul.mubr.f32.gmra.mxu0 %v691
  %v764 = vpop.f32.mrf.mxu0
  %v765 = vadd.f32 0.0, %v764
  %v766 = vpop.f32.mrf.mxu0
  %767 = vdwg.mxu0
  %v769 = vsel %vm686, %v143, 0
  %v772 = vsel %vm686, %v148, 0
  %774 = vmatprep.subr.mxu0 0.0
  %775 = vmatpush1.msra.mxu0 0.0
  %776 = vmatprep.subr.mxu0 0.0
  %777 = vmatpush1.msra.mxu0 0.0
  %778 = vmatprep.subr.mxu0 0.0
  %779 = vmatpush1.msra.mxu0 0.0
  %780 = vmatprep.subr.mxu0 0.0
  %781 = vmatpush1.msra.mxu0 0.0
  %782 = vmatprep.subr.mxu0 0.0
  %783 = vmatpush1.msra.mxu0 0.0
  %784 = vmatprep.subr.mxu0 0.0
  %785 = vmatpush1.msra.mxu0 0.0
  %786 = vmatprep.subr.mxu0 0.0
  %787 = vmatpush1.msra.mxu0 0.0
  %788 = vmatprep.subr.mxu0 0.0
  %789 = vmatpush1.msra.mxu0 0.0
  %790 = vmatprep.subr.mxu0 0.0
  %791 = vmatpush1.msra.mxu0 0.0
  %792 = vmatprep.subr.mxu0 0.0
  %793 = vmatpush1.msra.mxu0 0.0
  %794 = vmatprep.subr.mxu0 0.0
  %795 = vmatpush1.msra.mxu0 0.0
  %796 = vmatprep.subr.mxu0 0.0
  %797 = vmatpush1.msra.mxu0 0.0
  %798 = vmatprep.subr.mxu0 0.0
  %799 = vmatpush1.msra.mxu0 %v681
  %800 = vmatprep.subr.mxu0 0.0
  %801 = vmatpush1.msra.mxu0 %v680
  %802 = vmatprep.subr.mxu0 0.0
  %803 = vmatpush1.msra.mxu0 %v679
  %804 = vmatprep.subr.mxu0 0.0
  %805 = vmatpush1.msra.mxu0 %v678
  %806 = vmatprep.subr.mxu0 0.0
  %807 = vmatpush2.msra.mxu0 0.0
  %808 = vmatprep.subr.mxu0 0.0
  %809 = vmatpush2.msra.mxu0 0.0
  %810 = vmatprep.subr.mxu0 0.0
  %811 = vmatpush2.msra.mxu0 0.0
  %812 = vmatprep.subr.mxu0 0.0
  %813 = vmatpush2.msra.mxu0 0.0
  %814 = vmatprep.subr.mxu0 0.0
  %815 = vmatpush2.msra.mxu0 0.0
  %816 = vmatprep.subr.mxu0 0.0
  %817 = vmatpush2.msra.mxu0 0.0
  %818 = vmatprep.subr.mxu0 0.0
  %819 = vmatpush2.msra.mxu0 0.0
  %820 = vmatprep.subr.mxu0 0.0
  %821 = vmatpush2.msra.mxu0 0.0
  %822 = vmatprep.subr.mxu0 0.0
  %823 = vmatpush2.msra.mxu0 0.0
  %824 = vmatprep.subr.mxu0 0.0
  %825 = vmatpush2.msra.mxu0 0.0
  %826 = vmatprep.subr.mxu0 0.0
  %827 = vmatpush2.msra.mxu0 0.0
  %828 = vmatprep.subr.mxu0 0.0
  %829 = vmatpush2.msra.mxu0 0.0
  %830 = vmatprep.subr.mxu0 0.0
  %831 = vmatpush2.msra.mxu0 0.0
  %832 = vmatprep.subr.mxu0 0.0
  %833 = vmatpush2.msra.mxu0 0.0
  %834 = vmatprep.subr.mxu0 0.0
  %835 = vmatpush2.msra.mxu0 0.0
  %836 = vmatprep.subr.mxu0 0.0
  %837 = vmatpush2.msra.mxu0 0.0
  %838 = vmatprep.mubr.f32.mxu0 0.0
  %839 = vmatmul.mubr.f32.gmra.mxu0 %v769
  %v840 = vpop.f32.mrf.mxu0
  %v841 = vadd.f32 %v760, %v840
  %v842 = vpop.f32.mrf.mxu0
  %843 = vmatprep.mubr.f32.mxu0 0.0
  %844 = vmatmul.mubr.f32.gmra.mxu0 %v772
  %v845 = vpop.f32.mrf.mxu0
  %v846 = vadd.f32 %v765, %v845
  %v847 = vpop.f32.mrf.mxu0
  %848 = vdwg.mxu0
  %v849 = vld [vmem:[%s10] sm:$0x1]
  %v850 = vlaneseq
  %v851 = vshrl.u32 %v850, 7
  %v852 = vsub.s32 0, %v851
  %v853 = vrot.slane %v849, %v852
  %v854 = vadd.f32 %v841, %v853
  %v855 = vadd.f32 %v846, %v853
  %v856 = vld [vmem:[%s9 + $0x60] sm:$0xff]
  %v857 = vld [vmem:[%s9 + $0x68] sm:$0xff]
  %v858 = vld [vmem:[%s9 + $0x70] sm:$0xff]
  %v859 = vld [vmem:[%s9 + $0x78] sm:$0xff]
  %v861 = vsel %vm686, %v515, 0
  %863 = vmatprep.subr.mxu0 0.0
  %864 = vmatpush1.msra.mxu0 0.0
  %865 = vmatprep.subr.mxu0 0.0
  %866 = vmatpush1.msra.mxu0 0.0
  %867 = vmatprep.subr.mxu0 0.0
  %868 = vmatpush1.msra.mxu0 0.0
  %869 = vmatprep.subr.mxu0 0.0
  %870 = vmatpush1.msra.mxu0 0.0
  %871 = vmatprep.subr.mxu0 0.0
  %872 = vmatpush1.msra.mxu0 0.0
  %873 = vmatprep.subr.mxu0 0.0
  %874 = vmatpush1.msra.mxu0 0.0
  %875 = vmatprep.subr.mxu0 0.0
  %876 = vmatpush1.msra.mxu0 0.0
  %877 = vmatprep.subr.mxu0 0.0
  %878 = vmatpush1.msra.mxu0 0.0
  %879 = vmatprep.subr.mxu0 0.0
  %880 = vmatpush1.msra.mxu0 0.0
  %881 = vmatprep.subr.mxu0 0.0
  %882 = vmatpush1.msra.mxu0 0.0
  %883 = vmatprep.subr.mxu0 0.0
  %884 = vmatpush1.msra.mxu0 0.0
  %885 = vmatprep.subr.mxu0 0.0
  %886 = vmatpush1.msra.mxu0 0.0
  %887 = vmatprep.subr.mxu0 0.0
  %888 = vmatpush1.msra.mxu0 %v859
  %889 = vmatprep.subr.mxu0 0.0
  %890 = vmatpush1.msra.mxu0 %v858
  %891 = vmatprep.subr.mxu0 0.0
  %892 = vmatpush1.msra.mxu0 %v857
  %893 = vmatprep.subr.mxu0 0.0
  %894 = vmatpush1.msra.mxu0 %v856
  %895 = vmatprep.subr.mxu0 0.0
  %896 = vmatpush2.msra.mxu0 0.0
  %897 = vmatprep.subr.mxu0 0.0
  %898 = vmatpush2.msra.mxu0 0.0
  %899 = vmatprep.subr.mxu0 0.0
  %900 = vmatpush2.msra.mxu0 0.0
  %901 = vmatprep.subr.mxu0 0.0
  %902 = vmatpush2.msra.mxu0 0.0
  %903 = vmatprep.subr.mxu0 0.0
  %904 = vmatpush2.msra.mxu0 0.0
  %905 = vmatprep.subr.mxu0 0.0
  %906 = vmatpush2.msra.mxu0 0.0
  %907 = vmatprep.subr.mxu0 0.0
  %908 = vmatpush2.msra.mxu0 0.0
  %909 = vmatprep.subr.mxu0 0.0
  %910 = vmatpush2.msra.mxu0 0.0
  %911 = vmatprep.subr.mxu0 0.0
  %912 = vmatpush2.msra.mxu0 0.0
  %913 = vmatprep.subr.mxu0 0.0
  %914 = vmatpush2.msra.mxu0 0.0
  %915 = vmatprep.subr.mxu0 0.0
  %916 = vmatpush2.msra.mxu0 0.0
  %917 = vmatprep.subr.mxu0 0.0
  %918 = vmatpush2.msra.mxu0 0.0
  %919 = vmatprep.subr.mxu0 0.0
  %920 = vmatpush2.msra.mxu0 0.0
  %921 = vmatprep.subr.mxu0 0.0
  %922 = vmatpush2.msra.mxu0 0.0
  %923 = vmatprep.subr.mxu0 0.0
  %924 = vmatpush2.msra.mxu0 0.0
  %925 = vmatprep.subr.mxu0 0.0
  %926 = vmatpush2.msra.mxu0 0.0
  %927 = vmatprep.mubr.f32.mxu0 0.0
  %928 = vmatmul.mubr.f32.gmra.mxu0 %v861
  %v929 = vpop.f32.mrf.mxu0
  %v930 = vadd.f32 0.0, %v929
  %v931 = vpop.f32.mrf.mxu0
  %932 = vdwg.mxu0
  %v933 = vld [vmem:[%s9 + $0x40] sm:$0xff]
  %v934 = vld [vmem:[%s9 + $0x48] sm:$0xff]
  %v935 = vld [vmem:[%s9 + $0x50] sm:$0xff]
  %v936 = vld [vmem:[%s9 + $0x58] sm:$0xff]
  %v937 = vld [vmem:[%s10 + $0x1] sm:$0x1]
  %v938 = vlaneseq
  %v939 = vshrl.u32 %v938, 7
  %v940 = vsub.s32 0, %v939
  %v941 = vrot.slane %v937, %v940
  %v943 = vsel %vm686, %v854, 0
  %v946 = vsel %vm686, %v855, 0
  %948 = vmatprep.subr.mxu0 0.0
  %949 = vmatpush1.msra.mxu0 0.0
  %950 = vmatprep.subr.mxu0 0.0
  %951 = vmatpush1.msra.mxu0 0.0
  %952 = vmatprep.subr.mxu0 0.0
  %953 = vmatpush1.msra.mxu0 0.0
  %954 = vmatprep.subr.mxu0 0.0
  %955 = vmatpush1.msra.mxu0 0.0
  %956 = vmatprep.subr.mxu0 0.0
  %957 = vmatpush1.msra.mxu0 0.0
  %958 = vmatprep.subr.mxu0 0.0
  %959 = vmatpush1.msra.mxu0 0.0
  %960 = vmatprep.subr.mxu0 0.0
  %961 = vmatpush1.msra.mxu0 0.0
  %962 = vmatprep.subr.mxu0 0.0
  %963 = vmatpush1.msra.mxu0 0.0
  %964 = vmatprep.subr.mxu0 0.0
  %965 = vmatpush1.msra.mxu0 0.0
  %966 = vmatprep.subr.mxu0 0.0
  %967 = vmatpush1.msra.mxu0 0.0
  %968 = vmatprep.subr.mxu0 0.0
  %969 = vmatpush1.msra.mxu0 0.0
  %970 = vmatprep.subr.mxu0 0.0
  %971 = vmatpush1.msra.mxu0 0.0
  %972 = vmatprep.subr.mxu0 0.0
  %973 = vmatpush1.msra.mxu0 %v936
  %974 = vmatprep.subr.mxu0 0.0
  %975 = vmatpush1.msra.mxu0 %v935
  %976 = vmatprep.subr.mxu0 0.0
  %977 = vmatpush1.msra.mxu0 %v934
  %978 = vmatprep.subr.mxu0 0.0
  %979 = vmatpush1.msra.mxu0 %v933
  %980 = vmatprep.subr.mxu0 0.0
  %981 = vmatpush2.msra.mxu0 0.0
  %982 = vmatprep.subr.mxu0 0.0
  %983 = vmatpush2.msra.mxu0 0.0
  %984 = vmatprep.subr.mxu0 0.0
  %985 = vmatpush2.msra.mxu0 0.0
  %986 = vmatprep.subr.mxu0 0.0
  %987 = vmatpush2.msra.mxu0 0.0
  %988 = vmatprep.subr.mxu0 0.0
  %989 = vmatpush2.msra.mxu0 0.0
  %990 = vmatprep.subr.mxu0 0.0
  %991 = vmatpush2.msra.mxu0 0.0
  %992 = vmatprep.subr.mxu0 0.0
  %993 = vmatpush2.msra.mxu0 0.0
  %994 = vmatprep.subr.mxu0 0.0
  %995 = vmatpush2.msra.mxu0 0.0
  %996 = vmatprep.subr.mxu0 0.0
  %997 = vmatpush2.msra.mxu0 0.0
  %998 = vmatprep.subr.mxu0 0.0
  %999 = vmatpush2.msra.mxu0 0.0
  %1000 = vmatprep.subr.mxu0 0.0
  %1001 = vmatpush2.msra.mxu0 0.0
  %1002 = vmatprep.subr.mxu0 0.0
  %1003 = vmatpush2.msra.mxu0 0.0
  %1004 = vmatprep.subr.mxu0 0.0
  %1005 = vmatpush2.msra.mxu0 0.0
  %1006 = vmatprep.subr.mxu0 0.0
  %1007 = vmatpush2.msra.mxu0 0.0
  %1008 = vmatprep.subr.mxu0 0.0
  %1009 = vmatpush2.msra.mxu0 0.0
  %1010 = vmatprep.subr.mxu0 0.0
  %1011 = vmatpush2.msra.mxu0 0.0
  %1012 = vmatprep.mubr.f32.mxu0 0.0
  %1013 = vmatmul.mubr.f32.gmra.mxu0 %v943
  %v1014 = vpop.f32.mrf.mxu0
  %v1015 = vadd.f32 %v941, %v1014
  %v1016 = vpop.f32.mrf.mxu0
  %1017 = vmatprep.mubr.f32.mxu0 0.0
  %1018 = vmatmul.mubr.f32.gmra.mxu0 %v946
  %v1019 = vpop.f32.mrf.mxu0
  %v1020 = vadd.f32 %v941, %v1019
  %v1021 = vpop.f32.mrf.mxu0
  %1022 = vdwg.mxu0
  %v1025 = vunpack.c.l.s4 1966171168
  %v1026 = vunpack.c.0.s8 %v1025
  %v1027 = vlaneseq
  %v1028 = vshrl.u32 %v1027, 7
  %v1029 = vsub.s32 %v1026, %v1028
  %v1030 = vrot.slane %v930, %v1029
  %v1031 = vcombine.high %v1030, %v1030
  %v1033 = vunpack.c.l.s4 1966171168
  %v1034 = vunpack.c.0.s8 %v1033
  %v1035 = vlaneseq
  %v1036 = vshrl.u32 %v1035, 7
  %v1037 = vsub.s32 %v1034, %v1036
  %v1038 = vrot.slane %v1030, %v1037
  %v1040 = vunpack.c.l.s4 1966171168
  %v1041 = vunpack.c.0.s8 %v1040
  %v1042 = vlaneseq
  %v1043 = vshrl.u32 %v1042, 7
  %v1044 = vsub.s32 %v1041, %v1043
  %v1045 = vrot.slane %v1031, %v1044
  %v1046 = vlaneseq
  %v1047 = vshrl.u32 %v1046, 7
  %v1048 = vsub.s32 0, %v1047
  %v1049 = vrot.slane %v1038, %v1048
  %v1050 = vlaneseq
  %v1051 = vshrl.u32 %v1050, 7
  %v1052 = vsub.s32 0, %v1051
  %v1053 = vrot.slane %v1045, %v1052
  %v1056 = vadd.f32 %v1015, %v1049
  %v1057 = vadd.f32 %v1020, %v1053
  %vm1058 = vcmp.ge.f32.partialorder %v1056, 0.0
  %vm1059 = vcmp.ge.f32.partialorder %v1057, 0.0
  %v1060 = vmul.f32 %v1056, 0.1
  %v1061 = vmul.f32 %v1057, 0.1
  %v1062 = vsel %vm1058, %v1056, %v1060
  %v1063 = vsel %vm1059, %v1057, %v1061
  %v1064 = vld [vmem:[%s9 + $0x80] sm:$0xff]
  %v1065 = vld [vmem:[%s9 + $0x88] sm:$0xff]
  %v1066 = vld [vmem:[%s9 + $0x90] sm:$0xff]
  %v1067 = vld [vmem:[%s9 + $0x98] sm:$0xff]
  %v1068 = vld [vmem:[%s10 + $0x2] sm:$0x1]
  %v1069 = vlaneseq
  %v1070 = vshrl.u32 %v1069, 7
  %v1071 = vsub.s32 0, %v1070
  %v1072 = vrot.slane %v1068, %v1071
  %v1074 = vsel %vm686, %v1062, 0
  %v1077 = vsel %vm686, %v1063, 0
  %1079 = vmatprep.subr.mxu0 0.0
  %1080 = vmatpush1.msra.mxu0 0.0
  %1081 = vmatprep.subr.mxu0 0.0
  %1082 = vmatpush1.msra.mxu0 0.0
  %1083 = vmatprep.subr.mxu0 0.0
  %1084 = vmatpush1.msra.mxu0 0.0
  %1085 = vmatprep.subr.mxu0 0.0
  %1086 = vmatpush1.msra.mxu0 0.0
  %1087 = vmatprep.subr.mxu0 0.0
  %1088 = vmatpush1.msra.mxu0 0.0
  %1089 = vmatprep.subr.mxu0 0.0
  %1090 = vmatpush1.msra.mxu0 0.0
  %1091 = vmatprep.subr.mxu0 0.0
  %1092 = vmatpush1.msra.mxu0 0.0
  %1093 = vmatprep.subr.mxu0 0.0
  %1094 = vmatpush1.msra.mxu0 0.0
  %1095 = vmatprep.subr.mxu0 0.0
  %1096 = vmatpush1.msra.mxu0 0.0
  %1097 = vmatprep.subr.mxu0 0.0
  %1098 = vmatpush1.msra.mxu0 0.0
  %1099 = vmatprep.subr.mxu0 0.0
  %1100 = vmatpush1.msra.mxu0 0.0
  %1101 = vmatprep.subr.mxu0 0.0
  %1102 = vmatpush1.msra.mxu0 0.0
  %1103 = vmatprep.subr.mxu0 0.0
  %1104 = vmatpush1.msra.mxu0 %v1067
  %1105 = vmatprep.subr.mxu0 0.0
  %1106 = vmatpush1.msra.mxu0 %v1066
  %1107 = vmatprep.subr.mxu0 0.0
  %1108 = vmatpush1.msra.mxu0 %v1065
  %1109 = vmatprep.subr.mxu0 0.0
  %1110 = vmatpush1.msra.mxu0 %v1064
  %1111 = vmatprep.subr.mxu0 0.0
  %1112 = vmatpush2.msra.mxu0 0.0
  %1113 = vmatprep.subr.mxu0 0.0
  %1114 = vmatpush2.msra.mxu0 0.0
  %1115 = vmatprep.subr.mxu0 0.0
  %1116 = vmatpush2.msra.mxu0 0.0
  %1117 = vmatprep.subr.mxu0 0.0
  %1118 = vmatpush2.msra.mxu0 0.0
  %1119 = vmatprep.subr.mxu0 0.0
  %1120 = vmatpush2.msra.mxu0 0.0
  %1121 = vmatprep.subr.mxu0 0.0
  %1122 = vmatpush2.msra.mxu0 0.0
  %1123 = vmatprep.subr.mxu0 0.0
  %1124 = vmatpush2.msra.mxu0 0.0
  %1125 = vmatprep.subr.mxu0 0.0
  %1126 = vmatpush2.msra.mxu0 0.0
  %1127 = vmatprep.subr.mxu0 0.0
  %1128 = vmatpush2.msra.mxu0 0.0
  %1129 = vmatprep.subr.mxu0 0.0
  %1130 = vmatpush2.msra.mxu0 0.0
  %1131 = vmatprep.subr.mxu0 0.0
  %1132 = vmatpush2.msra.mxu0 0.0
  %1133 = vmatprep.subr.mxu0 0.0
  %1134 = vmatpush2.msra.mxu0 0.0
  %1135 = vmatprep.subr.mxu0 0.0
  %1136 = vmatpush2.msra.mxu0 0.0
  %1137 = vmatprep.subr.mxu0 0.0
  %1138 = vmatpush2.msra.mxu0 0.0
  %1139 = vmatprep.subr.mxu0 0.0
  %1140 = vmatpush2.msra.mxu0 0.0
  %1141 = vmatprep.subr.mxu0 0.0
  %1142 = vmatpush2.msra.mxu0 0.0
  %1143 = vmatprep.mubr.f32.mxu0 0.0
  %1144 = vmatmul.mubr.f32.gmra.mxu0 %v1074
  %v1145 = vpop.f32.mrf.mxu0
  %v1146 = vadd.f32 %v1072, %v1145
  %v1147 = vpop.f32.mrf.mxu0
  %1148 = vmatprep.mubr.f32.mxu0 0.0
  %1149 = vmatmul.mubr.f32.gmra.mxu0 %v1077
  %v1150 = vpop.f32.mrf.mxu0
  %v1151 = vadd.f32 %v1072, %v1150
  %v1152 = vpop.f32.mrf.mxu0
  %1153 = vdwg.mxu0
  %vm1154 = vcmp.ge.f32.partialorder %v1146, 0.0
  %vm1155 = vcmp.ge.f32.partialorder %v1151, 0.0
  %v1156 = vmul.f32 %v1146, 0.1
  %v1157 = vmul.f32 %v1151, 0.1
  %v1158 = vsel %vm1154, %v1146, %v1156
  %v1159 = vsel %vm1155, %v1151, %v1157
  %v1160 = vld [vmem:[%s10 + $0x3] sm:$0x1]
  %v1161 = vlaneseq
  %v1162 = vshrl.u32 %v1161, 7
  %v1163 = vsub.s32 0, %v1162
  %v1164 = vrot.slane %v1160, %v1163
  %v1165 = vmul.f32 %v1158, %v1164
  %v1166 = vmul.f32 %v1159, %v1164
  %v1167 = vsel %vm686, %v1165, 0.0
  %1168 = vadd.xlane.f32.xlu0 %v1167
  %v1169 = vpop.xlane.xlu0 %1168
  %v1170 = vsel %vm686, %v1166, 0.0
  %1171 = vadd.xlane.f32.xlu0 %v1170
  %v1172 = vpop.xlane.xlu0 %1171
  %v1174 = vlaneseq
  %v1175 = vshrl.u32 %v1174, 7
  %v1176 = vsub.s32 0, %v1175
  %v1177 = vrot.slane %v676, %v1176
  %1179 = vbcast.lane.b32.xlu0 %v1177, 256
  %v1180 = vpop.permute.xlu0 %1179
  %v1181 = vlaneseq
  %v1182 = vshrl.u32 %v1181, 7
  %v1183 = vsub.s32 1, %v1182
  %v1184 = vrot.slane %v676, %v1183
  %1186 = vbcast.lane.b32.xlu0 %v1184, 256
  %v1187 = vpop.permute.xlu0 %1186
  %v1190 = vadd.f32 %v1169, %v1180
  %v1191 = vadd.f32 %v1172, %v1187
  %1194 = vset.pattern.permute.xlu0 0
  %1195 = vperm.xlu0 %1194, %v1190
  %v1196 = vpop.permute.xlu0 %1195
  %1197 = vset.pattern.permute.xlu0 0
  %1198 = vperm.xlu0 %1197, %v1191
  %v1199 = vpop.permute.xlu0 %1198
  %v1200 = vlaneseq
  %v1201 = vshrl.u32 %v1200, 7
  %v1202 = vsub.s32 %v52, %v1201
  %v1203 = vrot.slane %v1196, %v1202
  %v1204 = vlaneseq
  %v1205 = vshrl.u32 %v1204, 7
  %v1206 = vsub.s32 %v52, %v1205
  %v1207 = vrot.slane %v1199, %v1206
  %vm1208 = vcmask 1041409
  %v1209 = vsel %vm1208, %v1207, %v1203
  %vm1211 = vcmask 58368
  %v1212 = vsel %vm1211, %v1209, -inf
  %1213 = vmax.xlane.f32.xlu0 %v1212
  %v1214 = vpop.xlane.xlu0 %1213
  %v1216 = vlaneseq
  %v1217 = vshrl.u32 %v1216, 7
  %v1218 = vsub.s32 0, %v1217
  %v1219 = vrot.slane %v1214, %v1218
  %v1220 = vlaneseq
  %v1221 = vshrl.u32 %v1220, 7
  %v1222 = vsub.s32 1, %v1221
  %v1223 = vrot.slane %v1214, %v1222
  %v1226 = vsub.f32 %v1190, %v1219
  %v1227 = vsub.f32 %v1191, %v1223
  %v1228 = vmul.f32 %v1226, 1.442695
  %v1229 = vpow.pop %v1228
  %v1230 = vmul.f32 %v1227, 1.442695
  %v1231 = vpow.pop %v1230
  %1234 = vset.pattern.permute.xlu0 0
  %1235 = vperm.xlu0 %1234, %v1229
  %v1236 = vpop.permute.xlu0 %1235
  %1237 = vset.pattern.permute.xlu0 0
  %1238 = vperm.xlu0 %1237, %v1231
  %v1239 = vpop.permute.xlu0 %1238
  %v1240 = vlaneseq
  %v1241 = vshrl.u32 %v1240, 7
  %v1242 = vsub.s32 %v52, %v1241
  %v1243 = vrot.slane %v1236, %v1242
  %v1244 = vlaneseq
  %v1245 = vshrl.u32 %v1244, 7
  %v1246 = vsub.s32 %v52, %v1245
  %v1247 = vrot.slane %v1239, %v1246
  %v1248 = vsel %vm1208, %v1247, %v1243
  %v1250 = vsel %vm1211, %v1248, 0.0
  %1251 = vadd.xlane.f32.xlu0 %v1250
  %v1252 = vpop.xlane.xlu0 %1251
  %v1254 = vlaneseq
  %v1255 = vshrl.u32 %v1254, 7
  %v1256 = vsub.s32 0, %v1255
  %v1257 = vrot.slane %v1252, %v1256
  %v1258 = vlaneseq
  %v1259 = vshrl.u32 %v1258, 7
  %v1260 = vsub.s32 1, %v1259
  %v1261 = vrot.slane %v1252, %v1260
  %v1264 = vrcp.pop %v1257
  %v1265 = vmul.f32 %v1229, %v1264
  %v1266 = vrcp.pop %v1261
  %v1267 = vmul.f32 %v1231, %v1266
  %1269 = vset.pattern.permute.xlu0 0
  %1270 = vperm.xlu0 %1269, %v1265
  %v1271 = vpop.permute.xlu0 %1270
  %1274 = vset.pattern.permute.xlu0 0
  %1275 = vperm.xlu0 %1274, %v1267
  %v1276 = vpop.permute.xlu0 %1275
  %v1278 = vmul.f32 %v1271, %v854
  %v1279 = vmul.f32 %v1276, %v855
  %v1280 = vsel %vm686, %v1278, 0.0
  %v1281 = vrot.slane %v1280, 4
  %v1282 = vadd.f32 %v1280, %v1281
  %v1283 = vrot.slane %v1282, 2
  %v1284 = vadd.f32 %v1282, %v1283
  %v1285 = vrot.slane %v1284, 1
  %v1286 = vadd.f32 %v1284, %v1285
  %v1287 = vsel %vm686, %v1279, 0.0
  %v1288 = vrot.slane %v1287, 4
  %v1289 = vadd.f32 %v1287, %v1288
  %v1290 = vrot.slane %v1289, 2
  %v1291 = vadd.f32 %v1289, %v1290
  %v1292 = vrot.slane %v1291, 1
  %v1293 = vadd.f32 %v1291, %v1292
  %v1294 = vld [vmem:[%s9 + $0xc0] sm:$0xff]
  %v1295 = vld [vmem:[%s9 + $0xc8] sm:$0xff]
  %v1296 = vld [vmem:[%s9 + $0xd0] sm:$0xff]
  %v1297 = vld [vmem:[%s9 + $0xd8] sm:$0xff]
  %1298 = vmatprep.subr.mxu0 0.0
  %1299 = vmatpush1.msra.mxu0 0.0
  %1300 = vmatprep.subr.mxu0 0.0
  %1301 = vmatpush1.msra.mxu0 0.0
  %1302 = vmatprep.subr.mxu0 0.0
  %1303 = vmatpush1.msra.mxu0 0.0
  %1304 = vmatprep.subr.mxu0 0.0
  %1305 = vmatpush1.msra.mxu0 0.0
  %1306 = vmatprep.subr.mxu0 0.0
  %1307 = vmatpush1.msra.mxu0 0.0
  %1308 = vmatprep.subr.mxu0 0.0
  %1309 = vmatpush1.msra.mxu0 0.0
  %1310 = vmatprep.subr.mxu0 0.0
  %1311 = vmatpush1.msra.mxu0 0.0
  %1312 = vmatprep.subr.mxu0 0.0
  %1313 = vmatpush1.msra.mxu0 0.0
  %1314 = vmatprep.subr.mxu0 0.0
  %1315 = vmatpush1.msra.mxu0 0.0
  %1316 = vmatprep.subr.mxu0 0.0
  %1317 = vmatpush1.msra.mxu0 0.0
  %1318 = vmatprep.subr.mxu0 0.0
  %1319 = vmatpush1.msra.mxu0 0.0
  %1320 = vmatprep.subr.mxu0 0.0
  %1321 = vmatpush1.msra.mxu0 0.0
  %1322 = vmatprep.subr.mxu0 0.0
  %1323 = vmatpush1.msra.mxu0 %v1297
  %1324 = vmatprep.subr.mxu0 0.0
  %1325 = vmatpush1.msra.mxu0 %v1296
  %1326 = vmatprep.subr.mxu0 0.0
  %1327 = vmatpush1.msra.mxu0 %v1295
  %1328 = vmatprep.subr.mxu0 0.0
  %1329 = vmatpush1.msra.mxu0 %v1294
  %1330 = vmatprep.subr.mxu0 0.0
  %1331 = vmatpush2.msra.mxu0 0.0
  %1332 = vmatprep.subr.mxu0 0.0
  %1333 = vmatpush2.msra.mxu0 0.0
  %1334 = vmatprep.subr.mxu0 0.0
  %1335 = vmatpush2.msra.mxu0 0.0
  %1336 = vmatprep.subr.mxu0 0.0
  %1337 = vmatpush2.msra.mxu0 0.0
  %1338 = vmatprep.subr.mxu0 0.0
  %1339 = vmatpush2.msra.mxu0 0.0
  %1340 = vmatprep.subr.mxu0 0.0
  %1341 = vmatpush2.msra.mxu0 0.0
  %1342 = vmatprep.subr.mxu0 0.0
  %1343 = vmatpush2.msra.mxu0 0.0
  %1344 = vmatprep.subr.mxu0 0.0
  %1345 = vmatpush2.msra.mxu0 0.0
  %1346 = vmatprep.subr.mxu0 0.0
  %1347 = vmatpush2.msra.mxu0 0.0
  %1348 = vmatprep.subr.mxu0 0.0
  %1349 = vmatpush2.msra.mxu0 0.0
  %1350 = vmatprep.subr.mxu0 0.0
  %1351 = vmatpush2.msra.mxu0 0.0
  %1352 = vmatprep.subr.mxu0 0.0
  %1353 = vmatpush2.msra.mxu0 0.0
  %1354 = vmatprep.subr.mxu0 0.0
  %1355 = vmatpush2.msra.mxu0 0.0
  %1356 = vmatprep.subr.mxu0 0.0
  %1357 = vmatpush2.msra.mxu0 0.0
  %1358 = vmatprep.subr.mxu0 0.0
  %1359 = vmatpush2.msra.mxu0 0.0
  %1360 = vmatprep.subr.mxu0 0.0
  %1361 = vmatpush2.msra.mxu0 0.0
  %1362 = vmatprep.mubr.f32.mxu0 0.0
  %1363 = vmatmul.mubr.f32.gmra.mxu0 %v861
  %v1364 = vpop.f32.mrf.mxu0
  %v1365 = vadd.f32 0.0, %v1364
  %v1366 = vpop.f32.mrf.mxu0
  %1367 = vdwg.mxu0
  %v1368 = vld [vmem:[%s9 + $0xa0] sm:$0xff]
  %v1369 = vld [vmem:[%s9 + $0xa8] sm:$0xff]
  %v1370 = vld [vmem:[%s9 + $0xb0] sm:$0xff]
  %v1371 = vld [vmem:[%s9 + $0xb8] sm:$0xff]
  %v1372 = vld [vmem:[%s10 + $0x4] sm:$0x1]
  %v1373 = vlaneseq
  %v1374 = vshrl.u32 %v1373, 7
  %v1375 = vsub.s32 0, %v1374
  %v1376 = vrot.slane %v1372, %v1375
  %v1378 = vsel %vm686, %v338, 0
  %v1381 = vsel %vm686, %v343, 0
  %1383 = vmatprep.subr.mxu0 0.0
  %1384 = vmatpush1.msra.mxu0 0.0
  %1385 = vmatprep.subr.mxu0 0.0
  %1386 = vmatpush1.msra.mxu0 0.0
  %1387 = vmatprep.subr.mxu0 0.0
  %1388 = vmatpush1.msra.mxu0 0.0
  %1389 = vmatprep.subr.mxu0 0.0
  %1390 = vmatpush1.msra.mxu0 0.0
  %1391 = vmatprep.subr.mxu0 0.0
  %1392 = vmatpush1.msra.mxu0 0.0
  %1393 = vmatprep.subr.mxu0 0.0
  %1394 = vmatpush1.msra.mxu0 0.0
  %1395 = vmatprep.subr.mxu0 0.0
  %1396 = vmatpush1.msra.mxu0 0.0
  %1397 = vmatprep.subr.mxu0 0.0
  %1398 = vmatpush1.msra.mxu0 0.0
  %1399 = vmatprep.subr.mxu0 0.0
  %1400 = vmatpush1.msra.mxu0 0.0
  %1401 = vmatprep.subr.mxu0 0.0
  %1402 = vmatpush1.msra.mxu0 0.0
  %1403 = vmatprep.subr.mxu0 0.0
  %1404 = vmatpush1.msra.mxu0 0.0
  %1405 = vmatprep.subr.mxu0 0.0
  %1406 = vmatpush1.msra.mxu0 0.0
  %1407 = vmatprep.subr.mxu0 0.0
  %1408 = vmatpush1.msra.mxu0 %v1371
  %1409 = vmatprep.subr.mxu0 0.0
  %1410 = vmatpush1.msra.mxu0 %v1370
  %1411 = vmatprep.subr.mxu0 0.0
  %1412 = vmatpush1.msra.mxu0 %v1369
  %1413 = vmatprep.subr.mxu0 0.0
  %1414 = vmatpush1.msra.mxu0 %v1368
  %1415 = vmatprep.subr.mxu0 0.0
  %1416 = vmatpush2.msra.mxu0 0.0
  %1417 = vmatprep.subr.mxu0 0.0
  %1418 = vmatpush2.msra.mxu0 0.0
  %1419 = vmatprep.subr.mxu0 0.0
  %1420 = vmatpush2.msra.mxu0 0.0
  %1421 = vmatprep.subr.mxu0 0.0
  %1422 = vmatpush2.msra.mxu0 0.0
  %1423 = vmatprep.subr.mxu0 0.0
  %1424 = vmatpush2.msra.mxu0 0.0
  %1425 = vmatprep.subr.mxu0 0.0
  %1426 = vmatpush2.msra.mxu0 0.0
  %1427 = vmatprep.subr.mxu0 0.0
  %1428 = vmatpush2.msra.mxu0 0.0
  %1429 = vmatprep.subr.mxu0 0.0
  %1430 = vmatpush2.msra.mxu0 0.0
  %1431 = vmatprep.subr.mxu0 0.0
  %1432 = vmatpush2.msra.mxu0 0.0
  %1433 = vmatprep.subr.mxu0 0.0
  %1434 = vmatpush2.msra.mxu0 0.0
  %1435 = vmatprep.subr.mxu0 0.0
  %1436 = vmatpush2.msra.mxu0 0.0
  %1437 = vmatprep.subr.mxu0 0.0
  %1438 = vmatpush2.msra.mxu0 0.0
  %1439 = vmatprep.subr.mxu0 0.0
  %1440 = vmatpush2.msra.mxu0 0.0
  %1441 = vmatprep.subr.mxu0 0.0
  %1442 = vmatpush2.msra.mxu0 0.0
  %1443 = vmatprep.subr.mxu0 0.0
  %1444 = vmatpush2.msra.mxu0 0.0
  %1445 = vmatprep.subr.mxu0 0.0
  %1446 = vmatpush2.msra.mxu0 0.0
  %1447 = vmatprep.mubr.f32.mxu0 0.0
  %1448 = vmatmul.mubr.f32.gmra.mxu0 %v1378
  %v1449 = vpop.f32.mrf.mxu0
  %v1450 = vadd.f32 %v1376, %v1449
  %v1451 = vpop.f32.mrf.mxu0
  %1452 = vmatprep.mubr.f32.mxu0 0.0
  %1453 = vmatmul.mubr.f32.gmra.mxu0 %v1381
  %v1454 = vpop.f32.mrf.mxu0
  %v1455 = vadd.f32 %v1376, %v1454
  %v1456 = vpop.f32.mrf.mxu0
  %1457 = vdwg.mxu0
  %v1460 = vcombine.high %v1450, %v1450
  %v1462 = vunpack.c.l.s4 1983009808
  %v1463 = vunpack.c.0.s8 %v1462
  %v1464 = vlaneseq
  %v1465 = vshrl.u32 %v1464, 7
  %v1466 = vsub.s32 %v1463, %v1465
  %v1467 = vrot.slane %v1450, %v1466
  %v1469 = vunpack.c.l.s4 1983009808
  %v1470 = vunpack.c.0.s8 %v1469
  %v1471 = vlaneseq
  %v1472 = vshrl.u32 %v1471, 7
  %v1473 = vsub.s32 %v1470, %v1472
  %v1474 = vrot.slane %v1460, %v1473
  %v1475 = vcombine.high %v1467, %v1467
  %v1476 = vcombine.high %v1474, %v1474
  %v1478 = vunpack.c.l.s4 1983009808
  %v1479 = vunpack.c.0.s8 %v1478
  %v1480 = vlaneseq
  %v1481 = vshrl.u32 %v1480, 7
  %v1482 = vsub.s32 %v1479, %v1481
  %v1483 = vrot.slane %v1455, %v1482
  %v1484 = vcombine.high %v1483, %v1483
  %v1493 = vunpack.c.l.s4 1966171168
  %v1494 = vunpack.c.0.s8 %v1493
  %v1495 = vlaneseq
  %v1496 = vshrl.u32 %v1495, 7
  %v1497 = vsub.s32 %v1494, %v1496
  %v1498 = vrot.slane %v1365, %v1497
  %v1499 = vcombine.high %v1498, %v1498
  %v1501 = vunpack.c.l.s4 1966171168
  %v1502 = vunpack.c.0.s8 %v1501
  %v1503 = vlaneseq
  %v1504 = vshrl.u32 %v1503, 7
  %v1505 = vsub.s32 %v1502, %v1504
  %v1506 = vrot.slane %v1498, %v1505
  %v1508 = vunpack.c.l.s4 1966171168
  %v1509 = vunpack.c.0.s8 %v1508
  %v1510 = vlaneseq
  %v1511 = vshrl.u32 %v1510, 7
  %v1512 = vsub.s32 %v1509, %v1511
  %v1513 = vrot.slane %v1499, %v1512
  %v1514 = vlaneseq
  %v1515 = vshrl.u32 %v1514, 7
  %v1516 = vsub.s32 0, %v1515
  %v1517 = vrot.slane %v1506, %v1516
  %v1518 = vlaneseq
  %v1519 = vshrl.u32 %v1518, 7
  %v1520 = vsub.s32 0, %v1519
  %v1521 = vrot.slane %v1513, %v1520
  %v1522 = vcombine.high %v1517, %v1517
  %v1524 = vunpack.c.l.s4 1983009808
  %v1525 = vunpack.c.0.s8 %v1524
  %v1526 = vlaneseq
  %v1527 = vshrl.u32 %v1526, 7
  %v1528 = vsub.s32 %v1525, %v1527
  %v1529 = vrot.slane %v1517, %v1528
  %v1531 = vunpack.c.l.s4 1983009808
  %v1532 = vunpack.c.0.s8 %v1531
  %v1533 = vlaneseq
  %v1534 = vshrl.u32 %v1533, 7
  %v1535 = vsub.s32 %v1532, %v1534
  %v1536 = vrot.slane %v1522, %v1535
  %v1537 = vcombine.high %v1529, %v1529
  %v1538 = vcombine.high %v1521, %v1521
  %v1540 = vunpack.c.l.s4 1983009808
  %v1541 = vunpack.c.0.s8 %v1540
  %v1542 = vlaneseq
  %v1543 = vshrl.u32 %v1542, 7
  %v1544 = vsub.s32 %v1541, %v1543
  %v1545 = vrot.slane %v1521, %v1544
  %v1547 = vunpack.c.l.s4 1983009808
  %v1548 = vunpack.c.0.s8 %v1547
  %v1549 = vlaneseq
  %v1550 = vshrl.u32 %v1549, 7
  %v1551 = vsub.s32 %v1548, %v1550
  %v1552 = vrot.slane %v1538, %v1551
  %v1553 = vcombine.high %v1545, %v1545
  %v1560 = vadd.f32 %v1467, %v1529
  %v1561 = vadd.f32 %v1475, %v1537
  %v1562 = vadd.f32 %v1474, %v1536
  %v1563 = vadd.f32 %v1476, %v1545
  %v1564 = vadd.f32 %v1483, %v1553
  %v1565 = vadd.f32 %v1484, %v1552
  %vm1566 = vcmp.ge.f32.partialorder %v1560, 0.0
  %vm1567 = vcmp.ge.f32.partialorder %v1561, 0.0
  %vm1568 = vcmp.ge.f32.partialorder %v1562, 0.0
  %vm1569 = vcmp.ge.f32.partialorder %v1563, 0.0
  %vm1570 = vcmp.ge.f32.partialorder %v1564, 0.0
  %vm1571 = vcmp.ge.f32.partialorder %v1565, 0.0
  %v1572 = vmul.f32 %v1560, 0.1
  %v1573 = vmul.f32 %v1561, 0.1
  %v1574 = vmul.f32 %v1562, 0.1
  %v1575 = vmul.f32 %v1563, 0.1
  %v1576 = vmul.f32 %v1564, 0.1
  %v1577 = vmul.f32 %v1565, 0.1
  %v1578 = vsel %vm1566, %v1560, %v1572
  %v1579 = vsel %vm1567, %v1561, %v1573
  %v1580 = vsel %vm1568, %v1562, %v1574
  %v1581 = vsel %vm1569, %v1563, %v1575
  %v1582 = vsel %vm1570, %v1564, %v1576
  %v1583 = vsel %vm1571, %v1565, %v1577
  %v1584 = vld [vmem:[%s9 + $0xe0] sm:$0xff]
  %v1585 = vld [vmem:[%s9 + $0xe8] sm:$0xff]
  %v1586 = vld [vmem:[%s9 + $0xf0] sm:$0xff]
  %v1587 = vld [vmem:[%s9 + $0xf8] sm:$0xff]
  %v1588 = vld [vmem:[%s10 + $0x5] sm:$0x1]
  %v1589 = vlaneseq
  %v1590 = vshrl.u32 %v1589, 7
  %v1591 = vsub.s32 0, %v1590
  %v1592 = vrot.slane %v1588, %v1591
  %v1599 = vcombine.low %v1578, %v1579
  %v1600 = vcombine.low %v1580, %v1581
  %v1602 = vunpack.c.l.s4 1983009808
  %v1603 = vunpack.c.0.s8 %v1602
  %v1604 = vlaneseq
  %v1605 = vshrl.u32 %v1604, 7
  %v1606 = vsub.s32 %v1603, %v1605
  %v1607 = vrot.slane %v1599, %v1606
  %v1609 = vunpack.c.l.s4 1983009808
  %v1610 = vunpack.c.0.s8 %v1609
  %v1611 = vlaneseq
  %v1612 = vshrl.u32 %v1611, 7
  %v1613 = vsub.s32 %v1610, %v1612
  %v1614 = vrot.slane %v1600, %v1613
  %v1615 = vcombine.low %v1607, %v1614
  %v1616 = vcombine.low %v1582, %v1583
  %v1618 = vunpack.c.l.s4 1983009808
  %v1619 = vunpack.c.0.s8 %v1618
  %v1620 = vlaneseq
  %v1621 = vshrl.u32 %v1620, 7
  %v1622 = vsub.s32 %v1619, %v1621
  %v1623 = vrot.slane %v1616, %v1622
  %v1624 = vsel %vm686, %v1615, 0
  %v1626 = vsel %vm686, %v1623, 0
  %1628 = vmatprep.subr.mxu0 0.0
  %1629 = vmatpush1.msra.mxu0 0.0
  %1630 = vmatprep.subr.mxu0 0.0
  %1631 = vmatpush1.msra.mxu0 0.0
  %1632 = vmatprep.subr.mxu0 0.0
  %1633 = vmatpush1.msra.mxu0 0.0
  %1634 = vmatprep.subr.mxu0 0.0
  %1635 = vmatpush1.msra.mxu0 0.0
  %1636 = vmatprep.subr.mxu0 0.0
  %1637 = vmatpush1.msra.mxu0 0.0
  %1638 = vmatprep.subr.mxu0 0.0
  %1639 = vmatpush1.msra.mxu0 0.0
  %1640 = vmatprep.subr.mxu0 0.0
  %1641 = vmatpush1.msra.mxu0 0.0
  %1642 = vmatprep.subr.mxu0 0.0
  %1643 = vmatpush1.msra.mxu0 0.0
  %1644 = vmatprep.subr.mxu0 0.0
  %1645 = vmatpush1.msra.mxu0 0.0
  %1646 = vmatprep.subr.mxu0 0.0
  %1647 = vmatpush1.msra.mxu0 0.0
  %1648 = vmatprep.subr.mxu0 0.0
  %1649 = vmatpush1.msra.mxu0 0.0
  %1650 = vmatprep.subr.mxu0 0.0
  %1651 = vmatpush1.msra.mxu0 0.0
  %1652 = vmatprep.subr.mxu0 0.0
  %1653 = vmatpush1.msra.mxu0 %v1587
  %1654 = vmatprep.subr.mxu0 0.0
  %1655 = vmatpush1.msra.mxu0 %v1586
  %1656 = vmatprep.subr.mxu0 0.0
  %1657 = vmatpush1.msra.mxu0 %v1585
  %1658 = vmatprep.subr.mxu0 0.0
  %1659 = vmatpush1.msra.mxu0 %v1584
  %1660 = vmatprep.subr.mxu0 0.0
  %1661 = vmatpush2.msra.mxu0 0.0
  %1662 = vmatprep.subr.mxu0 0.0
  %1663 = vmatpush2.msra.mxu0 0.0
  %1664 = vmatprep.subr.mxu0 0.0
  %1665 = vmatpush2.msra.mxu0 0.0
  %1666 = vmatprep.subr.mxu0 0.0
  %1667 = vmatpush2.msra.mxu0 0.0
  %1668 = vmatprep.subr.mxu0 0.0
  %1669 = vmatpush2.msra.mxu0 0.0
  %1670 = vmatprep.subr.mxu0 0.0
  %1671 = vmatpush2.msra.mxu0 0.0
  %1672 = vmatprep.subr.mxu0 0.0
  %1673 = vmatpush2.msra.mxu0 0.0
  %1674 = vmatprep.subr.mxu0 0.0
  %1675 = vmatpush2.msra.mxu0 0.0
  %1676 = vmatprep.subr.mxu0 0.0
  %1677 = vmatpush2.msra.mxu0 0.0
  %1678 = vmatprep.subr.mxu0 0.0
  %1679 = vmatpush2.msra.mxu0 0.0
  %1680 = vmatprep.subr.mxu0 0.0
  %1681 = vmatpush2.msra.mxu0 0.0
  %1682 = vmatprep.subr.mxu0 0.0
  %1683 = vmatpush2.msra.mxu0 0.0
  %1684 = vmatprep.subr.mxu0 0.0
  %1685 = vmatpush2.msra.mxu0 0.0
  %1686 = vmatprep.subr.mxu0 0.0
  %1687 = vmatpush2.msra.mxu0 0.0
  %1688 = vmatprep.subr.mxu0 0.0
  %1689 = vmatpush2.msra.mxu0 0.0
  %1690 = vmatprep.subr.mxu0 0.0
  %1691 = vmatpush2.msra.mxu0 0.0
  %1692 = vmatprep.mubr.f32.mxu0 0.0
  %1693 = vmatmul.mubr.f32.gmra.mxu0 %v1624
  %v1694 = vpop.f32.mrf.mxu0
  %v1695 = vadd.f32 %v1592, %v1694
  %v1696 = vpop.f32.mrf.mxu0
  %1697 = vmatprep.mubr.f32.mxu0 0.0
  %1698 = vmatmul.mubr.f32.gmra.mxu0 %v1626
  %v1699 = vpop.f32.mrf.mxu0
  %v1700 = vadd.f32 %v1592, %v1699
  %v1701 = vpop.f32.mrf.mxu0
  %1702 = vdwg.mxu0
  %vm1703 = vcmp.ge.f32.partialorder %v1695, 0.0
  %vm1704 = vcmp.ge.f32.partialorder %v1700, 0.0
  %v1705 = vmul.f32 %v1695, 0.1
  %v1706 = vmul.f32 %v1700, 0.1
  %v1707 = vsel %vm1703, %v1695, %v1705
  %v1708 = vsel %vm1704, %v1700, %v1706
  %v1711 = vcombine.high %v1707, %v1707
  %v1713 = vunpack.c.l.s4 1983009808
  %v1714 = vunpack.c.0.s8 %v1713
  %v1715 = vlaneseq
  %v1716 = vshrl.u32 %v1715, 7
  %v1717 = vsub.s32 %v1714, %v1716
  %v1718 = vrot.slane %v1707, %v1717
  %v1720 = vunpack.c.l.s4 1983009808
  %v1721 = vunpack.c.0.s8 %v1720
  %v1722 = vlaneseq
  %v1723 = vshrl.u32 %v1722, 7
  %v1724 = vsub.s32 %v1721, %v1723
  %v1725 = vrot.slane %v1711, %v1724
  %v1726 = vcombine.high %v1718, %v1718
  %v1727 = vcombine.high %v1725, %v1725
  %v1729 = vunpack.c.l.s4 1983009808
  %v1730 = vunpack.c.0.s8 %v1729
  %v1731 = vlaneseq
  %v1732 = vshrl.u32 %v1731, 7
  %v1733 = vsub.s32 %v1730, %v1732
  %v1734 = vrot.slane %v1708, %v1733
  %v1735 = vcombine.high %v1734, %v1734
  %v1742 = vld [vmem:[%s10 + $0x6] sm:$0x1]
  %v1743 = vlaneseq
  %v1744 = vshrl.u32 %v1743, 7
  %v1745 = vsub.s32 0, %v1744
  %v1746 = vrot.slane %v1742, %v1745
  %v1748 = vcombine.high %v1746, %v1746
  %v1750 = vunpack.c.l.s4 1983009808
  %v1751 = vunpack.c.0.s8 %v1750
  %v1752 = vlaneseq
  %v1753 = vshrl.u32 %v1752, 7
  %v1754 = vsub.s32 %v1751, %v1753
  %v1755 = vrot.slane %v1746, %v1754
  %v1757 = vunpack.c.l.s4 1983009808
  %v1758 = vunpack.c.0.s8 %v1757
  %v1759 = vlaneseq
  %v1760 = vshrl.u32 %v1759, 7
  %v1761 = vsub.s32 %v1758, %v1760
  %v1762 = vrot.slane %v1748, %v1761
  %v1763 = vcombine.high %v1755, %v1755
  %v1767 = vmul.f32 %v1718, %v1755
  %v1768 = vmul.f32 %v1726, %v1763
  %v1769 = vmul.f32 %v1725, %v1762
  %v1770 = vmul.f32 %v1727, %v1755
  %v1771 = vmul.f32 %v1734, %v1763
  %v1772 = vmul.f32 %v1735, %v1762
  %v1779 = vcombine.low %v1767, %v1768
  %v1781 = vunpack.c.l.s4 1983009808
  %v1782 = vunpack.c.0.s8 %v1781
  %v1783 = vlaneseq
  %v1784 = vshrl.u32 %v1783, 7
  %v1785 = vsub.s32 %v1782, %v1784
  %v1786 = vrot.slane %v1779, %v1785
  %v1788 = vunpack.c.l.s4 1983009808
  %v1789 = vunpack.c.0.s8 %v1788
  %v1790 = vlaneseq
  %v1791 = vshrl.u32 %v1790, 7
  %v1792 = vsub.s32 %v1789, %v1791
  %v1793 = vrot.slane %v1769, %v1792
  %v1794 = vcombine.low %v1786, %v1793
  %v1795 = vcombine.low %v1770, %v1771
  %v1797 = vunpack.c.l.s4 1983009808
  %v1798 = vunpack.c.0.s8 %v1797
  %v1799 = vlaneseq
  %v1800 = vshrl.u32 %v1799, 7
  %v1801 = vsub.s32 %v1798, %v1800
  %v1802 = vrot.slane %v1795, %v1801
  %v1804 = vunpack.c.l.s4 1983009808
  %v1805 = vunpack.c.0.s8 %v1804
  %v1806 = vlaneseq
  %v1807 = vshrl.u32 %v1806, 7
  %v1808 = vsub.s32 %v1805, %v1807
  %v1809 = vrot.slane %v1772, %v1808
  %v1810 = vcombine.low %v1802, %v1809
  %vm1813 = vcmask 259072
  %v1814 = vsel %vm1813, %v1794, 0.0
  %1815 = vadd.xlane.f32.xlu0 %v1814
  %v1816 = vpop.xlane.xlu0 %1815
  %v1817 = vsel %vm1813, %v1810, 0.0
  %1818 = vadd.xlane.f32.xlu0 %v1817
  %v1819 = vpop.xlane.xlu0 %1818
  %v1821 = vlaneseq
  %v1822 = vshrl.u32 %v1821, 7
  %v1823 = vsub.s32 0, %v1822
  %v1824 = vrot.slane %v677, %v1823
  %1826 = vbcast.lane.b32.xlu0 %v1824, 256
  %v1827 = vpop.permute.xlu0 %1826
  %v1828 = vlaneseq
  %v1829 = vshrl.u32 %v1828, 7
  %v1830 = vsub.s32 1, %v1829
  %v1831 = vrot.slane %v677, %v1830
  %1833 = vbcast.lane.b32.xlu0 %v1831, 256
  %v1834 = vpop.permute.xlu0 %1833
  %v1837 = vadd.f32 %v1816, %v1827
  %v1838 = vadd.f32 %v1819, %v1834
  %1841 = vset.pattern.permute.xlu0 0
  %1842 = vperm.xlu0 %1841, %v1837
  %v1843 = vpop.permute.xlu0 %1842
  %1844 = vset.pattern.permute.xlu0 0
  %1845 = vperm.xlu0 %1844, %v1838
  %v1846 = vpop.permute.xlu0 %1845
  %v1847 = vlaneseq
  %v1848 = vshrl.u32 %v1847, 7
  %v1849 = vsub.s32 %v52, %v1848
  %v1850 = vrot.slane %v1843, %v1849
  %v1851 = vlaneseq
  %v1852 = vshrl.u32 %v1851, 7
  %v1853 = vsub.s32 %v52, %v1852
  %v1854 = vrot.slane %v1846, %v1853
  %v1855 = vsel %vm1208, %v1854, %v1850
  %vm1857 = vcmask 41984
  %v1858 = vsel %vm1857, %v1855, -inf
  %1859 = vmax.xlane.f32.xlu0 %v1858
  %v1860 = vpop.xlane.xlu0 %1859
  %v1862 = vlaneseq
  %v1863 = vshrl.u32 %v1862, 7
  %v1864 = vsub.s32 0, %v1863
  %v1865 = vrot.slane %v1860, %v1864
  %v1866 = vlaneseq
  %v1867 = vshrl.u32 %v1866, 7
  %v1868 = vsub.s32 1, %v1867
  %v1869 = vrot.slane %v1860, %v1868
  %v1872 = vsub.f32 %v1837, %v1865
  %v1873 = vsub.f32 %v1838, %v1869
  %v1874 = vmul.f32 %v1872, 1.442695
  %v1875 = vpow.pop %v1874
  %v1876 = vmul.f32 %v1873, 1.442695
  %v1877 = vpow.pop %v1876
  %1880 = vset.pattern.permute.xlu0 0
  %1881 = vperm.xlu0 %1880, %v1875
  %v1882 = vpop.permute.xlu0 %1881
  %1883 = vset.pattern.permute.xlu0 0
  %1884 = vperm.xlu0 %1883, %v1877
  %v1885 = vpop.permute.xlu0 %1884
  %v1886 = vlaneseq
  %v1887 = vshrl.u32 %v1886, 7
  %v1888 = vsub.s32 %v52, %v1887
  %v1889 = vrot.slane %v1882, %v1888
  %v1890 = vlaneseq
  %v1891 = vshrl.u32 %v1890, 7
  %v1892 = vsub.s32 %v52, %v1891
  %v1893 = vrot.slane %v1885, %v1892
  %v1894 = vsel %vm1208, %v1893, %v1889
  %v1896 = vsel %vm1857, %v1894, 0.0
  %1897 = vadd.xlane.f32.xlu0 %v1896
  %v1898 = vpop.xlane.xlu0 %1897
  %v1900 = vlaneseq
  %v1901 = vshrl.u32 %v1900, 7
  %v1902 = vsub.s32 0, %v1901
  %v1903 = vrot.slane %v1898, %v1902
  %v1904 = vlaneseq
  %v1905 = vshrl.u32 %v1904, 7
  %v1906 = vsub.s32 1, %v1905
  %v1907 = vrot.slane %v1898, %v1906
  %v1910 = vrcp.pop %v1903
  %v1911 = vmul.f32 %v1875, %v1910
  %v1912 = vrcp.pop %v1907
  %v1913 = vmul.f32 %v1877, %v1912
  %v1914 = vcombine.high %v338, %v338
  %v1916 = vunpack.c.l.s4 1983009808
  %v1917 = vunpack.c.0.s8 %v1916
  %v1918 = vlaneseq
  %v1919 = vshrl.u32 %v1918, 7
  %v1920 = vsub.s32 %v1917, %v1919
  %v1921 = vrot.slane %v338, %v1920
  %v1923 = vunpack.c.l.s4 1983009808
  %v1924 = vunpack.c.0.s8 %v1923
  %v1925 = vlaneseq
  %v1926 = vshrl.u32 %v1925, 7
  %v1927 = vsub.s32 %v1924, %v1926
  %v1928 = vrot.slane %v1914, %v1927
  %v1929 = vcombine.high %v1921, %v1921
  %v1930 = vcombine.high %v1928, %v1928
  %v1932 = vunpack.c.l.s4 1983009808
  %v1933 = vunpack.c.0.s8 %v1932
  %v1934 = vlaneseq
  %v1935 = vshrl.u32 %v1934, 7
  %v1936 = vsub.s32 %v1933, %v1935
  %v1937 = vrot.slane %v343, %v1936
  %v1938 = vcombine.high %v1937, %v1937
  %1940 = vset.pattern.permute.xlu0 0
  %1941 = vperm.xlu0 %1940, %v1911
  %v1942 = vpop.permute.xlu0 %1941
  %1945 = vset.pattern.permute.xlu0 0
  %1946 = vperm.xlu0 %1945, %v1913
  %v1947 = vpop.permute.xlu0 %1946
  %v1949 = vcombine.low %v1921, %v1929
  %v1951 = vunpack.c.l.s4 1983009808
  %v1952 = vunpack.c.0.s8 %v1951
  %v1953 = vlaneseq
  %v1954 = vshrl.u32 %v1953, 7
  %v1955 = vsub.s32 %v1952, %v1954
  %v1956 = vrot.slane %v1949, %v1955
  %v1958 = vunpack.c.l.s4 1983009808
  %v1959 = vunpack.c.0.s8 %v1958
  %v1960 = vlaneseq
  %v1961 = vshrl.u32 %v1960, 7
  %v1962 = vsub.s32 %v1959, %v1961
  %v1963 = vrot.slane %v1928, %v1962
  %v1964 = vcombine.low %v1956, %v1963
  %v1965 = vcombine.low %v1930, %v1937
  %v1967 = vunpack.c.l.s4 1983009808
  %v1968 = vunpack.c.0.s8 %v1967
  %v1969 = vlaneseq
  %v1970 = vshrl.u32 %v1969, 7
  %v1971 = vsub.s32 %v1968, %v1970
  %v1972 = vrot.slane %v1965, %v1971
  %v1974 = vunpack.c.l.s4 1983009808
  %v1975 = vunpack.c.0.s8 %v1974
  %v1976 = vlaneseq
  %v1977 = vshrl.u32 %v1976, 7
  %v1978 = vsub.s32 %v1975, %v1977
  %v1979 = vrot.slane %v1938, %v1978
  %v1980 = vcombine.low %v1972, %v1979
  %v1983 = vmul.f32 %v1942, %v1964
  %v1984 = vmul.f32 %v1947, %v1980
  %v1985 = vsel %vm1813, %v1983, 0.0
  %v1986 = vrot.slane %v1985, 4
  %v1987 = vadd.f32 %v1985, %v1986
  %v1988 = vrot.slane %v1987, 2
  %v1989 = vadd.f32 %v1987, %v1988
  %v1990 = vrot.slane %v1989, 1
  %v1991 = vadd.f32 %v1989, %v1990
  %v1992 = vsel %vm1813, %v1984, 0.0
  %v1993 = vrot.slane %v1992, 4
  %v1994 = vadd.f32 %v1992, %v1993
  %v1995 = vrot.slane %v1994, 2
  %v1996 = vadd.f32 %v1994, %v1995
  %v1997 = vrot.slane %v1996, 1
  %v1998 = vadd.f32 %v1996, %v1997
  %v1999 = vld [vmem:[%s9 + $0x100] sm:$0xff]
  %v2000 = vld [vmem:[%s9 + $0x108] sm:$0xff]
  %v2001 = vld [vmem:[%s9 + $0x110] sm:$0xff]
  %v2002 = vld [vmem:[%s9 + $0x118] sm:$0xff]
  %v2003 = vld [vmem:[%s9 + $0x120] sm:$0xff]
  %v2004 = vld [vmem:[%s9 + $0x128] sm:$0xff]
  %v2005 = vld [vmem:[%s9 + $0x130] sm:$0xff]
  %v2006 = vld [vmem:[%s9 + $0x138] sm:$0xff]
  %v2009 = vsel %vm1208, %v1998, %v1991
  %v2010 = vsel %vm686, %v2009, 0
  %2012 = vmatprep.subr.mxu0 0.0
  %2013 = vmatpush1.msra.mxu0 0.0
  %2014 = vmatprep.subr.mxu0 0.0
  %2015 = vmatpush1.msra.mxu0 0.0
  %2016 = vmatprep.subr.mxu0 0.0
  %2017 = vmatpush1.msra.mxu0 0.0
  %2018 = vmatprep.subr.mxu0 0.0
  %2019 = vmatpush1.msra.mxu0 0.0
  %2020 = vmatprep.subr.mxu0 0.0
  %2021 = vmatpush1.msra.mxu0 0.0
  %2022 = vmatprep.subr.mxu0 0.0
  %2023 = vmatpush1.msra.mxu0 0.0
  %2024 = vmatprep.subr.mxu0 0.0
  %2025 = vmatpush1.msra.mxu0 0.0
  %2026 = vmatprep.subr.mxu0 0.0
  %2027 = vmatpush1.msra.mxu0 0.0
  %2028 = vmatprep.subr.mxu0 0.0
  %2029 = vmatpush1.msra.mxu0 0.0
  %2030 = vmatprep.subr.mxu0 0.0
  %2031 = vmatpush1.msra.mxu0 0.0
  %2032 = vmatprep.subr.mxu0 0.0
  %2033 = vmatpush1.msra.mxu0 0.0
  %2034 = vmatprep.subr.mxu0 0.0
  %2035 = vmatpush1.msra.mxu0 0.0
  %2036 = vmatprep.subr.mxu0 0.0
  %2037 = vmatpush1.msra.mxu0 %v2006
  %2038 = vmatprep.subr.mxu0 0.0
  %2039 = vmatpush1.msra.mxu0 %v2005
  %2040 = vmatprep.subr.mxu0 0.0
  %2041 = vmatpush1.msra.mxu0 %v2004
  %2042 = vmatprep.subr.mxu0 0.0
  %2043 = vmatpush1.msra.mxu0 %v2003
  %2044 = vmatprep.subr.mxu0 0.0
  %2045 = vmatpush2.msra.mxu0 0.0
  %2046 = vmatprep.subr.mxu0 0.0
  %2047 = vmatpush2.msra.mxu0 0.0
  %2048 = vmatprep.subr.mxu0 0.0
  %2049 = vmatpush2.msra.mxu0 0.0
  %2050 = vmatprep.subr.mxu0 0.0
  %2051 = vmatpush2.msra.mxu0 0.0
  %2052 = vmatprep.subr.mxu0 0.0
  %2053 = vmatpush2.msra.mxu0 0.0
  %2054 = vmatprep.subr.mxu0 0.0
  %2055 = vmatpush2.msra.mxu0 0.0
  %2056 = vmatprep.subr.mxu0 0.0
  %2057 = vmatpush2.msra.mxu0 0.0
  %2058 = vmatprep.subr.mxu0 0.0
  %2059 = vmatpush2.msra.mxu0 0.0
  %2060 = vmatprep.subr.mxu0 0.0
  %2061 = vmatpush2.msra.mxu0 0.0
  %2062 = vmatprep.subr.mxu0 0.0
  %2063 = vmatpush2.msra.mxu0 0.0
  %2064 = vmatprep.subr.mxu0 0.0
  %2065 = vmatpush2.msra.mxu0 0.0
  %2066 = vmatprep.subr.mxu0 0.0
  %2067 = vmatpush2.msra.mxu0 0.0
  %2068 = vmatprep.subr.mxu0 0.0
  %2069 = vmatpush2.msra.mxu0 0.0
  %2070 = vmatprep.subr.mxu0 0.0
  %2071 = vmatpush2.msra.mxu0 0.0
  %2072 = vmatprep.subr.mxu0 0.0
  %2073 = vmatpush2.msra.mxu0 0.0
  %2074 = vmatprep.subr.mxu0 0.0
  %2075 = vmatpush2.msra.mxu0 0.0
  %2076 = vmatprep.mubr.f32.mxu0 0.0
  %2077 = vmatmul.mubr.f32.gmra.mxu0 %v2010
  %v2078 = vpop.f32.mrf.mxu0
  %v2079 = vadd.f32 0.0, %v2078
  %v2080 = vpop.f32.mrf.mxu0
  %2081 = vdwg.mxu0
  %v2084 = vsel %vm1208, %v1293, %v1286
  %v2085 = vsel %vm686, %v2084, 0
  %2087 = vmatprep.subr.mxu0 0.0
  %2088 = vmatpush1.msra.mxu0 0.0
  %2089 = vmatprep.subr.mxu0 0.0
  %2090 = vmatpush1.msra.mxu0 0.0
  %2091 = vmatprep.subr.mxu0 0.0
  %2092 = vmatpush1.msra.mxu0 0.0
  %2093 = vmatprep.subr.mxu0 0.0
  %2094 = vmatpush1.msra.mxu0 0.0
  %2095 = vmatprep.subr.mxu0 0.0
  %2096 = vmatpush1.msra.mxu0 0.0
  %2097 = vmatprep.subr.mxu0 0.0
  %2098 = vmatpush1.msra.mxu0 0.0
  %2099 = vmatprep.subr.mxu0 0.0
  %2100 = vmatpush1.msra.mxu0 0.0
  %2101 = vmatprep.subr.mxu0 0.0
  %2102 = vmatpush1.msra.mxu0 0.0
  %2103 = vmatprep.subr.mxu0 0.0
  %2104 = vmatpush1.msra.mxu0 0.0
  %2105 = vmatprep.subr.mxu0 0.0
  %2106 = vmatpush1.msra.mxu0 0.0
  %2107 = vmatprep.subr.mxu0 0.0
  %2108 = vmatpush1.msra.mxu0 0.0
  %2109 = vmatprep.subr.mxu0 0.0
  %2110 = vmatpush1.msra.mxu0 0.0
  %2111 = vmatprep.subr.mxu0 0.0
  %2112 = vmatpush1.msra.mxu0 %v2002
  %2113 = vmatprep.subr.mxu0 0.0
  %2114 = vmatpush1.msra.mxu0 %v2001
  %2115 = vmatprep.subr.mxu0 0.0
  %2116 = vmatpush1.msra.mxu0 %v2000
  %2117 = vmatprep.subr.mxu0 0.0
  %2118 = vmatpush1.msra.mxu0 %v1999
  %2119 = vmatprep.subr.mxu0 0.0
  %2120 = vmatpush2.msra.mxu0 0.0
  %2121 = vmatprep.subr.mxu0 0.0
  %2122 = vmatpush2.msra.mxu0 0.0
  %2123 = vmatprep.subr.mxu0 0.0
  %2124 = vmatpush2.msra.mxu0 0.0
  %2125 = vmatprep.subr.mxu0 0.0
  %2126 = vmatpush2.msra.mxu0 0.0
  %2127 = vmatprep.subr.mxu0 0.0
  %2128 = vmatpush2.msra.mxu0 0.0
  %2129 = vmatprep.subr.mxu0 0.0
  %2130 = vmatpush2.msra.mxu0 0.0
  %2131 = vmatprep.subr.mxu0 0.0
  %2132 = vmatpush2.msra.mxu0 0.0
  %2133 = vmatprep.subr.mxu0 0.0
  %2134 = vmatpush2.msra.mxu0 0.0
  %2135 = vmatprep.subr.mxu0 0.0
  %2136 = vmatpush2.msra.mxu0 0.0
  %2137 = vmatprep.subr.mxu0 0.0
  %2138 = vmatpush2.msra.mxu0 0.0
  %2139 = vmatprep.subr.mxu0 0.0
  %2140 = vmatpush2.msra.mxu0 0.0
  %2141 = vmatprep.subr.mxu0 0.0
  %2142 = vmatpush2.msra.mxu0 0.0
  %2143 = vmatprep.subr.mxu0 0.0
  %2144 = vmatpush2.msra.mxu0 0.0
  %2145 = vmatprep.subr.mxu0 0.0
  %2146 = vmatpush2.msra.mxu0 0.0
  %2147 = vmatprep.subr.mxu0 0.0
  %2148 = vmatpush2.msra.mxu0 0.0
  %2149 = vmatprep.subr.mxu0 0.0
  %2150 = vmatpush2.msra.mxu0 0.0
  %2151 = vmatprep.mubr.f32.mxu0 0.0
  %2152 = vmatmul.mubr.f32.gmra.mxu0 %v2085
  %v2153 = vpop.f32.mrf.mxu0
  %v2154 = vadd.f32 %v2079, %v2153
  %v2155 = vpop.f32.mrf.mxu0
  %2156 = vdwg.mxu0
  %v2157 = vld [vmem:[%s10 + $0x7] sm:$0x1]
  %v2158 = vlaneseq
  %v2159 = vshrl.u32 %v2158, 7
  %v2160 = vsub.s32 0, %v2159
  %v2161 = vrot.slane %v2157, %v2160
  %v2162 = vadd.f32 %v2154, %v2161
  %v2163 = vmax.f32 %v2162, 0.0
  %v2164 = vld [vmem:[%s9 + $0x140] sm:$0xff]
  %v2165 = vld [vmem:[%s9 + $0x148] sm:$0xff]
  %v2166 = vld [vmem:[%s9 + $0x150] sm:$0xff]
  %v2167 = vld [vmem:[%s9 + $0x158] sm:$0xff]
  %v2168 = vld [vmem:[%s9 + $0x160] sm:$0xff]
  %v2169 = vld [vmem:[%s9 + $0x168] sm:$0xff]
  %v2170 = vld [vmem:[%s9 + $0x170] sm:$0xff]
  %v2171 = vld [vmem:[%s9 + $0x178] sm:$0xff]
  %2172 = vmatprep.subr.mxu0 0.0
  %2173 = vmatpush1.msra.mxu0 0.0
  %2174 = vmatprep.subr.mxu0 0.0
  %2175 = vmatpush1.msra.mxu0 0.0
  %2176 = vmatprep.subr.mxu0 0.0
  %2177 = vmatpush1.msra.mxu0 0.0
  %2178 = vmatprep.subr.mxu0 0.0
  %2179 = vmatpush1.msra.mxu0 0.0
  %2180 = vmatprep.subr.mxu0 0.0
  %2181 = vmatpush1.msra.mxu0 0.0
  %2182 = vmatprep.subr.mxu0 0.0
  %2183 = vmatpush1.msra.mxu0 0.0
  %2184 = vmatprep.subr.mxu0 0.0
  %2185 = vmatpush1.msra.mxu0 0.0
  %2186 = vmatprep.subr.mxu0 0.0
  %2187 = vmatpush1.msra.mxu0 0.0
  %2188 = vmatprep.subr.mxu0 0.0
  %2189 = vmatpush1.msra.mxu0 0.0
  %2190 = vmatprep.subr.mxu0 0.0
  %2191 = vmatpush1.msra.mxu0 0.0
  %2192 = vmatprep.subr.mxu0 0.0
  %2193 = vmatpush1.msra.mxu0 0.0
  %2194 = vmatprep.subr.mxu0 0.0
  %2195 = vmatpush1.msra.mxu0 0.0
  %2196 = vmatprep.subr.mxu0 0.0
  %2197 = vmatpush1.msra.mxu0 %v2171
  %2198 = vmatprep.subr.mxu0 0.0
  %2199 = vmatpush1.msra.mxu0 %v2170
  %2200 = vmatprep.subr.mxu0 0.0
  %2201 = vmatpush1.msra.mxu0 %v2169
  %2202 = vmatprep.subr.mxu0 0.0
  %2203 = vmatpush1.msra.mxu0 %v2168
  %2204 = vmatprep.subr.mxu0 0.0
  %2205 = vmatpush2.msra.mxu0 0.0
  %2206 = vmatprep.subr.mxu0 0.0
  %2207 = vmatpush2.msra.mxu0 0.0
  %2208 = vmatprep.subr.mxu0 0.0
  %2209 = vmatpush2.msra.mxu0 0.0
  %2210 = vmatprep.subr.mxu0 0.0
  %2211 = vmatpush2.msra.mxu0 0.0
  %2212 = vmatprep.subr.mxu0 0.0
  %2213 = vmatpush2.msra.mxu0 0.0
  %2214 = vmatprep.subr.mxu0 0.0
  %2215 = vmatpush2.msra.mxu0 0.0
  %2216 = vmatprep.subr.mxu0 0.0
  %2217 = vmatpush2.msra.mxu0 0.0
  %2218 = vmatprep.subr.mxu0 0.0
  %2219 = vmatpush2.msra.mxu0 0.0
  %2220 = vmatprep.subr.mxu0 0.0
  %2221 = vmatpush2.msra.mxu0 0.0
  %2222 = vmatprep.subr.mxu0 0.0
  %2223 = vmatpush2.msra.mxu0 0.0
  %2224 = vmatprep.subr.mxu0 0.0
  %2225 = vmatpush2.msra.mxu0 0.0
  %2226 = vmatprep.subr.mxu0 0.0
  %2227 = vmatpush2.msra.mxu0 0.0
  %2228 = vmatprep.subr.mxu0 0.0
  %2229 = vmatpush2.msra.mxu0 0.0
  %2230 = vmatprep.subr.mxu0 0.0
  %2231 = vmatpush2.msra.mxu0 0.0
  %2232 = vmatprep.subr.mxu0 0.0
  %2233 = vmatpush2.msra.mxu0 0.0
  %2234 = vmatprep.subr.mxu0 0.0
  %2235 = vmatpush2.msra.mxu0 0.0
  %2236 = vmatprep.mubr.f32.mxu0 0.0
  %2237 = vmatmul.mubr.f32.gmra.mxu0 %v861
  %v2238 = vpop.f32.mrf.mxu0
  %v2239 = vadd.f32 0.0, %v2238
  %v2240 = vpop.f32.mrf.mxu0
  %2241 = vdwg.mxu0
  %v2243 = vsel %vm686, %v2163, 0
  %2245 = vmatprep.subr.mxu0 0.0
  %2246 = vmatpush1.msra.mxu0 0.0
  %2247 = vmatprep.subr.mxu0 0.0
  %2248 = vmatpush1.msra.mxu0 0.0
  %2249 = vmatprep.subr.mxu0 0.0
  %2250 = vmatpush1.msra.mxu0 0.0
  %2251 = vmatprep.subr.mxu0 0.0
  %2252 = vmatpush1.msra.mxu0 0.0
  %2253 = vmatprep.subr.mxu0 0.0
  %2254 = vmatpush1.msra.mxu0 0.0
  %2255 = vmatprep.subr.mxu0 0.0
  %2256 = vmatpush1.msra.mxu0 0.0
  %2257 = vmatprep.subr.mxu0 0.0
  %2258 = vmatpush1.msra.mxu0 0.0
  %2259 = vmatprep.subr.mxu0 0.0
  %2260 = vmatpush1.msra.mxu0 0.0
  %2261 = vmatprep.subr.mxu0 0.0
  %2262 = vmatpush1.msra.mxu0 0.0
  %2263 = vmatprep.subr.mxu0 0.0
  %2264 = vmatpush1.msra.mxu0 0.0
  %2265 = vmatprep.subr.mxu0 0.0
  %2266 = vmatpush1.msra.mxu0 0.0
  %2267 = vmatprep.subr.mxu0 0.0
  %2268 = vmatpush1.msra.mxu0 0.0
  %2269 = vmatprep.subr.mxu0 0.0
  %2270 = vmatpush1.msra.mxu0 %v2167
  %2271 = vmatprep.subr.mxu0 0.0
  %2272 = vmatpush1.msra.mxu0 %v2166
  %2273 = vmatprep.subr.mxu0 0.0
  %2274 = vmatpush1.msra.mxu0 %v2165
  %2275 = vmatprep.subr.mxu0 0.0
  %2276 = vmatpush1.msra.mxu0 %v2164
  %2277 = vmatprep.subr.mxu0 0.0
  %2278 = vmatpush2.msra.mxu0 0.0
  %2279 = vmatprep.subr.mxu0 0.0
  %2280 = vmatpush2.msra.mxu0 0.0
  %2281 = vmatprep.subr.mxu0 0.0
  %2282 = vmatpush2.msra.mxu0 0.0
  %2283 = vmatprep.subr.mxu0 0.0
  %2284 = vmatpush2.msra.mxu0 0.0
  %2285 = vmatprep.subr.mxu0 0.0
  %2286 = vmatpush2.msra.mxu0 0.0
  %2287 = vmatprep.subr.mxu0 0.0
  %2288 = vmatpush2.msra.mxu0 0.0
  %2289 = vmatprep.subr.mxu0 0.0
  %2290 = vmatpush2.msra.mxu0 0.0
  %2291 = vmatprep.subr.mxu0 0.0
  %2292 = vmatpush2.msra.mxu0 0.0
  %2293 = vmatprep.subr.mxu0 0.0
  %2294 = vmatpush2.msra.mxu0 0.0
  %2295 = vmatprep.subr.mxu0 0.0
  %2296 = vmatpush2.msra.mxu0 0.0
  %2297 = vmatprep.subr.mxu0 0.0
  %2298 = vmatpush2.msra.mxu0 0.0
  %2299 = vmatprep.subr.mxu0 0.0
  %2300 = vmatpush2.msra.mxu0 0.0
  %2301 = vmatprep.subr.mxu0 0.0
  %2302 = vmatpush2.msra.mxu0 0.0
  %2303 = vmatprep.subr.mxu0 0.0
  %2304 = vmatpush2.msra.mxu0 0.0
  %2305 = vmatprep.subr.mxu0 0.0
  %2306 = vmatpush2.msra.mxu0 0.0
  %2307 = vmatprep.subr.mxu0 0.0
  %2308 = vmatpush2.msra.mxu0 0.0
  %2309 = vmatprep.mubr.f32.mxu0 0.0
  %2310 = vmatmul.mubr.f32.gmra.mxu0 %v2243
  %v2311 = vpop.f32.mrf.mxu0
  %v2312 = vadd.f32 %v2239, %v2311
  %v2313 = vpop.f32.mrf.mxu0
  %2314 = vdwg.mxu0
  %v2315 = vld [vmem:[%s10 + $0x8] sm:$0x1]
  %v2316 = vlaneseq
  %v2317 = vshrl.u32 %v2316, 7
  %v2318 = vsub.s32 0, %v2317
  %v2319 = vrot.slane %v2315, %v2318
  %v2320 = vadd.f32 %v2312, %v2319
  %v2321 = vld [vmem:[%s9 + $0x180] sm:$0xff]
  %v2322 = vld [vmem:[%s9 + $0x188] sm:$0xff]
  %v2323 = vld [vmem:[%s9 + $0x190] sm:$0xff]
  %v2324 = vld [vmem:[%s9 + $0x198] sm:$0xff]
  %v2325 = vld [vmem:[%s10 + $0x9] sm:$0x1]
  %v2326 = vlaneseq
  %v2327 = vshrl.u32 %v2326, 7
  %v2328 = vsub.s32 0, %v2327
  %v2329 = vrot.slane %v2325, %v2328
  %v2331 = vsel %vm686, %v2320, 0
  %2333 = vmatprep.subr.mxu0 0.0
  %2334 = vmatpush1.msra.mxu0 0.0
  %2335 = vmatprep.subr.mxu0 0.0
  %2336 = vmatpush1.msra.mxu0 0.0
  %2337 = vmatprep.subr.mxu0 0.0
  %2338 = vmatpush1.msra.mxu0 0.0
  %2339 = vmatprep.subr.mxu0 0.0
  %2340 = vmatpush1.msra.mxu0 0.0
  %2341 = vmatprep.subr.mxu0 0.0
  %2342 = vmatpush1.msra.mxu0 0.0
  %2343 = vmatprep.subr.mxu0 0.0
  %2344 = vmatpush1.msra.mxu0 0.0
  %2345 = vmatprep.subr.mxu0 0.0
  %2346 = vmatpush1.msra.mxu0 0.0
  %2347 = vmatprep.subr.mxu0 0.0
  %2348 = vmatpush1.msra.mxu0 0.0
  %2349 = vmatprep.subr.mxu0 0.0
  %2350 = vmatpush1.msra.mxu0 0.0
  %2351 = vmatprep.subr.mxu0 0.0
  %2352 = vmatpush1.msra.mxu0 0.0
  %2353 = vmatprep.subr.mxu0 0.0
  %2354 = vmatpush1.msra.mxu0 0.0
  %2355 = vmatprep.subr.mxu0 0.0
  %2356 = vmatpush1.msra.mxu0 0.0
  %2357 = vmatprep.subr.mxu0 0.0
  %2358 = vmatpush1.msra.mxu0 %v2324
  %2359 = vmatprep.subr.mxu0 0.0
  %2360 = vmatpush1.msra.mxu0 %v2323
  %2361 = vmatprep.subr.mxu0 0.0
  %2362 = vmatpush1.msra.mxu0 %v2322
  %2363 = vmatprep.subr.mxu0 0.0
  %2364 = vmatpush1.msra.mxu0 %v2321
  %2365 = vmatprep.subr.mxu0 0.0
  %2366 = vmatpush2.msra.mxu0 0.0
  %2367 = vmatprep.subr.mxu0 0.0
  %2368 = vmatpush2.msra.mxu0 0.0
  %2369 = vmatprep.subr.mxu0 0.0
  %2370 = vmatpush2.msra.mxu0 0.0
  %2371 = vmatprep.subr.mxu0 0.0
  %2372 = vmatpush2.msra.mxu0 0.0
  %2373 = vmatprep.subr.mxu0 0.0
  %2374 = vmatpush2.msra.mxu0 0.0
  %2375 = vmatprep.subr.mxu0 0.0
  %2376 = vmatpush2.msra.mxu0 0.0
  %2377 = vmatprep.subr.mxu0 0.0
  %2378 = vmatpush2.msra.mxu0 0.0
  %2379 = vmatprep.subr.mxu0 0.0
  %2380 = vmatpush2.msra.mxu0 0.0
  %2381 = vmatprep.subr.mxu0 0.0
  %2382 = vmatpush2.msra.mxu0 0.0
  %2383 = vmatprep.subr.mxu0 0.0
  %2384 = vmatpush2.msra.mxu0 0.0
  %2385 = vmatprep.subr.mxu0 0.0
  %2386 = vmatpush2.msra.mxu0 0.0
  %2387 = vmatprep.subr.mxu0 0.0
  %2388 = vmatpush2.msra.mxu0 0.0
  %2389 = vmatprep.subr.mxu0 0.0
  %2390 = vmatpush2.msra.mxu0 0.0
  %2391 = vmatprep.subr.mxu0 0.0
  %2392 = vmatpush2.msra.mxu0 0.0
  %2393 = vmatprep.subr.mxu0 0.0
  %2394 = vmatpush2.msra.mxu0 0.0
  %2395 = vmatprep.subr.mxu0 0.0
  %2396 = vmatpush2.msra.mxu0 0.0
  %2397 = vmatprep.mubr.f32.mxu0 0.0
  %2398 = vmatmul.mubr.f32.gmra.mxu0 %v2331
  %v2399 = vpop.f32.mrf.mxu0
  %v2400 = vadd.f32 %v2329, %v2399
  %v2401 = vpop.f32.mrf.mxu0
  %2402 = vdwg.mxu0
  %v2403 = vld [vmem:[%s9 + $0x1a0] sm:$0xff]
  %v2404 = vld [vmem:[%s9 + $0x1a8] sm:$0xff]
  %v2405 = vld [vmem:[%s9 + $0x1b0] sm:$0xff]
  %v2406 = vld [vmem:[%s9 + $0x1b8] sm:$0xff]
  %v2407 = vld [vmem:[%s10 + $0xa] sm:$0x1]
  %v2408 = vlaneseq
  %v2409 = vshrl.u32 %v2408, 7
  %v2410 = vsub.s32 0, %v2409
  %v2411 = vrot.slane %v2407, %v2410
  %2412 = vmatprep.subr.mxu0 0.0
  %2413 = vmatpush1.msra.mxu0 0.0
  %2414 = vmatprep.subr.mxu0 0.0
  %2415 = vmatpush1.msra.mxu0 0.0
  %2416 = vmatprep.subr.mxu0 0.0
  %2417 = vmatpush1.msra.mxu0 0.0
  %2418 = vmatprep.subr.mxu0 0.0
  %2419 = vmatpush1.msra.mxu0 0.0
  %2420 = vmatprep.subr.mxu0 0.0
  %2421 = vmatpush1.msra.mxu0 0.0
  %2422 = vmatprep.subr.mxu0 0.0
  %2423 = vmatpush1.msra.mxu0 0.0
  %2424 = vmatprep.subr.mxu0 0.0
  %2425 = vmatpush1.msra.mxu0 0.0
  %2426 = vmatprep.subr.mxu0 0.0
  %2427 = vmatpush1.msra.mxu0 0.0
  %2428 = vmatprep.subr.mxu0 0.0
  %2429 = vmatpush1.msra.mxu0 0.0
  %2430 = vmatprep.subr.mxu0 0.0
  %2431 = vmatpush1.msra.mxu0 0.0
  %2432 = vmatprep.subr.mxu0 0.0
  %2433 = vmatpush1.msra.mxu0 0.0
  %2434 = vmatprep.subr.mxu0 0.0
  %2435 = vmatpush1.msra.mxu0 0.0
  %2436 = vmatprep.subr.mxu0 0.0
  %2437 = vmatpush1.msra.mxu0 %v2406
  %2438 = vmatprep.subr.mxu0 0.0
  %2439 = vmatpush1.msra.mxu0 %v2405
  %2440 = vmatprep.subr.mxu0 0.0
  %2441 = vmatpush1.msra.mxu0 %v2404
  %2442 = vmatprep.subr.mxu0 0.0
  %2443 = vmatpush1.msra.mxu0 %v2403
  %2444 = vmatprep.subr.mxu0 0.0
  %2445 = vmatpush2.msra.mxu0 0.0
  %2446 = vmatprep.subr.mxu0 0.0
  %2447 = vmatpush2.msra.mxu0 0.0
  %2448 = vmatprep.subr.mxu0 0.0
  %2449 = vmatpush2.msra.mxu0 0.0
  %2450 = vmatprep.subr.mxu0 0.0
  %2451 = vmatpush2.msra.mxu0 0.0
  %2452 = vmatprep.subr.mxu0 0.0
  %2453 = vmatpush2.msra.mxu0 0.0
  %2454 = vmatprep.subr.mxu0 0.0
  %2455 = vmatpush2.msra.mxu0 0.0
  %2456 = vmatprep.subr.mxu0 0.0
  %2457 = vmatpush2.msra.mxu0 0.0
  %2458 = vmatprep.subr.mxu0 0.0
  %2459 = vmatpush2.msra.mxu0 0.0
  %2460 = vmatprep.subr.mxu0 0.0
  %2461 = vmatpush2.msra.mxu0 0.0
  %2462 = vmatprep.subr.mxu0 0.0
  %2463 = vmatpush2.msra.mxu0 0.0
  %2464 = vmatprep.subr.mxu0 0.0
  %2465 = vmatpush2.msra.mxu0 0.0
  %2466 = vmatprep.subr.mxu0 0.0
  %2467 = vmatpush2.msra.mxu0 0.0
  %2468 = vmatprep.subr.mxu0 0.0
  %2469 = vmatpush2.msra.mxu0 0.0
  %2470 = vmatprep.subr.mxu0 0.0
  %2471 = vmatpush2.msra.mxu0 0.0
  %2472 = vmatprep.subr.mxu0 0.0
  %2473 = vmatpush2.msra.mxu0 0.0
  %2474 = vmatprep.subr.mxu0 0.0
  %2475 = vmatpush2.msra.mxu0 0.0
  %2476 = vmatprep.mubr.f32.mxu0 0.0
  %2477 = vmatmul.mubr.f32.gmra.mxu0 %v2331
  %v2478 = vpop.f32.mrf.mxu0
  %v2479 = vadd.f32 %v2411, %v2478
  %v2480 = vpop.f32.mrf.mxu0
  %2481 = vdwg.mxu0
  %v2482 = vld [vmem:[%s9 + $0x3c0] sm:$0xff]
  %v2483 = vld [vmem:[%s9 + $0x3c8] sm:$0xff]
  %v2484 = vld [vmem:[%s9 + $0x3d0] sm:$0xff]
  %v2485 = vld [vmem:[%s9 + $0x3d8] sm:$0xff]
  %v2486 = vld [vmem:[%s9 + $0x380] sm:$0xff]
  %v2487 = vld [vmem:[%s9 + $0x388] sm:$0xff]
  %v2488 = vld [vmem:[%s9 + $0x390] sm:$0xff]
  %v2489 = vld [vmem:[%s9 + $0x398] sm:$0xff]
  %v2490 = vld [vmem:[%s10 + $0x16] sm:$0x1]
  %v2491 = vlaneseq
  %v2492 = vshrl.u32 %v2491, 7
  %v2493 = vsub.s32 0, %v2492
  %v2494 = vrot.slane %v2490, %v2493
  %v2496 = vsel %vm686, %v673, 0
  %2498 = vmatprep.subr.mxu0 0.0
  %2499 = vmatpush1.msra.mxu0 0.0
  %2500 = vmatprep.subr.mxu0 0.0
  %2501 = vmatpush1.msra.mxu0 0.0
  %2502 = vmatprep.subr.mxu0 0.0
  %2503 = vmatpush1.msra.mxu0 0.0
  %2504 = vmatprep.subr.mxu0 0.0
  %2505 = vmatpush1.msra.mxu0 0.0
  %2506 = vmatprep.subr.mxu0 0.0
  %2507 = vmatpush1.msra.mxu0 0.0
  %2508 = vmatprep.subr.mxu0 0.0
  %2509 = vmatpush1.msra.mxu0 0.0
  %2510 = vmatprep.subr.mxu0 0.0
  %2511 = vmatpush1.msra.mxu0 0.0
  %2512 = vmatprep.subr.mxu0 0.0
  %2513 = vmatpush1.msra.mxu0 0.0
  %2514 = vmatprep.subr.mxu0 0.0
  %2515 = vmatpush1.msra.mxu0 0.0
  %2516 = vmatprep.subr.mxu0 0.0
  %2517 = vmatpush1.msra.mxu0 0.0
  %2518 = vmatprep.subr.mxu0 0.0
  %2519 = vmatpush1.msra.mxu0 0.0
  %2520 = vmatprep.subr.mxu0 0.0
  %2521 = vmatpush1.msra.mxu0 0.0
  %2522 = vmatprep.subr.mxu0 0.0
  %2523 = vmatpush1.msra.mxu0 %v2489
  %2524 = vmatprep.subr.mxu0 0.0
  %2525 = vmatpush1.msra.mxu0 %v2488
  %2526 = vmatprep.subr.mxu0 0.0
  %2527 = vmatpush1.msra.mxu0 %v2487
  %2528 = vmatprep.subr.mxu0 0.0
  %2529 = vmatpush1.msra.mxu0 %v2486
  %2530 = vmatprep.subr.mxu0 0.0
  %2531 = vmatpush2.msra.mxu0 0.0
  %2532 = vmatprep.subr.mxu0 0.0
  %2533 = vmatpush2.msra.mxu0 0.0
  %2534 = vmatprep.subr.mxu0 0.0
  %2535 = vmatpush2.msra.mxu0 0.0
  %2536 = vmatprep.subr.mxu0 0.0
  %2537 = vmatpush2.msra.mxu0 0.0
  %2538 = vmatprep.subr.mxu0 0.0
  %2539 = vmatpush2.msra.mxu0 0.0
  %2540 = vmatprep.subr.mxu0 0.0
  %2541 = vmatpush2.msra.mxu0 0.0
  %2542 = vmatprep.subr.mxu0 0.0
  %2543 = vmatpush2.msra.mxu0 0.0
  %2544 = vmatprep.subr.mxu0 0.0
  %2545 = vmatpush2.msra.mxu0 0.0
  %2546 = vmatprep.subr.mxu0 0.0
  %2547 = vmatpush2.msra.mxu0 0.0
  %2548 = vmatprep.subr.mxu0 0.0
  %2549 = vmatpush2.msra.mxu0 0.0
  %2550 = vmatprep.subr.mxu0 0.0
  %2551 = vmatpush2.msra.mxu0 0.0
  %2552 = vmatprep.subr.mxu0 0.0
  %2553 = vmatpush2.msra.mxu0 0.0
  %2554 = vmatprep.subr.mxu0 0.0
  %2555 = vmatpush2.msra.mxu0 0.0
  %2556 = vmatprep.subr.mxu0 0.0
  %2557 = vmatpush2.msra.mxu0 0.0
  %2558 = vmatprep.subr.mxu0 0.0
  %2559 = vmatpush2.msra.mxu0 0.0
  %2560 = vmatprep.subr.mxu0 0.0
  %2561 = vmatpush2.msra.mxu0 0.0
  %2562 = vmatprep.mubr.f32.mxu0 0.0
  %2563 = vmatmul.mubr.f32.gmra.mxu0 %v2496
  %v2564 = vpop.f32.mrf.mxu0
  %v2565 = vadd.f32 %v2494, %v2564
  %v2566 = vpop.f32.mrf.mxu0
  %2567 = vdwg.mxu0
  %v2568 = vmax.f32 %v2565, 0.0
  %v2569 = vld [vmem:[%s9 + $0x3a0] sm:$0xff]
  %v2570 = vld [vmem:[%s9 + $0x3a8] sm:$0xff]
  %v2571 = vld [vmem:[%s9 + $0x3b0] sm:$0xff]
  %v2572 = vld [vmem:[%s9 + $0x3b8] sm:$0xff]
  %v2573 = vld [vmem:[%s10 + $0x17] sm:$0x1]
  %v2574 = vlaneseq
  %v2575 = vshrl.u32 %v2574, 7
  %v2576 = vsub.s32 0, %v2575
  %v2577 = vrot.slane %v2573, %v2576
  %v2579 = vsel %vm686, %v2568, 0
  %2581 = vmatprep.subr.mxu0 0.0
  %2582 = vmatpush1.msra.mxu0 0.0
  %2583 = vmatprep.subr.mxu0 0.0
  %2584 = vmatpush1.msra.mxu0 0.0
  %2585 = vmatprep.subr.mxu0 0.0
  %2586 = vmatpush1.msra.mxu0 0.0
  %2587 = vmatprep.subr.mxu0 0.0
  %2588 = vmatpush1.msra.mxu0 0.0
  %2589 = vmatprep.subr.mxu0 0.0
  %2590 = vmatpush1.msra.mxu0 0.0
  %2591 = vmatprep.subr.mxu0 0.0
  %2592 = vmatpush1.msra.mxu0 0.0
  %2593 = vmatprep.subr.mxu0 0.0
  %2594 = vmatpush1.msra.mxu0 0.0
  %2595 = vmatprep.subr.mxu0 0.0
  %2596 = vmatpush1.msra.mxu0 0.0
  %2597 = vmatprep.subr.mxu0 0.0
  %2598 = vmatpush1.msra.mxu0 0.0
  %2599 = vmatprep.subr.mxu0 0.0
  %2600 = vmatpush1.msra.mxu0 0.0
  %2601 = vmatprep.subr.mxu0 0.0
  %2602 = vmatpush1.msra.mxu0 0.0
  %2603 = vmatprep.subr.mxu0 0.0
  %2604 = vmatpush1.msra.mxu0 0.0
  %2605 = vmatprep.subr.mxu0 0.0
  %2606 = vmatpush1.msra.mxu0 %v2572
  %2607 = vmatprep.subr.mxu0 0.0
  %2608 = vmatpush1.msra.mxu0 %v2571
  %2609 = vmatprep.subr.mxu0 0.0
  %2610 = vmatpush1.msra.mxu0 %v2570
  %2611 = vmatprep.subr.mxu0 0.0
  %2612 = vmatpush1.msra.mxu0 %v2569
  %2613 = vmatprep.subr.mxu0 0.0
  %2614 = vmatpush2.msra.mxu0 0.0
  %2615 = vmatprep.subr.mxu0 0.0
  %2616 = vmatpush2.msra.mxu0 0.0
  %2617 = vmatprep.subr.mxu0 0.0
  %2618 = vmatpush2.msra.mxu0 0.0
  %2619 = vmatprep.subr.mxu0 0.0
  %2620 = vmatpush2.msra.mxu0 0.0
  %2621 = vmatprep.subr.mxu0 0.0
  %2622 = vmatpush2.msra.mxu0 0.0
  %2623 = vmatprep.subr.mxu0 0.0
  %2624 = vmatpush2.msra.mxu0 0.0
  %2625 = vmatprep.subr.mxu0 0.0
  %2626 = vmatpush2.msra.mxu0 0.0
  %2627 = vmatprep.subr.mxu0 0.0
  %2628 = vmatpush2.msra.mxu0 0.0
  %2629 = vmatprep.subr.mxu0 0.0
  %2630 = vmatpush2.msra.mxu0 0.0
  %2631 = vmatprep.subr.mxu0 0.0
  %2632 = vmatpush2.msra.mxu0 0.0
  %2633 = vmatprep.subr.mxu0 0.0
  %2634 = vmatpush2.msra.mxu0 0.0
  %2635 = vmatprep.subr.mxu0 0.0
  %2636 = vmatpush2.msra.mxu0 0.0
  %2637 = vmatprep.subr.mxu0 0.0
  %2638 = vmatpush2.msra.mxu0 0.0
  %2639 = vmatprep.subr.mxu0 0.0
  %2640 = vmatpush2.msra.mxu0 0.0
  %2641 = vmatprep.subr.mxu0 0.0
  %2642 = vmatpush2.msra.mxu0 0.0
  %2643 = vmatprep.subr.mxu0 0.0
  %2644 = vmatpush2.msra.mxu0 0.0
  %2645 = vmatprep.mubr.f32.mxu0 0.0
  %2646 = vmatmul.mubr.f32.gmra.mxu0 %v2579
  %v2647 = vpop.f32.mrf.mxu0
  %v2648 = vadd.f32 %v2577, %v2647
  %v2649 = vpop.f32.mrf.mxu0
  %2650 = vdwg.mxu0
  %v2651 = vld [vmem:[%s9 + $0x3e0] sm:$0xff]
  %v2652 = vld [vmem:[%s9 + $0x3e8] sm:$0xff]
  %v2653 = vld [vmem:[%s9 + $0x3f0] sm:$0xff]
  %v2654 = vld [vmem:[%s9 + $0x3f8] sm:$0xff]
  %v2656 = vsel %vm686, %v2648, 0
  %2658 = vmatprep.subr.mxu0 0.0
  %2659 = vmatpush1.msra.mxu0 0.0
  %2660 = vmatprep.subr.mxu0 0.0
  %2661 = vmatpush1.msra.mxu0 0.0
  %2662 = vmatprep.subr.mxu0 0.0
  %2663 = vmatpush1.msra.mxu0 0.0
  %2664 = vmatprep.subr.mxu0 0.0
  %2665 = vmatpush1.msra.mxu0 0.0
  %2666 = vmatprep.subr.mxu0 0.0
  %2667 = vmatpush1.msra.mxu0 0.0
  %2668 = vmatprep.subr.mxu0 0.0
  %2669 = vmatpush1.msra.mxu0 0.0
  %2670 = vmatprep.subr.mxu0 0.0
  %2671 = vmatpush1.msra.mxu0 0.0
  %2672 = vmatprep.subr.mxu0 0.0
  %2673 = vmatpush1.msra.mxu0 0.0
  %2674 = vmatprep.subr.mxu0 0.0
  %2675 = vmatpush1.msra.mxu0 0.0
  %2676 = vmatprep.subr.mxu0 0.0
  %2677 = vmatpush1.msra.mxu0 0.0
  %2678 = vmatprep.subr.mxu0 0.0
  %2679 = vmatpush1.msra.mxu0 0.0
  %2680 = vmatprep.subr.mxu0 0.0
  %2681 = vmatpush1.msra.mxu0 0.0
  %2682 = vmatprep.subr.mxu0 0.0
  %2683 = vmatpush1.msra.mxu0 %v2654
  %2684 = vmatprep.subr.mxu0 0.0
  %2685 = vmatpush1.msra.mxu0 %v2653
  %2686 = vmatprep.subr.mxu0 0.0
  %2687 = vmatpush1.msra.mxu0 %v2652
  %2688 = vmatprep.subr.mxu0 0.0
  %2689 = vmatpush1.msra.mxu0 %v2651
  %2690 = vmatprep.subr.mxu0 0.0
  %2691 = vmatpush2.msra.mxu0 0.0
  %2692 = vmatprep.subr.mxu0 0.0
  %2693 = vmatpush2.msra.mxu0 0.0
  %2694 = vmatprep.subr.mxu0 0.0
  %2695 = vmatpush2.msra.mxu0 0.0
  %2696 = vmatprep.subr.mxu0 0.0
  %2697 = vmatpush2.msra.mxu0 0.0
  %2698 = vmatprep.subr.mxu0 0.0
  %2699 = vmatpush2.msra.mxu0 0.0
  %2700 = vmatprep.subr.mxu0 0.0
  %2701 = vmatpush2.msra.mxu0 0.0
  %2702 = vmatprep.subr.mxu0 0.0
  %2703 = vmatpush2.msra.mxu0 0.0
  %2704 = vmatprep.subr.mxu0 0.0
  %2705 = vmatpush2.msra.mxu0 0.0
  %2706 = vmatprep.subr.mxu0 0.0
  %2707 = vmatpush2.msra.mxu0 0.0
  %2708 = vmatprep.subr.mxu0 0.0
  %2709 = vmatpush2.msra.mxu0 0.0
  %2710 = vmatprep.subr.mxu0 0.0
  %2711 = vmatpush2.msra.mxu0 0.0
  %2712 = vmatprep.subr.mxu0 0.0
  %2713 = vmatpush2.msra.mxu0 0.0
  %2714 = vmatprep.subr.mxu0 0.0
  %2715 = vmatpush2.msra.mxu0 0.0
  %2716 = vmatprep.subr.mxu0 0.0
  %2717 = vmatpush2.msra.mxu0 0.0
  %2718 = vmatprep.subr.mxu0 0.0
  %2719 = vmatpush2.msra.mxu0 0.0
  %2720 = vmatprep.subr.mxu0 0.0
  %2721 = vmatpush2.msra.mxu0 0.0
  %2722 = vmatprep.mubr.f32.mxu0 0.0
  %2723 = vmatmul.mubr.f32.gmra.mxu0 %v2656
  %v2724 = vpop.f32.mrf.mxu0
  %v2725 = vadd.f32 0.0, %v2724
  %v2726 = vpop.f32.mrf.mxu0
  %2727 = vdwg.mxu0
  %v2729 = vsel %vm686, %v2400, 0
  %2731 = vmatprep.subr.mxu0 0.0
  %2732 = vmatpush1.msra.mxu0 0.0
  %2733 = vmatprep.subr.mxu0 0.0
  %2734 = vmatpush1.msra.mxu0 0.0
  %2735 = vmatprep.subr.mxu0 0.0
  %2736 = vmatpush1.msra.mxu0 0.0
  %2737 = vmatprep.subr.mxu0 0.0
  %2738 = vmatpush1.msra.mxu0 0.0
  %2739 = vmatprep.subr.mxu0 0.0
  %2740 = vmatpush1.msra.mxu0 0.0
  %2741 = vmatprep.subr.mxu0 0.0
  %2742 = vmatpush1.msra.mxu0 0.0
  %2743 = vmatprep.subr.mxu0 0.0
  %2744 = vmatpush1.msra.mxu0 0.0
  %2745 = vmatprep.subr.mxu0 0.0
  %2746 = vmatpush1.msra.mxu0 0.0
  %2747 = vmatprep.subr.mxu0 0.0
  %2748 = vmatpush1.msra.mxu0 0.0
  %2749 = vmatprep.subr.mxu0 0.0
  %2750 = vmatpush1.msra.mxu0 0.0
  %2751 = vmatprep.subr.mxu0 0.0
  %2752 = vmatpush1.msra.mxu0 0.0
  %2753 = vmatprep.subr.mxu0 0.0
  %2754 = vmatpush1.msra.mxu0 0.0
  %2755 = vmatprep.subr.mxu0 0.0
  %2756 = vmatpush1.msra.mxu0 %v2485
  %2757 = vmatprep.subr.mxu0 0.0
  %2758 = vmatpush1.msra.mxu0 %v2484
  %2759 = vmatprep.subr.mxu0 0.0
  %2760 = vmatpush1.msra.mxu0 %v2483
  %2761 = vmatprep.subr.mxu0 0.0
  %2762 = vmatpush1.msra.mxu0 %v2482
  %2763 = vmatprep.subr.mxu0 0.0
  %2764 = vmatpush2.msra.mxu0 0.0
  %2765 = vmatprep.subr.mxu0 0.0
  %2766 = vmatpush2.msra.mxu0 0.0
  %2767 = vmatprep.subr.mxu0 0.0
  %2768 = vmatpush2.msra.mxu0 0.0
  %2769 = vmatprep.subr.mxu0 0.0
  %2770 = vmatpush2.msra.mxu0 0.0
  %2771 = vmatprep.subr.mxu0 0.0
  %2772 = vmatpush2.msra.mxu0 0.0
  %2773 = vmatprep.subr.mxu0 0.0
  %2774 = vmatpush2.msra.mxu0 0.0
  %2775 = vmatprep.subr.mxu0 0.0
  %2776 = vmatpush2.msra.mxu0 0.0
  %2777 = vmatprep.subr.mxu0 0.0
  %2778 = vmatpush2.msra.mxu0 0.0
  %2779 = vmatprep.subr.mxu0 0.0
  %2780 = vmatpush2.msra.mxu0 0.0
  %2781 = vmatprep.subr.mxu0 0.0
  %2782 = vmatpush2.msra.mxu0 0.0
  %2783 = vmatprep.subr.mxu0 0.0
  %2784 = vmatpush2.msra.mxu0 0.0
  %2785 = vmatprep.subr.mxu0 0.0
  %2786 = vmatpush2.msra.mxu0 0.0
  %2787 = vmatprep.subr.mxu0 0.0
  %2788 = vmatpush2.msra.mxu0 0.0
  %2789 = vmatprep.subr.mxu0 0.0
  %2790 = vmatpush2.msra.mxu0 0.0
  %2791 = vmatprep.subr.mxu0 0.0
  %2792 = vmatpush2.msra.mxu0 0.0
  %2793 = vmatprep.subr.mxu0 0.0
  %2794 = vmatpush2.msra.mxu0 0.0
  %2795 = vmatprep.mubr.f32.mxu0 0.0
  %2796 = vmatmul.mubr.f32.gmra.mxu0 %v2729
  %v2797 = vpop.f32.mrf.mxu0
  %v2798 = vadd.f32 %v2725, %v2797
  %v2799 = vpop.f32.mrf.mxu0
  %2800 = vdwg.mxu0
  %v2801 = vld [vmem:[%s10 + $0x18] sm:$0x1]
  %v2802 = vlaneseq
  %v2803 = vshrl.u32 %v2802, 7
  %v2804 = vsub.s32 0, %v2803
  %v2805 = vrot.slane %v2801, %v2804
  %v2806 = vadd.f32 %v2798, %v2805
  %v2807 = vmax.f32 %v2806, 0.0
  %v2808 = vld [vmem:[%s9 + $0x400] sm:$0xff]
  %v2809 = vld [vmem:[%s9 + $0x408] sm:$0xff]
  %v2810 = vld [vmem:[%s9 + $0x410] sm:$0xff]
  %v2811 = vld [vmem:[%s9 + $0x418] sm:$0xff]
  %v2813 = vsel %vm686, %v594, 0
  %2815 = vmatprep.subr.mxu0 0.0
  %2816 = vmatpush1.msra.mxu0 0.0
  %2817 = vmatprep.subr.mxu0 0.0
  %2818 = vmatpush1.msra.mxu0 0.0
  %2819 = vmatprep.subr.mxu0 0.0
  %2820 = vmatpush1.msra.mxu0 0.0
  %2821 = vmatprep.subr.mxu0 0.0
  %2822 = vmatpush1.msra.mxu0 0.0
  %2823 = vmatprep.subr.mxu0 0.0
  %2824 = vmatpush1.msra.mxu0 0.0
  %2825 = vmatprep.subr.mxu0 0.0
  %2826 = vmatpush1.msra.mxu0 0.0
  %2827 = vmatprep.subr.mxu0 0.0
  %2828 = vmatpush1.msra.mxu0 0.0
  %2829 = vmatprep.subr.mxu0 0.0
  %2830 = vmatpush1.msra.mxu0 0.0
  %2831 = vmatprep.subr.mxu0 0.0
  %2832 = vmatpush1.msra.mxu0 0.0
  %2833 = vmatprep.subr.mxu0 0.0
  %2834 = vmatpush1.msra.mxu0 0.0
  %2835 = vmatprep.subr.mxu0 0.0
  %2836 = vmatpush1.msra.mxu0 0.0
  %2837 = vmatprep.subr.mxu0 0.0
  %2838 = vmatpush1.msra.mxu0 0.0
  %2839 = vmatprep.subr.mxu0 0.0
  %2840 = vmatpush1.msra.mxu0 %v2489
  %2841 = vmatprep.subr.mxu0 0.0
  %2842 = vmatpush1.msra.mxu0 %v2488
  %2843 = vmatprep.subr.mxu0 0.0
  %2844 = vmatpush1.msra.mxu0 %v2487
  %2845 = vmatprep.subr.mxu0 0.0
  %2846 = vmatpush1.msra.mxu0 %v2486
  %2847 = vmatprep.subr.mxu0 0.0
  %2848 = vmatpush2.msra.mxu0 0.0
  %2849 = vmatprep.subr.mxu0 0.0
  %2850 = vmatpush2.msra.mxu0 0.0
  %2851 = vmatprep.subr.mxu0 0.0
  %2852 = vmatpush2.msra.mxu0 0.0
  %2853 = vmatprep.subr.mxu0 0.0
  %2854 = vmatpush2.msra.mxu0 0.0
  %2855 = vmatprep.subr.mxu0 0.0
  %2856 = vmatpush2.msra.mxu0 0.0
  %2857 = vmatprep.subr.mxu0 0.0
  %2858 = vmatpush2.msra.mxu0 0.0
  %2859 = vmatprep.subr.mxu0 0.0
  %2860 = vmatpush2.msra.mxu0 0.0
  %2861 = vmatprep.subr.mxu0 0.0
  %2862 = vmatpush2.msra.mxu0 0.0
  %2863 = vmatprep.subr.mxu0 0.0
  %2864 = vmatpush2.msra.mxu0 0.0
  %2865 = vmatprep.subr.mxu0 0.0
  %2866 = vmatpush2.msra.mxu0 0.0
  %2867 = vmatprep.subr.mxu0 0.0
  %2868 = vmatpush2.msra.mxu0 0.0
  %2869 = vmatprep.subr.mxu0 0.0
  %2870 = vmatpush2.msra.mxu0 0.0
  %2871 = vmatprep.subr.mxu0 0.0
  %2872 = vmatpush2.msra.mxu0 0.0
  %2873 = vmatprep.subr.mxu0 0.0
  %2874 = vmatpush2.msra.mxu0 0.0
  %2875 = vmatprep.subr.mxu0 0.0
  %2876 = vmatpush2.msra.mxu0 0.0
  %2877 = vmatprep.subr.mxu0 0.0
  %2878 = vmatpush2.msra.mxu0 0.0
  %2879 = vmatprep.mubr.f32.mxu0 0.0
  %2880 = vmatmul.mubr.f32.gmra.mxu0 %v2813
  %v2881 = vpop.f32.mrf.mxu0
  %v2882 = vadd.f32 %v2494, %v2881
  %v2883 = vpop.f32.mrf.mxu0
  %2884 = vdwg.mxu0
  %v2885 = vmax.f32 %v2882, 0.0
  %v2887 = vsel %vm686, %v2885, 0
  %2889 = vmatprep.subr.mxu0 0.0
  %2890 = vmatpush1.msra.mxu0 0.0
  %2891 = vmatprep.subr.mxu0 0.0
  %2892 = vmatpush1.msra.mxu0 0.0
  %2893 = vmatprep.subr.mxu0 0.0
  %2894 = vmatpush1.msra.mxu0 0.0
  %2895 = vmatprep.subr.mxu0 0.0
  %2896 = vmatpush1.msra.mxu0 0.0
  %2897 = vmatprep.subr.mxu0 0.0
  %2898 = vmatpush1.msra.mxu0 0.0
  %2899 = vmatprep.subr.mxu0 0.0
  %2900 = vmatpush1.msra.mxu0 0.0
  %2901 = vmatprep.subr.mxu0 0.0
  %2902 = vmatpush1.msra.mxu0 0.0
  %2903 = vmatprep.subr.mxu0 0.0
  %2904 = vmatpush1.msra.mxu0 0.0
  %2905 = vmatprep.subr.mxu0 0.0
  %2906 = vmatpush1.msra.mxu0 0.0
  %2907 = vmatprep.subr.mxu0 0.0
  %2908 = vmatpush1.msra.mxu0 0.0
  %2909 = vmatprep.subr.mxu0 0.0
  %2910 = vmatpush1.msra.mxu0 0.0
  %2911 = vmatprep.subr.mxu0 0.0
  %2912 = vmatpush1.msra.mxu0 0.0
  %2913 = vmatprep.subr.mxu0 0.0
  %2914 = vmatpush1.msra.mxu0 %v2572
  %2915 = vmatprep.subr.mxu0 0.0
  %2916 = vmatpush1.msra.mxu0 %v2571
  %2917 = vmatprep.subr.mxu0 0.0
  %2918 = vmatpush1.msra.mxu0 %v2570
  %2919 = vmatprep.subr.mxu0 0.0
  %2920 = vmatpush1.msra.mxu0 %v2569
  %2921 = vmatprep.subr.mxu0 0.0
  %2922 = vmatpush2.msra.mxu0 0.0
  %2923 = vmatprep.subr.mxu0 0.0
  %2924 = vmatpush2.msra.mxu0 0.0
  %2925 = vmatprep.subr.mxu0 0.0
  %2926 = vmatpush2.msra.mxu0 0.0
  %2927 = vmatprep.subr.mxu0 0.0
  %2928 = vmatpush2.msra.mxu0 0.0
  %2929 = vmatprep.subr.mxu0 0.0
  %2930 = vmatpush2.msra.mxu0 0.0
  %2931 = vmatprep.subr.mxu0 0.0
  %2932 = vmatpush2.msra.mxu0 0.0
  %2933 = vmatprep.subr.mxu0 0.0
  %2934 = vmatpush2.msra.mxu0 0.0
  %2935 = vmatprep.subr.mxu0 0.0
  %2936 = vmatpush2.msra.mxu0 0.0
  %2937 = vmatprep.subr.mxu0 0.0
  %2938 = vmatpush2.msra.mxu0 0.0
  %2939 = vmatprep.subr.mxu0 0.0
  %2940 = vmatpush2.msra.mxu0 0.0
  %2941 = vmatprep.subr.mxu0 0.0
  %2942 = vmatpush2.msra.mxu0 0.0
  %2943 = vmatprep.subr.mxu0 0.0
  %2944 = vmatpush2.msra.mxu0 0.0
  %2945 = vmatprep.subr.mxu0 0.0
  %2946 = vmatpush2.msra.mxu0 0.0
  %2947 = vmatprep.subr.mxu0 0.0
  %2948 = vmatpush2.msra.mxu0 0.0
  %2949 = vmatprep.subr.mxu0 0.0
  %2950 = vmatpush2.msra.mxu0 0.0
  %2951 = vmatprep.subr.mxu0 0.0
  %2952 = vmatpush2.msra.mxu0 0.0
  %2953 = vmatprep.mubr.f32.mxu0 0.0
  %2954 = vmatmul.mubr.f32.gmra.mxu0 %v2887
  %v2955 = vpop.f32.mrf.mxu0
  %v2956 = vadd.f32 %v2577, %v2955
  %v2957 = vpop.f32.mrf.mxu0
  %2958 = vdwg.mxu0
  %v2959 = vld [vmem:[%s9 + $0x420] sm:$0xff]
  %v2960 = vld [vmem:[%s9 + $0x428] sm:$0xff]
  %v2961 = vld [vmem:[%s9 + $0x430] sm:$0xff]
  %v2962 = vld [vmem:[%s9 + $0x438] sm:$0xff]
  %v2964 = vsel %vm686, %v2956, 0
  %2966 = vmatprep.subr.mxu0 0.0
  %2967 = vmatpush1.msra.mxu0 0.0
  %2968 = vmatprep.subr.mxu0 0.0
  %2969 = vmatpush1.msra.mxu0 0.0
  %2970 = vmatprep.subr.mxu0 0.0
  %2971 = vmatpush1.msra.mxu0 0.0
  %2972 = vmatprep.subr.mxu0 0.0
  %2973 = vmatpush1.msra.mxu0 0.0
  %2974 = vmatprep.subr.mxu0 0.0
  %2975 = vmatpush1.msra.mxu0 0.0
  %2976 = vmatprep.subr.mxu0 0.0
  %2977 = vmatpush1.msra.mxu0 0.0
  %2978 = vmatprep.subr.mxu0 0.0
  %2979 = vmatpush1.msra.mxu0 0.0
  %2980 = vmatprep.subr.mxu0 0.0
  %2981 = vmatpush1.msra.mxu0 0.0
  %2982 = vmatprep.subr.mxu0 0.0
  %2983 = vmatpush1.msra.mxu0 0.0
  %2984 = vmatprep.subr.mxu0 0.0
  %2985 = vmatpush1.msra.mxu0 0.0
  %2986 = vmatprep.subr.mxu0 0.0
  %2987 = vmatpush1.msra.mxu0 0.0
  %2988 = vmatprep.subr.mxu0 0.0
  %2989 = vmatpush1.msra.mxu0 0.0
  %2990 = vmatprep.subr.mxu0 0.0
  %2991 = vmatpush1.msra.mxu0 %v2962
  %2992 = vmatprep.subr.mxu0 0.0
  %2993 = vmatpush1.msra.mxu0 %v2961
  %2994 = vmatprep.subr.mxu0 0.0
  %2995 = vmatpush1.msra.mxu0 %v2960
  %2996 = vmatprep.subr.mxu0 0.0
  %2997 = vmatpush1.msra.mxu0 %v2959
  %2998 = vmatprep.subr.mxu0 0.0
  %2999 = vmatpush2.msra.mxu0 0.0
  %3000 = vmatprep.subr.mxu0 0.0
  %3001 = vmatpush2.msra.mxu0 0.0
  %3002 = vmatprep.subr.mxu0 0.0
  %3003 = vmatpush2.msra.mxu0 0.0
  %3004 = vmatprep.subr.mxu0 0.0
  %3005 = vmatpush2.msra.mxu0 0.0
  %3006 = vmatprep.subr.mxu0 0.0
  %3007 = vmatpush2.msra.mxu0 0.0
  %3008 = vmatprep.subr.mxu0 0.0
  %3009 = vmatpush2.msra.mxu0 0.0
  %3010 = vmatprep.subr.mxu0 0.0
  %3011 = vmatpush2.msra.mxu0 0.0
  %3012 = vmatprep.subr.mxu0 0.0
  %3013 = vmatpush2.msra.mxu0 0.0
  %3014 = vmatprep.subr.mxu0 0.0
  %3015 = vmatpush2.msra.mxu0 0.0
  %3016 = vmatprep.subr.mxu0 0.0
  %3017 = vmatpush2.msra.mxu0 0.0
  %3018 = vmatprep.subr.mxu0 0.0
  %3019 = vmatpush2.msra.mxu0 0.0
  %3020 = vmatprep.subr.mxu0 0.0
  %3021 = vmatpush2.msra.mxu0 0.0
  %3022 = vmatprep.subr.mxu0 0.0
  %3023 = vmatpush2.msra.mxu0 0.0
  %3024 = vmatprep.subr.mxu0 0.0
  %3025 = vmatpush2.msra.mxu0 0.0
  %3026 = vmatprep.subr.mxu0 0.0
  %3027 = vmatpush2.msra.mxu0 0.0
  %3028 = vmatprep.subr.mxu0 0.0
  %3029 = vmatpush2.msra.mxu0 0.0
  %3030 = vmatprep.mubr.f32.mxu0 0.0
  %3031 = vmatmul.mubr.f32.gmra.mxu0 %v2964
  %v3032 = vpop.f32.mrf.mxu0
  %v3033 = vadd.f32 0.0, %v3032
  %v3034 = vpop.f32.mrf.mxu0
  %3035 = vdwg.mxu0
  %v3037 = vsel %vm686, %v2479, 0
  %3039 = vmatprep.subr.mxu0 0.0
  %3040 = vmatpush1.msra.mxu0 0.0
  %3041 = vmatprep.subr.mxu0 0.0
  %3042 = vmatpush1.msra.mxu0 0.0
  %3043 = vmatprep.subr.mxu0 0.0
  %3044 = vmatpush1.msra.mxu0 0.0
  %3045 = vmatprep.subr.mxu0 0.0
  %3046 = vmatpush1.msra.mxu0 0.0
  %3047 = vmatprep.subr.mxu0 0.0
  %3048 = vmatpush1.msra.mxu0 0.0
  %3049 = vmatprep.subr.mxu0 0.0
  %3050 = vmatpush1.msra.mxu0 0.0
  %3051 = vmatprep.subr.mxu0 0.0
  %3052 = vmatpush1.msra.mxu0 0.0
  %3053 = vmatprep.subr.mxu0 0.0
  %3054 = vmatpush1.msra.mxu0 0.0
  %3055 = vmatprep.subr.mxu0 0.0
  %3056 = vmatpush1.msra.mxu0 0.0
  %3057 = vmatprep.subr.mxu0 0.0
  %3058 = vmatpush1.msra.mxu0 0.0
  %3059 = vmatprep.subr.mxu0 0.0
  %3060 = vmatpush1.msra.mxu0 0.0
  %3061 = vmatprep.subr.mxu0 0.0
  %3062 = vmatpush1.msra.mxu0 0.0
  %3063 = vmatprep.subr.mxu0 0.0
  %3064 = vmatpush1.msra.mxu0 %v2811
  %3065 = vmatprep.subr.mxu0 0.0
  %3066 = vmatpush1.msra.mxu0 %v2810
  %3067 = vmatprep.subr.mxu0 0.0
  %3068 = vmatpush1.msra.mxu0 %v2809
  %3069 = vmatprep.subr.mxu0 0.0
  %3070 = vmatpush1.msra.mxu0 %v2808
  %3071 = vmatprep.subr.mxu0 0.0
  %3072 = vmatpush2.msra.mxu0 0.0
  %3073 = vmatprep.subr.mxu0 0.0
  %3074 = vmatpush2.msra.mxu0 0.0
  %3075 = vmatprep.subr.mxu0 0.0
  %3076 = vmatpush2.msra.mxu0 0.0
  %3077 = vmatprep.subr.mxu0 0.0
  %3078 = vmatpush2.msra.mxu0 0.0
  %3079 = vmatprep.subr.mxu0 0.0
  %3080 = vmatpush2.msra.mxu0 0.0
  %3081 = vmatprep.subr.mxu0 0.0
  %3082 = vmatpush2.msra.mxu0 0.0
  %3083 = vmatprep.subr.mxu0 0.0
  %3084 = vmatpush2.msra.mxu0 0.0
  %3085 = vmatprep.subr.mxu0 0.0
  %3086 = vmatpush2.msra.mxu0 0.0
  %3087 = vmatprep.subr.mxu0 0.0
  %3088 = vmatpush2.msra.mxu0 0.0
  %3089 = vmatprep.subr.mxu0 0.0
  %3090 = vmatpush2.msra.mxu0 0.0
  %3091 = vmatprep.subr.mxu0 0.0
  %3092 = vmatpush2.msra.mxu0 0.0
  %3093 = vmatprep.subr.mxu0 0.0
  %3094 = vmatpush2.msra.mxu0 0.0
  %3095 = vmatprep.subr.mxu0 0.0
  %3096 = vmatpush2.msra.mxu0 0.0
  %3097 = vmatprep.subr.mxu0 0.0
  %3098 = vmatpush2.msra.mxu0 0.0
  %3099 = vmatprep.subr.mxu0 0.0
  %3100 = vmatpush2.msra.mxu0 0.0
  %3101 = vmatprep.subr.mxu0 0.0
  %3102 = vmatpush2.msra.mxu0 0.0
  %3103 = vmatprep.mubr.f32.mxu0 0.0
  %3104 = vmatmul.mubr.f32.gmra.mxu0 %v3037
  %v3105 = vpop.f32.mrf.mxu0
  %v3106 = vadd.f32 %v3033, %v3105
  %v3107 = vpop.f32.mrf.mxu0
  %3108 = vdwg.mxu0
  %v3109 = vld [vmem:[%s10 + $0x19] sm:$0x1]
  %v3110 = vlaneseq
  %v3111 = vshrl.u32 %v3110, 7
  %v3112 = vsub.s32 0, %v3111
  %v3113 = vrot.slane %v3109, %v3112
  %v3114 = vadd.f32 %v3106, %v3113
  %v3115 = vmax.f32 %v3114, 0.0
  %vm3116 = vcmask 254976
  %v3117 = vsel %vm3116, %v2807, -inf
  %3118 = vmax.xlane.f32.xlu0 %v3117
  %v3119 = vpop.xlane.xlu0 %3118
  %v3120 = vsub.f32 %v2807, %v3119
  %v3121 = vmul.f32 %v3120, 1.442695
  %v3122 = vpow.pop %v3121
  %v3123 = vsel %vm3116, %v3122, 0.0
  %3124 = vadd.xlane.f32.xlu0 %v3123
  %v3125 = vpop.xlane.xlu0 %3124
  %v3126 = vrcp.pop %v3125
  %v3127 = vmul.f32 %v3122, %v3126
  %v3128 = vsel %vm3116, %v3115, -inf
  %3129 = vmax.xlane.f32.xlu0 %v3128
  %v3130 = vpop.xlane.xlu0 %3129
  %v3131 = vsub.f32 %v3115, %v3130
  %v3132 = vmul.f32 %v3131, 1.442695
  %v3133 = vpow.pop %v3132
  %v3134 = vsel %vm3116, %v3133, 0.0
  %3135 = vadd.xlane.f32.xlu0 %v3134
  %v3136 = vpop.xlane.xlu0 %3135
  %v3137 = vrcp.pop %v3136
  %v3138 = vmul.f32 %v3133, %v3137
  %v3139 = vld [vmem:[%s5] sm:$0xf]
  %v3140 = vadd.f32 %v2807, %v3139
  %v3141 = vsel %vm1211, %v3140, -inf
  %3142 = vmax.xlane.f32.xlu0 %v3141
  %v3143 = vpop.xlane.xlu0 %3142
  %vm3144 = vcmp.eq.f32.partialorder %v3140, %v3143
  %v3145 = vsel %vm3144, %v52, 8
  %v3146 = vsel %vm1211, %v3145, 2147483647
  %v3147 = vand.u32 %v3146, 65535
  %v3148 = vshra.s32 %v3146, 16
  %v3149 = vcvt.s32.f32 %v3147
  %v3150 = vcvt.s32.f32 %v3148
  %3151 = vmin.xlane.f32.xlu0 %v3150
  %v3152 = vpop.xlane.xlu0 %3151
  %vm3153 = vcmp.eq.f32.partialorder %v3150, %v3152
  %v3154 = vsel %vm3153, %v3149, inf
  %3155 = vmin.xlane.f32.xlu0 %v3154
  %v3156 = vpop.xlane.xlu0 %3155
  %v3157 = vcvt.f32.s32 %v3156
  %v3158 = vcvt.f32.s32 %v3152
  %v3159 = vshll.u32 %v3158, 16
  %v3160 = vadd.s32 %v3159, %v3157
  %vm3161 = vcmp.eq.s32.totalorder %v52, %v3160
  %v3162 = vsel %vm3161, 1, 0
  %v3163 = vcvt.s32.f32 %v3162
  %vm3164 = vcmask 123968
  %v3165 = vsel %vm3164, %v3140, -inf
  %3166 = vmax.xlane.f32.xlu0 %v3165
  %v3167 = vpop.xlane.xlu0 %3166
  %vm3168 = vcmp.eq.f32.partialorder %v3140, %v3167
  %3169 = vrot.lane.b32.xlu0 %v52, 8
  %v3170 = vpop.permute.xlu0 %3169
  %v3171 = vsel %vm3168, %v3170, 8
  %v3172 = vsel %vm3164, %v3171, 2147483647
  %v3173 = vand.u32 %v3172, 65535
  %v3174 = vshra.s32 %v3172, 16
  %v3175 = vcvt.s32.f32 %v3173
  %v3176 = vcvt.s32.f32 %v3174
  %3177 = vmin.xlane.f32.xlu0 %v3176
  %v3178 = vpop.xlane.xlu0 %3177
  %vm3179 = vcmp.eq.f32.partialorder %v3176, %v3178
  %v3180 = vsel %vm3179, %v3175, inf
  %3181 = vmin.xlane.f32.xlu0 %v3180
  %v3182 = vpop.xlane.xlu0 %3181
  %v3183 = vcvt.f32.s32 %v3182
  %v3184 = vcvt.f32.s32 %v3178
  %v3185 = vshll.u32 %v3184, 16
  %v3186 = vadd.s32 %v3185, %v3183
  %vm3187 = vcmp.eq.s32.totalorder %v52, %v3186
  %v3188 = vsel %vm3187, 1, 0
  %v3189 = vcvt.s32.f32 %v3188
  %vm3190 = vcmask 189568
  %v3191 = vsel %vm3190, %v3140, -inf
  %3192 = vmax.xlane.f32.xlu0 %v3191
  %v3193 = vpop.xlane.xlu0 %3192
  %vm3194 = vcmp.eq.f32.partialorder %v3140, %v3193
  %3195 = vrot.lane.b32.xlu0 %v52, 16
  %v3196 = vpop.permute.xlu0 %3195
  %v3197 = vsel %vm3194, %v3196, 8
  %v3198 = vsel %vm3190, %v3197, 2147483647
  %v3199 = vand.u32 %v3198, 65535
  %v3200 = vshra.s32 %v3198, 16
  %v3201 = vcvt.s32.f32 %v3199
  %v3202 = vcvt.s32.f32 %v3200
  %3203 = vmin.xlane.f32.xlu0 %v3202
  %v3204 = vpop.xlane.xlu0 %3203
  %vm3205 = vcmp.eq.f32.partialorder %v3202, %v3204
  %v3206 = vsel %vm3205, %v3201, inf
  %3207 = vmin.xlane.f32.xlu0 %v3206
  %v3208 = vpop.xlane.xlu0 %3207
  %v3209 = vcvt.f32.s32 %v3208
  %v3210 = vcvt.f32.s32 %v3204
  %v3211 = vshll.u32 %v3210, 16
  %v3212 = vadd.s32 %v3211, %v3209
  %vm3213 = vcmp.eq.s32.totalorder %v52, %v3212
  %v3214 = vsel %vm3213, 1, 0
  %v3215 = vcvt.s32.f32 %v3214
  %vm3216 = vcmask 255168
  %v3217 = vsel %vm3216, %v3140, -inf
  %3218 = vmax.xlane.f32.xlu0 %v3217
  %v3219 = vpop.xlane.xlu0 %3218
  %vm3220 = vcmp.eq.f32.partialorder %v3140, %v3219
  %3221 = vrot.lane.b32.xlu0 %v52, 24
  %v3222 = vpop.permute.xlu0 %3221
  %v3223 = vsel %vm3220, %v3222, 8
  %v3224 = vsel %vm3216, %v3223, 2147483647
  %v3225 = vand.u32 %v3224, 65535
  %v3226 = vshra.s32 %v3224, 16
  %v3227 = vcvt.s32.f32 %v3225
  %v3228 = vcvt.s32.f32 %v3226
  %3229 = vmin.xlane.f32.xlu0 %v3228
  %v3230 = vpop.xlane.xlu0 %3229
  %vm3231 = vcmp.eq.f32.partialorder %v3228, %v3230
  %v3232 = vsel %vm3231, %v3227, inf
  %3233 = vmin.xlane.f32.xlu0 %v3232
  %v3234 = vpop.xlane.xlu0 %3233
  %v3235 = vcvt.f32.s32 %v3234
  %v3236 = vcvt.f32.s32 %v3230
  %v3237 = vshll.u32 %v3236, 16
  %v3238 = vadd.s32 %v3237, %v3235
  %vm3239 = vcmp.eq.s32.totalorder %v52, %v3238
  %v3240 = vsel %vm3239, 1, 0
  %v3241 = vcvt.s32.f32 %v3240
  %3243 = vrot.lane.b32.xlu0 %v3189, 8
  %v3244 = vpop.permute.xlu0 %3243
  %3247 = vrot.lane.b32.xlu0 %v3215, 16
  %v3248 = vpop.permute.xlu0 %3247
  %3251 = vrot.lane.b32.xlu0 %v3241, 24
  %v3252 = vpop.permute.xlu0 %3251
  %vm3254 = vcmask 64512
  %v3255 = vsel %vm3254, %v3163, %v3244
  %vm3256 = vcmask 130048
  %v3257 = vsel %vm3256, %v3255, %v3248
  %vm3258 = vcmask 195584
  %v3259 = vsel %vm3258, %v3257, %v3252
  %v3261 = vrot.slane %v3139, 2
  %v3263 = vadd.f32 %v3115, %v3261
  %v3264 = vsel %vm1211, %v3263, -inf
  %3265 = vmax.xlane.f32.xlu0 %v3264
  %v3266 = vpop.xlane.xlu0 %3265
  %vm3267 = vcmp.eq.f32.partialorder %v3263, %v3266
  %v3268 = vsel %vm3267, %v52, 8
  %v3269 = vsel %vm1211, %v3268, 2147483647
  %v3270 = vand.u32 %v3269, 65535
  %v3271 = vshra.s32 %v3269, 16
  %v3272 = vcvt.s32.f32 %v3270
  %v3273 = vcvt.s32.f32 %v3271
  %3274 = vmin.xlane.f32.xlu0 %v3273
  %v3275 = vpop.xlane.xlu0 %3274
  %vm3276 = vcmp.eq.f32.partialorder %v3273, %v3275
  %v3277 = vsel %vm3276, %v3272, inf
  %3278 = vmin.xlane.f32.xlu0 %v3277
  %v3279 = vpop.xlane.xlu0 %3278
  %v3280 = vcvt.f32.s32 %v3279
  %v3281 = vcvt.f32.s32 %v3275
  %v3282 = vshll.u32 %v3281, 16
  %v3283 = vadd.s32 %v3282, %v3280
  %vm3284 = vcmp.eq.s32.totalorder %v52, %v3283
  %v3285 = vsel %vm3284, 1, 0
  %v3286 = vcvt.s32.f32 %v3285
  %v3287 = vsel %vm3164, %v3263, -inf
  %3288 = vmax.xlane.f32.xlu0 %v3287
  %v3289 = vpop.xlane.xlu0 %3288
  %vm3290 = vcmp.eq.f32.partialorder %v3263, %v3289
  %v3291 = vsel %vm3290, %v3170, 8
  %v3292 = vsel %vm3164, %v3291, 2147483647
  %v3293 = vand.u32 %v3292, 65535
  %v3294 = vshra.s32 %v3292, 16
  %v3295 = vcvt.s32.f32 %v3293
  %v3296 = vcvt.s32.f32 %v3294
  %3297 = vmin.xlane.f32.xlu0 %v3296
  %v3298 = vpop.xlane.xlu0 %3297
  %vm3299 = vcmp.eq.f32.partialorder %v3296, %v3298
  %v3300 = vsel %vm3299, %v3295, inf
  %3301 = vmin.xlane.f32.xlu0 %v3300
  %v3302 = vpop.xlane.xlu0 %3301
  %v3303 = vcvt.f32.s32 %v3302
  %v3304 = vcvt.f32.s32 %v3298
  %v3305 = vshll.u32 %v3304, 16
  %v3306 = vadd.s32 %v3305, %v3303
  %vm3307 = vcmp.eq.s32.totalorder %v52, %v3306
  %v3308 = vsel %vm3307, 1, 0
  %v3309 = vcvt.s32.f32 %v3308
  %v3310 = vsel %vm3190, %v3263, -inf
  %3311 = vmax.xlane.f32.xlu0 %v3310
  %v3312 = vpop.xlane.xlu0 %3311
  %vm3313 = vcmp.eq.f32.partialorder %v3263, %v3312
  %v3314 = vsel %vm3313, %v3196, 8
  %v3315 = vsel %vm3190, %v3314, 2147483647
  %v3316 = vand.u32 %v3315, 65535
  %v3317 = vshra.s32 %v3315, 16
  %v3318 = vcvt.s32.f32 %v3316
  %v3319 = vcvt.s32.f32 %v3317
  %3320 = vmin.xlane.f32.xlu0 %v3319
  %v3321 = vpop.xlane.xlu0 %3320
  %vm3322 = vcmp.eq.f32.partialorder %v3319, %v3321
  %v3323 = vsel %vm3322, %v3318, inf
  %3324 = vmin.xlane.f32.xlu0 %v3323
  %v3325 = vpop.xlane.xlu0 %3324
  %v3326 = vcvt.f32.s32 %v3325
  %v3327 = vcvt.f32.s32 %v3321
  %v3328 = vshll.u32 %v3327, 16
  %v3329 = vadd.s32 %v3328, %v3326
  %vm3330 = vcmp.eq.s32.totalorder %v52, %v3329
  %v3331 = vsel %vm3330, 1, 0
  %v3332 = vcvt.s32.f32 %v3331
  %v3333 = vsel %vm3216, %v3263, -inf
  %3334 = vmax.xlane.f32.xlu0 %v3333
  %v3335 = vpop.xlane.xlu0 %3334
  %vm3336 = vcmp.eq.f32.partialorder %v3263, %v3335
  %v3337 = vsel %vm3336, %v3222, 8
  %v3338 = vsel %vm3216, %v3337, 2147483647
  %v3339 = vand.u32 %v3338, 65535
  %v3340 = vshra.s32 %v3338, 16
  %v3341 = vcvt.s32.f32 %v3339
  %v3342 = vcvt.s32.f32 %v3340
  %3343 = vmin.xlane.f32.xlu0 %v3342
  %v3344 = vpop.xlane.xlu0 %3343
  %vm3345 = vcmp.eq.f32.partialorder %v3342, %v3344
  %v3346 = vsel %vm3345, %v3341, inf
  %3347 = vmin.xlane.f32.xlu0 %v3346
  %v3348 = vpop.xlane.xlu0 %3347
  %v3349 = vcvt.f32.s32 %v3348
  %v3350 = vcvt.f32.s32 %v3344
  %v3351 = vshll.u32 %v3350, 16
  %v3352 = vadd.s32 %v3351, %v3349
  %vm3353 = vcmp.eq.s32.totalorder %v52, %v3352
  %v3354 = vsel %vm3353, 1, 0
  %v3355 = vcvt.s32.f32 %v3354
  %3357 = vrot.lane.b32.xlu0 %v3309, 8
  %v3358 = vpop.permute.xlu0 %3357
  %3361 = vrot.lane.b32.xlu0 %v3332, 16
  %v3362 = vpop.permute.xlu0 %3361
  %3365 = vrot.lane.b32.xlu0 %v3355, 24
  %v3366 = vpop.permute.xlu0 %3365
  %v3368 = vsel %vm3254, %v3286, %v3358
  %v3369 = vsel %vm3256, %v3368, %v3362
  %v3370 = vsel %vm3258, %v3369, %v3366
  %v3371 = vld [vmem:[%s9 + $0x1c0] sm:$0xff]
  %v3372 = vld [vmem:[%s9 + $0x1c8] sm:$0xff]
  %v3373 = vld [vmem:[%s9 + $0x1d0] sm:$0xff]
  %v3374 = vld [vmem:[%s9 + $0x1d8] sm:$0xff]
  %v3375 = vld [vmem:[%s9 + $0x1e0] sm:$0xff]
  %v3376 = vld [vmem:[%s9 + $0x1e8] sm:$0xff]
  %v3377 = vld [vmem:[%s9 + $0x1f0] sm:$0xff]
  %v3378 = vld [vmem:[%s9 + $0x1f8] sm:$0xff]
  %3379 = vmatprep.subr.mxu0 0.0
  %3380 = vmatpush1.msra.mxu0 0.0
  %3381 = vmatprep.subr.mxu0 0.0
  %3382 = vmatpush1.msra.mxu0 0.0
  %3383 = vmatprep.subr.mxu0 0.0
  %3384 = vmatpush1.msra.mxu0 0.0
  %3385 = vmatprep.subr.mxu0 0.0
  %3386 = vmatpush1.msra.mxu0 0.0
  %3387 = vmatprep.subr.mxu0 0.0
  %3388 = vmatpush1.msra.mxu0 0.0
  %3389 = vmatprep.subr.mxu0 0.0
  %3390 = vmatpush1.msra.mxu0 0.0
  %3391 = vmatprep.subr.mxu0 0.0
  %3392 = vmatpush1.msra.mxu0 0.0
  %3393 = vmatprep.subr.mxu0 0.0
  %3394 = vmatpush1.msra.mxu0 0.0
  %3395 = vmatprep.subr.mxu0 0.0
  %3396 = vmatpush1.msra.mxu0 0.0
  %3397 = vmatprep.subr.mxu0 0.0
  %3398 = vmatpush1.msra.mxu0 0.0
  %3399 = vmatprep.subr.mxu0 0.0
  %3400 = vmatpush1.msra.mxu0 0.0
  %3401 = vmatprep.subr.mxu0 0.0
  %3402 = vmatpush1.msra.mxu0 0.0
  %3403 = vmatprep.subr.mxu0 0.0
  %3404 = vmatpush1.msra.mxu0 %v3378
  %3405 = vmatprep.subr.mxu0 0.0
  %3406 = vmatpush1.msra.mxu0 %v3377
  %3407 = vmatprep.subr.mxu0 0.0
  %3408 = vmatpush1.msra.mxu0 %v3376
  %3409 = vmatprep.subr.mxu0 0.0
  %3410 = vmatpush1.msra.mxu0 %v3375
  %3411 = vmatprep.subr.mxu0 0.0
  %3412 = vmatpush2.msra.mxu0 0.0
  %3413 = vmatprep.subr.mxu0 0.0
  %3414 = vmatpush2.msra.mxu0 0.0
  %3415 = vmatprep.subr.mxu0 0.0
  %3416 = vmatpush2.msra.mxu0 0.0
  %3417 = vmatprep.subr.mxu0 0.0
  %3418 = vmatpush2.msra.mxu0 0.0
  %3419 = vmatprep.subr.mxu0 0.0
  %3420 = vmatpush2.msra.mxu0 0.0
  %3421 = vmatprep.subr.mxu0 0.0
  %3422 = vmatpush2.msra.mxu0 0.0
  %3423 = vmatprep.subr.mxu0 0.0
  %3424 = vmatpush2.msra.mxu0 0.0
  %3425 = vmatprep.subr.mxu0 0.0
  %3426 = vmatpush2.msra.mxu0 0.0
  %3427 = vmatprep.subr.mxu0 0.0
  %3428 = vmatpush2.msra.mxu0 0.0
  %3429 = vmatprep.subr.mxu0 0.0
  %3430 = vmatpush2.msra.mxu0 0.0
  %3431 = vmatprep.subr.mxu0 0.0
  %3432 = vmatpush2.msra.mxu0 0.0
  %3433 = vmatprep.subr.mxu0 0.0
  %3434 = vmatpush2.msra.mxu0 0.0
  %3435 = vmatprep.subr.mxu0 0.0
  %3436 = vmatpush2.msra.mxu0 0.0
  %3437 = vmatprep.subr.mxu0 0.0
  %3438 = vmatpush2.msra.mxu0 0.0
  %3439 = vmatprep.subr.mxu0 0.0
  %3440 = vmatpush2.msra.mxu0 0.0
  %3441 = vmatprep.subr.mxu0 0.0
  %3442 = vmatpush2.msra.mxu0 0.0
  %3443 = vmatprep.mubr.f32.mxu0 0.0
  %3444 = vmatmul.mubr.f32.gmra.mxu0 %v688
  %v3445 = vpop.f32.mrf.mxu0
  %v3446 = vadd.f32 0.0, %v3445
  %v3447 = vpop.f32.mrf.mxu0
  %3448 = vmatprep.mubr.f32.mxu0 0.0
  %3449 = vmatmul.mubr.f32.gmra.mxu0 %v691
  %v3450 = vpop.f32.mrf.mxu0
  %v3451 = vadd.f32 0.0, %v3450
  %v3452 = vpop.f32.mrf.mxu0
  %3453 = vdwg.mxu0
  %3454 = vmatprep.subr.mxu0 0.0
  %3455 = vmatpush1.msra.mxu0 0.0
  %3456 = vmatprep.subr.mxu0 0.0
  %3457 = vmatpush1.msra.mxu0 0.0
  %3458 = vmatprep.subr.mxu0 0.0
  %3459 = vmatpush1.msra.mxu0 0.0
  %3460 = vmatprep.subr.mxu0 0.0
  %3461 = vmatpush1.msra.mxu0 0.0
  %3462 = vmatprep.subr.mxu0 0.0
  %3463 = vmatpush1.msra.mxu0 0.0
  %3464 = vmatprep.subr.mxu0 0.0
  %3465 = vmatpush1.msra.mxu0 0.0
  %3466 = vmatprep.subr.mxu0 0.0
  %3467 = vmatpush1.msra.mxu0 0.0
  %3468 = vmatprep.subr.mxu0 0.0
  %3469 = vmatpush1.msra.mxu0 0.0
  %3470 = vmatprep.subr.mxu0 0.0
  %3471 = vmatpush1.msra.mxu0 0.0
  %3472 = vmatprep.subr.mxu0 0.0
  %3473 = vmatpush1.msra.mxu0 0.0
  %3474 = vmatprep.subr.mxu0 0.0
  %3475 = vmatpush1.msra.mxu0 0.0
  %3476 = vmatprep.subr.mxu0 0.0
  %3477 = vmatpush1.msra.mxu0 0.0
  %3478 = vmatprep.subr.mxu0 0.0
  %3479 = vmatpush1.msra.mxu0 %v3374
  %3480 = vmatprep.subr.mxu0 0.0
  %3481 = vmatpush1.msra.mxu0 %v3373
  %3482 = vmatprep.subr.mxu0 0.0
  %3483 = vmatpush1.msra.mxu0 %v3372
  %3484 = vmatprep.subr.mxu0 0.0
  %3485 = vmatpush1.msra.mxu0 %v3371
  %3486 = vmatprep.subr.mxu0 0.0
  %3487 = vmatpush2.msra.mxu0 0.0
  %3488 = vmatprep.subr.mxu0 0.0
  %3489 = vmatpush2.msra.mxu0 0.0
  %3490 = vmatprep.subr.mxu0 0.0
  %3491 = vmatpush2.msra.mxu0 0.0
  %3492 = vmatprep.subr.mxu0 0.0
  %3493 = vmatpush2.msra.mxu0 0.0
  %3494 = vmatprep.subr.mxu0 0.0
  %3495 = vmatpush2.msra.mxu0 0.0
  %3496 = vmatprep.subr.mxu0 0.0
  %3497 = vmatpush2.msra.mxu0 0.0
  %3498 = vmatprep.subr.mxu0 0.0
  %3499 = vmatpush2.msra.mxu0 0.0
  %3500 = vmatprep.subr.mxu0 0.0
  %3501 = vmatpush2.msra.mxu0 0.0
  %3502 = vmatprep.subr.mxu0 0.0
  %3503 = vmatpush2.msra.mxu0 0.0
  %3504 = vmatprep.subr.mxu0 0.0
  %3505 = vmatpush2.msra.mxu0 0.0
  %3506 = vmatprep.subr.mxu0 0.0
  %3507 = vmatpush2.msra.mxu0 0.0
  %3508 = vmatprep.subr.mxu0 0.0
  %3509 = vmatpush2.msra.mxu0 0.0
  %3510 = vmatprep.subr.mxu0 0.0
  %3511 = vmatpush2.msra.mxu0 0.0
  %3512 = vmatprep.subr.mxu0 0.0
  %3513 = vmatpush2.msra.mxu0 0.0
  %3514 = vmatprep.subr.mxu0 0.0
  %3515 = vmatpush2.msra.mxu0 0.0
  %3516 = vmatprep.subr.mxu0 0.0
  %3517 = vmatpush2.msra.mxu0 0.0
  %3518 = vmatprep.mubr.f32.mxu0 0.0
  %3519 = vmatmul.mubr.f32.gmra.mxu0 %v769
  %v3520 = vpop.f32.mrf.mxu0
  %v3521 = vadd.f32 %v3446, %v3520
  %v3522 = vpop.f32.mrf.mxu0
  %3523 = vmatprep.mubr.f32.mxu0 0.0
  %3524 = vmatmul.mubr.f32.gmra.mxu0 %v772
  %v3525 = vpop.f32.mrf.mxu0
  %v3526 = vadd.f32 %v3451, %v3525
  %v3527 = vpop.f32.mrf.mxu0
  %3528 = vdwg.mxu0
  %v3529 = vld [vmem:[%s10 + $0xb] sm:$0x1]
  %v3530 = vlaneseq
  %v3531 = vshrl.u32 %v3530, 7
  %v3532 = vsub.s32 0, %v3531
  %v3533 = vrot.slane %v3529, %v3532
  %v3534 = vadd.f32 %v3521, %v3533
  %v3535 = vadd.f32 %v3526, %v3533
  %v3536 = vld [vmem:[%s9 + $0x220] sm:$0xff]
  %v3537 = vld [vmem:[%s9 + $0x228] sm:$0xff]
  %v3538 = vld [vmem:[%s9 + $0x230] sm:$0xff]
  %v3539 = vld [vmem:[%s9 + $0x238] sm:$0xff]
  %3540 = vmatprep.subr.mxu0 0.0
  %3541 = vmatpush1.msra.mxu0 0.0
  %3542 = vmatprep.subr.mxu0 0.0
  %3543 = vmatpush1.msra.mxu0 0.0
  %3544 = vmatprep.subr.mxu0 0.0
  %3545 = vmatpush1.msra.mxu0 0.0
  %3546 = vmatprep.subr.mxu0 0.0
  %3547 = vmatpush1.msra.mxu0 0.0
  %3548 = vmatprep.subr.mxu0 0.0
  %3549 = vmatpush1.msra.mxu0 0.0
  %3550 = vmatprep.subr.mxu0 0.0
  %3551 = vmatpush1.msra.mxu0 0.0
  %3552 = vmatprep.subr.mxu0 0.0
  %3553 = vmatpush1.msra.mxu0 0.0
  %3554 = vmatprep.subr.mxu0 0.0
  %3555 = vmatpush1.msra.mxu0 0.0
  %3556 = vmatprep.subr.mxu0 0.0
  %3557 = vmatpush1.msra.mxu0 0.0
  %3558 = vmatprep.subr.mxu0 0.0
  %3559 = vmatpush1.msra.mxu0 0.0
  %3560 = vmatprep.subr.mxu0 0.0
  %3561 = vmatpush1.msra.mxu0 0.0
  %3562 = vmatprep.subr.mxu0 0.0
  %3563 = vmatpush1.msra.mxu0 0.0
  %3564 = vmatprep.subr.mxu0 0.0
  %3565 = vmatpush1.msra.mxu0 %v3539
  %3566 = vmatprep.subr.mxu0 0.0
  %3567 = vmatpush1.msra.mxu0 %v3538
  %3568 = vmatprep.subr.mxu0 0.0
  %3569 = vmatpush1.msra.mxu0 %v3537
  %3570 = vmatprep.subr.mxu0 0.0
  %3571 = vmatpush1.msra.mxu0 %v3536
  %3572 = vmatprep.subr.mxu0 0.0
  %3573 = vmatpush2.msra.mxu0 0.0
  %3574 = vmatprep.subr.mxu0 0.0
  %3575 = vmatpush2.msra.mxu0 0.0
  %3576 = vmatprep.subr.mxu0 0.0
  %3577 = vmatpush2.msra.mxu0 0.0
  %3578 = vmatprep.subr.mxu0 0.0
  %3579 = vmatpush2.msra.mxu0 0.0
  %3580 = vmatprep.subr.mxu0 0.0
  %3581 = vmatpush2.msra.mxu0 0.0
  %3582 = vmatprep.subr.mxu0 0.0
  %3583 = vmatpush2.msra.mxu0 0.0
  %3584 = vmatprep.subr.mxu0 0.0
  %3585 = vmatpush2.msra.mxu0 0.0
  %3586 = vmatprep.subr.mxu0 0.0
  %3587 = vmatpush2.msra.mxu0 0.0
  %3588 = vmatprep.subr.mxu0 0.0
  %3589 = vmatpush2.msra.mxu0 0.0
  %3590 = vmatprep.subr.mxu0 0.0
  %3591 = vmatpush2.msra.mxu0 0.0
  %3592 = vmatprep.subr.mxu0 0.0
  %3593 = vmatpush2.msra.mxu0 0.0
  %3594 = vmatprep.subr.mxu0 0.0
  %3595 = vmatpush2.msra.mxu0 0.0
  %3596 = vmatprep.subr.mxu0 0.0
  %3597 = vmatpush2.msra.mxu0 0.0
  %3598 = vmatprep.subr.mxu0 0.0
  %3599 = vmatpush2.msra.mxu0 0.0
  %3600 = vmatprep.subr.mxu0 0.0
  %3601 = vmatpush2.msra.mxu0 0.0
  %3602 = vmatprep.subr.mxu0 0.0
  %3603 = vmatpush2.msra.mxu0 0.0
  %3604 = vmatprep.mubr.f32.mxu0 0.0
  %3605 = vmatmul.mubr.f32.gmra.mxu0 %v861
  %v3606 = vpop.f32.mrf.mxu0
  %v3607 = vadd.f32 0.0, %v3606
  %v3608 = vpop.f32.mrf.mxu0
  %3609 = vdwg.mxu0
  %v3610 = vld [vmem:[%s9 + $0x200] sm:$0xff]
  %v3611 = vld [vmem:[%s9 + $0x208] sm:$0xff]
  %v3612 = vld [vmem:[%s9 + $0x210] sm:$0xff]
  %v3613 = vld [vmem:[%s9 + $0x218] sm:$0xff]
  %v3614 = vld [vmem:[%s10 + $0xc] sm:$0x1]
  %v3615 = vlaneseq
  %v3616 = vshrl.u32 %v3615, 7
  %v3617 = vsub.s32 0, %v3616
  %v3618 = vrot.slane %v3614, %v3617
  %v3620 = vsel %vm686, %v3534, 0
  %v3623 = vsel %vm686, %v3535, 0
  %3625 = vmatprep.subr.mxu0 0.0
  %3626 = vmatpush1.msra.mxu0 0.0
  %3627 = vmatprep.subr.mxu0 0.0
  %3628 = vmatpush1.msra.mxu0 0.0
  %3629 = vmatprep.subr.mxu0 0.0
  %3630 = vmatpush1.msra.mxu0 0.0
  %3631 = vmatprep.subr.mxu0 0.0
  %3632 = vmatpush1.msra.mxu0 0.0
  %3633 = vmatprep.subr.mxu0 0.0
  %3634 = vmatpush1.msra.mxu0 0.0
  %3635 = vmatprep.subr.mxu0 0.0
  %3636 = vmatpush1.msra.mxu0 0.0
  %3637 = vmatprep.subr.mxu0 0.0
  %3638 = vmatpush1.msra.mxu0 0.0
  %3639 = vmatprep.subr.mxu0 0.0
  %3640 = vmatpush1.msra.mxu0 0.0
  %3641 = vmatprep.subr.mxu0 0.0
  %3642 = vmatpush1.msra.mxu0 0.0
  %3643 = vmatprep.subr.mxu0 0.0
  %3644 = vmatpush1.msra.mxu0 0.0
  %3645 = vmatprep.subr.mxu0 0.0
  %3646 = vmatpush1.msra.mxu0 0.0
  %3647 = vmatprep.subr.mxu0 0.0
  %3648 = vmatpush1.msra.mxu0 0.0
  %3649 = vmatprep.subr.mxu0 0.0
  %3650 = vmatpush1.msra.mxu0 %v3613
  %3651 = vmatprep.subr.mxu0 0.0
  %3652 = vmatpush1.msra.mxu0 %v3612
  %3653 = vmatprep.subr.mxu0 0.0
  %3654 = vmatpush1.msra.mxu0 %v3611
  %3655 = vmatprep.subr.mxu0 0.0
  %3656 = vmatpush1.msra.mxu0 %v3610
  %3657 = vmatprep.subr.mxu0 0.0
  %3658 = vmatpush2.msra.mxu0 0.0
  %3659 = vmatprep.subr.mxu0 0.0
  %3660 = vmatpush2.msra.mxu0 0.0
  %3661 = vmatprep.subr.mxu0 0.0
  %3662 = vmatpush2.msra.mxu0 0.0
  %3663 = vmatprep.subr.mxu0 0.0
  %3664 = vmatpush2.msra.mxu0 0.0
  %3665 = vmatprep.subr.mxu0 0.0
  %3666 = vmatpush2.msra.mxu0 0.0
  %3667 = vmatprep.subr.mxu0 0.0
  %3668 = vmatpush2.msra.mxu0 0.0
  %3669 = vmatprep.subr.mxu0 0.0
  %3670 = vmatpush2.msra.mxu0 0.0
  %3671 = vmatprep.subr.mxu0 0.0
  %3672 = vmatpush2.msra.mxu0 0.0
  %3673 = vmatprep.subr.mxu0 0.0
  %3674 = vmatpush2.msra.mxu0 0.0
  %3675 = vmatprep.subr.mxu0 0.0
  %3676 = vmatpush2.msra.mxu0 0.0
  %3677 = vmatprep.subr.mxu0 0.0
  %3678 = vmatpush2.msra.mxu0 0.0
  %3679 = vmatprep.subr.mxu0 0.0
  %3680 = vmatpush2.msra.mxu0 0.0
  %3681 = vmatprep.subr.mxu0 0.0
  %3682 = vmatpush2.msra.mxu0 0.0
  %3683 = vmatprep.subr.mxu0 0.0
  %3684 = vmatpush2.msra.mxu0 0.0
  %3685 = vmatprep.subr.mxu0 0.0
  %3686 = vmatpush2.msra.mxu0 0.0
  %3687 = vmatprep.subr.mxu0 0.0
  %3688 = vmatpush2.msra.mxu0 0.0
  %3689 = vmatprep.mubr.f32.mxu0 0.0
  %3690 = vmatmul.mubr.f32.gmra.mxu0 %v3620
  %v3691 = vpop.f32.mrf.mxu0
  %v3692 = vadd.f32 %v3618, %v3691
  %v3693 = vpop.f32.mrf.mxu0
  %3694 = vmatprep.mubr.f32.mxu0 0.0
  %3695 = vmatmul.mubr.f32.gmra.mxu0 %v3623
  %v3696 = vpop.f32.mrf.mxu0
  %v3697 = vadd.f32 %v3618, %v3696
  %v3698 = vpop.f32.mrf.mxu0
  %3699 = vdwg.mxu0
  %v3702 = vunpack.c.l.s4 1966171168
  %v3703 = vunpack.c.0.s8 %v3702
  %v3704 = vlaneseq
  %v3705 = vshrl.u32 %v3704, 7
  %v3706 = vsub.s32 %v3703, %v3705
  %v3707 = vrot.slane %v3607, %v3706
  %v3708 = vcombine.high %v3707, %v3707
  %v3710 = vunpack.c.l.s4 1966171168
  %v3711 = vunpack.c.0.s8 %v3710
  %v3712 = vlaneseq
  %v3713 = vshrl.u32 %v3712, 7
  %v3714 = vsub.s32 %v3711, %v3713
  %v3715 = vrot.slane %v3707, %v3714
  %v3717 = vunpack.c.l.s4 1966171168
  %v3718 = vunpack.c.0.s8 %v3717
  %v3719 = vlaneseq
  %v3720 = vshrl.u32 %v3719, 7
  %v3721 = vsub.s32 %v3718, %v3720
  %v3722 = vrot.slane %v3708, %v3721
  %v3723 = vlaneseq
  %v3724 = vshrl.u32 %v3723, 7
  %v3725 = vsub.s32 0, %v3724
  %v3726 = vrot.slane %v3715, %v3725
  %v3727 = vlaneseq
  %v3728 = vshrl.u32 %v3727, 7
  %v3729 = vsub.s32 0, %v3728
  %v3730 = vrot.slane %v3722, %v3729
  %v3733 = vadd.f32 %v3692, %v3726
  %v3734 = vadd.f32 %v3697, %v3730
  %vm3735 = vcmp.ge.f32.partialorder %v3733, 0.0
  %vm3736 = vcmp.ge.f32.partialorder %v3734, 0.0
  %v3737 = vmul.f32 %v3733, 0.1
  %v3738 = vmul.f32 %v3734, 0.1
  %v3739 = vsel %vm3735, %v3733, %v3737
  %v3740 = vsel %vm3736, %v3734, %v3738
  %v3741 = vld [vmem:[%s9 + $0x240] sm:$0xff]
  %v3742 = vld [vmem:[%s9 + $0x248] sm:$0xff]
  %v3743 = vld [vmem:[%s9 + $0x250] sm:$0xff]
  %v3744 = vld [vmem:[%s9 + $0x258] sm:$0xff]
  %v3745 = vld [vmem:[%s10 + $0xd] sm:$0x1]
  %v3746 = vlaneseq
  %v3747 = vshrl.u32 %v3746, 7
  %v3748 = vsub.s32 0, %v3747
  %v3749 = vrot.slane %v3745, %v3748
  %v3751 = vsel %vm686, %v3739, 0
  %v3754 = vsel %vm686, %v3740, 0
  %3756 = vmatprep.subr.mxu0 0.0
  %3757 = vmatpush1.msra.mxu0 0.0
  %3758 = vmatprep.subr.mxu0 0.0
  %3759 = vmatpush1.msra.mxu0 0.0
  %3760 = vmatprep.subr.mxu0 0.0
  %3761 = vmatpush1.msra.mxu0 0.0
  %3762 = vmatprep.subr.mxu0 0.0
  %3763 = vmatpush1.msra.mxu0 0.0
  %3764 = vmatprep.subr.mxu0 0.0
  %3765 = vmatpush1.msra.mxu0 0.0
  %3766 = vmatprep.subr.mxu0 0.0
  %3767 = vmatpush1.msra.mxu0 0.0
  %3768 = vmatprep.subr.mxu0 0.0
  %3769 = vmatpush1.msra.mxu0 0.0
  %3770 = vmatprep.subr.mxu0 0.0
  %3771 = vmatpush1.msra.mxu0 0.0
  %3772 = vmatprep.subr.mxu0 0.0
  %3773 = vmatpush1.msra.mxu0 0.0
  %3774 = vmatprep.subr.mxu0 0.0
  %3775 = vmatpush1.msra.mxu0 0.0
  %3776 = vmatprep.subr.mxu0 0.0
  %3777 = vmatpush1.msra.mxu0 0.0
  %3778 = vmatprep.subr.mxu0 0.0
  %3779 = vmatpush1.msra.mxu0 0.0
  %3780 = vmatprep.subr.mxu0 0.0
  %3781 = vmatpush1.msra.mxu0 %v3744
  %3782 = vmatprep.subr.mxu0 0.0
  %3783 = vmatpush1.msra.mxu0 %v3743
  %3784 = vmatprep.subr.mxu0 0.0
  %3785 = vmatpush1.msra.mxu0 %v3742
  %3786 = vmatprep.subr.mxu0 0.0
  %3787 = vmatpush1.msra.mxu0 %v3741
  %3788 = vmatprep.subr.mxu0 0.0
  %3789 = vmatpush2.msra.mxu0 0.0
  %3790 = vmatprep.subr.mxu0 0.0
  %3791 = vmatpush2.msra.mxu0 0.0
  %3792 = vmatprep.subr.mxu0 0.0
  %3793 = vmatpush2.msra.mxu0 0.0
  %3794 = vmatprep.subr.mxu0 0.0
  %3795 = vmatpush2.msra.mxu0 0.0
  %3796 = vmatprep.subr.mxu0 0.0
  %3797 = vmatpush2.msra.mxu0 0.0
  %3798 = vmatprep.subr.mxu0 0.0
  %3799 = vmatpush2.msra.mxu0 0.0
  %3800 = vmatprep.subr.mxu0 0.0
  %3801 = vmatpush2.msra.mxu0 0.0
  %3802 = vmatprep.subr.mxu0 0.0
  %3803 = vmatpush2.msra.mxu0 0.0
  %3804 = vmatprep.subr.mxu0 0.0
  %3805 = vmatpush2.msra.mxu0 0.0
  %3806 = vmatprep.subr.mxu0 0.0
  %3807 = vmatpush2.msra.mxu0 0.0
  %3808 = vmatprep.subr.mxu0 0.0
  %3809 = vmatpush2.msra.mxu0 0.0
  %3810 = vmatprep.subr.mxu0 0.0
  %3811 = vmatpush2.msra.mxu0 0.0
  %3812 = vmatprep.subr.mxu0 0.0
  %3813 = vmatpush2.msra.mxu0 0.0
  %3814 = vmatprep.subr.mxu0 0.0
  %3815 = vmatpush2.msra.mxu0 0.0
  %3816 = vmatprep.subr.mxu0 0.0
  %3817 = vmatpush2.msra.mxu0 0.0
  %3818 = vmatprep.subr.mxu0 0.0
  %3819 = vmatpush2.msra.mxu0 0.0
  %3820 = vmatprep.mubr.f32.mxu0 0.0
  %3821 = vmatmul.mubr.f32.gmra.mxu0 %v3751
  %v3822 = vpop.f32.mrf.mxu0
  %v3823 = vadd.f32 %v3749, %v3822
  %v3824 = vpop.f32.mrf.mxu0
  %3825 = vmatprep.mubr.f32.mxu0 0.0
  %3826 = vmatmul.mubr.f32.gmra.mxu0 %v3754
  %v3827 = vpop.f32.mrf.mxu0
  %v3828 = vadd.f32 %v3749, %v3827
  %v3829 = vpop.f32.mrf.mxu0
  %3830 = vdwg.mxu0
  %vm3831 = vcmp.ge.f32.partialorder %v3823, 0.0
  %vm3832 = vcmp.ge.f32.partialorder %v3828, 0.0
  %v3833 = vmul.f32 %v3823, 0.1
  %v3834 = vmul.f32 %v3828, 0.1
  %v3835 = vsel %vm3831, %v3823, %v3833
  %v3836 = vsel %vm3832, %v3828, %v3834
  %v3837 = vld [vmem:[%s10 + $0xe] sm:$0x1]
  %v3838 = vlaneseq
  %v3839 = vshrl.u32 %v3838, 7
  %v3840 = vsub.s32 0, %v3839
  %v3841 = vrot.slane %v3837, %v3840
  %v3842 = vmul.f32 %v3835, %v3841
  %v3843 = vmul.f32 %v3836, %v3841
  %v3844 = vsel %vm686, %v3842, 0.0
  %3845 = vadd.xlane.f32.xlu0 %v3844
  %v3846 = vpop.xlane.xlu0 %3845
  %v3847 = vsel %vm686, %v3843, 0.0
  %3848 = vadd.xlane.f32.xlu0 %v3847
  %v3849 = vpop.xlane.xlu0 %3848
  %v3850 = vadd.f32 %v3846, %v1180
  %v3851 = vadd.f32 %v3849, %v1187
  %3854 = vset.pattern.permute.xlu0 0
  %3855 = vperm.xlu0 %3854, %v3850
  %v3856 = vpop.permute.xlu0 %3855
  %3857 = vset.pattern.permute.xlu0 0
  %3858 = vperm.xlu0 %3857, %v3851
  %v3859 = vpop.permute.xlu0 %3858
  %v3860 = vlaneseq
  %v3861 = vshrl.u32 %v3860, 7
  %v3862 = vsub.s32 %v52, %v3861
  %v3863 = vrot.slane %v3856, %v3862
  %v3864 = vlaneseq
  %v3865 = vshrl.u32 %v3864, 7
  %v3866 = vsub.s32 %v52, %v3865
  %v3867 = vrot.slane %v3859, %v3866
  %v3868 = vsel %vm1208, %v3867, %v3863
  %v3870 = vsel %vm1211, %v3868, -inf
  %3871 = vmax.xlane.f32.xlu0 %v3870
  %v3872 = vpop.xlane.xlu0 %3871
  %v3874 = vlaneseq
  %v3875 = vshrl.u32 %v3874, 7
  %v3876 = vsub.s32 0, %v3875
  %v3877 = vrot.slane %v3872, %v3876
  %v3878 = vlaneseq
  %v3879 = vshrl.u32 %v3878, 7
  %v3880 = vsub.s32 1, %v3879
  %v3881 = vrot.slane %v3872, %v3880
  %v3884 = vsub.f32 %v3850, %v3877
  %v3885 = vsub.f32 %v3851, %v3881
  %v3886 = vmul.f32 %v3884, 1.442695
  %v3887 = vpow.pop %v3886
  %v3888 = vmul.f32 %v3885, 1.442695
  %v3889 = vpow.pop %v3888
  %3892 = vset.pattern.permute.xlu0 0
  %3893 = vperm.xlu0 %3892, %v3887
  %v3894 = vpop.permute.xlu0 %3893
  %3895 = vset.pattern.permute.xlu0 0
  %3896 = vperm.xlu0 %3895, %v3889
  %v3897 = vpop.permute.xlu0 %3896
  %v3898 = vlaneseq
  %v3899 = vshrl.u32 %v3898, 7
  %v3900 = vsub.s32 %v52, %v3899
  %v3901 = vrot.slane %v3894, %v3900
  %v3902 = vlaneseq
  %v3903 = vshrl.u32 %v3902, 7
  %v3904 = vsub.s32 %v52, %v3903
  %v3905 = vrot.slane %v3897, %v3904
  %v3906 = vsel %vm1208, %v3905, %v3901
  %v3908 = vsel %vm1211, %v3906, 0.0
  %3909 = vadd.xlane.f32.xlu0 %v3908
  %v3910 = vpop.xlane.xlu0 %3909
  %v3912 = vlaneseq
  %v3913 = vshrl.u32 %v3912, 7
  %v3914 = vsub.s32 0, %v3913
  %v3915 = vrot.slane %v3910, %v3914
  %v3916 = vlaneseq
  %v3917 = vshrl.u32 %v3916, 7
  %v3918 = vsub.s32 1, %v3917
  %v3919 = vrot.slane %v3910, %v3918
  %v3922 = vrcp.pop %v3915
  %v3923 = vmul.f32 %v3887, %v3922
  %v3924 = vrcp.pop %v3919
  %v3925 = vmul.f32 %v3889, %v3924
  %3927 = vset.pattern.permute.xlu0 0
  %3928 = vperm.xlu0 %3927, %v3923
  %v3929 = vpop.permute.xlu0 %3928
  %3932 = vset.pattern.permute.xlu0 0
  %3933 = vperm.xlu0 %3932, %v3925
  %v3934 = vpop.permute.xlu0 %3933
  %v3936 = vmul.f32 %v3929, %v3534
  %v3937 = vmul.f32 %v3934, %v3535
  %v3938 = vsel %vm686, %v3936, 0.0
  %v3939 = vrot.slane %v3938, 4
  %v3940 = vadd.f32 %v3938, %v3939
  %v3941 = vrot.slane %v3940, 2
  %v3942 = vadd.f32 %v3940, %v3941
  %v3943 = vrot.slane %v3942, 1
  %v3944 = vadd.f32 %v3942, %v3943
  %v3945 = vsel %vm686, %v3937, 0.0
  %v3946 = vrot.slane %v3945, 4
  %v3947 = vadd.f32 %v3945, %v3946
  %v3948 = vrot.slane %v3947, 2
  %v3949 = vadd.f32 %v3947, %v3948
  %v3950 = vrot.slane %v3949, 1
  %v3951 = vadd.f32 %v3949, %v3950
  %v3952 = vld [vmem:[%s9 + $0x280] sm:$0xff]
  %v3953 = vld [vmem:[%s9 + $0x288] sm:$0xff]
  %v3954 = vld [vmem:[%s9 + $0x290] sm:$0xff]
  %v3955 = vld [vmem:[%s9 + $0x298] sm:$0xff]
  %3956 = vmatprep.subr.mxu0 0.0
  %3957 = vmatpush1.msra.mxu0 0.0
  %3958 = vmatprep.subr.mxu0 0.0
  %3959 = vmatpush1.msra.mxu0 0.0
  %3960 = vmatprep.subr.mxu0 0.0
  %3961 = vmatpush1.msra.mxu0 0.0
  %3962 = vmatprep.subr.mxu0 0.0
  %3963 = vmatpush1.msra.mxu0 0.0
  %3964 = vmatprep.subr.mxu0 0.0
  %3965 = vmatpush1.msra.mxu0 0.0
  %3966 = vmatprep.subr.mxu0 0.0
  %3967 = vmatpush1.msra.mxu0 0.0
  %3968 = vmatprep.subr.mxu0 0.0
  %3969 = vmatpush1.msra.mxu0 0.0
  %3970 = vmatprep.subr.mxu0 0.0
  %3971 = vmatpush1.msra.mxu0 0.0
  %3972 = vmatprep.subr.mxu0 0.0
  %3973 = vmatpush1.msra.mxu0 0.0
  %3974 = vmatprep.subr.mxu0 0.0
  %3975 = vmatpush1.msra.mxu0 0.0
  %3976 = vmatprep.subr.mxu0 0.0
  %3977 = vmatpush1.msra.mxu0 0.0
  %3978 = vmatprep.subr.mxu0 0.0
  %3979 = vmatpush1.msra.mxu0 0.0
  %3980 = vmatprep.subr.mxu0 0.0
  %3981 = vmatpush1.msra.mxu0 %v3955
  %3982 = vmatprep.subr.mxu0 0.0
  %3983 = vmatpush1.msra.mxu0 %v3954
  %3984 = vmatprep.subr.mxu0 0.0
  %3985 = vmatpush1.msra.mxu0 %v3953
  %3986 = vmatprep.subr.mxu0 0.0
  %3987 = vmatpush1.msra.mxu0 %v3952
  %3988 = vmatprep.subr.mxu0 0.0
  %3989 = vmatpush2.msra.mxu0 0.0
  %3990 = vmatprep.subr.mxu0 0.0
  %3991 = vmatpush2.msra.mxu0 0.0
  %3992 = vmatprep.subr.mxu0 0.0
  %3993 = vmatpush2.msra.mxu0 0.0
  %3994 = vmatprep.subr.mxu0 0.0
  %3995 = vmatpush2.msra.mxu0 0.0
  %3996 = vmatprep.subr.mxu0 0.0
  %3997 = vmatpush2.msra.mxu0 0.0
  %3998 = vmatprep.subr.mxu0 0.0
  %3999 = vmatpush2.msra.mxu0 0.0
  %4000 = vmatprep.subr.mxu0 0.0
  %4001 = vmatpush2.msra.mxu0 0.0
  %4002 = vmatprep.subr.mxu0 0.0
  %4003 = vmatpush2.msra.mxu0 0.0
  %4004 = vmatprep.subr.mxu0 0.0
  %4005 = vmatpush2.msra.mxu0 0.0
  %4006 = vmatprep.subr.mxu0 0.0
  %4007 = vmatpush2.msra.mxu0 0.0
  %4008 = vmatprep.subr.mxu0 0.0
  %4009 = vmatpush2.msra.mxu0 0.0
  %4010 = vmatprep.subr.mxu0 0.0
  %4011 = vmatpush2.msra.mxu0 0.0
  %4012 = vmatprep.subr.mxu0 0.0
  %4013 = vmatpush2.msra.mxu0 0.0
  %4014 = vmatprep.subr.mxu0 0.0
  %4015 = vmatpush2.msra.mxu0 0.0
  %4016 = vmatprep.subr.mxu0 0.0
  %4017 = vmatpush2.msra.mxu0 0.0
  %4018 = vmatprep.subr.mxu0 0.0
  %4019 = vmatpush2.msra.mxu0 0.0
  %4020 = vmatprep.mubr.f32.mxu0 0.0
  %4021 = vmatmul.mubr.f32.gmra.mxu0 %v861
  %v4022 = vpop.f32.mrf.mxu0
  %v4023 = vadd.f32 0.0, %v4022
  %v4024 = vpop.f32.mrf.mxu0
  %4025 = vdwg.mxu0
  %v4026 = vld [vmem:[%s9 + $0x260] sm:$0xff]
  %v4027 = vld [vmem:[%s9 + $0x268] sm:$0xff]
  %v4028 = vld [vmem:[%s9 + $0x270] sm:$0xff]
  %v4029 = vld [vmem:[%s9 + $0x278] sm:$0xff]
  %v4030 = vld [vmem:[%s10 + $0xf] sm:$0x1]
  %v4031 = vlaneseq
  %v4032 = vshrl.u32 %v4031, 7
  %v4033 = vsub.s32 0, %v4032
  %v4034 = vrot.slane %v4030, %v4033
  %4035 = vmatprep.subr.mxu0 0.0
  %4036 = vmatpush1.msra.mxu0 0.0
  %4037 = vmatprep.subr.mxu0 0.0
  %4038 = vmatpush1.msra.mxu0 0.0
  %4039 = vmatprep.subr.mxu0 0.0
  %4040 = vmatpush1.msra.mxu0 0.0
  %4041 = vmatprep.subr.mxu0 0.0
  %4042 = vmatpush1.msra.mxu0 0.0
  %4043 = vmatprep.subr.mxu0 0.0
  %4044 = vmatpush1.msra.mxu0 0.0
  %4045 = vmatprep.subr.mxu0 0.0
  %4046 = vmatpush1.msra.mxu0 0.0
  %4047 = vmatprep.subr.mxu0 0.0
  %4048 = vmatpush1.msra.mxu0 0.0
  %4049 = vmatprep.subr.mxu0 0.0
  %4050 = vmatpush1.msra.mxu0 0.0
  %4051 = vmatprep.subr.mxu0 0.0
  %4052 = vmatpush1.msra.mxu0 0.0
  %4053 = vmatprep.subr.mxu0 0.0
  %4054 = vmatpush1.msra.mxu0 0.0
  %4055 = vmatprep.subr.mxu0 0.0
  %4056 = vmatpush1.msra.mxu0 0.0
  %4057 = vmatprep.subr.mxu0 0.0
  %4058 = vmatpush1.msra.mxu0 0.0
  %4059 = vmatprep.subr.mxu0 0.0
  %4060 = vmatpush1.msra.mxu0 %v4029
  %4061 = vmatprep.subr.mxu0 0.0
  %4062 = vmatpush1.msra.mxu0 %v4028
  %4063 = vmatprep.subr.mxu0 0.0
  %4064 = vmatpush1.msra.mxu0 %v4027
  %4065 = vmatprep.subr.mxu0 0.0
  %4066 = vmatpush1.msra.mxu0 %v4026
  %4067 = vmatprep.subr.mxu0 0.0
  %4068 = vmatpush2.msra.mxu0 0.0
  %4069 = vmatprep.subr.mxu0 0.0
  %4070 = vmatpush2.msra.mxu0 0.0
  %4071 = vmatprep.subr.mxu0 0.0
  %4072 = vmatpush2.msra.mxu0 0.0
  %4073 = vmatprep.subr.mxu0 0.0
  %4074 = vmatpush2.msra.mxu0 0.0
  %4075 = vmatprep.subr.mxu0 0.0
  %4076 = vmatpush2.msra.mxu0 0.0
  %4077 = vmatprep.subr.mxu0 0.0
  %4078 = vmatpush2.msra.mxu0 0.0
  %4079 = vmatprep.subr.mxu0 0.0
  %4080 = vmatpush2.msra.mxu0 0.0
  %4081 = vmatprep.subr.mxu0 0.0
  %4082 = vmatpush2.msra.mxu0 0.0
  %4083 = vmatprep.subr.mxu0 0.0
  %4084 = vmatpush2.msra.mxu0 0.0
  %4085 = vmatprep.subr.mxu0 0.0
  %4086 = vmatpush2.msra.mxu0 0.0
  %4087 = vmatprep.subr.mxu0 0.0
  %4088 = vmatpush2.msra.mxu0 0.0
  %4089 = vmatprep.subr.mxu0 0.0
  %4090 = vmatpush2.msra.mxu0 0.0
  %4091 = vmatprep.subr.mxu0 0.0
  %4092 = vmatpush2.msra.mxu0 0.0
  %4093 = vmatprep.subr.mxu0 0.0
  %4094 = vmatpush2.msra.mxu0 0.0
  %4095 = vmatprep.subr.mxu0 0.0
  %4096 = vmatpush2.msra.mxu0 0.0
  %4097 = vmatprep.subr.mxu0 0.0
  %4098 = vmatpush2.msra.mxu0 0.0
  %4099 = vmatprep.mubr.f32.mxu0 0.0
  %4100 = vmatmul.mubr.f32.gmra.mxu0 %v1378
  %v4101 = vpop.f32.mrf.mxu0
  %v4102 = vadd.f32 %v4034, %v4101
  %v4103 = vpop.f32.mrf.mxu0
  %4104 = vmatprep.mubr.f32.mxu0 0.0
  %4105 = vmatmul.mubr.f32.gmra.mxu0 %v1381
  %v4106 = vpop.f32.mrf.mxu0
  %v4107 = vadd.f32 %v4034, %v4106
  %v4108 = vpop.f32.mrf.mxu0
  %4109 = vdwg.mxu0
  %v4112 = vcombine.high %v4102, %v4102
  %v4114 = vunpack.c.l.s4 1983009808
  %v4115 = vunpack.c.0.s8 %v4114
  %v4116 = vlaneseq
  %v4117 = vshrl.u32 %v4116, 7
  %v4118 = vsub.s32 %v4115, %v4117
  %v4119 = vrot.slane %v4102, %v4118
  %v4121 = vunpack.c.l.s4 1983009808
  %v4122 = vunpack.c.0.s8 %v4121
  %v4123 = vlaneseq
  %v4124 = vshrl.u32 %v4123, 7
  %v4125 = vsub.s32 %v4122, %v4124
  %v4126 = vrot.slane %v4112, %v4125
  %v4127 = vcombine.high %v4119, %v4119
  %v4128 = vcombine.high %v4126, %v4126
  %v4130 = vunpack.c.l.s4 1983009808
  %v4131 = vunpack.c.0.s8 %v4130
  %v4132 = vlaneseq
  %v4133 = vshrl.u32 %v4132, 7
  %v4134 = vsub.s32 %v4131, %v4133
  %v4135 = vrot.slane %v4107, %v4134
  %v4136 = vcombine.high %v4135, %v4135
  %v4145 = vunpack.c.l.s4 1966171168
  %v4146 = vunpack.c.0.s8 %v4145
  %v4147 = vlaneseq
  %v4148 = vshrl.u32 %v4147, 7
  %v4149 = vsub.s32 %v4146, %v4148
  %v4150 = vrot.slane %v4023, %v4149
  %v4151 = vcombine.high %v4150, %v4150
  %v4153 = vunpack.c.l.s4 1966171168
  %v4154 = vunpack.c.0.s8 %v4153
  %v4155 = vlaneseq
  %v4156 = vshrl.u32 %v4155, 7
  %v4157 = vsub.s32 %v4154, %v4156
  %v4158 = vrot.slane %v4150, %v4157
  %v4160 = vunpack.c.l.s4 1966171168
  %v4161 = vunpack.c.0.s8 %v4160
  %v4162 = vlaneseq
  %v4163 = vshrl.u32 %v4162, 7
  %v4164 = vsub.s32 %v4161, %v4163
  %v4165 = vrot.slane %v4151, %v4164
  %v4166 = vlaneseq
  %v4167 = vshrl.u32 %v4166, 7
  %v4168 = vsub.s32 0, %v4167
  %v4169 = vrot.slane %v4158, %v4168
  %v4170 = vlaneseq
  %v4171 = vshrl.u32 %v4170, 7
  %v4172 = vsub.s32 0, %v4171
  %v4173 = vrot.slane %v4165, %v4172
  %v4174 = vcombine.high %v4169, %v4169
  %v4176 = vunpack.c.l.s4 1983009808
  %v4177 = vunpack.c.0.s8 %v4176
  %v4178 = vlaneseq
  %v4179 = vshrl.u32 %v4178, 7
  %v4180 = vsub.s32 %v4177, %v4179
  %v4181 = vrot.slane %v4169, %v4180
  %v4183 = vunpack.c.l.s4 1983009808
  %v4184 = vunpack.c.0.s8 %v4183
  %v4185 = vlaneseq
  %v4186 = vshrl.u32 %v4185, 7
  %v4187 = vsub.s32 %v4184, %v4186
  %v4188 = vrot.slane %v4174, %v4187
  %v4189 = vcombine.high %v4181, %v4181
  %v4190 = vcombine.high %v4173, %v4173
  %v4192 = vunpack.c.l.s4 1983009808
  %v4193 = vunpack.c.0.s8 %v4192
  %v4194 = vlaneseq
  %v4195 = vshrl.u32 %v4194, 7
  %v4196 = vsub.s32 %v4193, %v4195
  %v4197 = vrot.slane %v4173, %v4196
  %v4199 = vunpack.c.l.s4 1983009808
  %v4200 = vunpack.c.0.s8 %v4199
  %v4201 = vlaneseq
  %v4202 = vshrl.u32 %v4201, 7
  %v4203 = vsub.s32 %v4200, %v4202
  %v4204 = vrot.slane %v4190, %v4203
  %v4205 = vcombine.high %v4197, %v4197
  %v4212 = vadd.f32 %v4119, %v4181
  %v4213 = vadd.f32 %v4127, %v4189
  %v4214 = vadd.f32 %v4126, %v4188
  %v4215 = vadd.f32 %v4128, %v4197
  %v4216 = vadd.f32 %v4135, %v4205
  %v4217 = vadd.f32 %v4136, %v4204
  %vm4218 = vcmp.ge.f32.partialorder %v4212, 0.0
  %vm4219 = vcmp.ge.f32.partialorder %v4213, 0.0
  %vm4220 = vcmp.ge.f32.partialorder %v4214, 0.0
  %vm4221 = vcmp.ge.f32.partialorder %v4215, 0.0
  %vm4222 = vcmp.ge.f32.partialorder %v4216, 0.0
  %vm4223 = vcmp.ge.f32.partialorder %v4217, 0.0
  %v4224 = vmul.f32 %v4212, 0.1
  %v4225 = vmul.f32 %v4213, 0.1
  %v4226 = vmul.f32 %v4214, 0.1
  %v4227 = vmul.f32 %v4215, 0.1
  %v4228 = vmul.f32 %v4216, 0.1
  %v4229 = vmul.f32 %v4217, 0.1
  %v4230 = vsel %vm4218, %v4212, %v4224
  %v4231 = vsel %vm4219, %v4213, %v4225
  %v4232 = vsel %vm4220, %v4214, %v4226
  %v4233 = vsel %vm4221, %v4215, %v4227
  %v4234 = vsel %vm4222, %v4216, %v4228
  %v4235 = vsel %vm4223, %v4217, %v4229
  %v4236 = vld [vmem:[%s9 + $0x2a0] sm:$0xff]
  %v4237 = vld [vmem:[%s9 + $0x2a8] sm:$0xff]
  %v4238 = vld [vmem:[%s9 + $0x2b0] sm:$0xff]
  %v4239 = vld [vmem:[%s9 + $0x2b8] sm:$0xff]
  %v4240 = vld [vmem:[%s10 + $0x10] sm:$0x1]
  %v4241 = vlaneseq
  %v4242 = vshrl.u32 %v4241, 7
  %v4243 = vsub.s32 0, %v4242
  %v4244 = vrot.slane %v4240, %v4243
  %v4251 = vcombine.low %v4230, %v4231
  %v4252 = vcombine.low %v4232, %v4233
  %v4254 = vunpack.c.l.s4 1983009808
  %v4255 = vunpack.c.0.s8 %v4254
  %v4256 = vlaneseq
  %v4257 = vshrl.u32 %v4256, 7
  %v4258 = vsub.s32 %v4255, %v4257
  %v4259 = vrot.slane %v4251, %v4258
  %v4261 = vunpack.c.l.s4 1983009808
  %v4262 = vunpack.c.0.s8 %v4261
  %v4263 = vlaneseq
  %v4264 = vshrl.u32 %v4263, 7
  %v4265 = vsub.s32 %v4262, %v4264
  %v4266 = vrot.slane %v4252, %v4265
  %v4267 = vcombine.low %v4259, %v4266
  %v4268 = vcombine.low %v4234, %v4235
  %v4270 = vunpack.c.l.s4 1983009808
  %v4271 = vunpack.c.0.s8 %v4270
  %v4272 = vlaneseq
  %v4273 = vshrl.u32 %v4272, 7
  %v4274 = vsub.s32 %v4271, %v4273
  %v4275 = vrot.slane %v4268, %v4274
  %v4276 = vsel %vm686, %v4267, 0
  %v4278 = vsel %vm686, %v4275, 0
  %4280 = vmatprep.subr.mxu0 0.0
  %4281 = vmatpush1.msra.mxu0 0.0
  %4282 = vmatprep.subr.mxu0 0.0
  %4283 = vmatpush1.msra.mxu0 0.0
  %4284 = vmatprep.subr.mxu0 0.0
  %4285 = vmatpush1.msra.mxu0 0.0
  %4286 = vmatprep.subr.mxu0 0.0
  %4287 = vmatpush1.msra.mxu0 0.0
  %4288 = vmatprep.subr.mxu0 0.0
  %4289 = vmatpush1.msra.mxu0 0.0
  %4290 = vmatprep.subr.mxu0 0.0
  %4291 = vmatpush1.msra.mxu0 0.0
  %4292 = vmatprep.subr.mxu0 0.0
  %4293 = vmatpush1.msra.mxu0 0.0
  %4294 = vmatprep.subr.mxu0 0.0
  %4295 = vmatpush1.msra.mxu0 0.0
  %4296 = vmatprep.subr.mxu0 0.0
  %4297 = vmatpush1.msra.mxu0 0.0
  %4298 = vmatprep.subr.mxu0 0.0
  %4299 = vmatpush1.msra.mxu0 0.0
  %4300 = vmatprep.subr.mxu0 0.0
  %4301 = vmatpush1.msra.mxu0 0.0
  %4302 = vmatprep.subr.mxu0 0.0
  %4303 = vmatpush1.msra.mxu0 0.0
  %4304 = vmatprep.subr.mxu0 0.0
  %4305 = vmatpush1.msra.mxu0 %v4239
  %4306 = vmatprep.subr.mxu0 0.0
  %4307 = vmatpush1.msra.mxu0 %v4238
  %4308 = vmatprep.subr.mxu0 0.0
  %4309 = vmatpush1.msra.mxu0 %v4237
  %4310 = vmatprep.subr.mxu0 0.0
  %4311 = vmatpush1.msra.mxu0 %v4236
  %4312 = vmatprep.subr.mxu0 0.0
  %4313 = vmatpush2.msra.mxu0 0.0
  %4314 = vmatprep.subr.mxu0 0.0
  %4315 = vmatpush2.msra.mxu0 0.0
  %4316 = vmatprep.subr.mxu0 0.0
  %4317 = vmatpush2.msra.mxu0 0.0
  %4318 = vmatprep.subr.mxu0 0.0
  %4319 = vmatpush2.msra.mxu0 0.0
  %4320 = vmatprep.subr.mxu0 0.0
  %4321 = vmatpush2.msra.mxu0 0.0
  %4322 = vmatprep.subr.mxu0 0.0
  %4323 = vmatpush2.msra.mxu0 0.0
  %4324 = vmatprep.subr.mxu0 0.0
  %4325 = vmatpush2.msra.mxu0 0.0
  %4326 = vmatprep.subr.mxu0 0.0
  %4327 = vmatpush2.msra.mxu0 0.0
  %4328 = vmatprep.subr.mxu0 0.0
  %4329 = vmatpush2.msra.mxu0 0.0
  %4330 = vmatprep.subr.mxu0 0.0
  %4331 = vmatpush2.msra.mxu0 0.0
  %4332 = vmatprep.subr.mxu0 0.0
  %4333 = vmatpush2.msra.mxu0 0.0
  %4334 = vmatprep.subr.mxu0 0.0
  %4335 = vmatpush2.msra.mxu0 0.0
  %4336 = vmatprep.subr.mxu0 0.0
  %4337 = vmatpush2.msra.mxu0 0.0
  %4338 = vmatprep.subr.mxu0 0.0
  %4339 = vmatpush2.msra.mxu0 0.0
  %4340 = vmatprep.subr.mxu0 0.0
  %4341 = vmatpush2.msra.mxu0 0.0
  %4342 = vmatprep.subr.mxu0 0.0
  %4343 = vmatpush2.msra.mxu0 0.0
  %4344 = vmatprep.mubr.f32.mxu0 0.0
  %4345 = vmatmul.mubr.f32.gmra.mxu0 %v4276
  %v4346 = vpop.f32.mrf.mxu0
  %v4347 = vadd.f32 %v4244, %v4346
  %v4348 = vpop.f32.mrf.mxu0
  %4349 = vmatprep.mubr.f32.mxu0 0.0
  %4350 = vmatmul.mubr.f32.gmra.mxu0 %v4278
  %v4351 = vpop.f32.mrf.mxu0
  %v4352 = vadd.f32 %v4244, %v4351
  %v4353 = vpop.f32.mrf.mxu0
  %4354 = vdwg.mxu0
  %vm4355 = vcmp.ge.f32.partialorder %v4347, 0.0
  %vm4356 = vcmp.ge.f32.partialorder %v4352, 0.0
  %v4357 = vmul.f32 %v4347, 0.1
  %v4358 = vmul.f32 %v4352, 0.1
  %v4359 = vsel %vm4355, %v4347, %v4357
  %v4360 = vsel %vm4356, %v4352, %v4358
  %v4363 = vcombine.high %v4359, %v4359
  %v4365 = vunpack.c.l.s4 1983009808
  %v4366 = vunpack.c.0.s8 %v4365
  %v4367 = vlaneseq
  %v4368 = vshrl.u32 %v4367, 7
  %v4369 = vsub.s32 %v4366, %v4368
  %v4370 = vrot.slane %v4359, %v4369
  %v4372 = vunpack.c.l.s4 1983009808
  %v4373 = vunpack.c.0.s8 %v4372
  %v4374 = vlaneseq
  %v4375 = vshrl.u32 %v4374, 7
  %v4376 = vsub.s32 %v4373, %v4375
  %v4377 = vrot.slane %v4363, %v4376
  %v4378 = vcombine.high %v4370, %v4370
  %v4379 = vcombine.high %v4377, %v4377
  %v4381 = vunpack.c.l.s4 1983009808
  %v4382 = vunpack.c.0.s8 %v4381
  %v4383 = vlaneseq
  %v4384 = vshrl.u32 %v4383, 7
  %v4385 = vsub.s32 %v4382, %v4384
  %v4386 = vrot.slane %v4360, %v4385
  %v4387 = vcombine.high %v4386, %v4386
  %v4394 = vld [vmem:[%s10 + $0x11] sm:$0x1]
  %v4395 = vlaneseq
  %v4396 = vshrl.u32 %v4395, 7
  %v4397 = vsub.s32 0, %v4396
  %v4398 = vrot.slane %v4394, %v4397
  %v4400 = vcombine.high %v4398, %v4398
  %v4402 = vunpack.c.l.s4 1983009808
  %v4403 = vunpack.c.0.s8 %v4402
  %v4404 = vlaneseq
  %v4405 = vshrl.u32 %v4404, 7
  %v4406 = vsub.s32 %v4403, %v4405
  %v4407 = vrot.slane %v4398, %v4406
  %v4409 = vunpack.c.l.s4 1983009808
  %v4410 = vunpack.c.0.s8 %v4409
  %v4411 = vlaneseq
  %v4412 = vshrl.u32 %v4411, 7
  %v4413 = vsub.s32 %v4410, %v4412
  %v4414 = vrot.slane %v4400, %v4413
  %v4415 = vcombine.high %v4407, %v4407
  %v4419 = vmul.f32 %v4370, %v4407
  %v4420 = vmul.f32 %v4378, %v4415
  %v4421 = vmul.f32 %v4377, %v4414
  %v4422 = vmul.f32 %v4379, %v4407
  %v4423 = vmul.f32 %v4386, %v4415
  %v4424 = vmul.f32 %v4387, %v4414
  %v4431 = vcombine.low %v4419, %v4420
  %v4433 = vunpack.c.l.s4 1983009808
  %v4434 = vunpack.c.0.s8 %v4433
  %v4435 = vlaneseq
  %v4436 = vshrl.u32 %v4435, 7
  %v4437 = vsub.s32 %v4434, %v4436
  %v4438 = vrot.slane %v4431, %v4437
  %v4440 = vunpack.c.l.s4 1983009808
  %v4441 = vunpack.c.0.s8 %v4440
  %v4442 = vlaneseq
  %v4443 = vshrl.u32 %v4442, 7
  %v4444 = vsub.s32 %v4441, %v4443
  %v4445 = vrot.slane %v4421, %v4444
  %v4446 = vcombine.low %v4438, %v4445
  %v4447 = vcombine.low %v4422, %v4423
  %v4449 = vunpack.c.l.s4 1983009808
  %v4450 = vunpack.c.0.s8 %v4449
  %v4451 = vlaneseq
  %v4452 = vshrl.u32 %v4451, 7
  %v4453 = vsub.s32 %v4450, %v4452
  %v4454 = vrot.slane %v4447, %v4453
  %v4456 = vunpack.c.l.s4 1983009808
  %v4457 = vunpack.c.0.s8 %v4456
  %v4458 = vlaneseq
  %v4459 = vshrl.u32 %v4458, 7
  %v4460 = vsub.s32 %v4457, %v4459
  %v4461 = vrot.slane %v4424, %v4460
  %v4462 = vcombine.low %v4454, %v4461
  %v4465 = vsel %vm1813, %v4446, 0.0
  %4466 = vadd.xlane.f32.xlu0 %v4465
  %v4467 = vpop.xlane.xlu0 %4466
  %v4468 = vsel %vm1813, %v4462, 0.0
  %4469 = vadd.xlane.f32.xlu0 %v4468
  %v4470 = vpop.xlane.xlu0 %4469
  %v4471 = vadd.f32 %v4467, %v1827
  %v4472 = vadd.f32 %v4470, %v1834
  %4475 = vset.pattern.permute.xlu0 0
  %4476 = vperm.xlu0 %4475, %v4471
  %v4477 = vpop.permute.xlu0 %4476
  %4478 = vset.pattern.permute.xlu0 0
  %4479 = vperm.xlu0 %4478, %v4472
  %v4480 = vpop.permute.xlu0 %4479
  %v4481 = vlaneseq
  %v4482 = vshrl.u32 %v4481, 7
  %v4483 = vsub.s32 %v52, %v4482
  %v4484 = vrot.slane %v4477, %v4483
  %v4485 = vlaneseq
  %v4486 = vshrl.u32 %v4485, 7
  %v4487 = vsub.s32 %v52, %v4486
  %v4488 = vrot.slane %v4480, %v4487
  %v4489 = vsel %vm1208, %v4488, %v4484
  %v4491 = vsel %vm1857, %v4489, -inf
  %4492 = vmax.xlane.f32.xlu0 %v4491
  %v4493 = vpop.xlane.xlu0 %4492
  %v4495 = vlaneseq
  %v4496 = vshrl.u32 %v4495, 7
  %v4497 = vsub.s32 0, %v4496
  %v4498 = vrot.slane %v4493, %v4497
  %v4499 = vlaneseq
  %v4500 = vshrl.u32 %v4499, 7
  %v4501 = vsub.s32 1, %v4500
  %v4502 = vrot.slane %v4493, %v4501
  %v4505 = vsub.f32 %v4471, %v4498
  %v4506 = vsub.f32 %v4472, %v4502
  %v4507 = vmul.f32 %v4505, 1.442695
  %v4508 = vpow.pop %v4507
  %v4509 = vmul.f32 %v4506, 1.442695
  %v4510 = vpow.pop %v4509
  %4513 = vset.pattern.permute.xlu0 0
  %4514 = vperm.xlu0 %4513, %v4508
  %v4515 = vpop.permute.xlu0 %4514
  %4516 = vset.pattern.permute.xlu0 0
  %4517 = vperm.xlu0 %4516, %v4510
  %v4518 = vpop.permute.xlu0 %4517
  %v4519 = vlaneseq
  %v4520 = vshrl.u32 %v4519, 7
  %v4521 = vsub.s32 %v52, %v4520
  %v4522 = vrot.slane %v4515, %v4521
  %v4523 = vlaneseq
  %v4524 = vshrl.u32 %v4523, 7
  %v4525 = vsub.s32 %v52, %v4524
  %v4526 = vrot.slane %v4518, %v4525
  %v4527 = vsel %vm1208, %v4526, %v4522
  %v4529 = vsel %vm1857, %v4527, 0.0
  %4530 = vadd.xlane.f32.xlu0 %v4529
  %v4531 = vpop.xlane.xlu0 %4530
  %v4533 = vlaneseq
  %v4534 = vshrl.u32 %v4533, 7
  %v4535 = vsub.s32 0, %v4534
  %v4536 = vrot.slane %v4531, %v4535
  %v4537 = vlaneseq
  %v4538 = vshrl.u32 %v4537, 7
  %v4539 = vsub.s32 1, %v4538
  %v4540 = vrot.slane %v4531, %v4539
  %v4543 = vrcp.pop %v4536
  %v4544 = vmul.f32 %v4508, %v4543
  %v4545 = vrcp.pop %v4540
  %v4546 = vmul.f32 %v4510, %v4545
  %4548 = vset.pattern.permute.xlu0 0
  %4549 = vperm.xlu0 %4548, %v4544
  %v4550 = vpop.permute.xlu0 %4549
  %4553 = vset.pattern.permute.xlu0 0
  %4554 = vperm.xlu0 %4553, %v4546
  %v4555 = vpop.permute.xlu0 %4554
  %v4557 = vmul.f32 %v4550, %v1964
  %v4558 = vmul.f32 %v4555, %v1980
  %v4559 = vsel %vm1813, %v4557, 0.0
  %v4560 = vrot.slane %v4559, 4
  %v4561 = vadd.f32 %v4559, %v4560
  %v4562 = vrot.slane %v4561, 2
  %v4563 = vadd.f32 %v4561, %v4562
  %v4564 = vrot.slane %v4563, 1
  %v4565 = vadd.f32 %v4563, %v4564
  %v4566 = vsel %vm1813, %v4558, 0.0
  %v4567 = vrot.slane %v4566, 4
  %v4568 = vadd.f32 %v4566, %v4567
  %v4569 = vrot.slane %v4568, 2
  %v4570 = vadd.f32 %v4568, %v4569
  %v4571 = vrot.slane %v4570, 1
  %v4572 = vadd.f32 %v4570, %v4571
  %v4573 = vld [vmem:[%s9 + $0x2c0] sm:$0xff]
  %v4574 = vld [vmem:[%s9 + $0x2c8] sm:$0xff]
  %v4575 = vld [vmem:[%s9 + $0x2d0] sm:$0xff]
  %v4576 = vld [vmem:[%s9 + $0x2d8] sm:$0xff]
  %v4577 = vld [vmem:[%s9 + $0x2e0] sm:$0xff]
  %v4578 = vld [vmem:[%s9 + $0x2e8] sm:$0xff]
  %v4579 = vld [vmem:[%s9 + $0x2f0] sm:$0xff]
  %v4580 = vld [vmem:[%s9 + $0x2f8] sm:$0xff]
  %v4583 = vsel %vm1208, %v4572, %v4565
  %v4584 = vsel %vm686, %v4583, 0
  %4586 = vmatprep.subr.mxu0 0.0
  %4587 = vmatpush1.msra.mxu0 0.0
  %4588 = vmatprep.subr.mxu0 0.0
  %4589 = vmatpush1.msra.mxu0 0.0
  %4590 = vmatprep.subr.mxu0 0.0
  %4591 = vmatpush1.msra.mxu0 0.0
  %4592 = vmatprep.subr.mxu0 0.0
  %4593 = vmatpush1.msra.mxu0 0.0
  %4594 = vmatprep.subr.mxu0 0.0
  %4595 = vmatpush1.msra.mxu0 0.0
  %4596 = vmatprep.subr.mxu0 0.0
  %4597 = vmatpush1.msra.mxu0 0.0
  %4598 = vmatprep.subr.mxu0 0.0
  %4599 = vmatpush1.msra.mxu0 0.0
  %4600 = vmatprep.subr.mxu0 0.0
  %4601 = vmatpush1.msra.mxu0 0.0
  %4602 = vmatprep.subr.mxu0 0.0
  %4603 = vmatpush1.msra.mxu0 0.0
  %4604 = vmatprep.subr.mxu0 0.0
  %4605 = vmatpush1.msra.mxu0 0.0
  %4606 = vmatprep.subr.mxu0 0.0
  %4607 = vmatpush1.msra.mxu0 0.0
  %4608 = vmatprep.subr.mxu0 0.0
  %4609 = vmatpush1.msra.mxu0 0.0
  %4610 = vmatprep.subr.mxu0 0.0
  %4611 = vmatpush1.msra.mxu0 %v4580
  %4612 = vmatprep.subr.mxu0 0.0
  %4613 = vmatpush1.msra.mxu0 %v4579
  %4614 = vmatprep.subr.mxu0 0.0
  %4615 = vmatpush1.msra.mxu0 %v4578
  %4616 = vmatprep.subr.mxu0 0.0
  %4617 = vmatpush1.msra.mxu0 %v4577
  %4618 = vmatprep.subr.mxu0 0.0
  %4619 = vmatpush2.msra.mxu0 0.0
  %4620 = vmatprep.subr.mxu0 0.0
  %4621 = vmatpush2.msra.mxu0 0.0
  %4622 = vmatprep.subr.mxu0 0.0
  %4623 = vmatpush2.msra.mxu0 0.0
  %4624 = vmatprep.subr.mxu0 0.0
  %4625 = vmatpush2.msra.mxu0 0.0
  %4626 = vmatprep.subr.mxu0 0.0
  %4627 = vmatpush2.msra.mxu0 0.0
  %4628 = vmatprep.subr.mxu0 0.0
  %4629 = vmatpush2.msra.mxu0 0.0
  %4630 = vmatprep.subr.mxu0 0.0
  %4631 = vmatpush2.msra.mxu0 0.0
  %4632 = vmatprep.subr.mxu0 0.0
  %4633 = vmatpush2.msra.mxu0 0.0
  %4634 = vmatprep.subr.mxu0 0.0
  %4635 = vmatpush2.msra.mxu0 0.0
  %4636 = vmatprep.subr.mxu0 0.0
  %4637 = vmatpush2.msra.mxu0 0.0
  %4638 = vmatprep.subr.mxu0 0.0
  %4639 = vmatpush2.msra.mxu0 0.0
  %4640 = vmatprep.subr.mxu0 0.0
  %4641 = vmatpush2.msra.mxu0 0.0
  %4642 = vmatprep.subr.mxu0 0.0
  %4643 = vmatpush2.msra.mxu0 0.0
  %4644 = vmatprep.subr.mxu0 0.0
  %4645 = vmatpush2.msra.mxu0 0.0
  %4646 = vmatprep.subr.mxu0 0.0
  %4647 = vmatpush2.msra.mxu0 0.0
  %4648 = vmatprep.subr.mxu0 0.0
  %4649 = vmatpush2.msra.mxu0 0.0
  %4650 = vmatprep.mubr.f32.mxu0 0.0
  %4651 = vmatmul.mubr.f32.gmra.mxu0 %v4584
  %v4652 = vpop.f32.mrf.mxu0
  %v4653 = vadd.f32 0.0, %v4652
  %v4654 = vpop.f32.mrf.mxu0
  %4655 = vdwg.mxu0
  %v4658 = vsel %vm1208, %v3951, %v3944
  %v4659 = vsel %vm686, %v4658, 0
  %4661 = vmatprep.subr.mxu0 0.0
  %4662 = vmatpush1.msra.mxu0 0.0
  %4663 = vmatprep.subr.mxu0 0.0
  %4664 = vmatpush1.msra.mxu0 0.0
  %4665 = vmatprep.subr.mxu0 0.0
  %4666 = vmatpush1.msra.mxu0 0.0
  %4667 = vmatprep.subr.mxu0 0.0
  %4668 = vmatpush1.msra.mxu0 0.0
  %4669 = vmatprep.subr.mxu0 0.0
  %4670 = vmatpush1.msra.mxu0 0.0
  %4671 = vmatprep.subr.mxu0 0.0
  %4672 = vmatpush1.msra.mxu0 0.0
  %4673 = vmatprep.subr.mxu0 0.0
  %4674 = vmatpush1.msra.mxu0 0.0
  %4675 = vmatprep.subr.mxu0 0.0
  %4676 = vmatpush1.msra.mxu0 0.0
  %4677 = vmatprep.subr.mxu0 0.0
  %4678 = vmatpush1.msra.mxu0 0.0
  %4679 = vmatprep.subr.mxu0 0.0
  %4680 = vmatpush1.msra.mxu0 0.0
  %4681 = vmatprep.subr.mxu0 0.0
  %4682 = vmatpush1.msra.mxu0 0.0
  %4683 = vmatprep.subr.mxu0 0.0
  %4684 = vmatpush1.msra.mxu0 0.0
  %4685 = vmatprep.subr.mxu0 0.0
  %4686 = vmatpush1.msra.mxu0 %v4576
  %4687 = vmatprep.subr.mxu0 0.0
  %4688 = vmatpush1.msra.mxu0 %v4575
  %4689 = vmatprep.subr.mxu0 0.0
  %4690 = vmatpush1.msra.mxu0 %v4574
  %4691 = vmatprep.subr.mxu0 0.0
  %4692 = vmatpush1.msra.mxu0 %v4573
  %4693 = vmatprep.subr.mxu0 0.0
  %4694 = vmatpush2.msra.mxu0 0.0
  %4695 = vmatprep.subr.mxu0 0.0
  %4696 = vmatpush2.msra.mxu0 0.0
  %4697 = vmatprep.subr.mxu0 0.0
  %4698 = vmatpush2.msra.mxu0 0.0
  %4699 = vmatprep.subr.mxu0 0.0
  %4700 = vmatpush2.msra.mxu0 0.0
  %4701 = vmatprep.subr.mxu0 0.0
  %4702 = vmatpush2.msra.mxu0 0.0
  %4703 = vmatprep.subr.mxu0 0.0
  %4704 = vmatpush2.msra.mxu0 0.0
  %4705 = vmatprep.subr.mxu0 0.0
  %4706 = vmatpush2.msra.mxu0 0.0
  %4707 = vmatprep.subr.mxu0 0.0
  %4708 = vmatpush2.msra.mxu0 0.0
  %4709 = vmatprep.subr.mxu0 0.0
  %4710 = vmatpush2.msra.mxu0 0.0
  %4711 = vmatprep.subr.mxu0 0.0
  %4712 = vmatpush2.msra.mxu0 0.0
  %4713 = vmatprep.subr.mxu0 0.0
  %4714 = vmatpush2.msra.mxu0 0.0
  %4715 = vmatprep.subr.mxu0 0.0
  %4716 = vmatpush2.msra.mxu0 0.0
  %4717 = vmatprep.subr.mxu0 0.0
  %4718 = vmatpush2.msra.mxu0 0.0
  %4719 = vmatprep.subr.mxu0 0.0
  %4720 = vmatpush2.msra.mxu0 0.0
  %4721 = vmatprep.subr.mxu0 0.0
  %4722 = vmatpush2.msra.mxu0 0.0
  %4723 = vmatprep.subr.mxu0 0.0
  %4724 = vmatpush2.msra.mxu0 0.0
  %4725 = vmatprep.mubr.f32.mxu0 0.0
  %4726 = vmatmul.mubr.f32.gmra.mxu0 %v4659
  %v4727 = vpop.f32.mrf.mxu0
  %v4728 = vadd.f32 %v4653, %v4727
  %v4729 = vpop.f32.mrf.mxu0
  %4730 = vdwg.mxu0
  %v4731 = vld [vmem:[%s10 + $0x12] sm:$0x1]
  %v4732 = vlaneseq
  %v4733 = vshrl.u32 %v4732, 7
  %v4734 = vsub.s32 0, %v4733
  %v4735 = vrot.slane %v4731, %v4734
  %v4736 = vadd.f32 %v4728, %v4735
  %v4737 = vmax.f32 %v4736, 0.0
  %v4738 = vld [vmem:[%s9 + $0x300] sm:$0xff]
  %v4739 = vld [vmem:[%s9 + $0x308] sm:$0xff]
  %v4740 = vld [vmem:[%s9 + $0x310] sm:$0xff]
  %v4741 = vld [vmem:[%s9 + $0x318] sm:$0xff]
  %v4742 = vld [vmem:[%s9 + $0x320] sm:$0xff]
  %v4743 = vld [vmem:[%s9 + $0x328] sm:$0xff]
  %v4744 = vld [vmem:[%s9 + $0x330] sm:$0xff]
  %v4745 = vld [vmem:[%s9 + $0x338] sm:$0xff]
  %4746 = vmatprep.subr.mxu0 0.0
  %4747 = vmatpush1.msra.mxu0 0.0
  %4748 = vmatprep.subr.mxu0 0.0
  %4749 = vmatpush1.msra.mxu0 0.0
  %4750 = vmatprep.subr.mxu0 0.0
  %4751 = vmatpush1.msra.mxu0 0.0
  %4752 = vmatprep.subr.mxu0 0.0
  %4753 = vmatpush1.msra.mxu0 0.0
  %4754 = vmatprep.subr.mxu0 0.0
  %4755 = vmatpush1.msra.mxu0 0.0
  %4756 = vmatprep.subr.mxu0 0.0
  %4757 = vmatpush1.msra.mxu0 0.0
  %4758 = vmatprep.subr.mxu0 0.0
  %4759 = vmatpush1.msra.mxu0 0.0
  %4760 = vmatprep.subr.mxu0 0.0
  %4761 = vmatpush1.msra.mxu0 0.0
  %4762 = vmatprep.subr.mxu0 0.0
  %4763 = vmatpush1.msra.mxu0 0.0
  %4764 = vmatprep.subr.mxu0 0.0
  %4765 = vmatpush1.msra.mxu0 0.0
  %4766 = vmatprep.subr.mxu0 0.0
  %4767 = vmatpush1.msra.mxu0 0.0
  %4768 = vmatprep.subr.mxu0 0.0
  %4769 = vmatpush1.msra.mxu0 0.0
  %4770 = vmatprep.subr.mxu0 0.0
  %4771 = vmatpush1.msra.mxu0 %v4745
  %4772 = vmatprep.subr.mxu0 0.0
  %4773 = vmatpush1.msra.mxu0 %v4744
  %4774 = vmatprep.subr.mxu0 0.0
  %4775 = vmatpush1.msra.mxu0 %v4743
  %4776 = vmatprep.subr.mxu0 0.0
  %4777 = vmatpush1.msra.mxu0 %v4742
  %4778 = vmatprep.subr.mxu0 0.0
  %4779 = vmatpush2.msra.mxu0 0.0
  %4780 = vmatprep.subr.mxu0 0.0
  %4781 = vmatpush2.msra.mxu0 0.0
  %4782 = vmatprep.subr.mxu0 0.0
  %4783 = vmatpush2.msra.mxu0 0.0
  %4784 = vmatprep.subr.mxu0 0.0
  %4785 = vmatpush2.msra.mxu0 0.0
  %4786 = vmatprep.subr.mxu0 0.0
  %4787 = vmatpush2.msra.mxu0 0.0
  %4788 = vmatprep.subr.mxu0 0.0
  %4789 = vmatpush2.msra.mxu0 0.0
  %4790 = vmatprep.subr.mxu0 0.0
  %4791 = vmatpush2.msra.mxu0 0.0
  %4792 = vmatprep.subr.mxu0 0.0
  %4793 = vmatpush2.msra.mxu0 0.0
  %4794 = vmatprep.subr.mxu0 0.0
  %4795 = vmatpush2.msra.mxu0 0.0
  %4796 = vmatprep.subr.mxu0 0.0
  %4797 = vmatpush2.msra.mxu0 0.0
  %4798 = vmatprep.subr.mxu0 0.0
  %4799 = vmatpush2.msra.mxu0 0.0
  %4800 = vmatprep.subr.mxu0 0.0
  %4801 = vmatpush2.msra.mxu0 0.0
  %4802 = vmatprep.subr.mxu0 0.0
  %4803 = vmatpush2.msra.mxu0 0.0
  %4804 = vmatprep.subr.mxu0 0.0
  %4805 = vmatpush2.msra.mxu0 0.0
  %4806 = vmatprep.subr.mxu0 0.0
  %4807 = vmatpush2.msra.mxu0 0.0
  %4808 = vmatprep.subr.mxu0 0.0
  %4809 = vmatpush2.msra.mxu0 0.0
  %4810 = vmatprep.mubr.f32.mxu0 0.0
  %4811 = vmatmul.mubr.f32.gmra.mxu0 %v861
  %v4812 = vpop.f32.mrf.mxu0
  %v4813 = vadd.f32 0.0, %v4812
  %v4814 = vpop.f32.mrf.mxu0
  %4815 = vdwg.mxu0
  %v4817 = vsel %vm686, %v4737, 0
  %4819 = vmatprep.subr.mxu0 0.0
  %4820 = vmatpush1.msra.mxu0 0.0
  %4821 = vmatprep.subr.mxu0 0.0
  %4822 = vmatpush1.msra.mxu0 0.0
  %4823 = vmatprep.subr.mxu0 0.0
  %4824 = vmatpush1.msra.mxu0 0.0
  %4825 = vmatprep.subr.mxu0 0.0
  %4826 = vmatpush1.msra.mxu0 0.0
  %4827 = vmatprep.subr.mxu0 0.0
  %4828 = vmatpush1.msra.mxu0 0.0
  %4829 = vmatprep.subr.mxu0 0.0
  %4830 = vmatpush1.msra.mxu0 0.0
  %4831 = vmatprep.subr.mxu0 0.0
  %4832 = vmatpush1.msra.mxu0 0.0
  %4833 = vmatprep.subr.mxu0 0.0
  %4834 = vmatpush1.msra.mxu0 0.0
  %4835 = vmatprep.subr.mxu0 0.0
  %4836 = vmatpush1.msra.mxu0 0.0
  %4837 = vmatprep.subr.mxu0 0.0
  %4838 = vmatpush1.msra.mxu0 0.0
  %4839 = vmatprep.subr.mxu0 0.0
  %4840 = vmatpush1.msra.mxu0 0.0
  %4841 = vmatprep.subr.mxu0 0.0
  %4842 = vmatpush1.msra.mxu0 0.0
  %4843 = vmatprep.subr.mxu0 0.0
  %4844 = vmatpush1.msra.mxu0 %v4741
  %4845 = vmatprep.subr.mxu0 0.0
  %4846 = vmatpush1.msra.mxu0 %v4740
  %4847 = vmatprep.subr.mxu0 0.0
  %4848 = vmatpush1.msra.mxu0 %v4739
  %4849 = vmatprep.subr.mxu0 0.0
  %4850 = vmatpush1.msra.mxu0 %v4738
  %4851 = vmatprep.subr.mxu0 0.0
  %4852 = vmatpush2.msra.mxu0 0.0
  %4853 = vmatprep.subr.mxu0 0.0
  %4854 = vmatpush2.msra.mxu0 0.0
  %4855 = vmatprep.subr.mxu0 0.0
  %4856 = vmatpush2.msra.mxu0 0.0
  %4857 = vmatprep.subr.mxu0 0.0
  %4858 = vmatpush2.msra.mxu0 0.0
  %4859 = vmatprep.subr.mxu0 0.0
  %4860 = vmatpush2.msra.mxu0 0.0
  %4861 = vmatprep.subr.mxu0 0.0
  %4862 = vmatpush2.msra.mxu0 0.0
  %4863 = vmatprep.subr.mxu0 0.0
  %4864 = vmatpush2.msra.mxu0 0.0
  %4865 = vmatprep.subr.mxu0 0.0
  %4866 = vmatpush2.msra.mxu0 0.0
  %4867 = vmatprep.subr.mxu0 0.0
  %4868 = vmatpush2.msra.mxu0 0.0
  %4869 = vmatprep.subr.mxu0 0.0
  %4870 = vmatpush2.msra.mxu0 0.0
  %4871 = vmatprep.subr.mxu0 0.0
  %4872 = vmatpush2.msra.mxu0 0.0
  %4873 = vmatprep.subr.mxu0 0.0
  %4874 = vmatpush2.msra.mxu0 0.0
  %4875 = vmatprep.subr.mxu0 0.0
  %4876 = vmatpush2.msra.mxu0 0.0
  %4877 = vmatprep.subr.mxu0 0.0
  %4878 = vmatpush2.msra.mxu0 0.0
  %4879 = vmatprep.subr.mxu0 0.0
  %4880 = vmatpush2.msra.mxu0 0.0
  %4881 = vmatprep.subr.mxu0 0.0
  %4882 = vmatpush2.msra.mxu0 0.0
  %4883 = vmatprep.mubr.f32.mxu0 0.0
  %4884 = vmatmul.mubr.f32.gmra.mxu0 %v4817
  %v4885 = vpop.f32.mrf.mxu0
  %v4886 = vadd.f32 %v4813, %v4885
  %v4887 = vpop.f32.mrf.mxu0
  %4888 = vdwg.mxu0
  %v4889 = vld [vmem:[%s10 + $0x13] sm:$0x1]
  %v4890 = vlaneseq
  %v4891 = vshrl.u32 %v4890, 7
  %v4892 = vsub.s32 0, %v4891
  %v4893 = vrot.slane %v4889, %v4892
  %v4894 = vadd.f32 %v4886, %v4893
  %v4895 = vld [vmem:[%s9 + $0x340] sm:$0xff]
  %v4896 = vld [vmem:[%s9 + $0x348] sm:$0xff]
  %v4897 = vld [vmem:[%s9 + $0x350] sm:$0xff]
  %v4898 = vld [vmem:[%s9 + $0x358] sm:$0xff]
  %v4899 = vld [vmem:[%s10 + $0x14] sm:$0x1]
  %v4900 = vlaneseq
  %v4901 = vshrl.u32 %v4900, 7
  %v4902 = vsub.s32 0, %v4901
  %v4903 = vrot.slane %v4899, %v4902
  %v4905 = vsel %vm686, %v4894, 0
  %4907 = vmatprep.subr.mxu0 0.0
  %4908 = vmatpush1.msra.mxu0 0.0
  %4909 = vmatprep.subr.mxu0 0.0
  %4910 = vmatpush1.msra.mxu0 0.0
  %4911 = vmatprep.subr.mxu0 0.0
  %4912 = vmatpush1.msra.mxu0 0.0
  %4913 = vmatprep.subr.mxu0 0.0
  %4914 = vmatpush1.msra.mxu0 0.0
  %4915 = vmatprep.subr.mxu0 0.0
  %4916 = vmatpush1.msra.mxu0 0.0
  %4917 = vmatprep.subr.mxu0 0.0
  %4918 = vmatpush1.msra.mxu0 0.0
  %4919 = vmatprep.subr.mxu0 0.0
  %4920 = vmatpush1.msra.mxu0 0.0
  %4921 = vmatprep.subr.mxu0 0.0
  %4922 = vmatpush1.msra.mxu0 0.0
  %4923 = vmatprep.subr.mxu0 0.0
  %4924 = vmatpush1.msra.mxu0 0.0
  %4925 = vmatprep.subr.mxu0 0.0
  %4926 = vmatpush1.msra.mxu0 0.0
  %4927 = vmatprep.subr.mxu0 0.0
  %4928 = vmatpush1.msra.mxu0 0.0
  %4929 = vmatprep.subr.mxu0 0.0
  %4930 = vmatpush1.msra.mxu0 0.0
  %4931 = vmatprep.subr.mxu0 0.0
  %4932 = vmatpush1.msra.mxu0 %v4898
  %4933 = vmatprep.subr.mxu0 0.0
  %4934 = vmatpush1.msra.mxu0 %v4897
  %4935 = vmatprep.subr.mxu0 0.0
  %4936 = vmatpush1.msra.mxu0 %v4896
  %4937 = vmatprep.subr.mxu0 0.0
  %4938 = vmatpush1.msra.mxu0 %v4895
  %4939 = vmatprep.subr.mxu0 0.0
  %4940 = vmatpush2.msra.mxu0 0.0
  %4941 = vmatprep.subr.mxu0 0.0
  %4942 = vmatpush2.msra.mxu0 0.0
  %4943 = vmatprep.subr.mxu0 0.0
  %4944 = vmatpush2.msra.mxu0 0.0
  %4945 = vmatprep.subr.mxu0 0.0
  %4946 = vmatpush2.msra.mxu0 0.0
  %4947 = vmatprep.subr.mxu0 0.0
  %4948 = vmatpush2.msra.mxu0 0.0
  %4949 = vmatprep.subr.mxu0 0.0
  %4950 = vmatpush2.msra.mxu0 0.0
  %4951 = vmatprep.subr.mxu0 0.0
  %4952 = vmatpush2.msra.mxu0 0.0
  %4953 = vmatprep.subr.mxu0 0.0
  %4954 = vmatpush2.msra.mxu0 0.0
  %4955 = vmatprep.subr.mxu0 0.0
  %4956 = vmatpush2.msra.mxu0 0.0
  %4957 = vmatprep.subr.mxu0 0.0
  %4958 = vmatpush2.msra.mxu0 0.0
  %4959 = vmatprep.subr.mxu0 0.0
  %4960 = vmatpush2.msra.mxu0 0.0
  %4961 = vmatprep.subr.mxu0 0.0
  %4962 = vmatpush2.msra.mxu0 0.0
  %4963 = vmatprep.subr.mxu0 0.0
  %4964 = vmatpush2.msra.mxu0 0.0
  %4965 = vmatprep.subr.mxu0 0.0
  %4966 = vmatpush2.msra.mxu0 0.0
  %4967 = vmatprep.subr.mxu0 0.0
  %4968 = vmatpush2.msra.mxu0 0.0
  %4969 = vmatprep.subr.mxu0 0.0
  %4970 = vmatpush2.msra.mxu0 0.0
  %4971 = vmatprep.mubr.f32.mxu0 0.0
  %4972 = vmatmul.mubr.f32.gmra.mxu0 %v4905
  %v4973 = vpop.f32.mrf.mxu0
  %v4974 = vadd.f32 %v4903, %v4973
  %v4975 = vpop.f32.mrf.mxu0
  %4976 = vdwg.mxu0
  %v4977 = vld [vmem:[%s9 + $0x360] sm:$0xff]
  %v4978 = vld [vmem:[%s9 + $0x368] sm:$0xff]
  %v4979 = vld [vmem:[%s9 + $0x370] sm:$0xff]
  %v4980 = vld [vmem:[%s9 + $0x378] sm:$0xff]
  %v4981 = vld [vmem:[%s10 + $0x15] sm:$0x1]
  %v4982 = vlaneseq
  %v4983 = vshrl.u32 %v4982, 7
  %v4984 = vsub.s32 0, %v4983
  %v4985 = vrot.slane %v4981, %v4984
  %4986 = vmatprep.subr.mxu0 0.0
  %4987 = vmatpush1.msra.mxu0 0.0
  %4988 = vmatprep.subr.mxu0 0.0
  %4989 = vmatpush1.msra.mxu0 0.0
  %4990 = vmatprep.subr.mxu0 0.0
  %4991 = vmatpush1.msra.mxu0 0.0
  %4992 = vmatprep.subr.mxu0 0.0
  %4993 = vmatpush1.msra.mxu0 0.0
  %4994 = vmatprep.subr.mxu0 0.0
  %4995 = vmatpush1.msra.mxu0 0.0
  %4996 = vmatprep.subr.mxu0 0.0
  %4997 = vmatpush1.msra.mxu0 0.0
  %4998 = vmatprep.subr.mxu0 0.0
  %4999 = vmatpush1.msra.mxu0 0.0
  %5000 = vmatprep.subr.mxu0 0.0
  %5001 = vmatpush1.msra.mxu0 0.0
  %5002 = vmatprep.subr.mxu0 0.0
  %5003 = vmatpush1.msra.mxu0 0.0
  %5004 = vmatprep.subr.mxu0 0.0
  %5005 = vmatpush1.msra.mxu0 0.0
  %5006 = vmatprep.subr.mxu0 0.0
  %5007 = vmatpush1.msra.mxu0 0.0
  %5008 = vmatprep.subr.mxu0 0.0
  %5009 = vmatpush1.msra.mxu0 0.0
  %5010 = vmatprep.subr.mxu0 0.0
  %5011 = vmatpush1.msra.mxu0 %v4980
  %5012 = vmatprep.subr.mxu0 0.0
  %5013 = vmatpush1.msra.mxu0 %v4979
  %5014 = vmatprep.subr.mxu0 0.0
  %5015 = vmatpush1.msra.mxu0 %v4978
  %5016 = vmatprep.subr.mxu0 0.0
  %5017 = vmatpush1.msra.mxu0 %v4977
  %5018 = vmatprep.subr.mxu0 0.0
  %5019 = vmatpush2.msra.mxu0 0.0
  %5020 = vmatprep.subr.mxu0 0.0
  %5021 = vmatpush2.msra.mxu0 0.0
  %5022 = vmatprep.subr.mxu0 0.0
  %5023 = vmatpush2.msra.mxu0 0.0
  %5024 = vmatprep.subr.mxu0 0.0
  %5025 = vmatpush2.msra.mxu0 0.0
  %5026 = vmatprep.subr.mxu0 0.0
  %5027 = vmatpush2.msra.mxu0 0.0
  %5028 = vmatprep.subr.mxu0 0.0
  %5029 = vmatpush2.msra.mxu0 0.0
  %5030 = vmatprep.subr.mxu0 0.0
  %5031 = vmatpush2.msra.mxu0 0.0
  %5032 = vmatprep.subr.mxu0 0.0
  %5033 = vmatpush2.msra.mxu0 0.0
  %5034 = vmatprep.subr.mxu0 0.0
  %5035 = vmatpush2.msra.mxu0 0.0
  %5036 = vmatprep.subr.mxu0 0.0
  %5037 = vmatpush2.msra.mxu0 0.0
  %5038 = vmatprep.subr.mxu0 0.0
  %5039 = vmatpush2.msra.mxu0 0.0
  %5040 = vmatprep.subr.mxu0 0.0
  %5041 = vmatpush2.msra.mxu0 0.0
  %5042 = vmatprep.subr.mxu0 0.0
  %5043 = vmatpush2.msra.mxu0 0.0
  %5044 = vmatprep.subr.mxu0 0.0
  %5045 = vmatpush2.msra.mxu0 0.0
  %5046 = vmatprep.subr.mxu0 0.0
  %5047 = vmatpush2.msra.mxu0 0.0
  %5048 = vmatprep.subr.mxu0 0.0
  %5049 = vmatpush2.msra.mxu0 0.0
  %5050 = vmatprep.mubr.f32.mxu0 0.0
  %5051 = vmatmul.mubr.f32.gmra.mxu0 %v4905
  %v5052 = vpop.f32.mrf.mxu0
  %v5053 = vadd.f32 %v4985, %v5052
  %v5054 = vpop.f32.mrf.mxu0
  %5055 = vdwg.mxu0
  %v5056 = vld [vmem:[%s10 + $0x24] sm:$0x1]
  %v5057 = vld [vmem:[%s9 + $0x440] sm:$0xff]
  %v5058 = vld [vmem:[%s9 + $0x448] sm:$0xff]
  %v5059 = vld [vmem:[%s9 + $0x450] sm:$0xff]
  %v5060 = vld [vmem:[%s9 + $0x458] sm:$0xff]
  %v5061 = vld [vmem:[%s9 + $0x460] sm:$0xff]
  %v5062 = vld [vmem:[%s9 + $0x468] sm:$0xff]
  %v5063 = vld [vmem:[%s9 + $0x470] sm:$0xff]
  %v5064 = vld [vmem:[%s9 + $0x478] sm:$0xff]
  %5065 = vmatprep.subr.mxu0 0.0
  %5066 = vmatpush1.msra.mxu0 0.0
  %5067 = vmatprep.subr.mxu0 0.0
  %5068 = vmatpush1.msra.mxu0 0.0
  %5069 = vmatprep.subr.mxu0 0.0
  %5070 = vmatpush1.msra.mxu0 0.0
  %5071 = vmatprep.subr.mxu0 0.0
  %5072 = vmatpush1.msra.mxu0 0.0
  %5073 = vmatprep.subr.mxu0 0.0
  %5074 = vmatpush1.msra.mxu0 0.0
  %5075 = vmatprep.subr.mxu0 0.0
  %5076 = vmatpush1.msra.mxu0 0.0
  %5077 = vmatprep.subr.mxu0 0.0
  %5078 = vmatpush1.msra.mxu0 0.0
  %5079 = vmatprep.subr.mxu0 0.0
  %5080 = vmatpush1.msra.mxu0 0.0
  %5081 = vmatprep.subr.mxu0 0.0
  %5082 = vmatpush1.msra.mxu0 0.0
  %5083 = vmatprep.subr.mxu0 0.0
  %5084 = vmatpush1.msra.mxu0 0.0
  %5085 = vmatprep.subr.mxu0 0.0
  %5086 = vmatpush1.msra.mxu0 0.0
  %5087 = vmatprep.subr.mxu0 0.0
  %5088 = vmatpush1.msra.mxu0 0.0
  %5089 = vmatprep.subr.mxu0 0.0
  %5090 = vmatpush1.msra.mxu0 %v5064
  %5091 = vmatprep.subr.mxu0 0.0
  %5092 = vmatpush1.msra.mxu0 %v5063
  %5093 = vmatprep.subr.mxu0 0.0
  %5094 = vmatpush1.msra.mxu0 %v5062
  %5095 = vmatprep.subr.mxu0 0.0
  %5096 = vmatpush1.msra.mxu0 %v5061
  %5097 = vmatprep.subr.mxu0 0.0
  %5098 = vmatpush2.msra.mxu0 0.0
  %5099 = vmatprep.subr.mxu0 0.0
  %5100 = vmatpush2.msra.mxu0 0.0
  %5101 = vmatprep.subr.mxu0 0.0
  %5102 = vmatpush2.msra.mxu0 0.0
  %5103 = vmatprep.subr.mxu0 0.0
  %5104 = vmatpush2.msra.mxu0 0.0
  %5105 = vmatprep.subr.mxu0 0.0
  %5106 = vmatpush2.msra.mxu0 0.0
  %5107 = vmatprep.subr.mxu0 0.0
  %5108 = vmatpush2.msra.mxu0 0.0
  %5109 = vmatprep.subr.mxu0 0.0
  %5110 = vmatpush2.msra.mxu0 0.0
  %5111 = vmatprep.subr.mxu0 0.0
  %5112 = vmatpush2.msra.mxu0 0.0
  %5113 = vmatprep.subr.mxu0 0.0
  %5114 = vmatpush2.msra.mxu0 0.0
  %5115 = vmatprep.subr.mxu0 0.0
  %5116 = vmatpush2.msra.mxu0 0.0
  %5117 = vmatprep.subr.mxu0 0.0
  %5118 = vmatpush2.msra.mxu0 0.0
  %5119 = vmatprep.subr.mxu0 0.0
  %5120 = vmatpush2.msra.mxu0 0.0
  %5121 = vmatprep.subr.mxu0 0.0
  %5122 = vmatpush2.msra.mxu0 0.0
  %5123 = vmatprep.subr.mxu0 0.0
  %5124 = vmatpush2.msra.mxu0 0.0
  %5125 = vmatprep.subr.mxu0 0.0
  %5126 = vmatpush2.msra.mxu0 0.0
  %5127 = vmatprep.subr.mxu0 0.0
  %5128 = vmatpush2.msra.mxu0 0.0
  %5129 = vmatprep.mubr.f32.mxu0 0.0
  %5130 = vmatmul.mubr.f32.gmra.mxu0 %v2496
  %v5131 = vpop.f32.mrf.mxu0
  %v5132 = vadd.f32 0.0, %v5131
  %v5133 = vpop.f32.mrf.mxu0
  %5134 = vdwg.mxu0
  %v5136 = vsel %vm686, %v4974, 0
  %5138 = vmatprep.subr.mxu0 0.0
  %5139 = vmatpush1.msra.mxu0 0.0
  %5140 = vmatprep.subr.mxu0 0.0
  %5141 = vmatpush1.msra.mxu0 0.0
  %5142 = vmatprep.subr.mxu0 0.0
  %5143 = vmatpush1.msra.mxu0 0.0
  %5144 = vmatprep.subr.mxu0 0.0
  %5145 = vmatpush1.msra.mxu0 0.0
  %5146 = vmatprep.subr.mxu0 0.0
  %5147 = vmatpush1.msra.mxu0 0.0
  %5148 = vmatprep.subr.mxu0 0.0
  %5149 = vmatpush1.msra.mxu0 0.0
  %5150 = vmatprep.subr.mxu0 0.0
  %5151 = vmatpush1.msra.mxu0 0.0
  %5152 = vmatprep.subr.mxu0 0.0
  %5153 = vmatpush1.msra.mxu0 0.0
  %5154 = vmatprep.subr.mxu0 0.0
  %5155 = vmatpush1.msra.mxu0 0.0
  %5156 = vmatprep.subr.mxu0 0.0
  %5157 = vmatpush1.msra.mxu0 0.0
  %5158 = vmatprep.subr.mxu0 0.0
  %5159 = vmatpush1.msra.mxu0 0.0
  %5160 = vmatprep.subr.mxu0 0.0
  %5161 = vmatpush1.msra.mxu0 0.0
  %5162 = vmatprep.subr.mxu0 0.0
  %5163 = vmatpush1.msra.mxu0 %v5060
  %5164 = vmatprep.subr.mxu0 0.0
  %5165 = vmatpush1.msra.mxu0 %v5059
  %5166 = vmatprep.subr.mxu0 0.0
  %5167 = vmatpush1.msra.mxu0 %v5058
  %5168 = vmatprep.subr.mxu0 0.0
  %5169 = vmatpush1.msra.mxu0 %v5057
  %5170 = vmatprep.subr.mxu0 0.0
  %5171 = vmatpush2.msra.mxu0 0.0
  %5172 = vmatprep.subr.mxu0 0.0
  %5173 = vmatpush2.msra.mxu0 0.0
  %5174 = vmatprep.subr.mxu0 0.0
  %5175 = vmatpush2.msra.mxu0 0.0
  %5176 = vmatprep.subr.mxu0 0.0
  %5177 = vmatpush2.msra.mxu0 0.0
  %5178 = vmatprep.subr.mxu0 0.0
  %5179 = vmatpush2.msra.mxu0 0.0
  %5180 = vmatprep.subr.mxu0 0.0
  %5181 = vmatpush2.msra.mxu0 0.0
  %5182 = vmatprep.subr.mxu0 0.0
  %5183 = vmatpush2.msra.mxu0 0.0
  %5184 = vmatprep.subr.mxu0 0.0
  %5185 = vmatpush2.msra.mxu0 0.0
  %5186 = vmatprep.subr.mxu0 0.0
  %5187 = vmatpush2.msra.mxu0 0.0
  %5188 = vmatprep.subr.mxu0 0.0
  %5189 = vmatpush2.msra.mxu0 0.0
  %5190 = vmatprep.subr.mxu0 0.0
  %5191 = vmatpush2.msra.mxu0 0.0
  %5192 = vmatprep.subr.mxu0 0.0
  %5193 = vmatpush2.msra.mxu0 0.0
  %5194 = vmatprep.subr.mxu0 0.0
  %5195 = vmatpush2.msra.mxu0 0.0
  %5196 = vmatprep.subr.mxu0 0.0
  %5197 = vmatpush2.msra.mxu0 0.0
  %5198 = vmatprep.subr.mxu0 0.0
  %5199 = vmatpush2.msra.mxu0 0.0
  %5200 = vmatprep.subr.mxu0 0.0
  %5201 = vmatpush2.msra.mxu0 0.0
  %5202 = vmatprep.mubr.f32.mxu0 0.0
  %5203 = vmatmul.mubr.f32.gmra.mxu0 %v5136
  %v5204 = vpop.f32.mrf.mxu0
  %v5205 = vadd.f32 %v5132, %v5204
  %v5206 = vpop.f32.mrf.mxu0
  %5207 = vdwg.mxu0
  %v5208 = vld [vmem:[%s9 + $0x480] sm:$0xff]
  %v5209 = vld [vmem:[%s9 + $0x488] sm:$0xff]
  %v5210 = vld [vmem:[%s9 + $0x490] sm:$0xff]
  %v5211 = vld [vmem:[%s9 + $0x498] sm:$0xff]
  %v5213 = vsel %vm686, %v3259, 0
  %5215 = vmatprep.subr.mxu0 0.0
  %5216 = vmatpush1.msra.mxu0 0.0
  %5217 = vmatprep.subr.mxu0 0.0
  %5218 = vmatpush1.msra.mxu0 0.0
  %5219 = vmatprep.subr.mxu0 0.0
  %5220 = vmatpush1.msra.mxu0 0.0
  %5221 = vmatprep.subr.mxu0 0.0
  %5222 = vmatpush1.msra.mxu0 0.0
  %5223 = vmatprep.subr.mxu0 0.0
  %5224 = vmatpush1.msra.mxu0 0.0
  %5225 = vmatprep.subr.mxu0 0.0
  %5226 = vmatpush1.msra.mxu0 0.0
  %5227 = vmatprep.subr.mxu0 0.0
  %5228 = vmatpush1.msra.mxu0 0.0
  %5229 = vmatprep.subr.mxu0 0.0
  %5230 = vmatpush1.msra.mxu0 0.0
  %5231 = vmatprep.subr.mxu0 0.0
  %5232 = vmatpush1.msra.mxu0 0.0
  %5233 = vmatprep.subr.mxu0 0.0
  %5234 = vmatpush1.msra.mxu0 0.0
  %5235 = vmatprep.subr.mxu0 0.0
  %5236 = vmatpush1.msra.mxu0 0.0
  %5237 = vmatprep.subr.mxu0 0.0
  %5238 = vmatpush1.msra.mxu0 0.0
  %5239 = vmatprep.subr.mxu0 0.0
  %5240 = vmatpush1.msra.mxu0 %v5211
  %5241 = vmatprep.subr.mxu0 0.0
  %5242 = vmatpush1.msra.mxu0 %v5210
  %5243 = vmatprep.subr.mxu0 0.0
  %5244 = vmatpush1.msra.mxu0 %v5209
  %5245 = vmatprep.subr.mxu0 0.0
  %5246 = vmatpush1.msra.mxu0 %v5208
  %5247 = vmatprep.subr.mxu0 0.0
  %5248 = vmatpush2.msra.mxu0 0.0
  %5249 = vmatprep.subr.mxu0 0.0
  %5250 = vmatpush2.msra.mxu0 0.0
  %5251 = vmatprep.subr.mxu0 0.0
  %5252 = vmatpush2.msra.mxu0 0.0
  %5253 = vmatprep.subr.mxu0 0.0
  %5254 = vmatpush2.msra.mxu0 0.0
  %5255 = vmatprep.subr.mxu0 0.0
  %5256 = vmatpush2.msra.mxu0 0.0
  %5257 = vmatprep.subr.mxu0 0.0
  %5258 = vmatpush2.msra.mxu0 0.0
  %5259 = vmatprep.subr.mxu0 0.0
  %5260 = vmatpush2.msra.mxu0 0.0
  %5261 = vmatprep.subr.mxu0 0.0
  %5262 = vmatpush2.msra.mxu0 0.0
  %5263 = vmatprep.subr.mxu0 0.0
  %5264 = vmatpush2.msra.mxu0 0.0
  %5265 = vmatprep.subr.mxu0 0.0
  %5266 = vmatpush2.msra.mxu0 0.0
  %5267 = vmatprep.subr.mxu0 0.0
  %5268 = vmatpush2.msra.mxu0 0.0
  %5269 = vmatprep.subr.mxu0 0.0
  %5270 = vmatpush2.msra.mxu0 0.0
  %5271 = vmatprep.subr.mxu0 0.0
  %5272 = vmatpush2.msra.mxu0 0.0
  %5273 = vmatprep.subr.mxu0 0.0
  %5274 = vmatpush2.msra.mxu0 0.0
  %5275 = vmatprep.subr.mxu0 0.0
  %5276 = vmatpush2.msra.mxu0 0.0
  %5277 = vmatprep.subr.mxu0 0.0
  %5278 = vmatpush2.msra.mxu0 0.0
  %5279 = vmatprep.mubr.f32.mxu0 0.0
  %5280 = vmatmul.mubr.f32.gmra.mxu0 %v5213
  %v5281 = vpop.f32.mrf.mxu0
  %v5282 = vadd.f32 0.0, %v5281
  %v5283 = vpop.f32.mrf.mxu0
  %5284 = vdwg.mxu0
  %v5285 = vadd.f32 %v5205, %v5282
  %v5286 = vld [vmem:[%s10 + $0x1a] sm:$0x1]
  %v5287 = vlaneseq
  %v5288 = vshrl.u32 %v5287, 7
  %v5289 = vsub.s32 0, %v5288
  %v5290 = vrot.slane %v5286, %v5289
  %v5291 = vadd.f32 %v5285, %v5290
  %v5292 = vmax.f32 %v5291, 0.0
  %v5293 = vld [vmem:[%s10 + $0x1b] sm:$0x1]
  %v5294 = vlaneseq
  %v5295 = vshrl.u32 %v5294, 7
  %v5296 = vsub.s32 0, %v5295
  %v5297 = vrot.slane %v5293, %v5296
  %v5298 = vmul.f32 %v5292, %v5297
  %v5299 = vsel %vm3116, %v5298, 0.0
  %5300 = vadd.xlane.f32.xlu0 %v5299
  %v5301 = vpop.xlane.xlu0 %5300
  %v5302 = vlaneseq
  %v5303 = vshrl.u32 %v5302, 7
  %v5304 = vsub.s32 0, %v5303
  %v5305 = vrot.slane %v5056, %v5304
  %v5306 = vadd.f32 %v5301, %v5305
  %5307 = vmatprep.subr.mxu0 0.0
  %5308 = vmatpush1.msra.mxu0 0.0
  %5309 = vmatprep.subr.mxu0 0.0
  %5310 = vmatpush1.msra.mxu0 0.0
  %5311 = vmatprep.subr.mxu0 0.0
  %5312 = vmatpush1.msra.mxu0 0.0
  %5313 = vmatprep.subr.mxu0 0.0
  %5314 = vmatpush1.msra.mxu0 0.0
  %5315 = vmatprep.subr.mxu0 0.0
  %5316 = vmatpush1.msra.mxu0 0.0
  %5317 = vmatprep.subr.mxu0 0.0
  %5318 = vmatpush1.msra.mxu0 0.0
  %5319 = vmatprep.subr.mxu0 0.0
  %5320 = vmatpush1.msra.mxu0 0.0
  %5321 = vmatprep.subr.mxu0 0.0
  %5322 = vmatpush1.msra.mxu0 0.0
  %5323 = vmatprep.subr.mxu0 0.0
  %5324 = vmatpush1.msra.mxu0 0.0
  %5325 = vmatprep.subr.mxu0 0.0
  %5326 = vmatpush1.msra.mxu0 0.0
  %5327 = vmatprep.subr.mxu0 0.0
  %5328 = vmatpush1.msra.mxu0 0.0
  %5329 = vmatprep.subr.mxu0 0.0
  %5330 = vmatpush1.msra.mxu0 0.0
  %5331 = vmatprep.subr.mxu0 0.0
  %5332 = vmatpush1.msra.mxu0 %v5064
  %5333 = vmatprep.subr.mxu0 0.0
  %5334 = vmatpush1.msra.mxu0 %v5063
  %5335 = vmatprep.subr.mxu0 0.0
  %5336 = vmatpush1.msra.mxu0 %v5062
  %5337 = vmatprep.subr.mxu0 0.0
  %5338 = vmatpush1.msra.mxu0 %v5061
  %5339 = vmatprep.subr.mxu0 0.0
  %5340 = vmatpush2.msra.mxu0 0.0
  %5341 = vmatprep.subr.mxu0 0.0
  %5342 = vmatpush2.msra.mxu0 0.0
  %5343 = vmatprep.subr.mxu0 0.0
  %5344 = vmatpush2.msra.mxu0 0.0
  %5345 = vmatprep.subr.mxu0 0.0
  %5346 = vmatpush2.msra.mxu0 0.0
  %5347 = vmatprep.subr.mxu0 0.0
  %5348 = vmatpush2.msra.mxu0 0.0
  %5349 = vmatprep.subr.mxu0 0.0
  %5350 = vmatpush2.msra.mxu0 0.0
  %5351 = vmatprep.subr.mxu0 0.0
  %5352 = vmatpush2.msra.mxu0 0.0
  %5353 = vmatprep.subr.mxu0 0.0
  %5354 = vmatpush2.msra.mxu0 0.0
  %5355 = vmatprep.subr.mxu0 0.0
  %5356 = vmatpush2.msra.mxu0 0.0
  %5357 = vmatprep.subr.mxu0 0.0
  %5358 = vmatpush2.msra.mxu0 0.0
  %5359 = vmatprep.subr.mxu0 0.0
  %5360 = vmatpush2.msra.mxu0 0.0
  %5361 = vmatprep.subr.mxu0 0.0
  %5362 = vmatpush2.msra.mxu0 0.0
  %5363 = vmatprep.subr.mxu0 0.0
  %5364 = vmatpush2.msra.mxu0 0.0
  %5365 = vmatprep.subr.mxu0 0.0
  %5366 = vmatpush2.msra.mxu0 0.0
  %5367 = vmatprep.subr.mxu0 0.0
  %5368 = vmatpush2.msra.mxu0 0.0
  %5369 = vmatprep.subr.mxu0 0.0
  %5370 = vmatpush2.msra.mxu0 0.0
  %5371 = vmatprep.mubr.f32.mxu0 0.0
  %5372 = vmatmul.mubr.f32.gmra.mxu0 %v2813
  %v5373 = vpop.f32.mrf.mxu0
  %v5374 = vadd.f32 0.0, %v5373
  %v5375 = vpop.f32.mrf.mxu0
  %5376 = vdwg.mxu0
  %v5378 = vsel %vm686, %v5053, 0
  %5380 = vmatprep.subr.mxu0 0.0
  %5381 = vmatpush1.msra.mxu0 0.0
  %5382 = vmatprep.subr.mxu0 0.0
  %5383 = vmatpush1.msra.mxu0 0.0
  %5384 = vmatprep.subr.mxu0 0.0
  %5385 = vmatpush1.msra.mxu0 0.0
  %5386 = vmatprep.subr.mxu0 0.0
  %5387 = vmatpush1.msra.mxu0 0.0
  %5388 = vmatprep.subr.mxu0 0.0
  %5389 = vmatpush1.msra.mxu0 0.0
  %5390 = vmatprep.subr.mxu0 0.0
  %5391 = vmatpush1.msra.mxu0 0.0
  %5392 = vmatprep.subr.mxu0 0.0
  %5393 = vmatpush1.msra.mxu0 0.0
  %5394 = vmatprep.subr.mxu0 0.0
  %5395 = vmatpush1.msra.mxu0 0.0
  %5396 = vmatprep.subr.mxu0 0.0
  %5397 = vmatpush1.msra.mxu0 0.0
  %5398 = vmatprep.subr.mxu0 0.0
  %5399 = vmatpush1.msra.mxu0 0.0
  %5400 = vmatprep.subr.mxu0 0.0
  %5401 = vmatpush1.msra.mxu0 0.0
  %5402 = vmatprep.subr.mxu0 0.0
  %5403 = vmatpush1.msra.mxu0 0.0
  %5404 = vmatprep.subr.mxu0 0.0
  %5405 = vmatpush1.msra.mxu0 %v5060
  %5406 = vmatprep.subr.mxu0 0.0
  %5407 = vmatpush1.msra.mxu0 %v5059
  %5408 = vmatprep.subr.mxu0 0.0
  %5409 = vmatpush1.msra.mxu0 %v5058
  %5410 = vmatprep.subr.mxu0 0.0
  %5411 = vmatpush1.msra.mxu0 %v5057
  %5412 = vmatprep.subr.mxu0 0.0
  %5413 = vmatpush2.msra.mxu0 0.0
  %5414 = vmatprep.subr.mxu0 0.0
  %5415 = vmatpush2.msra.mxu0 0.0
  %5416 = vmatprep.subr.mxu0 0.0
  %5417 = vmatpush2.msra.mxu0 0.0
  %5418 = vmatprep.subr.mxu0 0.0
  %5419 = vmatpush2.msra.mxu0 0.0
  %5420 = vmatprep.subr.mxu0 0.0
  %5421 = vmatpush2.msra.mxu0 0.0
  %5422 = vmatprep.subr.mxu0 0.0
  %5423 = vmatpush2.msra.mxu0 0.0
  %5424 = vmatprep.subr.mxu0 0.0
  %5425 = vmatpush2.msra.mxu0 0.0
  %5426 = vmatprep.subr.mxu0 0.0
  %5427 = vmatpush2.msra.mxu0 0.0
  %5428 = vmatprep.subr.mxu0 0.0
  %5429 = vmatpush2.msra.mxu0 0.0
  %5430 = vmatprep.subr.mxu0 0.0
  %5431 = vmatpush2.msra.mxu0 0.0
  %5432 = vmatprep.subr.mxu0 0.0
  %5433 = vmatpush2.msra.mxu0 0.0
  %5434 = vmatprep.subr.mxu0 0.0
  %5435 = vmatpush2.msra.mxu0 0.0
  %5436 = vmatprep.subr.mxu0 0.0
  %5437 = vmatpush2.msra.mxu0 0.0
  %5438 = vmatprep.subr.mxu0 0.0
  %5439 = vmatpush2.msra.mxu0 0.0
  %5440 = vmatprep.subr.mxu0 0.0
  %5441 = vmatpush2.msra.mxu0 0.0
  %5442 = vmatprep.subr.mxu0 0.0
  %5443 = vmatpush2.msra.mxu0 0.0
  %5444 = vmatprep.mubr.f32.mxu0 0.0
  %5445 = vmatmul.mubr.f32.gmra.mxu0 %v5378
  %v5446 = vpop.f32.mrf.mxu0
  %v5447 = vadd.f32 %v5374, %v5446
  %v5448 = vpop.f32.mrf.mxu0
  %5449 = vdwg.mxu0
  %v5451 = vsel %vm686, %v3370, 0
  %5453 = vmatprep.subr.mxu0 0.0
  %5454 = vmatpush1.msra.mxu0 0.0
  %5455 = vmatprep.subr.mxu0 0.0
  %5456 = vmatpush1.msra.mxu0 0.0
  %5457 = vmatprep.subr.mxu0 0.0
  %5458 = vmatpush1.msra.mxu0 0.0
  %5459 = vmatprep.subr.mxu0 0.0
  %5460 = vmatpush1.msra.mxu0 0.0
  %5461 = vmatprep.subr.mxu0 0.0
  %5462 = vmatpush1.msra.mxu0 0.0
  %5463 = vmatprep.subr.mxu0 0.0
  %5464 = vmatpush1.msra.mxu0 0.0
  %5465 = vmatprep.subr.mxu0 0.0
  %5466 = vmatpush1.msra.mxu0 0.0
  %5467 = vmatprep.subr.mxu0 0.0
  %5468 = vmatpush1.msra.mxu0 0.0
  %5469 = vmatprep.subr.mxu0 0.0
  %5470 = vmatpush1.msra.mxu0 0.0
  %5471 = vmatprep.subr.mxu0 0.0
  %5472 = vmatpush1.msra.mxu0 0.0
  %5473 = vmatprep.subr.mxu0 0.0
  %5474 = vmatpush1.msra.mxu0 0.0
  %5475 = vmatprep.subr.mxu0 0.0
  %5476 = vmatpush1.msra.mxu0 0.0
  %5477 = vmatprep.subr.mxu0 0.0
  %5478 = vmatpush1.msra.mxu0 %v5211
  %5479 = vmatprep.subr.mxu0 0.0
  %5480 = vmatpush1.msra.mxu0 %v5210
  %5481 = vmatprep.subr.mxu0 0.0
  %5482 = vmatpush1.msra.mxu0 %v5209
  %5483 = vmatprep.subr.mxu0 0.0
  %5484 = vmatpush1.msra.mxu0 %v5208
  %5485 = vmatprep.subr.mxu0 0.0
  %5486 = vmatpush2.msra.mxu0 0.0
  %5487 = vmatprep.subr.mxu0 0.0
  %5488 = vmatpush2.msra.mxu0 0.0
  %5489 = vmatprep.subr.mxu0 0.0
  %5490 = vmatpush2.msra.mxu0 0.0
  %5491 = vmatprep.subr.mxu0 0.0
  %5492 = vmatpush2.msra.mxu0 0.0
  %5493 = vmatprep.subr.mxu0 0.0
  %5494 = vmatpush2.msra.mxu0 0.0
  %5495 = vmatprep.subr.mxu0 0.0
  %5496 = vmatpush2.msra.mxu0 0.0
  %5497 = vmatprep.subr.mxu0 0.0
  %5498 = vmatpush2.msra.mxu0 0.0
  %5499 = vmatprep.subr.mxu0 0.0
  %5500 = vmatpush2.msra.mxu0 0.0
  %5501 = vmatprep.subr.mxu0 0.0
  %5502 = vmatpush2.msra.mxu0 0.0
  %5503 = vmatprep.subr.mxu0 0.0
  %5504 = vmatpush2.msra.mxu0 0.0
  %5505 = vmatprep.subr.mxu0 0.0
  %5506 = vmatpush2.msra.mxu0 0.0
  %5507 = vmatprep.subr.mxu0 0.0
  %5508 = vmatpush2.msra.mxu0 0.0
  %5509 = vmatprep.subr.mxu0 0.0
  %5510 = vmatpush2.msra.mxu0 0.0
  %5511 = vmatprep.subr.mxu0 0.0
  %5512 = vmatpush2.msra.mxu0 0.0
  %5513 = vmatprep.subr.mxu0 0.0
  %5514 = vmatpush2.msra.mxu0 0.0
  %5515 = vmatprep.subr.mxu0 0.0
  %5516 = vmatpush2.msra.mxu0 0.0
  %5517 = vmatprep.mubr.f32.mxu0 0.0
  %5518 = vmatmul.mubr.f32.gmra.mxu0 %v5451
  %v5519 = vpop.f32.mrf.mxu0
  %v5520 = vadd.f32 0.0, %v5519
  %v5521 = vpop.f32.mrf.mxu0
  %5522 = vdwg.mxu0
  %v5523 = vadd.f32 %v5447, %v5520
  %v5524 = vadd.f32 %v5523, %v5290
  %v5525 = vmax.f32 %v5524, 0.0
  %v5526 = vmul.f32 %v5525, %v5297
  %v5527 = vsel %vm3116, %v5526, 0.0
  %5528 = vadd.xlane.f32.xlu0 %v5527
  %v5529 = vpop.xlane.xlu0 %5528
  %v5530 = vadd.f32 %v5529, %v5305
  %v5531 = vld [vmem:[%s9 + $0x4a0] sm:$0xff]
  %v5532 = vld [vmem:[%s9 + $0x4a8] sm:$0xff]
  %v5533 = vld [vmem:[%s9 + $0x4b0] sm:$0xff]
  %v5534 = vld [vmem:[%s9 + $0x4b8] sm:$0xff]
  %v5535 = vld [vmem:[%s10 + $0x1c] sm:$0x1]
  %v5536 = vlaneseq
  %v5537 = vshrl.u32 %v5536, 7
  %v5538 = vsub.s32 0, %v5537
  %v5539 = vrot.slane %v5535, %v5538
  %5540 = vmatprep.subr.mxu0 0.0
  %5541 = vmatpush1.msra.mxu0 0.0
  %5542 = vmatprep.subr.mxu0 0.0
  %5543 = vmatpush1.msra.mxu0 0.0
  %5544 = vmatprep.subr.mxu0 0.0
  %5545 = vmatpush1.msra.mxu0 0.0
  %5546 = vmatprep.subr.mxu0 0.0
  %5547 = vmatpush1.msra.mxu0 0.0
  %5548 = vmatprep.subr.mxu0 0.0
  %5549 = vmatpush1.msra.mxu0 0.0
  %5550 = vmatprep.subr.mxu0 0.0
  %5551 = vmatpush1.msra.mxu0 0.0
  %5552 = vmatprep.subr.mxu0 0.0
  %5553 = vmatpush1.msra.mxu0 0.0
  %5554 = vmatprep.subr.mxu0 0.0
  %5555 = vmatpush1.msra.mxu0 0.0
  %5556 = vmatprep.subr.mxu0 0.0
  %5557 = vmatpush1.msra.mxu0 0.0
  %5558 = vmatprep.subr.mxu0 0.0
  %5559 = vmatpush1.msra.mxu0 0.0
  %5560 = vmatprep.subr.mxu0 0.0
  %5561 = vmatpush1.msra.mxu0 0.0
  %5562 = vmatprep.subr.mxu0 0.0
  %5563 = vmatpush1.msra.mxu0 0.0
  %5564 = vmatprep.subr.mxu0 0.0
  %5565 = vmatpush1.msra.mxu0 %v5534
  %5566 = vmatprep.subr.mxu0 0.0
  %5567 = vmatpush1.msra.mxu0 %v5533
  %5568 = vmatprep.subr.mxu0 0.0
  %5569 = vmatpush1.msra.mxu0 %v5532
  %5570 = vmatprep.subr.mxu0 0.0
  %5571 = vmatpush1.msra.mxu0 %v5531
  %5572 = vmatprep.subr.mxu0 0.0
  %5573 = vmatpush2.msra.mxu0 0.0
  %5574 = vmatprep.subr.mxu0 0.0
  %5575 = vmatpush2.msra.mxu0 0.0
  %5576 = vmatprep.subr.mxu0 0.0
  %5577 = vmatpush2.msra.mxu0 0.0
  %5578 = vmatprep.subr.mxu0 0.0
  %5579 = vmatpush2.msra.mxu0 0.0
  %5580 = vmatprep.subr.mxu0 0.0
  %5581 = vmatpush2.msra.mxu0 0.0
  %5582 = vmatprep.subr.mxu0 0.0
  %5583 = vmatpush2.msra.mxu0 0.0
  %5584 = vmatprep.subr.mxu0 0.0
  %5585 = vmatpush2.msra.mxu0 0.0
  %5586 = vmatprep.subr.mxu0 0.0
  %5587 = vmatpush2.msra.mxu0 0.0
  %5588 = vmatprep.subr.mxu0 0.0
  %5589 = vmatpush2.msra.mxu0 0.0
  %5590 = vmatprep.subr.mxu0 0.0
  %5591 = vmatpush2.msra.mxu0 0.0
  %5592 = vmatprep.subr.mxu0 0.0
  %5593 = vmatpush2.msra.mxu0 0.0
  %5594 = vmatprep.subr.mxu0 0.0
  %5595 = vmatpush2.msra.mxu0 0.0
  %5596 = vmatprep.subr.mxu0 0.0
  %5597 = vmatpush2.msra.mxu0 0.0
  %5598 = vmatprep.subr.mxu0 0.0
  %5599 = vmatpush2.msra.mxu0 0.0
  %5600 = vmatprep.subr.mxu0 0.0
  %5601 = vmatpush2.msra.mxu0 0.0
  %5602 = vmatprep.subr.mxu0 0.0
  %5603 = vmatpush2.msra.mxu0 0.0
  %5604 = vmatprep.mubr.f32.mxu0 0.0
  %5605 = vmatmul.mubr.f32.gmra.mxu0 %v2496
  %v5606 = vpop.f32.mrf.mxu0
  %v5607 = vadd.f32 %v5539, %v5606
  %v5608 = vpop.f32.mrf.mxu0
  %5609 = vdwg.mxu0
  %v5610 = vmax.f32 %v5607, 0.0
  %v5611 = vld [vmem:[%s9 + $0x4c0] sm:$0xff]
  %v5612 = vld [vmem:[%s9 + $0x4c8] sm:$0xff]
  %v5613 = vld [vmem:[%s9 + $0x4d0] sm:$0xff]
  %v5614 = vld [vmem:[%s9 + $0x4d8] sm:$0xff]
  %v5615 = vld [vmem:[%s10 + $0x1d] sm:$0x1]
  %v5616 = vlaneseq
  %v5617 = vshrl.u32 %v5616, 7
  %v5618 = vsub.s32 0, %v5617
  %v5619 = vrot.slane %v5615, %v5618
  %v5621 = vsel %vm686, %v5610, 0
  %5623 = vmatprep.subr.mxu0 0.0
  %5624 = vmatpush1.msra.mxu0 0.0
  %5625 = vmatprep.subr.mxu0 0.0
  %5626 = vmatpush1.msra.mxu0 0.0
  %5627 = vmatprep.subr.mxu0 0.0
  %5628 = vmatpush1.msra.mxu0 0.0
  %5629 = vmatprep.subr.mxu0 0.0
  %5630 = vmatpush1.msra.mxu0 0.0
  %5631 = vmatprep.subr.mxu0 0.0
  %5632 = vmatpush1.msra.mxu0 0.0
  %5633 = vmatprep.subr.mxu0 0.0
  %5634 = vmatpush1.msra.mxu0 0.0
  %5635 = vmatprep.subr.mxu0 0.0
  %5636 = vmatpush1.msra.mxu0 0.0
  %5637 = vmatprep.subr.mxu0 0.0
  %5638 = vmatpush1.msra.mxu0 0.0
  %5639 = vmatprep.subr.mxu0 0.0
  %5640 = vmatpush1.msra.mxu0 0.0
  %5641 = vmatprep.subr.mxu0 0.0
  %5642 = vmatpush1.msra.mxu0 0.0
  %5643 = vmatprep.subr.mxu0 0.0
  %5644 = vmatpush1.msra.mxu0 0.0
  %5645 = vmatprep.subr.mxu0 0.0
  %5646 = vmatpush1.msra.mxu0 0.0
  %5647 = vmatprep.subr.mxu0 0.0
  %5648 = vmatpush1.msra.mxu0 %v5614
  %5649 = vmatprep.subr.mxu0 0.0
  %5650 = vmatpush1.msra.mxu0 %v5613
  %5651 = vmatprep.subr.mxu0 0.0
  %5652 = vmatpush1.msra.mxu0 %v5612
  %5653 = vmatprep.subr.mxu0 0.0
  %5654 = vmatpush1.msra.mxu0 %v5611
  %5655 = vmatprep.subr.mxu0 0.0
  %5656 = vmatpush2.msra.mxu0 0.0
  %5657 = vmatprep.subr.mxu0 0.0
  %5658 = vmatpush2.msra.mxu0 0.0
  %5659 = vmatprep.subr.mxu0 0.0
  %5660 = vmatpush2.msra.mxu0 0.0
  %5661 = vmatprep.subr.mxu0 0.0
  %5662 = vmatpush2.msra.mxu0 0.0
  %5663 = vmatprep.subr.mxu0 0.0
  %5664 = vmatpush2.msra.mxu0 0.0
  %5665 = vmatprep.subr.mxu0 0.0
  %5666 = vmatpush2.msra.mxu0 0.0
  %5667 = vmatprep.subr.mxu0 0.0
  %5668 = vmatpush2.msra.mxu0 0.0
  %5669 = vmatprep.subr.mxu0 0.0
  %5670 = vmatpush2.msra.mxu0 0.0
  %5671 = vmatprep.subr.mxu0 0.0
  %5672 = vmatpush2.msra.mxu0 0.0
  %5673 = vmatprep.subr.mxu0 0.0
  %5674 = vmatpush2.msra.mxu0 0.0
  %5675 = vmatprep.subr.mxu0 0.0
  %5676 = vmatpush2.msra.mxu0 0.0
  %5677 = vmatprep.subr.mxu0 0.0
  %5678 = vmatpush2.msra.mxu0 0.0
  %5679 = vmatprep.subr.mxu0 0.0
  %5680 = vmatpush2.msra.mxu0 0.0
  %5681 = vmatprep.subr.mxu0 0.0
  %5682 = vmatpush2.msra.mxu0 0.0
  %5683 = vmatprep.subr.mxu0 0.0
  %5684 = vmatpush2.msra.mxu0 0.0
  %5685 = vmatprep.subr.mxu0 0.0
  %5686 = vmatpush2.msra.mxu0 0.0
  %5687 = vmatprep.mubr.f32.mxu0 0.0
  %5688 = vmatmul.mubr.f32.gmra.mxu0 %v5621
  %v5689 = vpop.f32.mrf.mxu0
  %v5690 = vadd.f32 %v5619, %v5689
  %v5691 = vpop.f32.mrf.mxu0
  %5692 = vdwg.mxu0
  %v5693 = vld [vmem:[%s9 + $0x4e0] sm:$0xff]
  %v5694 = vld [vmem:[%s9 + $0x4e8] sm:$0xff]
  %v5695 = vld [vmem:[%s9 + $0x4f0] sm:$0xff]
  %v5696 = vld [vmem:[%s9 + $0x4f8] sm:$0xff]
  %v5697 = vld [vmem:[%s9 + $0x500] sm:$0xff]
  %v5698 = vld [vmem:[%s9 + $0x508] sm:$0xff]
  %v5699 = vld [vmem:[%s9 + $0x510] sm:$0xff]
  %v5700 = vld [vmem:[%s9 + $0x518] sm:$0xff]
  %v5702 = vsel %vm686, %v5690, 0
  %5704 = vmatprep.subr.mxu0 0.0
  %5705 = vmatpush1.msra.mxu0 0.0
  %5706 = vmatprep.subr.mxu0 0.0
  %5707 = vmatpush1.msra.mxu0 0.0
  %5708 = vmatprep.subr.mxu0 0.0
  %5709 = vmatpush1.msra.mxu0 0.0
  %5710 = vmatprep.subr.mxu0 0.0
  %5711 = vmatpush1.msra.mxu0 0.0
  %5712 = vmatprep.subr.mxu0 0.0
  %5713 = vmatpush1.msra.mxu0 0.0
  %5714 = vmatprep.subr.mxu0 0.0
  %5715 = vmatpush1.msra.mxu0 0.0
  %5716 = vmatprep.subr.mxu0 0.0
  %5717 = vmatpush1.msra.mxu0 0.0
  %5718 = vmatprep.subr.mxu0 0.0
  %5719 = vmatpush1.msra.mxu0 0.0
  %5720 = vmatprep.subr.mxu0 0.0
  %5721 = vmatpush1.msra.mxu0 0.0
  %5722 = vmatprep.subr.mxu0 0.0
  %5723 = vmatpush1.msra.mxu0 0.0
  %5724 = vmatprep.subr.mxu0 0.0
  %5725 = vmatpush1.msra.mxu0 0.0
  %5726 = vmatprep.subr.mxu0 0.0
  %5727 = vmatpush1.msra.mxu0 0.0
  %5728 = vmatprep.subr.mxu0 0.0
  %5729 = vmatpush1.msra.mxu0 %v5700
  %5730 = vmatprep.subr.mxu0 0.0
  %5731 = vmatpush1.msra.mxu0 %v5699
  %5732 = vmatprep.subr.mxu0 0.0
  %5733 = vmatpush1.msra.mxu0 %v5698
  %5734 = vmatprep.subr.mxu0 0.0
  %5735 = vmatpush1.msra.mxu0 %v5697
  %5736 = vmatprep.subr.mxu0 0.0
  %5737 = vmatpush2.msra.mxu0 0.0
  %5738 = vmatprep.subr.mxu0 0.0
  %5739 = vmatpush2.msra.mxu0 0.0
  %5740 = vmatprep.subr.mxu0 0.0
  %5741 = vmatpush2.msra.mxu0 0.0
  %5742 = vmatprep.subr.mxu0 0.0
  %5743 = vmatpush2.msra.mxu0 0.0
  %5744 = vmatprep.subr.mxu0 0.0
  %5745 = vmatpush2.msra.mxu0 0.0
  %5746 = vmatprep.subr.mxu0 0.0
  %5747 = vmatpush2.msra.mxu0 0.0
  %5748 = vmatprep.subr.mxu0 0.0
  %5749 = vmatpush2.msra.mxu0 0.0
  %5750 = vmatprep.subr.mxu0 0.0
  %5751 = vmatpush2.msra.mxu0 0.0
  %5752 = vmatprep.subr.mxu0 0.0
  %5753 = vmatpush2.msra.mxu0 0.0
  %5754 = vmatprep.subr.mxu0 0.0
  %5755 = vmatpush2.msra.mxu0 0.0
  %5756 = vmatprep.subr.mxu0 0.0
  %5757 = vmatpush2.msra.mxu0 0.0
  %5758 = vmatprep.subr.mxu0 0.0
  %5759 = vmatpush2.msra.mxu0 0.0
  %5760 = vmatprep.subr.mxu0 0.0
  %5761 = vmatpush2.msra.mxu0 0.0
  %5762 = vmatprep.subr.mxu0 0.0
  %5763 = vmatpush2.msra.mxu0 0.0
  %5764 = vmatprep.subr.mxu0 0.0
  %5765 = vmatpush2.msra.mxu0 0.0
  %5766 = vmatprep.subr.mxu0 0.0
  %5767 = vmatpush2.msra.mxu0 0.0
  %5768 = vmatprep.mubr.f32.mxu0 0.0
  %5769 = vmatmul.mubr.f32.gmra.mxu0 %v5702
  %v5770 = vpop.f32.mrf.mxu0
  %v5771 = vadd.f32 0.0, %v5770
  %v5772 = vpop.f32.mrf.mxu0
  %5773 = vdwg.mxu0
  %5774 = vmatprep.subr.mxu0 0.0
  %5775 = vmatpush1.msra.mxu0 0.0
  %5776 = vmatprep.subr.mxu0 0.0
  %5777 = vmatpush1.msra.mxu0 0.0
  %5778 = vmatprep.subr.mxu0 0.0
  %5779 = vmatpush1.msra.mxu0 0.0
  %5780 = vmatprep.subr.mxu0 0.0
  %5781 = vmatpush1.msra.mxu0 0.0
  %5782 = vmatprep.subr.mxu0 0.0
  %5783 = vmatpush1.msra.mxu0 0.0
  %5784 = vmatprep.subr.mxu0 0.0
  %5785 = vmatpush1.msra.mxu0 0.0
  %5786 = vmatprep.subr.mxu0 0.0
  %5787 = vmatpush1.msra.mxu0 0.0
  %5788 = vmatprep.subr.mxu0 0.0
  %5789 = vmatpush1.msra.mxu0 0.0
  %5790 = vmatprep.subr.mxu0 0.0
  %5791 = vmatpush1.msra.mxu0 0.0
  %5792 = vmatprep.subr.mxu0 0.0
  %5793 = vmatpush1.msra.mxu0 0.0
  %5794 = vmatprep.subr.mxu0 0.0
  %5795 = vmatpush1.msra.mxu0 0.0
  %5796 = vmatprep.subr.mxu0 0.0
  %5797 = vmatpush1.msra.mxu0 0.0
  %5798 = vmatprep.subr.mxu0 0.0
  %5799 = vmatpush1.msra.mxu0 %v5696
  %5800 = vmatprep.subr.mxu0 0.0
  %5801 = vmatpush1.msra.mxu0 %v5695
  %5802 = vmatprep.subr.mxu0 0.0
  %5803 = vmatpush1.msra.mxu0 %v5694
  %5804 = vmatprep.subr.mxu0 0.0
  %5805 = vmatpush1.msra.mxu0 %v5693
  %5806 = vmatprep.subr.mxu0 0.0
  %5807 = vmatpush2.msra.mxu0 0.0
  %5808 = vmatprep.subr.mxu0 0.0
  %5809 = vmatpush2.msra.mxu0 0.0
  %5810 = vmatprep.subr.mxu0 0.0
  %5811 = vmatpush2.msra.mxu0 0.0
  %5812 = vmatprep.subr.mxu0 0.0
  %5813 = vmatpush2.msra.mxu0 0.0
  %5814 = vmatprep.subr.mxu0 0.0
  %5815 = vmatpush2.msra.mxu0 0.0
  %5816 = vmatprep.subr.mxu0 0.0
  %5817 = vmatpush2.msra.mxu0 0.0
  %5818 = vmatprep.subr.mxu0 0.0
  %5819 = vmatpush2.msra.mxu0 0.0
  %5820 = vmatprep.subr.mxu0 0.0
  %5821 = vmatpush2.msra.mxu0 0.0
  %5822 = vmatprep.subr.mxu0 0.0
  %5823 = vmatpush2.msra.mxu0 0.0
  %5824 = vmatprep.subr.mxu0 0.0
  %5825 = vmatpush2.msra.mxu0 0.0
  %5826 = vmatprep.subr.mxu0 0.0
  %5827 = vmatpush2.msra.mxu0 0.0
  %5828 = vmatprep.subr.mxu0 0.0
  %5829 = vmatpush2.msra.mxu0 0.0
  %5830 = vmatprep.subr.mxu0 0.0
  %5831 = vmatpush2.msra.mxu0 0.0
  %5832 = vmatprep.subr.mxu0 0.0
  %5833 = vmatpush2.msra.mxu0 0.0
  %5834 = vmatprep.subr.mxu0 0.0
  %5835 = vmatpush2.msra.mxu0 0.0
  %5836 = vmatprep.subr.mxu0 0.0
  %5837 = vmatpush2.msra.mxu0 0.0
  %5838 = vmatprep.mubr.f32.mxu0 0.0
  %5839 = vmatmul.mubr.f32.gmra.mxu0 %v5136
  %v5840 = vpop.f32.mrf.mxu0
  %v5841 = vadd.f32 %v5771, %v5840
  %v5842 = vpop.f32.mrf.mxu0
  %5843 = vdwg.mxu0
  %v5844 = vld [vmem:[%s9 + $0x520] sm:$0xff]
  %v5845 = vld [vmem:[%s9 + $0x528] sm:$0xff]
  %v5846 = vld [vmem:[%s9 + $0x530] sm:$0xff]
  %v5847 = vld [vmem:[%s9 + $0x538] sm:$0xff]
  %v5849 = vsel %vm686, %v2807, 0
  %5851 = vmatprep.subr.mxu0 0.0
  %5852 = vmatpush1.msra.mxu0 0.0
  %5853 = vmatprep.subr.mxu0 0.0
  %5854 = vmatpush1.msra.mxu0 0.0
  %5855 = vmatprep.subr.mxu0 0.0
  %5856 = vmatpush1.msra.mxu0 0.0
  %5857 = vmatprep.subr.mxu0 0.0
  %5858 = vmatpush1.msra.mxu0 0.0
  %5859 = vmatprep.subr.mxu0 0.0
  %5860 = vmatpush1.msra.mxu0 0.0
  %5861 = vmatprep.subr.mxu0 0.0
  %5862 = vmatpush1.msra.mxu0 0.0
  %5863 = vmatprep.subr.mxu0 0.0
  %5864 = vmatpush1.msra.mxu0 0.0
  %5865 = vmatprep.subr.mxu0 0.0
  %5866 = vmatpush1.msra.mxu0 0.0
  %5867 = vmatprep.subr.mxu0 0.0
  %5868 = vmatpush1.msra.mxu0 0.0
  %5869 = vmatprep.subr.mxu0 0.0
  %5870 = vmatpush1.msra.mxu0 0.0
  %5871 = vmatprep.subr.mxu0 0.0
  %5872 = vmatpush1.msra.mxu0 0.0
  %5873 = vmatprep.subr.mxu0 0.0
  %5874 = vmatpush1.msra.mxu0 0.0
  %5875 = vmatprep.subr.mxu0 0.0
  %5876 = vmatpush1.msra.mxu0 %v5847
  %5877 = vmatprep.subr.mxu0 0.0
  %5878 = vmatpush1.msra.mxu0 %v5846
  %5879 = vmatprep.subr.mxu0 0.0
  %5880 = vmatpush1.msra.mxu0 %v5845
  %5881 = vmatprep.subr.mxu0 0.0
  %5882 = vmatpush1.msra.mxu0 %v5844
  %5883 = vmatprep.subr.mxu0 0.0
  %5884 = vmatpush2.msra.mxu0 0.0
  %5885 = vmatprep.subr.mxu0 0.0
  %5886 = vmatpush2.msra.mxu0 0.0
  %5887 = vmatprep.subr.mxu0 0.0
  %5888 = vmatpush2.msra.mxu0 0.0
  %5889 = vmatprep.subr.mxu0 0.0
  %5890 = vmatpush2.msra.mxu0 0.0
  %5891 = vmatprep.subr.mxu0 0.0
  %5892 = vmatpush2.msra.mxu0 0.0
  %5893 = vmatprep.subr.mxu0 0.0
  %5894 = vmatpush2.msra.mxu0 0.0
  %5895 = vmatprep.subr.mxu0 0.0
  %5896 = vmatpush2.msra.mxu0 0.0
  %5897 = vmatprep.subr.mxu0 0.0
  %5898 = vmatpush2.msra.mxu0 0.0
  %5899 = vmatprep.subr.mxu0 0.0
  %5900 = vmatpush2.msra.mxu0 0.0
  %5901 = vmatprep.subr.mxu0 0.0
  %5902 = vmatpush2.msra.mxu0 0.0
  %5903 = vmatprep.subr.mxu0 0.0
  %5904 = vmatpush2.msra.mxu0 0.0
  %5905 = vmatprep.subr.mxu0 0.0
  %5906 = vmatpush2.msra.mxu0 0.0
  %5907 = vmatprep.subr.mxu0 0.0
  %5908 = vmatpush2.msra.mxu0 0.0
  %5909 = vmatprep.subr.mxu0 0.0
  %5910 = vmatpush2.msra.mxu0 0.0
  %5911 = vmatprep.subr.mxu0 0.0
  %5912 = vmatpush2.msra.mxu0 0.0
  %5913 = vmatprep.subr.mxu0 0.0
  %5914 = vmatpush2.msra.mxu0 0.0
  %5915 = vmatprep.mubr.f32.mxu0 0.0
  %5916 = vmatmul.mubr.f32.gmra.mxu0 %v5849
  %v5917 = vpop.f32.mrf.mxu0
  %v5918 = vadd.f32 0.0, %v5917
  %v5919 = vpop.f32.mrf.mxu0
  %5920 = vdwg.mxu0
  %v5921 = vadd.f32 %v5841, %v5918
  %v5922 = vld [vmem:[%s10 + $0x1e] sm:$0x1]
  %v5923 = vlaneseq
  %v5924 = vshrl.u32 %v5923, 7
  %v5925 = vsub.s32 0, %v5924
  %v5926 = vrot.slane %v5922, %v5925
  %v5927 = vadd.f32 %v5921, %v5926
  %v5928 = vmax.f32 %v5927, 0.0
  %v5929 = vld [vmem:[%s9 + $0x540] sm:$0xff]
  %v5930 = vld [vmem:[%s9 + $0x548] sm:$0xff]
  %v5931 = vld [vmem:[%s9 + $0x550] sm:$0xff]
  %v5932 = vld [vmem:[%s9 + $0x558] sm:$0xff]
  %v5933 = vld [vmem:[%s10 + $0x1f] sm:$0x1]
  %v5934 = vlaneseq
  %v5935 = vshrl.u32 %v5934, 7
  %v5936 = vsub.s32 0, %v5935
  %v5937 = vrot.slane %v5933, %v5936
  %v5939 = vsel %vm686, %v5928, 0
  %5941 = vmatprep.subr.mxu0 0.0
  %5942 = vmatpush1.msra.mxu0 0.0
  %5943 = vmatprep.subr.mxu0 0.0
  %5944 = vmatpush1.msra.mxu0 0.0
  %5945 = vmatprep.subr.mxu0 0.0
  %5946 = vmatpush1.msra.mxu0 0.0
  %5947 = vmatprep.subr.mxu0 0.0
  %5948 = vmatpush1.msra.mxu0 0.0
  %5949 = vmatprep.subr.mxu0 0.0
  %5950 = vmatpush1.msra.mxu0 0.0
  %5951 = vmatprep.subr.mxu0 0.0
  %5952 = vmatpush1.msra.mxu0 0.0
  %5953 = vmatprep.subr.mxu0 0.0
  %5954 = vmatpush1.msra.mxu0 0.0
  %5955 = vmatprep.subr.mxu0 0.0
  %5956 = vmatpush1.msra.mxu0 0.0
  %5957 = vmatprep.subr.mxu0 0.0
  %5958 = vmatpush1.msra.mxu0 0.0
  %5959 = vmatprep.subr.mxu0 0.0
  %5960 = vmatpush1.msra.mxu0 0.0
  %5961 = vmatprep.subr.mxu0 0.0
  %5962 = vmatpush1.msra.mxu0 0.0
  %5963 = vmatprep.subr.mxu0 0.0
  %5964 = vmatpush1.msra.mxu0 0.0
  %5965 = vmatprep.subr.mxu0 0.0
  %5966 = vmatpush1.msra.mxu0 %v5932
  %5967 = vmatprep.subr.mxu0 0.0
  %5968 = vmatpush1.msra.mxu0 %v5931
  %5969 = vmatprep.subr.mxu0 0.0
  %5970 = vmatpush1.msra.mxu0 %v5930
  %5971 = vmatprep.subr.mxu0 0.0
  %5972 = vmatpush1.msra.mxu0 %v5929
  %5973 = vmatprep.subr.mxu0 0.0
  %5974 = vmatpush2.msra.mxu0 0.0
  %5975 = vmatprep.subr.mxu0 0.0
  %5976 = vmatpush2.msra.mxu0 0.0
  %5977 = vmatprep.subr.mxu0 0.0
  %5978 = vmatpush2.msra.mxu0 0.0
  %5979 = vmatprep.subr.mxu0 0.0
  %5980 = vmatpush2.msra.mxu0 0.0
  %5981 = vmatprep.subr.mxu0 0.0
  %5982 = vmatpush2.msra.mxu0 0.0
  %5983 = vmatprep.subr.mxu0 0.0
  %5984 = vmatpush2.msra.mxu0 0.0
  %5985 = vmatprep.subr.mxu0 0.0
  %5986 = vmatpush2.msra.mxu0 0.0
  %5987 = vmatprep.subr.mxu0 0.0
  %5988 = vmatpush2.msra.mxu0 0.0
  %5989 = vmatprep.subr.mxu0 0.0
  %5990 = vmatpush2.msra.mxu0 0.0
  %5991 = vmatprep.subr.mxu0 0.0
  %5992 = vmatpush2.msra.mxu0 0.0
  %5993 = vmatprep.subr.mxu0 0.0
  %5994 = vmatpush2.msra.mxu0 0.0
  %5995 = vmatprep.subr.mxu0 0.0
  %5996 = vmatpush2.msra.mxu0 0.0
  %5997 = vmatprep.subr.mxu0 0.0
  %5998 = vmatpush2.msra.mxu0 0.0
  %5999 = vmatprep.subr.mxu0 0.0
  %6000 = vmatpush2.msra.mxu0 0.0
  %6001 = vmatprep.subr.mxu0 0.0
  %6002 = vmatpush2.msra.mxu0 0.0
  %6003 = vmatprep.subr.mxu0 0.0
  %6004 = vmatpush2.msra.mxu0 0.0
  %6005 = vmatprep.mubr.f32.mxu0 0.0
  %6006 = vmatmul.mubr.f32.gmra.mxu0 %v5939
  %v6007 = vpop.f32.mrf.mxu0
  %v6008 = vadd.f32 %v5937, %v6007
  %v6009 = vpop.f32.mrf.mxu0
  %6010 = vdwg.mxu0
  %v6011 = vmax.f32 %v6008, 0.0
  %v6012 = vld [vmem:[%s10 + $0x20] sm:$0x1]
  %v6013 = vlaneseq
  %v6014 = vshrl.u32 %v6013, 7
  %v6015 = vsub.s32 0, %v6014
  %v6016 = vrot.slane %v6012, %v6015
  %v6017 = vmul.f32 %v6011, %v6016
  %v6018 = vsel %vm3116, %v6017, 0.0
  %6019 = vadd.xlane.f32.xlu0 %v6018
  %v6020 = vpop.xlane.xlu0 %6019
  %v6021 = vadd.f32 %v6020, %v5305
  %6022 = vmatprep.subr.mxu0 0.0
  %6023 = vmatpush1.msra.mxu0 0.0
  %6024 = vmatprep.subr.mxu0 0.0
  %6025 = vmatpush1.msra.mxu0 0.0
  %6026 = vmatprep.subr.mxu0 0.0
  %6027 = vmatpush1.msra.mxu0 0.0
  %6028 = vmatprep.subr.mxu0 0.0
  %6029 = vmatpush1.msra.mxu0 0.0
  %6030 = vmatprep.subr.mxu0 0.0
  %6031 = vmatpush1.msra.mxu0 0.0
  %6032 = vmatprep.subr.mxu0 0.0
  %6033 = vmatpush1.msra.mxu0 0.0
  %6034 = vmatprep.subr.mxu0 0.0
  %6035 = vmatpush1.msra.mxu0 0.0
  %6036 = vmatprep.subr.mxu0 0.0
  %6037 = vmatpush1.msra.mxu0 0.0
  %6038 = vmatprep.subr.mxu0 0.0
  %6039 = vmatpush1.msra.mxu0 0.0
  %6040 = vmatprep.subr.mxu0 0.0
  %6041 = vmatpush1.msra.mxu0 0.0
  %6042 = vmatprep.subr.mxu0 0.0
  %6043 = vmatpush1.msra.mxu0 0.0
  %6044 = vmatprep.subr.mxu0 0.0
  %6045 = vmatpush1.msra.mxu0 0.0
  %6046 = vmatprep.subr.mxu0 0.0
  %6047 = vmatpush1.msra.mxu0 %v5534
  %6048 = vmatprep.subr.mxu0 0.0
  %6049 = vmatpush1.msra.mxu0 %v5533
  %6050 = vmatprep.subr.mxu0 0.0
  %6051 = vmatpush1.msra.mxu0 %v5532
  %6052 = vmatprep.subr.mxu0 0.0
  %6053 = vmatpush1.msra.mxu0 %v5531
  %6054 = vmatprep.subr.mxu0 0.0
  %6055 = vmatpush2.msra.mxu0 0.0
  %6056 = vmatprep.subr.mxu0 0.0
  %6057 = vmatpush2.msra.mxu0 0.0
  %6058 = vmatprep.subr.mxu0 0.0
  %6059 = vmatpush2.msra.mxu0 0.0
  %6060 = vmatprep.subr.mxu0 0.0
  %6061 = vmatpush2.msra.mxu0 0.0
  %6062 = vmatprep.subr.mxu0 0.0
  %6063 = vmatpush2.msra.mxu0 0.0
  %6064 = vmatprep.subr.mxu0 0.0
  %6065 = vmatpush2.msra.mxu0 0.0
  %6066 = vmatprep.subr.mxu0 0.0
  %6067 = vmatpush2.msra.mxu0 0.0
  %6068 = vmatprep.subr.mxu0 0.0
  %6069 = vmatpush2.msra.mxu0 0.0
  %6070 = vmatprep.subr.mxu0 0.0
  %6071 = vmatpush2.msra.mxu0 0.0
  %6072 = vmatprep.subr.mxu0 0.0
  %6073 = vmatpush2.msra.mxu0 0.0
  %6074 = vmatprep.subr.mxu0 0.0
  %6075 = vmatpush2.msra.mxu0 0.0
  %6076 = vmatprep.subr.mxu0 0.0
  %6077 = vmatpush2.msra.mxu0 0.0
  %6078 = vmatprep.subr.mxu0 0.0
  %6079 = vmatpush2.msra.mxu0 0.0
  %6080 = vmatprep.subr.mxu0 0.0
  %6081 = vmatpush2.msra.mxu0 0.0
  %6082 = vmatprep.subr.mxu0 0.0
  %6083 = vmatpush2.msra.mxu0 0.0
  %6084 = vmatprep.subr.mxu0 0.0
  %6085 = vmatpush2.msra.mxu0 0.0
  %6086 = vmatprep.mubr.f32.mxu0 0.0
  %6087 = vmatmul.mubr.f32.gmra.mxu0 %v2813
  %v6088 = vpop.f32.mrf.mxu0
  %v6089 = vadd.f32 %v5539, %v6088
  %v6090 = vpop.f32.mrf.mxu0
  %6091 = vdwg.mxu0
  %v6092 = vmax.f32 %v6089, 0.0
  %v6094 = vsel %vm686, %v6092, 0
  %6096 = vmatprep.subr.mxu0 0.0
  %6097 = vmatpush1.msra.mxu0 0.0
  %6098 = vmatprep.subr.mxu0 0.0
  %6099 = vmatpush1.msra.mxu0 0.0
  %6100 = vmatprep.subr.mxu0 0.0
  %6101 = vmatpush1.msra.mxu0 0.0
  %6102 = vmatprep.subr.mxu0 0.0
  %6103 = vmatpush1.msra.mxu0 0.0
  %6104 = vmatprep.subr.mxu0 0.0
  %6105 = vmatpush1.msra.mxu0 0.0
  %6106 = vmatprep.subr.mxu0 0.0
  %6107 = vmatpush1.msra.mxu0 0.0
  %6108 = vmatprep.subr.mxu0 0.0
  %6109 = vmatpush1.msra.mxu0 0.0
  %6110 = vmatprep.subr.mxu0 0.0
  %6111 = vmatpush1.msra.mxu0 0.0
  %6112 = vmatprep.subr.mxu0 0.0
  %6113 = vmatpush1.msra.mxu0 0.0
  %6114 = vmatprep.subr.mxu0 0.0
  %6115 = vmatpush1.msra.mxu0 0.0
  %6116 = vmatprep.subr.mxu0 0.0
  %6117 = vmatpush1.msra.mxu0 0.0
  %6118 = vmatprep.subr.mxu0 0.0
  %6119 = vmatpush1.msra.mxu0 0.0
  %6120 = vmatprep.subr.mxu0 0.0
  %6121 = vmatpush1.msra.mxu0 %v5614
  %6122 = vmatprep.subr.mxu0 0.0
  %6123 = vmatpush1.msra.mxu0 %v5613
  %6124 = vmatprep.subr.mxu0 0.0
  %6125 = vmatpush1.msra.mxu0 %v5612
  %6126 = vmatprep.subr.mxu0 0.0
  %6127 = vmatpush1.msra.mxu0 %v5611
  %6128 = vmatprep.subr.mxu0 0.0
  %6129 = vmatpush2.msra.mxu0 0.0
  %6130 = vmatprep.subr.mxu0 0.0
  %6131 = vmatpush2.msra.mxu0 0.0
  %6132 = vmatprep.subr.mxu0 0.0
  %6133 = vmatpush2.msra.mxu0 0.0
  %6134 = vmatprep.subr.mxu0 0.0
  %6135 = vmatpush2.msra.mxu0 0.0
  %6136 = vmatprep.subr.mxu0 0.0
  %6137 = vmatpush2.msra.mxu0 0.0
  %6138 = vmatprep.subr.mxu0 0.0
  %6139 = vmatpush2.msra.mxu0 0.0
  %6140 = vmatprep.subr.mxu0 0.0
  %6141 = vmatpush2.msra.mxu0 0.0
  %6142 = vmatprep.subr.mxu0 0.0
  %6143 = vmatpush2.msra.mxu0 0.0
  %6144 = vmatprep.subr.mxu0 0.0
  %6145 = vmatpush2.msra.mxu0 0.0
  %6146 = vmatprep.subr.mxu0 0.0
  %6147 = vmatpush2.msra.mxu0 0.0
  %6148 = vmatprep.subr.mxu0 0.0
  %6149 = vmatpush2.msra.mxu0 0.0
  %6150 = vmatprep.subr.mxu0 0.0
  %6151 = vmatpush2.msra.mxu0 0.0
  %6152 = vmatprep.subr.mxu0 0.0
  %6153 = vmatpush2.msra.mxu0 0.0
  %6154 = vmatprep.subr.mxu0 0.0
  %6155 = vmatpush2.msra.mxu0 0.0
  %6156 = vmatprep.subr.mxu0 0.0
  %6157 = vmatpush2.msra.mxu0 0.0
  %6158 = vmatprep.subr.mxu0 0.0
  %6159 = vmatpush2.msra.mxu0 0.0
  %6160 = vmatprep.mubr.f32.mxu0 0.0
  %6161 = vmatmul.mubr.f32.gmra.mxu0 %v6094
  %v6162 = vpop.f32.mrf.mxu0
  %v6163 = vadd.f32 %v5619, %v6162
  %v6164 = vpop.f32.mrf.mxu0
  %6165 = vdwg.mxu0
  %v6166 = vld [vmem:[%s9 + $0x560] sm:$0xff]
  %v6167 = vld [vmem:[%s9 + $0x568] sm:$0xff]
  %v6168 = vld [vmem:[%s9 + $0x570] sm:$0xff]
  %v6169 = vld [vmem:[%s9 + $0x578] sm:$0xff]
  %v6170 = vld [vmem:[%s9 + $0x580] sm:$0xff]
  %v6171 = vld [vmem:[%s9 + $0x588] sm:$0xff]
  %v6172 = vld [vmem:[%s9 + $0x590] sm:$0xff]
  %v6173 = vld [vmem:[%s9 + $0x598] sm:$0xff]
  %v6175 = vsel %vm686, %v6163, 0
  %6177 = vmatprep.subr.mxu0 0.0
  %6178 = vmatpush1.msra.mxu0 0.0
  %6179 = vmatprep.subr.mxu0 0.0
  %6180 = vmatpush1.msra.mxu0 0.0
  %6181 = vmatprep.subr.mxu0 0.0
  %6182 = vmatpush1.msra.mxu0 0.0
  %6183 = vmatprep.subr.mxu0 0.0
  %6184 = vmatpush1.msra.mxu0 0.0
  %6185 = vmatprep.subr.mxu0 0.0
  %6186 = vmatpush1.msra.mxu0 0.0
  %6187 = vmatprep.subr.mxu0 0.0
  %6188 = vmatpush1.msra.mxu0 0.0
  %6189 = vmatprep.subr.mxu0 0.0
  %6190 = vmatpush1.msra.mxu0 0.0
  %6191 = vmatprep.subr.mxu0 0.0
  %6192 = vmatpush1.msra.mxu0 0.0
  %6193 = vmatprep.subr.mxu0 0.0
  %6194 = vmatpush1.msra.mxu0 0.0
  %6195 = vmatprep.subr.mxu0 0.0
  %6196 = vmatpush1.msra.mxu0 0.0
  %6197 = vmatprep.subr.mxu0 0.0
  %6198 = vmatpush1.msra.mxu0 0.0
  %6199 = vmatprep.subr.mxu0 0.0
  %6200 = vmatpush1.msra.mxu0 0.0
  %6201 = vmatprep.subr.mxu0 0.0
  %6202 = vmatpush1.msra.mxu0 %v6173
  %6203 = vmatprep.subr.mxu0 0.0
  %6204 = vmatpush1.msra.mxu0 %v6172
  %6205 = vmatprep.subr.mxu0 0.0
  %6206 = vmatpush1.msra.mxu0 %v6171
  %6207 = vmatprep.subr.mxu0 0.0
  %6208 = vmatpush1.msra.mxu0 %v6170
  %6209 = vmatprep.subr.mxu0 0.0
  %6210 = vmatpush2.msra.mxu0 0.0
  %6211 = vmatprep.subr.mxu0 0.0
  %6212 = vmatpush2.msra.mxu0 0.0
  %6213 = vmatprep.subr.mxu0 0.0
  %6214 = vmatpush2.msra.mxu0 0.0
  %6215 = vmatprep.subr.mxu0 0.0
  %6216 = vmatpush2.msra.mxu0 0.0
  %6217 = vmatprep.subr.mxu0 0.0
  %6218 = vmatpush2.msra.mxu0 0.0
  %6219 = vmatprep.subr.mxu0 0.0
  %6220 = vmatpush2.msra.mxu0 0.0
  %6221 = vmatprep.subr.mxu0 0.0
  %6222 = vmatpush2.msra.mxu0 0.0
  %6223 = vmatprep.subr.mxu0 0.0
  %6224 = vmatpush2.msra.mxu0 0.0
  %6225 = vmatprep.subr.mxu0 0.0
  %6226 = vmatpush2.msra.mxu0 0.0
  %6227 = vmatprep.subr.mxu0 0.0
  %6228 = vmatpush2.msra.mxu0 0.0
  %6229 = vmatprep.subr.mxu0 0.0
  %6230 = vmatpush2.msra.mxu0 0.0
  %6231 = vmatprep.subr.mxu0 0.0
  %6232 = vmatpush2.msra.mxu0 0.0
  %6233 = vmatprep.subr.mxu0 0.0
  %6234 = vmatpush2.msra.mxu0 0.0
  %6235 = vmatprep.subr.mxu0 0.0
  %6236 = vmatpush2.msra.mxu0 0.0
  %6237 = vmatprep.subr.mxu0 0.0
  %6238 = vmatpush2.msra.mxu0 0.0
  %6239 = vmatprep.subr.mxu0 0.0
  %6240 = vmatpush2.msra.mxu0 0.0
  %6241 = vmatprep.mubr.f32.mxu0 0.0
  %6242 = vmatmul.mubr.f32.gmra.mxu0 %v6175
  %v6243 = vpop.f32.mrf.mxu0
  %v6244 = vadd.f32 0.0, %v6243
  %v6245 = vpop.f32.mrf.mxu0
  %6246 = vdwg.mxu0
  %6247 = vmatprep.subr.mxu0 0.0
  %6248 = vmatpush1.msra.mxu0 0.0
  %6249 = vmatprep.subr.mxu0 0.0
  %6250 = vmatpush1.msra.mxu0 0.0
  %6251 = vmatprep.subr.mxu0 0.0
  %6252 = vmatpush1.msra.mxu0 0.0
  %6253 = vmatprep.subr.mxu0 0.0
  %6254 = vmatpush1.msra.mxu0 0.0
  %6255 = vmatprep.subr.mxu0 0.0
  %6256 = vmatpush1.msra.mxu0 0.0
  %6257 = vmatprep.subr.mxu0 0.0
  %6258 = vmatpush1.msra.mxu0 0.0
  %6259 = vmatprep.subr.mxu0 0.0
  %6260 = vmatpush1.msra.mxu0 0.0
  %6261 = vmatprep.subr.mxu0 0.0
  %6262 = vmatpush1.msra.mxu0 0.0
  %6263 = vmatprep.subr.mxu0 0.0
  %6264 = vmatpush1.msra.mxu0 0.0
  %6265 = vmatprep.subr.mxu0 0.0
  %6266 = vmatpush1.msra.mxu0 0.0
  %6267 = vmatprep.subr.mxu0 0.0
  %6268 = vmatpush1.msra.mxu0 0.0
  %6269 = vmatprep.subr.mxu0 0.0
  %6270 = vmatpush1.msra.mxu0 0.0
  %6271 = vmatprep.subr.mxu0 0.0
  %6272 = vmatpush1.msra.mxu0 %v6169
  %6273 = vmatprep.subr.mxu0 0.0
  %6274 = vmatpush1.msra.mxu0 %v6168
  %6275 = vmatprep.subr.mxu0 0.0
  %6276 = vmatpush1.msra.mxu0 %v6167
  %6277 = vmatprep.subr.mxu0 0.0
  %6278 = vmatpush1.msra.mxu0 %v6166
  %6279 = vmatprep.subr.mxu0 0.0
  %6280 = vmatpush2.msra.mxu0 0.0
  %6281 = vmatprep.subr.mxu0 0.0
  %6282 = vmatpush2.msra.mxu0 0.0
  %6283 = vmatprep.subr.mxu0 0.0
  %6284 = vmatpush2.msra.mxu0 0.0
  %6285 = vmatprep.subr.mxu0 0.0
  %6286 = vmatpush2.msra.mxu0 0.0
  %6287 = vmatprep.subr.mxu0 0.0
  %6288 = vmatpush2.msra.mxu0 0.0
  %6289 = vmatprep.subr.mxu0 0.0
  %6290 = vmatpush2.msra.mxu0 0.0
  %6291 = vmatprep.subr.mxu0 0.0
  %6292 = vmatpush2.msra.mxu0 0.0
  %6293 = vmatprep.subr.mxu0 0.0
  %6294 = vmatpush2.msra.mxu0 0.0
  %6295 = vmatprep.subr.mxu0 0.0
  %6296 = vmatpush2.msra.mxu0 0.0
  %6297 = vmatprep.subr.mxu0 0.0
  %6298 = vmatpush2.msra.mxu0 0.0
  %6299 = vmatprep.subr.mxu0 0.0
  %6300 = vmatpush2.msra.mxu0 0.0
  %6301 = vmatprep.subr.mxu0 0.0
  %6302 = vmatpush2.msra.mxu0 0.0
  %6303 = vmatprep.subr.mxu0 0.0
  %6304 = vmatpush2.msra.mxu0 0.0
  %6305 = vmatprep.subr.mxu0 0.0
  %6306 = vmatpush2.msra.mxu0 0.0
  %6307 = vmatprep.subr.mxu0 0.0
  %6308 = vmatpush2.msra.mxu0 0.0
  %6309 = vmatprep.subr.mxu0 0.0
  %6310 = vmatpush2.msra.mxu0 0.0
  %6311 = vmatprep.mubr.f32.mxu0 0.0
  %6312 = vmatmul.mubr.f32.gmra.mxu0 %v5378
  %v6313 = vpop.f32.mrf.mxu0
  %v6314 = vadd.f32 %v6244, %v6313
  %v6315 = vpop.f32.mrf.mxu0
  %6316 = vdwg.mxu0
  %v6317 = vld [vmem:[%s9 + $0x5a0] sm:$0xff]
  %v6318 = vld [vmem:[%s9 + $0x5a8] sm:$0xff]
  %v6319 = vld [vmem:[%s9 + $0x5b0] sm:$0xff]
  %v6320 = vld [vmem:[%s9 + $0x5b8] sm:$0xff]
  %v6322 = vsel %vm686, %v3115, 0
  %6324 = vmatprep.subr.mxu0 0.0
  %6325 = vmatpush1.msra.mxu0 0.0
  %6326 = vmatprep.subr.mxu0 0.0
  %6327 = vmatpush1.msra.mxu0 0.0
  %6328 = vmatprep.subr.mxu0 0.0
  %6329 = vmatpush1.msra.mxu0 0.0
  %6330 = vmatprep.subr.mxu0 0.0
  %6331 = vmatpush1.msra.mxu0 0.0
  %6332 = vmatprep.subr.mxu0 0.0
  %6333 = vmatpush1.msra.mxu0 0.0
  %6334 = vmatprep.subr.mxu0 0.0
  %6335 = vmatpush1.msra.mxu0 0.0
  %6336 = vmatprep.subr.mxu0 0.0
  %6337 = vmatpush1.msra.mxu0 0.0
  %6338 = vmatprep.subr.mxu0 0.0
  %6339 = vmatpush1.msra.mxu0 0.0
  %6340 = vmatprep.subr.mxu0 0.0
  %6341 = vmatpush1.msra.mxu0 0.0
  %6342 = vmatprep.subr.mxu0 0.0
  %6343 = vmatpush1.msra.mxu0 0.0
  %6344 = vmatprep.subr.mxu0 0.0
  %6345 = vmatpush1.msra.mxu0 0.0
  %6346 = vmatprep.subr.mxu0 0.0
  %6347 = vmatpush1.msra.mxu0 0.0
  %6348 = vmatprep.subr.mxu0 0.0
  %6349 = vmatpush1.msra.mxu0 %v6320
  %6350 = vmatprep.subr.mxu0 0.0
  %6351 = vmatpush1.msra.mxu0 %v6319
  %6352 = vmatprep.subr.mxu0 0.0
  %6353 = vmatpush1.msra.mxu0 %v6318
  %6354 = vmatprep.subr.mxu0 0.0
  %6355 = vmatpush1.msra.mxu0 %v6317
  %6356 = vmatprep.subr.mxu0 0.0
  %6357 = vmatpush2.msra.mxu0 0.0
  %6358 = vmatprep.subr.mxu0 0.0
  %6359 = vmatpush2.msra.mxu0 0.0
  %6360 = vmatprep.subr.mxu0 0.0
  %6361 = vmatpush2.msra.mxu0 0.0
  %6362 = vmatprep.subr.mxu0 0.0
  %6363 = vmatpush2.msra.mxu0 0.0
  %6364 = vmatprep.subr.mxu0 0.0
  %6365 = vmatpush2.msra.mxu0 0.0
  %6366 = vmatprep.subr.mxu0 0.0
  %6367 = vmatpush2.msra.mxu0 0.0
  %6368 = vmatprep.subr.mxu0 0.0
  %6369 = vmatpush2.msra.mxu0 0.0
  %6370 = vmatprep.subr.mxu0 0.0
  %6371 = vmatpush2.msra.mxu0 0.0
  %6372 = vmatprep.subr.mxu0 0.0
  %6373 = vmatpush2.msra.mxu0 0.0
  %6374 = vmatprep.subr.mxu0 0.0
  %6375 = vmatpush2.msra.mxu0 0.0
  %6376 = vmatprep.subr.mxu0 0.0
  %6377 = vmatpush2.msra.mxu0 0.0
  %6378 = vmatprep.subr.mxu0 0.0
  %6379 = vmatpush2.msra.mxu0 0.0
  %6380 = vmatprep.subr.mxu0 0.0
  %6381 = vmatpush2.msra.mxu0 0.0
  %6382 = vmatprep.subr.mxu0 0.0
  %6383 = vmatpush2.msra.mxu0 0.0
  %6384 = vmatprep.subr.mxu0 0.0
  %6385 = vmatpush2.msra.mxu0 0.0
  %6386 = vmatprep.subr.mxu0 0.0
  %6387 = vmatpush2.msra.mxu0 0.0
  %6388 = vmatprep.mubr.f32.mxu0 0.0
  %6389 = vmatmul.mubr.f32.gmra.mxu0 %v6322
  %v6390 = vpop.f32.mrf.mxu0
  %v6391 = vadd.f32 0.0, %v6390
  %v6392 = vpop.f32.mrf.mxu0
  %6393 = vdwg.mxu0
  %v6394 = vadd.f32 %v6314, %v6391
  %v6395 = vld [vmem:[%s10 + $0x21] sm:$0x1]
  %v6396 = vlaneseq
  %v6397 = vshrl.u32 %v6396, 7
  %v6398 = vsub.s32 0, %v6397
  %v6399 = vrot.slane %v6395, %v6398
  %v6400 = vadd.f32 %v6394, %v6399
  %v6401 = vmax.f32 %v6400, 0.0
  %v6402 = vld [vmem:[%s9 + $0x5c0] sm:$0xff]
  %v6403 = vld [vmem:[%s9 + $0x5c8] sm:$0xff]
  %v6404 = vld [vmem:[%s9 + $0x5d0] sm:$0xff]
  %v6405 = vld [vmem:[%s9 + $0x5d8] sm:$0xff]
  %v6406 = vld [vmem:[%s10 + $0x22] sm:$0x1]
  %v6407 = vlaneseq
  %v6408 = vshrl.u32 %v6407, 7
  %v6409 = vsub.s32 0, %v6408
  %v6410 = vrot.slane %v6406, %v6409
  %v6412 = vsel %vm686, %v6401, 0
  %6414 = vmatprep.subr.mxu0 0.0
  %6415 = vmatpush1.msra.mxu0 0.0
  %6416 = vmatprep.subr.mxu0 0.0
  %6417 = vmatpush1.msra.mxu0 0.0
  %6418 = vmatprep.subr.mxu0 0.0
  %6419 = vmatpush1.msra.mxu0 0.0
  %6420 = vmatprep.subr.mxu0 0.0
  %6421 = vmatpush1.msra.mxu0 0.0
  %6422 = vmatprep.subr.mxu0 0.0
  %6423 = vmatpush1.msra.mxu0 0.0
  %6424 = vmatprep.subr.mxu0 0.0
  %6425 = vmatpush1.msra.mxu0 0.0
  %6426 = vmatprep.subr.mxu0 0.0
  %6427 = vmatpush1.msra.mxu0 0.0
  %6428 = vmatprep.subr.mxu0 0.0
  %6429 = vmatpush1.msra.mxu0 0.0
  %6430 = vmatprep.subr.mxu0 0.0
  %6431 = vmatpush1.msra.mxu0 0.0
  %6432 = vmatprep.subr.mxu0 0.0
  %6433 = vmatpush1.msra.mxu0 0.0
  %6434 = vmatprep.subr.mxu0 0.0
  %6435 = vmatpush1.msra.mxu0 0.0
  %6436 = vmatprep.subr.mxu0 0.0
  %6437 = vmatpush1.msra.mxu0 0.0
  %6438 = vmatprep.subr.mxu0 0.0
  %6439 = vmatpush1.msra.mxu0 %v6405
  %6440 = vmatprep.subr.mxu0 0.0
  %6441 = vmatpush1.msra.mxu0 %v6404
  %6442 = vmatprep.subr.mxu0 0.0
  %6443 = vmatpush1.msra.mxu0 %v6403
  %6444 = vmatprep.subr.mxu0 0.0
  %6445 = vmatpush1.msra.mxu0 %v6402
  %6446 = vmatprep.subr.mxu0 0.0
  %6447 = vmatpush2.msra.mxu0 0.0
  %6448 = vmatprep.subr.mxu0 0.0
  %6449 = vmatpush2.msra.mxu0 0.0
  %6450 = vmatprep.subr.mxu0 0.0
  %6451 = vmatpush2.msra.mxu0 0.0
  %6452 = vmatprep.subr.mxu0 0.0
  %6453 = vmatpush2.msra.mxu0 0.0
  %6454 = vmatprep.subr.mxu0 0.0
  %6455 = vmatpush2.msra.mxu0 0.0
  %6456 = vmatprep.subr.mxu0 0.0
  %6457 = vmatpush2.msra.mxu0 0.0
  %6458 = vmatprep.subr.mxu0 0.0
  %6459 = vmatpush2.msra.mxu0 0.0
  %6460 = vmatprep.subr.mxu0 0.0
  %6461 = vmatpush2.msra.mxu0 0.0
  %6462 = vmatprep.subr.mxu0 0.0
  %6463 = vmatpush2.msra.mxu0 0.0
  %6464 = vmatprep.subr.mxu0 0.0
  %6465 = vmatpush2.msra.mxu0 0.0
  %6466 = vmatprep.subr.mxu0 0.0
  %6467 = vmatpush2.msra.mxu0 0.0
  %6468 = vmatprep.subr.mxu0 0.0
  %6469 = vmatpush2.msra.mxu0 0.0
  %6470 = vmatprep.subr.mxu0 0.0
  %6471 = vmatpush2.msra.mxu0 0.0
  %6472 = vmatprep.subr.mxu0 0.0
  %6473 = vmatpush2.msra.mxu0 0.0
  %6474 = vmatprep.subr.mxu0 0.0
  %6475 = vmatpush2.msra.mxu0 0.0
  %6476 = vmatprep.subr.mxu0 0.0
  %6477 = vmatpush2.msra.mxu0 0.0
  %6478 = vmatprep.mubr.f32.mxu0 0.0
  %6479 = vmatmul.mubr.f32.gmra.mxu0 %v6412
  %v6480 = vpop.f32.mrf.mxu0
  %v6481 = vadd.f32 %v6410, %v6480
  %v6482 = vpop.f32.mrf.mxu0
  %6483 = vdwg.mxu0
  %v6484 = vmax.f32 %v6481, 0.0
  %v6485 = vld [vmem:[%s10 + $0x23] sm:$0x1]
  %v6486 = vlaneseq
  %v6487 = vshrl.u32 %v6486, 7
  %v6488 = vsub.s32 0, %v6487
  %v6489 = vrot.slane %v6485, %v6488
  %v6490 = vmul.f32 %v6484, %v6489
  %v6491 = vsel %vm3116, %v6490, 0.0
  %6492 = vadd.xlane.f32.xlu0 %v6491
  %v6493 = vpop.xlane.xlu0 %6492
  %v6494 = vadd.f32 %v6493, %v5305
  %v6496 = vunpack.c.l.s4 1966171168
  %v6497 = vunpack.c.0.s8 %v6496
  %v6498 = vlaneseq
  %v6499 = vshrl.u32 %v6498, 7
  %v6500 = vsub.s32 %v6497, %v6499
  %v6501 = vrot.slane %v515, %v6500
  %v6502 = vcombine.high %v6501, %v6501
  %v6504 = vunpack.c.l.s4 1966171168
  %v6505 = vunpack.c.0.s8 %v6504
  %v6506 = vlaneseq
  %v6507 = vshrl.u32 %v6506, 7
  %v6508 = vsub.s32 %v6505, %v6507
  %v6509 = vrot.slane %v6501, %v6508
  %v6511 = vunpack.c.l.s4 1966171168
  %v6512 = vunpack.c.0.s8 %v6511
  %v6513 = vlaneseq
  %v6514 = vshrl.u32 %v6513, 7
  %v6515 = vsub.s32 %v6512, %v6514
  %v6516 = vrot.slane %v6502, %v6515
  %v6517 = vlaneseq
  %v6518 = vshrl.u32 %v6517, 7
  %v6519 = vsub.s32 0, %v6518
  %v6520 = vrot.slane %v6509, %v6519
  %v6521 = vlaneseq
  %v6522 = vshrl.u32 %v6521, 7
  %v6523 = vsub.s32 0, %v6522
  %v6524 = vrot.slane %v6516, %v6523
  %v6527 = vmul.f32 %v6520, %v1964
  %v6528 = vmul.f32 %v6524, %v1980
  %v6529 = vsel %vm1813, %v6527, 0.0
  %6530 = vadd.xlane.f32.xlu0 %v6529
  %v6531 = vpop.xlane.xlu0 %6530
  %v6532 = vsel %vm1813, %v6528, 0.0
  %6533 = vadd.xlane.f32.xlu0 %v6532
  %v6534 = vpop.xlane.xlu0 %6533
  %v6537 = vcombine.high %v431, %v431
  %v6539 = vunpack.c.l.s4 1983009808
  %v6540 = vunpack.c.0.s8 %v6539
  %v6541 = vlaneseq
  %v6542 = vshrl.u32 %v6541, 7
  %v6543 = vsub.s32 %v6540, %v6542
  %v6544 = vrot.slane %v431, %v6543
  %v6546 = vunpack.c.l.s4 1983009808
  %v6547 = vunpack.c.0.s8 %v6546
  %v6548 = vlaneseq
  %v6549 = vshrl.u32 %v6548, 7
  %v6550 = vsub.s32 %v6547, %v6549
  %v6551 = vrot.slane %v6537, %v6550
  %v6552 = vcombine.high %v6544, %v6544
  %v6553 = vcombine.high %v6551, %v6551
  %v6555 = vunpack.c.l.s4 1983009808
  %v6556 = vunpack.c.0.s8 %v6555
  %v6557 = vlaneseq
  %v6558 = vshrl.u32 %v6557, 7
  %v6559 = vsub.s32 %v6556, %v6558
  %v6560 = vrot.slane %v436, %v6559
  %v6561 = vcombine.high %v6560, %v6560
  %v6562 = vcombine.low %v6544, %v6552
  %v6564 = vunpack.c.l.s4 1983009808
  %v6565 = vunpack.c.0.s8 %v6564
  %v6566 = vlaneseq
  %v6567 = vshrl.u32 %v6566, 7
  %v6568 = vsub.s32 %v6565, %v6567
  %v6569 = vrot.slane %v6562, %v6568
  %v6571 = vunpack.c.l.s4 1983009808
  %v6572 = vunpack.c.0.s8 %v6571
  %v6573 = vlaneseq
  %v6574 = vshrl.u32 %v6573, 7
  %v6575 = vsub.s32 %v6572, %v6574
  %v6576 = vrot.slane %v6551, %v6575
  %v6577 = vcombine.low %v6569, %v6576
  %v6578 = vcombine.low %v6553, %v6560
  %v6580 = vunpack.c.l.s4 1983009808
  %v6581 = vunpack.c.0.s8 %v6580
  %v6582 = vlaneseq
  %v6583 = vshrl.u32 %v6582, 7
  %v6584 = vsub.s32 %v6581, %v6583
  %v6585 = vrot.slane %v6578, %v6584
  %v6587 = vunpack.c.l.s4 1983009808
  %v6588 = vunpack.c.0.s8 %v6587
  %v6589 = vlaneseq
  %v6590 = vshrl.u32 %v6589, 7
  %v6591 = vsub.s32 %v6588, %v6590
  %v6592 = vrot.slane %v6561, %v6591
  %v6593 = vcombine.low %v6585, %v6592
  %v6596 = vmul.f32 %v6520, %v6577
  %v6597 = vmul.f32 %v6524, %v6593
  %v6598 = vsel %vm1813, %v6596, 0.0
  %6599 = vadd.xlane.f32.xlu0 %v6598
  %v6600 = vpop.xlane.xlu0 %6599
  %v6601 = vsel %vm1813, %v6597, 0.0
  %6602 = vadd.xlane.f32.xlu0 %v6601
  %v6603 = vpop.xlane.xlu0 %6602
  %6604 = vrot.lane.b32.xlu0 %v594, 32
  %v6605 = vpop.permute.xlu0 %6604
  %6607 = vrot.lane.b32.xlu0 %v673, 64
  %v6608 = vpop.permute.xlu0 %6607
  %6611 = vrot.lane.b32.xlu0 %v3127, 96
  %v6612 = vpop.permute.xlu0 %6611
  %v6616 = vadd.s32 %v52, 4294967264
  %v6617 = vlaneseq
  %v6618 = vshrl.u32 %v6617, 7
  %v6619 = vsub.s32 %v6616, %v6618
  %v6620 = vrot.slane %v6531, %v6619
  %v6621 = vlaneseq
  %v6622 = vshrl.u32 %v6621, 7
  %v6623 = vsub.s32 %v6616, %v6622
  %v6624 = vrot.slane %v6534, %v6623
  %v6625 = vsel %vm1208, %v6624, %v6620
  %v6629 = vadd.s32 %v52, 4294967258
  %v6630 = vlaneseq
  %v6631 = vshrl.u32 %v6630, 7
  %v6632 = vsub.s32 %v6629, %v6631
  %v6633 = vrot.slane %v6600, %v6632
  %v6634 = vlaneseq
  %v6635 = vshrl.u32 %v6634, 7
  %v6636 = vsub.s32 %v6629, %v6635
  %v6637 = vrot.slane %v6603, %v6636
  %v6638 = vsel %vm1208, %v6637, %v6633
  %6641 = vrot.lane.b32.xlu0 %v5306, 44
  %v6642 = vpop.permute.xlu0 %6641
  %6645 = vrot.lane.b32.xlu0 %v5530, 45
  %v6646 = vpop.permute.xlu0 %6645
  %6649 = vrot.lane.b32.xlu0 %v6021, 45
  %v6650 = vpop.permute.xlu0 %6649
  %6653 = vrot.lane.b32.xlu0 %v6494, 45
  %v6654 = vpop.permute.xlu0 %6653
  %v6656 = vsel %vm686, %v515, %v6605
  %vm6657 = vcmask 523264
  %v6658 = vsel %vm6657, %v6656, %v6608
  %vm6659 = vcmask 785408
  %v6660 = vsel %vm6659, %v6658, %v6612
  %v6661 = vsel %vm686, %v3138, %v6625
  %vm6662 = vcmask 310272
  %v6663 = vsel %vm6662, %v6661, %v6638
  %vm6664 = vcmask 359424
  %v6665 = vsel %vm6664, %v6663, %v6642
  %vm6666 = vcmask 367616
  %v6667 = vsel %vm6666, %v6665, %v6646
  %vm6668 = vcmask 375808
  %v6669 = vsel %vm6668, %v6667, %v6650
  %vm6670 = vcmask 384000
  %v6671 = vsel %vm6670, %v6669, %v6654
  %vm6672 = vcmask 392192
  %v6673 = vsel %vm6672, %v6671, 0.0
  %v6676 = vcombine.low %v6660, %v6673
  %v6678 = vunpack.c.l.s4 1983009808
  %v6679 = vunpack.c.0.s8 %v6678
  %v6680 = vlaneseq
  %v6681 = vshrl.u32 %v6680, 7
  %v6682 = vsub.s32 %v6679, %v6681
  %v6683 = vrot.slane %v6676, %v6682
  %6685 = vst [vmem:[%s11] sm:$0xf] %v6683
  // Predicated region
  $region46: #{rest_forward_core.1} parent=0 // pred_check
    _
  $region47: #{rest_forward_core.1} parent=0 // pred_check_branch
    %6687 = sbr.rel (0) target = $region49
  $region48: #{rest_forward_core.1} parent=0 // pred_region
    _
  $region49: #{rest_forward_core.1} parent=0 // pred_fallthru
    _
  // Predicated region
  $region50: #{rest_forward_core.1} parent=0 // pred_check
    _
  $region51: #{rest_forward_core.1} parent=0 // pred_check_branch
    %6689 = sbr.rel (0) target = $region53
  $region52: #{rest_forward_core.1} parent=0 // pred_region
    _
  $region53: #{rest_forward_core.1} parent=0 // pred_fallthru
    _

</llo_original>
